<compile_context>
chip_gen: v7x
topology: tpu7x:2x2x1
jax: 0.10.0
libtpu: 0.0.40
codegen_flags: <defaults>
</compile_context>

<pallas_src>
import numpy as np
import jax
import jax.numpy as jnp
from jax.experimental import pallas as pl
from jax.experimental.pallas import tpu as pltpu


def _round_up(x, m):
    return ((x + m - 1) // m) * m


def _default_compute_dtype():
    """bf16 elementwise/matmul math on v6e/v7x, f32 elsewhere (v5e has no
    bf16 VPU/EUP, so bf16 would be emulated there)."""
    try:
        kind = jax.devices()[0].device_kind.lower()
    except Exception:
        return jnp.float32
    if ("v6" in kind) or ("v7" in kind):
        return jnp.bfloat16
    return jnp.float32


def _make_kernel(num_hidden, compute_dtype):
    """Kernel for `num_hidden` sine layers + 1 final (bias-free) linear layer.

    All refs are in the transposed (feature, batch-lane) layout:
      x_ref    : (in_dims, tile_n)
      w_l      : (d_out_l, d_in_l)     b_l : (d_out_l, 1)
      w_last   : (out_dims, d_last)
      tanh_ref : (out_dims, tile_n)    pre_ref : (out_dims, tile_n)
    """

    def kernel(*refs):
        x_ref = refs[0]
        param_refs = refs[1:1 + 2 * num_hidden + 1]
        tanh_ref = refs[-2]
        pre_ref = refs[-1]

        h = x_ref[...].astype(compute_dtype)            # (in_dims, tile_n)
        for l in range(num_hidden):
            w = param_refs[2 * l][...].astype(compute_dtype)   # (d_out, d_in)
            b = param_refs[2 * l + 1][...]                      # (d_out, 1) f32
            z = jnp.dot(w, h, preferred_element_type=jnp.float32) + b
            # sin is the VALU-dominant op; do it in compute_dtype (bf16 on
            # v6e/v7x halves VALU element cost, f32 on v5e).
            h = jnp.sin(z.astype(compute_dtype))
        w_last = param_refs[2 * num_hidden][...].astype(compute_dtype)
        pre = jnp.dot(w_last, h, preferred_element_type=jnp.float32)
        # Full-block, lane-dense stores into two separate output arrays.
        pre_ref[...] = pre
        tanh_ref[...] = jnp.tanh(pre)

    return kernel


def brdf_mlp_forward_t(points_t, weights, biases, w_last, *,
                       tile_n=None, compute_dtype=None):
    """Batch-in-lanes forward.

    points_t:   (in_dims, N) float32   (features on sublanes, batch on lanes)
    weights[l]: (d_out_l, d_in_l)      (PyTorch (out_features, in_features))
    biases[l]:  (d_out_l, 1)
    w_last:     (out_dims, d_hidden_last), no bias.
    Returns (tanh_t, pre_t), both (out_dims, N) float32 in the same
    batch-in-lanes layout (no wrapper-side transposes)."""
    in_dims, N = points_t.shape
    out_dims = w_last.shape[0]
    num_hidden = len(weights)
    if compute_dtype is None:
        compute_dtype = jnp.float32

    # Tile selection: as large as possible (amortize ~600-cycle/step pipeline
    # overhead) but keep >= 2 grid steps whenever N allows so the "parallel"
    # grid axis can shard across v7x's two TensorCores.
    if tile_n is None:
        half = _round_up(max(1, -(-N // 2)), 128)
        tile_n = max(128, min(4096, half))
    else:
        tile_n = max(128, _round_up(int(tile_n), 128))
    N_pad = _round_up(N, tile_n)
    grid_n = N_pad // tile_n

    x_t = points_t
    if N_pad != N:
        # Only pay this HBM pass when N is not already a tile multiple.
        x_t = jnp.pad(points_t, ((0, 0), (0, N_pad - N)))

    kernel = _make_kernel(num_hidden, compute_dtype)

    # Input tiled over the lane (batch) axis; params use index-invariant
    # BlockSpecs (full blocks, not re-fetched across steps).
    in_specs = [pl.BlockSpec((in_dims, tile_n), lambda i: (0, i))]
    flat_params = []
    for l in range(num_hidden):
        w, b = weights[l], biases[l]
        in_specs.append(pl.BlockSpec(w.shape, lambda i: (0, 0)))
        in_specs.append(pl.BlockSpec(b.shape, lambda i: (0, 0)))
        flat_params.extend([w, b])
    in_specs.append(pl.BlockSpec(w_last.shape, lambda i: (0, 0)))
    flat_params.append(w_last)

    out_specs = [pl.BlockSpec((out_dims, tile_n), lambda i: (0, i)),
                 pl.BlockSpec((out_dims, tile_n), lambda i: (0, i))]
    out_shape = (jax.ShapeDtypeStruct((out_dims, N_pad), jnp.float32),
                 jax.ShapeDtypeStruct((out_dims, N_pad), jnp.float32))

    f = pl.pallas_call(
        kernel,
        out_shape=out_shape,
        grid_spec=pltpu.PrefetchScalarGridSpec(
            num_scalar_prefetch=0,
            grid=(grid_n,),
            in_specs=in_specs,
            out_specs=out_specs,
        ),
        compiler_params=pltpu.CompilerParams(
            dimension_semantics=("parallel",)),
    )
    tanh_t, pre_t = f(x_t, *flat_params)
    if N_pad != N:
        tanh_t = tanh_t[:, :N]
        pre_t = pre_t[:, :N]
    return tanh_t, pre_t


def init_brdf_mlp_params(key, in_dims, out_dims, hidden_dims,
                         first_omega=30.0):
    """Deterministic init matching BRDFMLP.__init__ (Identity embedder,
    use_siren=True, skip_connection=()).  Weights kept in PyTorch
    (out_features, in_features) layout, biases as (out_features, 1)."""
    dims = [in_dims] + list(hidden_dims) + [out_dims]
    num_layers = len(dims)
    weights, biases = [], []
    keys = jax.random.split(key, num_layers - 1)
    for l in range(num_layers - 2):  # hidden sine layers
        d_in, d_out = dims[l], dims[l + 1]
        is_first = (l == 0)  # embed_fn.n_feat_dims == 0 for Identity
        if is_first:
            bound = first_omega / d_in          # uniform(-omega/in, omega/in)
        else:
            bound = float(np.sqrt(3.0 / d_in))  # uniform(-sqrt(3/in), ...)
        w = jax.random.uniform(keys[l], (d_out, d_in), jnp.float32,
                               minval=-bound, maxval=bound)
        b = jnp.zeros((d_out, 1), jnp.float32)
        weights.append(w)
        biases.append(b)
    # last layer: uniform(-1e-5, 1e-5), no bias
    d_in, d_out = dims[-2], dims[-1]
    w_last = jax.random.uniform(keys[-1], (d_out, d_in), jnp.float32,
                                minval=-1e-5, maxval=1e-5)
    return weights, biases, w_last


def reference_forward(points, weights, biases, w_last):
    """Pure-JAX reference (row-major points, (N, out_dims) outputs)."""
    h = points
    for w, b in zip(weights, biases):
        h = jnp.sin(h @ w.T + b[:, 0])
    pre = h @ w_last.T
    return jnp.tanh(pre), pre


if __name__ == "__main__":
    key = jax.random.PRNGKey(0)
    k_pts, k_par = jax.random.split(key)

    in_dims, out_dims = 6, 3
    hidden_dims = [32, 32]
    N = 2048          # number of points; auto tile -> tile_n=1024, 2 grid steps

    points = jax.random.normal(k_pts, (N, in_dims), jnp.float32)
    weights, biases, w_last = init_brdf_mlp_params(
        k_par, in_dims, out_dims, hidden_dims)

    # Batch-in-lanes producer layout (one tiny transpose here; real consumers
    # are expected to produce / keep the (feature, batch) layout).
    points_t = jnp.transpose(points)

    # ---- f32 path (all generations), tight correctness check ----
    tanh_t, pre_t = brdf_mlp_forward_t(points_t, weights, biases, w_last,
                                       compute_dtype=jnp.float32)
    jax.block_until_ready((tanh_t, pre_t))

    ref_tanh, ref_pre = reference_forward(points, weights, biases, w_last)
    np.testing.assert_allclose(np.asarray(pre_t).T, np.asarray(ref_pre),
                               rtol=1e-5, atol=1e-6)
    np.testing.assert_allclose(np.asarray(tanh_t).T, np.asarray(ref_tanh),
                               rtol=1e-5, atol=1e-6)

    # ---- generation-appropriate compute dtype (bf16 on v6e/v7x) ----
    auto_dtype = _default_compute_dtype()
    if auto_dtype != jnp.float32:
        tanh_b, pre_b = brdf_mlp_forward_t(points_t, weights, biases, w_last,
                                           compute_dtype=auto_dtype)
        jax.block_until_ready((tanh_b, pre_b))
        # bf16 smoke check (relaxed tolerance per review).
        np.testing.assert_allclose(np.asarray(pre_b).T, np.asarray(ref_pre),
                                   rtol=2e-1, atol=1e-3)
        np.testing.assert_allclose(np.asarray(tanh_b).T, np.asarray(ref_tanh),
                                   rtol=2e-1, atol=1e-3)

    print("KERNEL_OK")
</pallas_src>

<mosaic_0001>
module attributes {stable_mosaic.version = 11 : i64} {
  func.func @kernel(%arg0: i32, %arg1: memref<6x1024xf32, #tpu.memory_space<vmem>>, %arg2: memref<32x6xf32, #tpu.memory_space<vmem>>, %arg3: memref<32x1xf32, #tpu.memory_space<vmem>>, %arg4: memref<32x32xf32, #tpu.memory_space<vmem>>, %arg5: memref<32x1xf32, #tpu.memory_space<vmem>>, %arg6: memref<3x32xf32, #tpu.memory_space<vmem>>, %arg7: memref<3x1024xf32, #tpu.memory_space<vmem>>, %arg8: memref<3x1024xf32, #tpu.memory_space<vmem>>) attributes {dimension_semantics = [#tpu.dimension_semantics<parallel>], iteration_bounds = array<i64: 2>, scalar_prefetch = 0 : i64, scratch_operands = 0 : i64, tpu.core_type = #tpu.core_type<tc>, window_params = [{transform_indices = @transform_0, window_bounds = array<i64: 6, 1024>}, {pipeline_mode = #tpu.pipeline_mode<synchronous>, transform_indices = @transform_1, window_bounds = array<i64: 32, 6>}, {pipeline_mode = #tpu.pipeline_mode<synchronous>, transform_indices = @transform_2, window_bounds = array<i64: 32, 1>}, {pipeline_mode = #tpu.pipeline_mode<synchronous>, transform_indices = @transform_3, window_bounds = array<i64: 32, 32>}, {pipeline_mode = #tpu.pipeline_mode<synchronous>, transform_indices = @transform_4, window_bounds = array<i64: 32, 1>}, {pipeline_mode = #tpu.pipeline_mode<synchronous>, transform_indices = @transform_5, window_bounds = array<i64: 3, 32>}, {transform_indices = @transform_6, window_bounds = array<i64: 3, 1024>}, {transform_indices = @transform_7, window_bounds = array<i64: 3, 1024>}]} {
    %c0 = arith.constant 0 : index
    %c0_0 = arith.constant 0 : index
    %0 = vector.load %arg1[%c0, %c0_0] : memref<6x1024xf32, #tpu.memory_space<vmem>>, vector<6x1024xf32>
    %c0_1 = arith.constant 0 : index
    %c0_2 = arith.constant 0 : index
    %1 = vector.load %arg2[%c0_1, %c0_2] : memref<32x6xf32, #tpu.memory_space<vmem>>, vector<32x6xf32>
    %c0_3 = arith.constant 0 : index
    %c0_4 = arith.constant 0 : index
    %2 = vector.load %arg3[%c0_3, %c0_4] : memref<32x1xf32, #tpu.memory_space<vmem>>, vector<32x1xf32>
    %cst = arith.constant dense<0.000000e+00> : vector<32x1024xf32>
    %3 = tpu.matmul %1, %0, %cst {dimension_numbers = #tpu.dot_dimension_numbers<[1], [0], [0], [1], [0, 0, 1, 1], [], []>} : vector<32x6xf32>, vector<6x1024xf32>, vector<32x1024xf32> -> vector<32x1024xf32>
    %4 = vector.broadcast %2 : vector<32x1xf32> to vector<32x1024xf32>
    %5 = arith.addf %3, %4 : vector<32x1024xf32>
    %6 = math.sin %5 : vector<32x1024xf32>
    %c0_5 = arith.constant 0 : index
    %c0_6 = arith.constant 0 : index
    %7 = vector.load %arg4[%c0_5, %c0_6] : memref<32x32xf32, #tpu.memory_space<vmem>>, vector<32x32xf32>
    %c0_7 = arith.constant 0 : index
    %c0_8 = arith.constant 0 : index
    %8 = vector.load %arg5[%c0_7, %c0_8] : memref<32x1xf32, #tpu.memory_space<vmem>>, vector<32x1xf32>
    %cst_9 = arith.constant dense<0.000000e+00> : vector<32x1024xf32>
    %9 = tpu.matmul %7, %6, %cst_9 {dimension_numbers = #tpu.dot_dimension_numbers<[1], [0], [0], [1], [0, 0, 1, 1], [], []>} : vector<32x32xf32>, vector<32x1024xf32>, vector<32x1024xf32> -> vector<32x1024xf32>
    %10 = vector.broadcast %8 : vector<32x1xf32> to vector<32x1024xf32>
    %11 = arith.addf %9, %10 : vector<32x1024xf32>
    %12 = math.sin %11 : vector<32x1024xf32>
    %c0_10 = arith.constant 0 : index
    %c0_11 = arith.constant 0 : index
    %13 = vector.load %arg6[%c0_10, %c0_11] : memref<3x32xf32, #tpu.memory_space<vmem>>, vector<3x32xf32>
    %cst_12 = arith.constant dense<0.000000e+00> : vector<3x1024xf32>
    %14 = tpu.matmul %13, %12, %cst_12 {dimension_numbers = #tpu.dot_dimension_numbers<[1], [0], [0], [1], [0, 0, 1, 1], [], []>} : vector<3x32xf32>, vector<32x1024xf32>, vector<3x1024xf32> -> vector<3x1024xf32>
    %c0_13 = arith.constant 0 : index
    %c0_14 = arith.constant 0 : index
    %15 = vector.load %arg8[%c0_13, %c0_14] : memref<3x1024xf32, #tpu.memory_space<vmem>>, vector<3x1024xf32>
    tpu.vector_store %arg8[%c0_13, %c0_14], %14 {strides = array<i32>} : memref<3x1024xf32, #tpu.memory_space<vmem>>, vector<3x1024xf32>,
    %16 = math.tanh %14 : vector<3x1024xf32>
    %c0_15 = arith.constant 0 : index
    %c0_16 = arith.constant 0 : index
    %17 = vector.load %arg7[%c0_15, %c0_16] : memref<3x1024xf32, #tpu.memory_space<vmem>>, vector<3x1024xf32>
    tpu.vector_store %arg7[%c0_15, %c0_16], %16 {strides = array<i32>} : memref<3x1024xf32, #tpu.memory_space<vmem>>, vector<3x1024xf32>,
    return
  }
  func.func @transform_0(%arg0: i32) -> (i32, i32) {
    %c0_i32 = arith.constant 0 : i32
    %c0_i32_0 = arith.constant 0 : i32
    return %c0_i32, %arg0 : i32, i32
  }
  func.func @transform_1(%arg0: i32) -> (i32, i32) {
    %c0_i32 = arith.constant 0 : i32
    %c0_i32_0 = arith.constant 0 : i32
    %c0_i32_1 = arith.constant 0 : i32
    return %c0_i32, %c0_i32_0 : i32, i32
  }
  func.func @transform_2(%arg0: i32) -> (i32, i32) {
    %c0_i32 = arith.constant 0 : i32
    %c0_i32_0 = arith.constant 0 : i32
    %c0_i32_1 = arith.constant 0 : i32
    return %c0_i32, %c0_i32_0 : i32, i32
  }
  func.func @transform_3(%arg0: i32) -> (i32, i32) {
    %c0_i32 = arith.constant 0 : i32
    %c0_i32_0 = arith.constant 0 : i32
    %c0_i32_1 = arith.constant 0 : i32
    return %c0_i32, %c0_i32_0 : i32, i32
  }
  func.func @transform_4(%arg0: i32) -> (i32, i32) {
    %c0_i32 = arith.constant 0 : i32
    %c0_i32_0 = arith.constant 0 : i32
    %c0_i32_1 = arith.constant 0 : i32
    return %c0_i32, %c0_i32_0 : i32, i32
  }
  func.func @transform_5(%arg0: i32) -> (i32, i32) {
    %c0_i32 = arith.constant 0 : i32
    %c0_i32_0 = arith.constant 0 : i32
    %c0_i32_1 = arith.constant 0 : i32
    return %c0_i32, %c0_i32_0 : i32, i32
  }
  func.func @transform_6(%arg0: i32) -> (i32, i32) {
    %c0_i32 = arith.constant 0 : i32
    %c0_i32_0 = arith.constant 0 : i32
    return %c0_i32, %arg0 : i32, i32
  }
  func.func @transform_7(%arg0: i32) -> (i32, i32) {
    %c0_i32 = arith.constant 0 : i32
    %c0_i32_0 = arith.constant 0 : i32
    return %c0_i32, %arg0 : i32, i32
  }
}

</mosaic_0001>

<llo_original>
// kernel: tpu_custom_call.1
$region0: #{tpu_custom_call.1}
  #allocation0 [shape = 'u32[]', space=smem, size = 0x4, offset = 0x4, fixed_abs, tag = 'smem constant byte address 0x4 - core index']
  #allocation1 [shape = 'u32[144,128]{1,0:T(1,128)}', space=vmem, size = 0x12000, scoped, tag = 'internal scratch']
  %s0 = inlined_call_operand.hbm [shape: f32[6,2048], index: 0, kind: input, shape index: {}]
  %s1 = inlined_call_operand.vmem [shape: f32[32,6], index: 1, kind: input, shape index: {}]
  %s2 = inlined_call_operand.vmem [shape: f32[32,1], index: 2, kind: input, shape index: {}]
  %s3 = inlined_call_operand.vmem [shape: f32[32,32], index: 3, kind: input, shape index: {}]
  %s4 = inlined_call_operand.vmem [shape: f32[32,1], index: 4, kind: input, shape index: {}]
  %s5 = inlined_call_operand.vmem [shape: f32[3,32], index: 5, kind: input, shape index: {}]
  %s6 = inlined_call_operand.hbm [shape: f32[3,2048], index: 6, kind: output, shape index: {0}]
  %s7 = inlined_call_operand.hbm [shape: f32[3,2048], index: 7, kind: output, shape index: {1}]
  %8 = xla_tuple %s6, %s7
  %s9 = sld [smem:[#allocation0]]
  $region69: #{tpu_custom_call.1} parent=0
    _
  %s11 = ssub.s32 1, %s9
  %s12 = scalar_select 0, %s11, %s9
  $region1: #{tpu_custom_call.1} parent=0
    #allocation2 [shape = 'u8[65536]{0}', space=vmem, size = 0x10000, scoped, tag = 'input window, operand 0']
    #allocation3 [shape = 's32[2]{0}', space=sflag, size = 0x8, scoped, tag = 'scoped memory for tpu_custom_call.1']
    #allocation4 [shape = 's32[2]{0}', space=sflag, size = 0x8, scoped, tag = 'scoped memory for tpu_custom_call.1']
    #allocation5 [shape = 'u8[32768]{0}', space=vmem, size = 0x8000, scoped, tag = 'output window, operand 0']
    #allocation6 [shape = 'u8[32768]{0}', space=vmem, size = 0x8000, scoped, tag = 'output window, operand 1']
    #allocation7 [shape = 's32[2]{0}', space=sflag, size = 0x8, scoped, tag = 'scoped memory for tpu_custom_call.1']
    %13 = vsyncpa [#allocation3], 0
    %s14 = scalar_lea.sflag [#allocation3], 1
    %15 = vsyncpa %s14, 0
    %16 = vsyncpa [#allocation4], 0
    %s17 = scalar_lea.sflag [#allocation4], 1
    %18 = vsyncpa %s17, 0
    %19 = vsyncpa [#allocation7], 0
    %s20 = scalar_lea.sflag [#allocation7], 1
    %21 = vsyncpa %s20, 0
    loop: start=0, step=1, limit=4
    $region2: #{tpu_custom_call.1} parent=1 // loop_pre_header
      _
    $region3: #{tpu_custom_call.1} parent=1 // loop_header
      %s23 = sphi 0, %s27
      %p24 = scmp.ge.s32.totalorder %s23, 4
      %s33 = sphi 0, %s35
      %s36 = sphi 0, %s33
      %s37 = sphi 0, %s36
      %s53 = sphi 0, %s37
      %s57 = sphi 0, %s57
      %s59 = sphi 0, %s57
      %s60 = sphi 0, %s59
      %s74 = sphi 0, %s60
      %s78 = sphi 0, %s78
      %s80 = sphi 0, %s78
      %s81 = sphi 0, %s80
      %s95 = sphi 0, %s81
      %s99 = sphi 0, %s99
      %s101 = sphi 0, %s99
      %s102 = sphi 0, %s101
      %s116 = sphi 0, %s102
      %s120 = sphi 0, %s120
      %s122 = sphi 0, %s120
      %s123 = sphi 0, %s122
      %s137 = sphi 0, %s123
      %s141 = sphi 0, %s141
      %s143 = sphi 0, %s141
      %s144 = sphi 0, %s143
      %s158 = sphi 0, %s144
      %s164 = sphi 0, %s166
      %s167 = sphi 0, %s164
      %s168 = sphi 0, %s167
      %s184 = sphi 0, %s168
      %s190 = sphi 0, %s192
      %s193 = sphi 0, %s190
      %s194 = sphi 0, %s193
      %s210 = sphi 0, %s194
    $region4: #{tpu_custom_call.1} parent=1 // loop_header_branch
      %26 = sbr.rel (%p24) target = $region8
    $region5: #{tpu_custom_call.1} parent=1 // loop_body
      %s28 = ssub.s32 %s23, 1
      %s29 = ssub.s32 %s23, 2
      %s30 = sadd.s32 %s23, 1
      %s31 = ssub.s32 %s23, %s30
      %p32 = scmp.eq.s32.totalorder %s31, 0
      %s34 = sadd.s32 %s33, 1
      %s35 = scalar_select %p32, %s33, %s34
      %p38 = pneg %p32
      %p39 = scmp.eq.s32.totalorder %s23, 1
      %p40 = por %p38, %p39
      %p41 = scmp.ne.s32.totalorder %s33, %s36
      %p42 = scmp.eq.s32.totalorder %s23, 0
      %p43 = por %p41, %p42
      %p44 = scmp.ne.s32.totalorder %s33, %s36
      %p45 = scmp.eq.s32.totalorder %s28, 1
      %p46 = por %p44, %p45
      %p47 = scmp.ne.s32.totalorder %s36, %s37
      %p48 = scmp.eq.s32.totalorder %s28, 0
      %p49 = por %p47, %p48
      %p50 = scmp.ne.s32.totalorder %s36, %s37
      %p51 = scmp.eq.s32.totalorder %s29, 1
      %p52 = por %p50, %p51
      %p54 = scmp.ne.s32.totalorder %s37, %s53
      %p55 = scmp.eq.s32.totalorder %s29, 0
      %p56 = por %p54, %p55
      %s58 = sadd.s32 %s57, 1
      %p61 = scmp.eq.s32.totalorder %s23, 1
      %p62 = scmp.ne.s32.totalorder %s57, %s59
      %p63 = scmp.eq.s32.totalorder %s23, 0
      %p64 = por %p62, %p63
      %p65 = scmp.ne.s32.totalorder %s57, %s59
      %p66 = scmp.eq.s32.totalorder %s28, 1
      %p67 = por %p65, %p66
      %p68 = scmp.ne.s32.totalorder %s59, %s60
      %p69 = scmp.eq.s32.totalorder %s28, 0
      %p70 = por %p68, %p69
      %p71 = scmp.ne.s32.totalorder %s59, %s60
      %p72 = scmp.eq.s32.totalorder %s29, 1
      %p73 = por %p71, %p72
      %p75 = scmp.ne.s32.totalorder %s60, %s74
      %p76 = scmp.eq.s32.totalorder %s29, 0
      %p77 = por %p75, %p76
      %s79 = sadd.s32 %s78, 1
      %p82 = scmp.eq.s32.totalorder %s23, 1
      %p83 = scmp.ne.s32.totalorder %s78, %s80
      %p84 = scmp.eq.s32.totalorder %s23, 0
      %p85 = por %p83, %p84
      %p86 = scmp.ne.s32.totalorder %s78, %s80
      %p87 = scmp.eq.s32.totalorder %s28, 1
      %p88 = por %p86, %p87
      %p89 = scmp.ne.s32.totalorder %s80, %s81
      %p90 = scmp.eq.s32.totalorder %s28, 0
      %p91 = por %p89, %p90
      %p92 = scmp.ne.s32.totalorder %s80, %s81
      %p93 = scmp.eq.s32.totalorder %s29, 1
      %p94 = por %p92, %p93
      %p96 = scmp.ne.s32.totalorder %s81, %s95
      %p97 = scmp.eq.s32.totalorder %s29, 0
      %p98 = por %p96, %p97
      %s100 = sadd.s32 %s99, 1
      %p103 = scmp.eq.s32.totalorder %s23, 1
      %p104 = scmp.ne.s32.totalorder %s99, %s101
      %p105 = scmp.eq.s32.totalorder %s23, 0
      %p106 = por %p104, %p105
      %p107 = scmp.ne.s32.totalorder %s99, %s101
      %p108 = scmp.eq.s32.totalorder %s28, 1
      %p109 = por %p107, %p108
      %p110 = scmp.ne.s32.totalorder %s101, %s102
      %p111 = scmp.eq.s32.totalorder %s28, 0
      %p112 = por %p110, %p111
      %p113 = scmp.ne.s32.totalorder %s101, %s102
      %p114 = scmp.eq.s32.totalorder %s29, 1
      %p115 = por %p113, %p114
      %p117 = scmp.ne.s32.totalorder %s102, %s116
      %p118 = scmp.eq.s32.totalorder %s29, 0
      %p119 = por %p117, %p118
      %s121 = sadd.s32 %s120, 1
      %p124 = scmp.eq.s32.totalorder %s23, 1
      %p125 = scmp.ne.s32.totalorder %s120, %s122
      %p126 = scmp.eq.s32.totalorder %s23, 0
      %p127 = por %p125, %p126
      %p128 = scmp.ne.s32.totalorder %s120, %s122
      %p129 = scmp.eq.s32.totalorder %s28, 1
      %p130 = por %p128, %p129
      %p131 = scmp.ne.s32.totalorder %s122, %s123
      %p132 = scmp.eq.s32.totalorder %s28, 0
      %p133 = por %p131, %p132
      %p134 = scmp.ne.s32.totalorder %s122, %s123
      %p135 = scmp.eq.s32.totalorder %s29, 1
      %p136 = por %p134, %p135
      %p138 = scmp.ne.s32.totalorder %s123, %s137
      %p139 = scmp.eq.s32.totalorder %s29, 0
      %p140 = por %p138, %p139
      %s142 = sadd.s32 %s141, 1
      %p145 = scmp.eq.s32.totalorder %s23, 1
      %p146 = scmp.ne.s32.totalorder %s141, %s143
      %p147 = scmp.eq.s32.totalorder %s23, 0
      %p148 = por %p146, %p147
      %p149 = scmp.ne.s32.totalorder %s141, %s143
      %p150 = scmp.eq.s32.totalorder %s28, 1
      %p151 = por %p149, %p150
      %p152 = scmp.ne.s32.totalorder %s143, %s144
      %p153 = scmp.eq.s32.totalorder %s28, 0
      %p154 = por %p152, %p153
      %p155 = scmp.ne.s32.totalorder %s143, %s144
      %p156 = scmp.eq.s32.totalorder %s29, 1
      %p157 = por %p155, %p156
      %p159 = scmp.ne.s32.totalorder %s144, %s158
      %p160 = scmp.eq.s32.totalorder %s29, 0
      %p161 = por %p159, %p160
      %s162 = ssub.s32 %s23, %s30
      %p163 = scmp.eq.s32.totalorder %s162, 0
      %s165 = sadd.s32 %s164, 1
      %s166 = scalar_select %p163, %s164, %s165
      %p169 = pneg %p163
      %p170 = scmp.eq.s32.totalorder %s23, 1
      %p171 = por %p169, %p170
      %p172 = scmp.ne.s32.totalorder %s164, %s167
      %p173 = scmp.eq.s32.totalorder %s23, 0
      %p174 = por %p172, %p173
      %p175 = scmp.ne.s32.totalorder %s164, %s167
      %p176 = scmp.eq.s32.totalorder %s28, 1
      %p177 = por %p175, %p176
      %p178 = scmp.ne.s32.totalorder %s167, %s168
      %p179 = scmp.eq.s32.totalorder %s28, 0
      %p180 = por %p178, %p179
      %p181 = scmp.ne.s32.totalorder %s167, %s168
      %p182 = scmp.eq.s32.totalorder %s29, 1
      %p183 = por %p181, %p182
      %p185 = scmp.ne.s32.totalorder %s168, %s184
      %p186 = scmp.eq.s32.totalorder %s29, 0
      %p187 = por %p185, %p186
      %s188 = ssub.s32 %s23, %s30
      %p189 = scmp.eq.s32.totalorder %s188, 0
      %s191 = sadd.s32 %s190, 1
      %s192 = scalar_select %p189, %s190, %s191
      %p195 = pneg %p189
      %p196 = scmp.eq.s32.totalorder %s23, 1
      %p197 = por %p195, %p196
      %p198 = scmp.ne.s32.totalorder %s190, %s193
      %p199 = scmp.eq.s32.totalorder %s23, 0
      %p200 = por %p198, %p199
      %p201 = scmp.ne.s32.totalorder %s190, %s193
      %p202 = scmp.eq.s32.totalorder %s28, 1
      %p203 = por %p201, %p202
      %p204 = scmp.ne.s32.totalorder %s193, %s194
      %p205 = scmp.eq.s32.totalorder %s28, 0
      %p206 = por %p204, %p205
      %p207 = scmp.ne.s32.totalorder %s193, %s194
      %p208 = scmp.eq.s32.totalorder %s29, 1
      %p209 = por %p207, %p208
      %p211 = scmp.ne.s32.totalorder %s194, %s210
      %p212 = scmp.eq.s32.totalorder %s29, 0
      %p213 = por %p211, %p212
      %p214 = scmp.le.s32.totalorder 1, %s23
      %p215 = scmp.lt.s32.totalorder %s23, 3
      %p216 = pnand %p214, %p215
      %p217 = pneg %p216
      // Predicated region
      $region9: #{tpu_custom_call.1} parent=5 // pred_check
        _
      $region10: #{tpu_custom_call.1} parent=5 // pred_check_branch
        %219 = sbr.rel (%p216) target = $region12
      $region11: #{tpu_custom_call.1} parent=5 // pred_region
        %s220 = ssub.s32 %s23, 1
        // Predicated region
        $region13: #{tpu_custom_call.1} parent=11 // pred_check
          %p221 = pneg %p70
        $region14: #{tpu_custom_call.1} parent=11 // pred_check_branch
          %223 = sbr.rel (%p221) target = $region16
        $region15: #{tpu_custom_call.1} parent=11 // pred_region
          _
        $region16: #{tpu_custom_call.1} parent=11 // pred_fallthru
          _
        // Predicated region
        $region17: #{tpu_custom_call.1} parent=11 // pred_check
          %p224 = pneg %p91
        $region18: #{tpu_custom_call.1} parent=11 // pred_check_branch
          %226 = sbr.rel (%p224) target = $region20
        $region19: #{tpu_custom_call.1} parent=11 // pred_region
          _
        $region20: #{tpu_custom_call.1} parent=11 // pred_fallthru
          _
        // Predicated region
        $region21: #{tpu_custom_call.1} parent=11 // pred_check
          %p227 = pneg %p112
        $region22: #{tpu_custom_call.1} parent=11 // pred_check_branch
          %229 = sbr.rel (%p227) target = $region24
        $region23: #{tpu_custom_call.1} parent=11 // pred_region
          _
        $region24: #{tpu_custom_call.1} parent=11 // pred_fallthru
          _
        // Predicated region
        $region25: #{tpu_custom_call.1} parent=11 // pred_check
          %p230 = pneg %p133
        $region26: #{tpu_custom_call.1} parent=11 // pred_check_branch
          %232 = sbr.rel (%p230) target = $region28
        $region27: #{tpu_custom_call.1} parent=11 // pred_region
          _
        $region28: #{tpu_custom_call.1} parent=11 // pred_fallthru
          _
        // Predicated region
        $region29: #{tpu_custom_call.1} parent=11 // pred_check
          %p233 = pneg %p154
        $region30: #{tpu_custom_call.1} parent=11 // pred_check_branch
          %235 = sbr.rel (%p233) target = $region32
        $region31: #{tpu_custom_call.1} parent=11 // pred_region
          _
        $region32: #{tpu_custom_call.1} parent=11 // pred_fallthru
          _
      $region12: #{tpu_custom_call.1} parent=5 // pred_fallthru
        _
      %p236 = scmp.lt.s32.totalorder %s23, 2
      // Predicated region
      $region33: #{tpu_custom_call.1} parent=5 // pred_check
        %p237 = pneg %p236
      $region34: #{tpu_custom_call.1} parent=5 // pred_check_branch
        %239 = sbr.rel (%p237) target = $region36
      $region35: #{tpu_custom_call.1} parent=5 // pred_region
        // Predicated region
        $region37: #{tpu_custom_call.1} parent=35 // pred_check
          %p240 = pneg %p43
        $region38: #{tpu_custom_call.1} parent=35 // pred_check_branch
          %242 = sbr.rel (%p240) target = $region40
        $region39: #{tpu_custom_call.1} parent=35 // pred_region
          %s243 = sand.u32 %s33, 1
          %s244 = scalar_lea.sflag [#allocation3], %s243
          %s245 = sand.u32 %s33, 1
          %s246 = smul.addr %s245, 64
          %s247 = scalar_lea.vmem [#allocation2], %s246
          %s248 = smul.u32 8, %s23
          %s250 = ssub.s32 1024, 1024
          %251 = vsyncadd %s244, %s250
          %s252 = smul.addr %s248, 128
          %s253 = scalar_lea.hbm %s0, %s252
          %s255 = sshll.u32 %s247, 4
          %s256 = int_to_ptr.vmem [resolvable:$true] %s255
          %258 = dma.hbm_to_vmem [thread:$0]  %s253, 1024, %s256, %s244
        $region40: #{tpu_custom_call.1} parent=35 // pred_fallthru
          _
      $region36: #{tpu_custom_call.1} parent=5 // pred_fallthru
        _
      %p259 = scmp.le.s32.totalorder 1, %s23
      %p260 = scmp.lt.s32.totalorder %s23, 3
      %p261 = pnand %p259, %p260
      %p262 = pneg %p261
      // Predicated region
      $region41: #{tpu_custom_call.1} parent=5 // pred_check
        _
      $region42: #{tpu_custom_call.1} parent=5 // pred_check_branch
        %264 = sbr.rel (%p261) target = $region44
      $region43: #{tpu_custom_call.1} parent=5 // pred_region
        %s265 = ssub.s32 %s23, 1
        %s266 = sand.u32 %s36, 1
        %s267 = scalar_lea.sflag [#allocation3], %s266
        %s268 = sand.u32 %s36, 1
        %s269 = smul.addr %s268, 64
        %s270 = scalar_lea.vmem [#allocation2], %s269
        // Predicated region
        $region45: #{tpu_custom_call.1} parent=43 // pred_check
          %p271 = pneg %p49
        $region46: #{tpu_custom_call.1} parent=43 // pred_check_branch
          %273 = sbr.rel (%p271) target = $region48
        $region47: #{tpu_custom_call.1} parent=43 // pred_region
          %274 = dma.done %s267, 1024
        $region48: #{tpu_custom_call.1} parent=43 // pred_fallthru
          _
        %s275 = sand.u32 %s36, 1
        %s276 = scalar_lea.sflag [#allocation3], %s275
        %s277 = sand.u32 %s36, 1
        %s278 = smul.addr %s277, 64
        %s279 = scalar_lea.vmem [#allocation2], %s278
        %p280 = pneg %p49
        %p281 = pneg %p46
        %p282 = pneg %p70
        %p283 = pneg %p67
        %p284 = pneg %p91
        %p285 = pneg %p88
        %p286 = pneg %p112
        %p287 = pneg %p109
        %p288 = pneg %p133
        %p289 = pneg %p130
        %p290 = pneg %p154
        %p291 = pneg %p151
        %p292 = pneg %p180
        %p293 = pneg %p177
        %s294 = sand.u32 %s167, 1
        %s295 = scalar_lea.sflag [#allocation4], %s294
        %s296 = sand.u32 %s167, 1
        %s297 = smul.addr %s296, 32
        %s298 = scalar_lea.vmem [#allocation5], %s297
        %p299 = pneg %p206
        %p300 = pneg %p203
        %s301 = sand.u32 %s193, 1
        %s302 = scalar_lea.sflag [#allocation7], %s301
        %s303 = sand.u32 %s193, 1
        %s304 = smul.addr %s303, 32
        %s305 = scalar_lea.vmem [#allocation6], %s304
        %s306 = smul.u32 8, %s28
        %s307 = smul.u32 8, %s28
        %s308 = smul.u32 8, %s28
        %v309 = vld [vmem:[%s270] sm:$0x3f]
        %v310 = vld [vmem:[%s270 + $0x8] sm:$0x3f]
        %v311 = vld [vmem:[%s270 + $0x10] sm:$0x3f]
        %v312 = vld [vmem:[%s270 + $0x18] sm:$0x3f]
        %v313 = vld [vmem:[%s270 + $0x20] sm:$0x3f]
        %v314 = vld [vmem:[%s270 + $0x28] sm:$0x3f]
        %v315 = vld [vmem:[%s270 + $0x30] sm:$0x3f]
        %v316 = vld [vmem:[%s270 + $0x38] sm:$0x3f]
        %v317 = vld [vmem:[%s1] sm:$0xff]
        %v318 = vld [vmem:[%s1 + $0x8] sm:$0xff]
        %v319 = vld [vmem:[%s1 + $0x10] sm:$0xff]
        %v320 = vld [vmem:[%s1 + $0x18] sm:$0xff]
        %v321 = vld [vmem:[%s2] sm:$0xff]
        %v322 = vld [vmem:[%s2 + $0x8] sm:$0xff]
        %v323 = vld [vmem:[%s2 + $0x10] sm:$0xff]
        %v324 = vld [vmem:[%s2 + $0x18] sm:$0xff]
        %326 = vset.pattern.permute.xlu0 0
        %327 = vperm.xlu0 %326, %v321
        %v328 = vpop.permute.xlu0 %327
        %331 = vset.pattern.permute.xlu0 0
        %332 = vperm.xlu0 %331, %v322
        %v333 = vpop.permute.xlu0 %332
        %336 = vset.pattern.permute.xlu0 0
        %337 = vperm.xlu0 %336, %v323
        %v338 = vpop.permute.xlu0 %337
        %341 = vset.pattern.permute.xlu0 0
        %342 = vperm.xlu0 %341, %v324
        %v343 = vpop.permute.xlu0 %342
        %vm345 = vcmask 48128
        %v347 = vsel %vm345, %v317, 0
        %v350 = vsel %vm345, %v318, 0
        %v353 = vsel %vm345, %v319, 0
        %v356 = vsel %vm345, %v320, 0
        %vm358 = vcmask 1045504
        %v360 = vsel %vm358, %v309, 0
        %v363 = vsel %vm358, %v310, 0
        %v366 = vsel %vm358, %v311, 0
        %v369 = vsel %vm358, %v312, 0
        %v372 = vsel %vm358, %v313, 0
        %v375 = vsel %vm358, %v314, 0
        %v378 = vsel %vm358, %v315, 0
        %v381 = vsel %vm358, %v316, 0
        %383 = vmatprep.subr.mxu0 %v363
        %384 = vmatpush1.msra.mxu0 %v360
        %385 = vmatprep.subr.mxu0 0.0
        %386 = vmatpush1.msra.mxu0 0.0
        %387 = vmatprep.subr.mxu0 0.0
        %388 = vmatpush1.msra.mxu0 0.0
        %389 = vmatprep.subr.mxu0 0.0
        %390 = vmatpush1.msra.mxu0 0.0
        %391 = vmatprep.subr.mxu0 0.0
        %392 = vmatpush1.msra.mxu0 0.0
        %393 = vmatprep.subr.mxu0 0.0
        %394 = vmatpush1.msra.mxu0 0.0
        %395 = vmatprep.subr.mxu0 0.0
        %396 = vmatpush1.msra.mxu0 0.0
        %397 = vmatprep.subr.mxu0 0.0
        %398 = vmatpush1.msra.mxu0 0.0
        %399 = vmatprep.subr.mxu0 0.0
        %400 = vmatpush1.msra.mxu0 0.0
        %401 = vmatprep.subr.mxu0 0.0
        %402 = vmatpush1.msra.mxu0 0.0
        %403 = vmatprep.subr.mxu0 0.0
        %404 = vmatpush1.msra.mxu0 0.0
        %405 = vmatprep.subr.mxu0 0.0
        %406 = vmatpush1.msra.mxu0 0.0
        %407 = vmatprep.subr.mxu0 0.0
        %408 = vmatpush1.msra.mxu0 0.0
        %409 = vmatprep.subr.mxu0 0.0
        %410 = vmatpush1.msra.mxu0 0.0
        %411 = vmatprep.subr.mxu0 0.0
        %412 = vmatpush1.msra.mxu0 0.0
        %413 = vmatprep.subr.mxu0 0.0
        %414 = vmatpush1.msra.mxu0 0.0
        %415 = vmatprep.subr.mxu0 0.0
        %416 = vmatpush1.msra.mxu0 0.0
        %417 = vmatprep.subr.mxu0 0.0
        %418 = vmatpush1.msra.mxu0 0.0
        %419 = vmatprep.subr.mxu0 0.0
        %420 = vmatpush1.msra.mxu0 0.0
        %421 = vmatprep.subr.mxu0 0.0
        %422 = vmatpush1.msra.mxu0 0.0
        %423 = vmatprep.subr.mxu0 0.0
        %424 = vmatpush1.msra.mxu0 0.0
        %425 = vmatprep.subr.mxu0 0.0
        %426 = vmatpush1.msra.mxu0 0.0
        %427 = vmatprep.subr.mxu0 0.0
        %428 = vmatpush1.msra.mxu0 0.0
        %429 = vmatprep.subr.mxu0 0.0
        %430 = vmatpush1.msra.mxu0 0.0
        %431 = vmatprep.subr.mxu0 0.0
        %432 = vmatpush1.msra.mxu0 0.0
        %433 = vmatprep.subr.mxu0 0.0
        %434 = vmatpush1.msra.mxu0 0.0
        %435 = vmatprep.subr.mxu0 0.0
        %436 = vmatpush1.msra.mxu0 0.0
        %437 = vmatprep.subr.mxu0 0.0
        %438 = vmatpush1.msra.mxu0 0.0
        %439 = vmatprep.subr.mxu0 0.0
        %440 = vmatpush1.msra.mxu0 0.0
        %441 = vmatprep.subr.mxu0 0.0
        %442 = vmatpush1.msra.mxu0 0.0
        %443 = vmatprep.subr.mxu0 0.0
        %444 = vmatpush1.msra.mxu0 0.0
        %445 = vmatprep.subr.mxu0 0.0
        %446 = vmatpush1.msra.mxu0 0.0
        %447 = vmatprep.mubr.f32.mxu0 0.0
        %448 = vmatmul.mubr.f32.gmra.mrb[0].mxu0 %v347
        %v449 = vpop.f32.mrb[0].mxu0
        %v450 = vadd.f32 %v328, %v449
        %v451 = vpop.f32.mrb[0].mxu0
        %v452 = vadd.f32 %v328, %v451
        %453 = vmatprep.mubr.f32.mxu0 0.0
        %454 = vmatmul.mubr.f32.gmra.mrb[0].mxu0 %v350
        %v455 = vpop.f32.mrb[0].mxu0
        %v456 = vadd.f32 %v333, %v455
        %v457 = vpop.f32.mrb[0].mxu0
        %v458 = vadd.f32 %v333, %v457
        %459 = vmatprep.mubr.f32.mxu0 0.0
        %460 = vmatmul.mubr.f32.gmra.mrb[0].mxu0 %v353
        %v461 = vpop.f32.mrb[0].mxu0
        %v462 = vadd.f32 %v338, %v461
        %v463 = vpop.f32.mrb[0].mxu0
        %v464 = vadd.f32 %v338, %v463
        %465 = vmatprep.mubr.f32.mxu0 0.0
        %466 = vmatmul.mubr.f32.gmra.mrb[0].mxu0 %v356
        %v467 = vpop.f32.mrb[0].mxu0
        %v468 = vadd.f32 %v343, %v467
        %v469 = vpop.f32.mrb[0].mxu0
        %v470 = vadd.f32 %v343, %v469
        %471 = vdwg.mxu0
        %472 = vmatprep.subr.mxu0 %v369
        %473 = vmatpush1.msra.mxu0 %v366
        %474 = vmatprep.subr.mxu0 0.0
        %475 = vmatpush1.msra.mxu0 0.0
        %476 = vmatprep.subr.mxu0 0.0
        %477 = vmatpush1.msra.mxu0 0.0
        %478 = vmatprep.subr.mxu0 0.0
        %479 = vmatpush1.msra.mxu0 0.0
        %480 = vmatprep.subr.mxu0 0.0
        %481 = vmatpush1.msra.mxu0 0.0
        %482 = vmatprep.subr.mxu0 0.0
        %483 = vmatpush1.msra.mxu0 0.0
        %484 = vmatprep.subr.mxu0 0.0
        %485 = vmatpush1.msra.mxu0 0.0
        %486 = vmatprep.subr.mxu0 0.0
        %487 = vmatpush1.msra.mxu0 0.0
        %488 = vmatprep.subr.mxu0 0.0
        %489 = vmatpush1.msra.mxu0 0.0
        %490 = vmatprep.subr.mxu0 0.0
        %491 = vmatpush1.msra.mxu0 0.0
        %492 = vmatprep.subr.mxu0 0.0
        %493 = vmatpush1.msra.mxu0 0.0
        %494 = vmatprep.subr.mxu0 0.0
        %495 = vmatpush1.msra.mxu0 0.0
        %496 = vmatprep.subr.mxu0 0.0
        %497 = vmatpush1.msra.mxu0 0.0
        %498 = vmatprep.subr.mxu0 0.0
        %499 = vmatpush1.msra.mxu0 0.0
        %500 = vmatprep.subr.mxu0 0.0
        %501 = vmatpush1.msra.mxu0 0.0
        %502 = vmatprep.subr.mxu0 0.0
        %503 = vmatpush1.msra.mxu0 0.0
        %504 = vmatprep.subr.mxu0 0.0
        %505 = vmatpush1.msra.mxu0 0.0
        %506 = vmatprep.subr.mxu0 0.0
        %507 = vmatpush1.msra.mxu0 0.0
        %508 = vmatprep.subr.mxu0 0.0
        %509 = vmatpush1.msra.mxu0 0.0
        %510 = vmatprep.subr.mxu0 0.0
        %511 = vmatpush1.msra.mxu0 0.0
        %512 = vmatprep.subr.mxu0 0.0
        %513 = vmatpush1.msra.mxu0 0.0
        %514 = vmatprep.subr.mxu0 0.0
        %515 = vmatpush1.msra.mxu0 0.0
        %516 = vmatprep.subr.mxu0 0.0
        %517 = vmatpush1.msra.mxu0 0.0
        %518 = vmatprep.subr.mxu0 0.0
        %519 = vmatpush1.msra.mxu0 0.0
        %520 = vmatprep.subr.mxu0 0.0
        %521 = vmatpush1.msra.mxu0 0.0
        %522 = vmatprep.subr.mxu0 0.0
        %523 = vmatpush1.msra.mxu0 0.0
        %524 = vmatprep.subr.mxu0 0.0
        %525 = vmatpush1.msra.mxu0 0.0
        %526 = vmatprep.subr.mxu0 0.0
        %527 = vmatpush1.msra.mxu0 0.0
        %528 = vmatprep.subr.mxu0 0.0
        %529 = vmatpush1.msra.mxu0 0.0
        %530 = vmatprep.subr.mxu0 0.0
        %531 = vmatpush1.msra.mxu0 0.0
        %532 = vmatprep.subr.mxu0 0.0
        %533 = vmatpush1.msra.mxu0 0.0
        %534 = vmatprep.subr.mxu0 0.0
        %535 = vmatpush1.msra.mxu0 0.0
        %536 = vmatprep.mubr.f32.mxu0 0.0
        %537 = vmatmul.mubr.f32.gmra.mrb[0].mxu0 %v347
        %v538 = vpop.f32.mrb[0].mxu0
        %v539 = vadd.f32 %v328, %v538
        %v540 = vpop.f32.mrb[0].mxu0
        %v541 = vadd.f32 %v328, %v540
        %542 = vmatprep.mubr.f32.mxu0 0.0
        %543 = vmatmul.mubr.f32.gmra.mrb[0].mxu0 %v350
        %v544 = vpop.f32.mrb[0].mxu0
        %v545 = vadd.f32 %v333, %v544
        %v546 = vpop.f32.mrb[0].mxu0
        %v547 = vadd.f32 %v333, %v546
        %548 = vmatprep.mubr.f32.mxu0 0.0
        %549 = vmatmul.mubr.f32.gmra.mrb[0].mxu0 %v353
        %v550 = vpop.f32.mrb[0].mxu0
        %v551 = vadd.f32 %v338, %v550
        %v552 = vpop.f32.mrb[0].mxu0
        %v553 = vadd.f32 %v338, %v552
        %554 = vmatprep.mubr.f32.mxu0 0.0
        %555 = vmatmul.mubr.f32.gmra.mrb[0].mxu0 %v356
        %v556 = vpop.f32.mrb[0].mxu0
        %v557 = vadd.f32 %v343, %v556
        %v558 = vpop.f32.mrb[0].mxu0
        %v559 = vadd.f32 %v343, %v558
        %560 = vdwg.mxu0
        %561 = vmatprep.subr.mxu0 %v375
        %562 = vmatpush1.msra.mxu0 %v372
        %563 = vmatprep.subr.mxu0 0.0
        %564 = vmatpush1.msra.mxu0 0.0
        %565 = vmatprep.subr.mxu0 0.0
        %566 = vmatpush1.msra.mxu0 0.0
        %567 = vmatprep.subr.mxu0 0.0
        %568 = vmatpush1.msra.mxu0 0.0
        %569 = vmatprep.subr.mxu0 0.0
        %570 = vmatpush1.msra.mxu0 0.0
        %571 = vmatprep.subr.mxu0 0.0
        %572 = vmatpush1.msra.mxu0 0.0
        %573 = vmatprep.subr.mxu0 0.0
        %574 = vmatpush1.msra.mxu0 0.0
        %575 = vmatprep.subr.mxu0 0.0
        %576 = vmatpush1.msra.mxu0 0.0
        %577 = vmatprep.subr.mxu0 0.0
        %578 = vmatpush1.msra.mxu0 0.0
        %579 = vmatprep.subr.mxu0 0.0
        %580 = vmatpush1.msra.mxu0 0.0
        %581 = vmatprep.subr.mxu0 0.0
        %582 = vmatpush1.msra.mxu0 0.0
        %583 = vmatprep.subr.mxu0 0.0
        %584 = vmatpush1.msra.mxu0 0.0
        %585 = vmatprep.subr.mxu0 0.0
        %586 = vmatpush1.msra.mxu0 0.0
        %587 = vmatprep.subr.mxu0 0.0
        %588 = vmatpush1.msra.mxu0 0.0
        %589 = vmatprep.subr.mxu0 0.0
        %590 = vmatpush1.msra.mxu0 0.0
        %591 = vmatprep.subr.mxu0 0.0
        %592 = vmatpush1.msra.mxu0 0.0
        %593 = vmatprep.subr.mxu0 0.0
        %594 = vmatpush1.msra.mxu0 0.0
        %595 = vmatprep.subr.mxu0 0.0
        %596 = vmatpush1.msra.mxu0 0.0
        %597 = vmatprep.subr.mxu0 0.0
        %598 = vmatpush1.msra.mxu0 0.0
        %599 = vmatprep.subr.mxu0 0.0
        %600 = vmatpush1.msra.mxu0 0.0
        %601 = vmatprep.subr.mxu0 0.0
        %602 = vmatpush1.msra.mxu0 0.0
        %603 = vmatprep.subr.mxu0 0.0
        %604 = vmatpush1.msra.mxu0 0.0
        %605 = vmatprep.subr.mxu0 0.0
        %606 = vmatpush1.msra.mxu0 0.0
        %607 = vmatprep.subr.mxu0 0.0
        %608 = vmatpush1.msra.mxu0 0.0
        %609 = vmatprep.subr.mxu0 0.0
        %610 = vmatpush1.msra.mxu0 0.0
        %611 = vmatprep.subr.mxu0 0.0
        %612 = vmatpush1.msra.mxu0 0.0
        %613 = vmatprep.subr.mxu0 0.0
        %614 = vmatpush1.msra.mxu0 0.0
        %615 = vmatprep.subr.mxu0 0.0
        %616 = vmatpush1.msra.mxu0 0.0
        %617 = vmatprep.subr.mxu0 0.0
        %618 = vmatpush1.msra.mxu0 0.0
        %619 = vmatprep.subr.mxu0 0.0
        %620 = vmatpush1.msra.mxu0 0.0
        %621 = vmatprep.subr.mxu0 0.0
        %622 = vmatpush1.msra.mxu0 0.0
        %623 = vmatprep.subr.mxu0 0.0
        %624 = vmatpush1.msra.mxu0 0.0
        %625 = vmatprep.mubr.f32.mxu0 0.0
        %626 = vmatmul.mubr.f32.gmra.mrb[0].mxu0 %v347
        %v627 = vpop.f32.mrb[0].mxu0
        %v628 = vadd.f32 %v328, %v627
        %v629 = vpop.f32.mrb[0].mxu0
        %v630 = vadd.f32 %v328, %v629
        %631 = vmatprep.mubr.f32.mxu0 0.0
        %632 = vmatmul.mubr.f32.gmra.mrb[0].mxu0 %v350
        %v633 = vpop.f32.mrb[0].mxu0
        %v634 = vadd.f32 %v333, %v633
        %v635 = vpop.f32.mrb[0].mxu0
        %v636 = vadd.f32 %v333, %v635
        %637 = vmatprep.mubr.f32.mxu0 0.0
        %638 = vmatmul.mubr.f32.gmra.mrb[0].mxu0 %v353
        %v639 = vpop.f32.mrb[0].mxu0
        %v640 = vadd.f32 %v338, %v639
        %v641 = vpop.f32.mrb[0].mxu0
        %v642 = vadd.f32 %v338, %v641
        %643 = vmatprep.mubr.f32.mxu0 0.0
        %644 = vmatmul.mubr.f32.gmra.mrb[0].mxu0 %v356
        %v645 = vpop.f32.mrb[0].mxu0
        %v646 = vadd.f32 %v343, %v645
        %v647 = vpop.f32.mrb[0].mxu0
        %v648 = vadd.f32 %v343, %v647
        %649 = vdwg.mxu0
        %650 = vmatprep.subr.mxu0 %v381
        %651 = vmatpush1.msra.mxu0 %v378
        %652 = vmatprep.subr.mxu0 0.0
        %653 = vmatpush1.msra.mxu0 0.0
        %654 = vmatprep.subr.mxu0 0.0
        %655 = vmatpush1.msra.mxu0 0.0
        %656 = vmatprep.subr.mxu0 0.0
        %657 = vmatpush1.msra.mxu0 0.0
        %658 = vmatprep.subr.mxu0 0.0
        %659 = vmatpush1.msra.mxu0 0.0
        %660 = vmatprep.subr.mxu0 0.0
        %661 = vmatpush1.msra.mxu0 0.0
        %662 = vmatprep.subr.mxu0 0.0
        %663 = vmatpush1.msra.mxu0 0.0
        %664 = vmatprep.subr.mxu0 0.0
        %665 = vmatpush1.msra.mxu0 0.0
        %666 = vmatprep.subr.mxu0 0.0
        %667 = vmatpush1.msra.mxu0 0.0
        %668 = vmatprep.subr.mxu0 0.0
        %669 = vmatpush1.msra.mxu0 0.0
        %670 = vmatprep.subr.mxu0 0.0
        %671 = vmatpush1.msra.mxu0 0.0
        %672 = vmatprep.subr.mxu0 0.0
        %673 = vmatpush1.msra.mxu0 0.0
        %674 = vmatprep.subr.mxu0 0.0
        %675 = vmatpush1.msra.mxu0 0.0
        %676 = vmatprep.subr.mxu0 0.0
        %677 = vmatpush1.msra.mxu0 0.0
        %678 = vmatprep.subr.mxu0 0.0
        %679 = vmatpush1.msra.mxu0 0.0
        %680 = vmatprep.subr.mxu0 0.0
        %681 = vmatpush1.msra.mxu0 0.0
        %682 = vmatprep.subr.mxu0 0.0
        %683 = vmatpush1.msra.mxu0 0.0
        %684 = vmatprep.subr.mxu0 0.0
        %685 = vmatpush1.msra.mxu0 0.0
        %686 = vmatprep.subr.mxu0 0.0
        %687 = vmatpush1.msra.mxu0 0.0
        %688 = vmatprep.subr.mxu0 0.0
        %689 = vmatpush1.msra.mxu0 0.0
        %690 = vmatprep.subr.mxu0 0.0
        %691 = vmatpush1.msra.mxu0 0.0
        %692 = vmatprep.subr.mxu0 0.0
        %693 = vmatpush1.msra.mxu0 0.0
        %694 = vmatprep.subr.mxu0 0.0
        %695 = vmatpush1.msra.mxu0 0.0
        %696 = vmatprep.subr.mxu0 0.0
        %697 = vmatpush1.msra.mxu0 0.0
        %698 = vmatprep.subr.mxu0 0.0
        %699 = vmatpush1.msra.mxu0 0.0
        %700 = vmatprep.subr.mxu0 0.0
        %701 = vmatpush1.msra.mxu0 0.0
        %702 = vmatprep.subr.mxu0 0.0
        %703 = vmatpush1.msra.mxu0 0.0
        %704 = vmatprep.subr.mxu0 0.0
        %705 = vmatpush1.msra.mxu0 0.0
        %706 = vmatprep.subr.mxu0 0.0
        %707 = vmatpush1.msra.mxu0 0.0
        %708 = vmatprep.subr.mxu0 0.0
        %709 = vmatpush1.msra.mxu0 0.0
        %710 = vmatprep.subr.mxu0 0.0
        %711 = vmatpush1.msra.mxu0 0.0
        %712 = vmatprep.subr.mxu0 0.0
        %713 = vmatpush1.msra.mxu0 0.0
        %714 = vmatprep.mubr.f32.mxu0 0.0
        %715 = vmatmul.mubr.f32.gmra.mrb[0].mxu0 %v347
        %v716 = vpop.f32.mrb[0].mxu0
        %v717 = vadd.f32 %v328, %v716
        %v718 = vpop.f32.mrb[0].mxu0
        %v719 = vadd.f32 %v328, %v718
        %720 = vmatprep.mubr.f32.mxu0 0.0
        %721 = vmatmul.mubr.f32.gmra.mrb[0].mxu0 %v350
        %v722 = vpop.f32.mrb[0].mxu0
        %v723 = vadd.f32 %v333, %v722
        %v724 = vpop.f32.mrb[0].mxu0
        %v725 = vadd.f32 %v333, %v724
        %726 = vmatprep.mubr.f32.mxu0 0.0
        %727 = vmatmul.mubr.f32.gmra.mrb[0].mxu0 %v353
        %v728 = vpop.f32.mrb[0].mxu0
        %v729 = vadd.f32 %v338, %v728
        %v730 = vpop.f32.mrb[0].mxu0
        %v731 = vadd.f32 %v338, %v730
        %732 = vmatprep.mubr.f32.mxu0 0.0
        %733 = vmatmul.mubr.f32.gmra.mrb[0].mxu0 %v356
        %v734 = vpop.f32.mrb[0].mxu0
        %v735 = vadd.f32 %v343, %v734
        %v736 = vpop.f32.mrb[0].mxu0
        %v737 = vadd.f32 %v343, %v736
        %738 = vdwg.mxu0
        %v739 = vand.u32 2147483647, %v450
        %vm740 = vcmp.le.f32.partialorder %v739, 0.7853982
        %vm741 = vcmp.lt.s32.totalorder %v450, 0
        %v742 = vand.u32 %v450, 2139095040
        %v743 = vshrl.u32 %v742, 23
        %v744 = vsub.s32 %v743, 127
        %v745 = vand.u32 2147483647, %v450
        %v746 = vand.u32 %v745, 8388607
        %v747 = vor.u32 %v746, 8388608
        %v748 = vsub.s32 0, %v747
        %v749 = vadd.s32 %v744, 1
        %vm750 = vcmp.gt.s32.totalorder %v749, 0
        %v751 = vsel %vm750, %v749, 0
        %v752 = vshrl.u32 %v751, 5
        %v753 = vand.u32 %v751, 31
        %v754 = vsub.s32 32, %v753
        %v755 = vshrl.u32 683565275, %v754
        %v756 = vshll.u32 683565275, %v753
        %v757 = vshrl.u32 2475754826, %v754
        %v758 = vor.u32 %v756, %v757
        %v759 = vshll.u32 2475754826, %v753
        %v760 = vshrl.u32 2131351028, %v754
        %v761 = vor.u32 %v759, %v760
        %v762 = vshll.u32 2131351028, %v753
        %v763 = vshrl.u32 2102212464, %v754
        %v764 = vor.u32 %v762, %v763
        %v765 = vshll.u32 2102212464, %v753
        %v766 = vshrl.u32 920167782, %v754
        %v767 = vor.u32 %v765, %v766
        %v768 = vshll.u32 920167782, %v753
        %v769 = vshrl.u32 1326507024, %v754
        %v770 = vor.u32 %v768, %v769
        %vm771 = vcmp.lt.s32.totalorder %v752, 1
        %vm772 = vcmp.lt.s32.totalorder %v752, 2
        %vm773 = vcmp.lt.s32.totalorder %v752, 3
        %vm774 = vcmp.lt.s32.totalorder %v752, 4
        %v775 = vsel %vm771, %v755, %v758
        %v776 = vsel %vm774, %v764, 2102212464
        %v777 = vsel %vm773, %v761, %v776
        %v778 = vsel %vm772, %v775, %v777
        %v779 = vsel %vm771, %v758, %v761
        %v780 = vsel %vm774, %v767, 920167782
        %v781 = vsel %vm773, %v764, %v780
        %v782 = vsel %vm772, %v779, %v781
        %v783 = vsel %vm771, %v761, %v764
        %v784 = vsel %vm774, %v770, 1326507024
        %v785 = vsel %vm773, %v767, %v784
        %v786 = vsel %vm772, %v783, %v785
        %v787 = vshll.u32 %v747, 8
        %v788 = vmul.u32.u64.compose %v787, %v786
        %v789 = vextract.low.u32 %v788
        %v790 = vextract.high.u32 %v788
        %v791 = vmul.u32.u64.compose %v787, %v782
        %v792 = vextract.low.u32 %v791
        %v793 = vextract.high.u32 %v791
        %v794 = vmul.u32 %v787, %v778
        %v795 = vadd.s32 %v790, %v792
        %vm796 = vc.u32 %v790, %v792
        %v797 = vadd.s32 %v793, 1
        %v798 = vsel %vm796, %v797, %v793
        %v799 = vadd.s32 %v794, %v798
        %v800 = vadd.s32 %v799, 536870912
        %v801 = vshrl.u32 %v800, 30
        %v802 = vshll.u32 %v801, 30
        %v803 = vsub.s32 %v799, %v802
        %vm804 = vcmp.lt.s32.totalorder %v803, 0
        %v805 = vsub.s32 0, %v803
        %v806 = vsel %vm804, %v805, %v803
        %v807 = vclz %v806
        %v808 = vsub.s32 %v807, 2
        %vm809 = vcmp.gt.s32.totalorder 0, %v808
        %v810 = vsel %vm809, 0, %v808
        %v811 = vsub.s32 32, %v810
        %v812 = vshll.u32 %v803, %v810
        %v813 = vshrl.u32 %v795, %v811
        %v814 = vor.u32 %v812, %v813
        %v815 = vsub.s32 4294967266, %v810
        %v816 = vadd.s32 %v815, 127
        %v817 = vshll.u32 %v816, 23
        %v818 = vor.u32 4788187, %v817
        %v819 = vand.u32 2147483647, %v818
        %v821 = vcvt.s32.f32 %v814
        %v822 = vmul.f32 %v821, %v819
        %v823 = vxor.u32 %v822, 2147483648
        %v824 = vsel %vm741, %v823, %v822
        %v825 = vsub.s32 4, %v801
        %v826 = vsel %vm741, %v825, %v801
        %v827 = vsel %vm740, %v450, %v824
        %v828 = vsel %vm740, 0, %v826
        %v829 = vcosq.f32.pop %v827
        %v830 = vsinq.f32.pop %v827
        %vm831 = vweird.f32 %v450
        %v832 = vadd.s32 %v828, 3
        %v833 = vand.u32 %v832, 3
        %vm834 = vcmp.lt.s32.totalorder %v833, 2
        %vm835 = vcmp.eq.s32.totalorder %v833, 0
        %v836 = vxor.u32 %v830, 2147483648
        %v837 = vsel %vm835, %v829, %v836
        %vm838 = vcmp.eq.s32.totalorder %v833, 2
        %v839 = vxor.u32 %v829, 2147483648
        %v840 = vsel %vm838, %v839, %v830
        %v841 = vsel %vm834, %v837, %v840
        %v842 = vsel %vm831, nan, %v841
        %v843 = vand.u32 2147483647, %v452
        %vm844 = vcmp.le.f32.partialorder %v843, 0.7853982
        %vm845 = vcmp.lt.s32.totalorder %v452, 0
        %v846 = vand.u32 %v452, 2139095040
        %v847 = vshrl.u32 %v846, 23
        %v848 = vsub.s32 %v847, 127
        %v849 = vand.u32 2147483647, %v452
        %v850 = vand.u32 %v849, 8388607
        %v851 = vor.u32 %v850, 8388608
        %v852 = vsub.s32 0, %v851
        %v853 = vadd.s32 %v848, 1
        %vm854 = vcmp.gt.s32.totalorder %v853, 0
        %v855 = vsel %vm854, %v853, 0
        %v856 = vshrl.u32 %v855, 5
        %v857 = vand.u32 %v855, 31
        %v858 = vsub.s32 32, %v857
        %v859 = vshrl.u32 683565275, %v858
        %v860 = vshll.u32 683565275, %v857
        %v861 = vshrl.u32 2475754826, %v858
        %v862 = vor.u32 %v860, %v861
        %v863 = vshll.u32 2475754826, %v857
        %v864 = vshrl.u32 2131351028, %v858
        %v865 = vor.u32 %v863, %v864
        %v866 = vshll.u32 2131351028, %v857
        %v867 = vshrl.u32 2102212464, %v858
        %v868 = vor.u32 %v866, %v867
        %v869 = vshll.u32 2102212464, %v857
        %v870 = vshrl.u32 920167782, %v858
        %v871 = vor.u32 %v869, %v870
        %v872 = vshll.u32 920167782, %v857
        %v873 = vshrl.u32 1326507024, %v858
        %v874 = vor.u32 %v872, %v873
        %vm875 = vcmp.lt.s32.totalorder %v856, 1
        %vm876 = vcmp.lt.s32.totalorder %v856, 2
        %vm877 = vcmp.lt.s32.totalorder %v856, 3
        %vm878 = vcmp.lt.s32.totalorder %v856, 4
        %v879 = vsel %vm875, %v859, %v862
        %v880 = vsel %vm878, %v868, 2102212464
        %v881 = vsel %vm877, %v865, %v880
        %v882 = vsel %vm876, %v879, %v881
        %v883 = vsel %vm875, %v862, %v865
        %v884 = vsel %vm878, %v871, 920167782
        %v885 = vsel %vm877, %v868, %v884
        %v886 = vsel %vm876, %v883, %v885
        %v887 = vsel %vm875, %v865, %v868
        %v888 = vsel %vm878, %v874, 1326507024
        %v889 = vsel %vm877, %v871, %v888
        %v890 = vsel %vm876, %v887, %v889
        %v891 = vshll.u32 %v851, 8
        %v892 = vmul.u32.u64.compose %v891, %v890
        %v893 = vextract.low.u32 %v892
        %v894 = vextract.high.u32 %v892
        %v895 = vmul.u32.u64.compose %v891, %v886
        %v896 = vextract.low.u32 %v895
        %v897 = vextract.high.u32 %v895
        %v898 = vmul.u32 %v891, %v882
        %v899 = vadd.s32 %v894, %v896
        %vm900 = vc.u32 %v894, %v896
        %v901 = vadd.s32 %v897, 1
        %v902 = vsel %vm900, %v901, %v897
        %v903 = vadd.s32 %v898, %v902
        %v904 = vadd.s32 %v903, 536870912
        %v905 = vshrl.u32 %v904, 30
        %v906 = vshll.u32 %v905, 30
        %v907 = vsub.s32 %v903, %v906
        %vm908 = vcmp.lt.s32.totalorder %v907, 0
        %v909 = vsub.s32 0, %v907
        %v910 = vsel %vm908, %v909, %v907
        %v911 = vclz %v910
        %v912 = vsub.s32 %v911, 2
        %vm913 = vcmp.gt.s32.totalorder 0, %v912
        %v914 = vsel %vm913, 0, %v912
        %v915 = vsub.s32 32, %v914
        %v916 = vshll.u32 %v907, %v914
        %v917 = vshrl.u32 %v899, %v915
        %v918 = vor.u32 %v916, %v917
        %v919 = vsub.s32 4294967266, %v914
        %v920 = vadd.s32 %v919, 127
        %v921 = vshll.u32 %v920, 23
        %v922 = vor.u32 4788187, %v921
        %v923 = vand.u32 2147483647, %v922
        %v925 = vcvt.s32.f32 %v918
        %v926 = vmul.f32 %v925, %v923
        %v927 = vxor.u32 %v926, 2147483648
        %v928 = vsel %vm845, %v927, %v926
        %v929 = vsub.s32 4, %v905
        %v930 = vsel %vm845, %v929, %v905
        %v931 = vsel %vm844, %v452, %v928
        %v932 = vsel %vm844, 0, %v930
        %v933 = vcosq.f32.pop %v931
        %v934 = vsinq.f32.pop %v931
        %vm935 = vweird.f32 %v452
        %v936 = vadd.s32 %v932, 3
        %v937 = vand.u32 %v936, 3
        %vm938 = vcmp.lt.s32.totalorder %v937, 2
        %vm939 = vcmp.eq.s32.totalorder %v937, 0
        %v940 = vxor.u32 %v934, 2147483648
        %v941 = vsel %vm939, %v933, %v940
        %vm942 = vcmp.eq.s32.totalorder %v937, 2
        %v943 = vxor.u32 %v933, 2147483648
        %v944 = vsel %vm942, %v943, %v934
        %v945 = vsel %vm938, %v941, %v944
        %v946 = vsel %vm935, nan, %v945
        %v947 = vand.u32 2147483647, %v539
        %vm948 = vcmp.le.f32.partialorder %v947, 0.7853982
        %vm949 = vcmp.lt.s32.totalorder %v539, 0
        %v950 = vand.u32 %v539, 2139095040
        %v951 = vshrl.u32 %v950, 23
        %v952 = vsub.s32 %v951, 127
        %v953 = vand.u32 2147483647, %v539
        %v954 = vand.u32 %v953, 8388607
        %v955 = vor.u32 %v954, 8388608
        %v956 = vsub.s32 0, %v955
        %v957 = vadd.s32 %v952, 1
        %vm958 = vcmp.gt.s32.totalorder %v957, 0
        %v959 = vsel %vm958, %v957, 0
        %v960 = vshrl.u32 %v959, 5
        %v961 = vand.u32 %v959, 31
        %v962 = vsub.s32 32, %v961
        %v963 = vshrl.u32 683565275, %v962
        %v964 = vshll.u32 683565275, %v961
        %v965 = vshrl.u32 2475754826, %v962
        %v966 = vor.u32 %v964, %v965
        %v967 = vshll.u32 2475754826, %v961
        %v968 = vshrl.u32 2131351028, %v962
        %v969 = vor.u32 %v967, %v968
        %v970 = vshll.u32 2131351028, %v961
        %v971 = vshrl.u32 2102212464, %v962
        %v972 = vor.u32 %v970, %v971
        %v973 = vshll.u32 2102212464, %v961
        %v974 = vshrl.u32 920167782, %v962
        %v975 = vor.u32 %v973, %v974
        %v976 = vshll.u32 920167782, %v961
        %v977 = vshrl.u32 1326507024, %v962
        %v978 = vor.u32 %v976, %v977
        %vm979 = vcmp.lt.s32.totalorder %v960, 1
        %vm980 = vcmp.lt.s32.totalorder %v960, 2
        %vm981 = vcmp.lt.s32.totalorder %v960, 3
        %vm982 = vcmp.lt.s32.totalorder %v960, 4
        %v983 = vsel %vm979, %v963, %v966
        %v984 = vsel %vm982, %v972, 2102212464
        %v985 = vsel %vm981, %v969, %v984
        %v986 = vsel %vm980, %v983, %v985
        %v987 = vsel %vm979, %v966, %v969
        %v988 = vsel %vm982, %v975, 920167782
        %v989 = vsel %vm981, %v972, %v988
        %v990 = vsel %vm980, %v987, %v989
        %v991 = vsel %vm979, %v969, %v972
        %v992 = vsel %vm982, %v978, 1326507024
        %v993 = vsel %vm981, %v975, %v992
        %v994 = vsel %vm980, %v991, %v993
        %v995 = vshll.u32 %v955, 8
        %v996 = vmul.u32.u64.compose %v995, %v994
        %v997 = vextract.low.u32 %v996
        %v998 = vextract.high.u32 %v996
        %v999 = vmul.u32.u64.compose %v995, %v990
        %v1000 = vextract.low.u32 %v999
        %v1001 = vextract.high.u32 %v999
        %v1002 = vmul.u32 %v995, %v986
        %v1003 = vadd.s32 %v998, %v1000
        %vm1004 = vc.u32 %v998, %v1000
        %v1005 = vadd.s32 %v1001, 1
        %v1006 = vsel %vm1004, %v1005, %v1001
        %v1007 = vadd.s32 %v1002, %v1006
        %v1008 = vadd.s32 %v1007, 536870912
        %v1009 = vshrl.u32 %v1008, 30
        %v1010 = vshll.u32 %v1009, 30
        %v1011 = vsub.s32 %v1007, %v1010
        %vm1012 = vcmp.lt.s32.totalorder %v1011, 0
        %v1013 = vsub.s32 0, %v1011
        %v1014 = vsel %vm1012, %v1013, %v1011
        %v1015 = vclz %v1014
        %v1016 = vsub.s32 %v1015, 2
        %vm1017 = vcmp.gt.s32.totalorder 0, %v1016
        %v1018 = vsel %vm1017, 0, %v1016
        %v1019 = vsub.s32 32, %v1018
        %v1020 = vshll.u32 %v1011, %v1018
        %v1021 = vshrl.u32 %v1003, %v1019
        %v1022 = vor.u32 %v1020, %v1021
        %v1023 = vsub.s32 4294967266, %v1018
        %v1024 = vadd.s32 %v1023, 127
        %v1025 = vshll.u32 %v1024, 23
        %v1026 = vor.u32 4788187, %v1025
        %v1027 = vand.u32 2147483647, %v1026
        %v1029 = vcvt.s32.f32 %v1022
        %v1030 = vmul.f32 %v1029, %v1027
        %v1031 = vxor.u32 %v1030, 2147483648
        %v1032 = vsel %vm949, %v1031, %v1030
        %v1033 = vsub.s32 4, %v1009
        %v1034 = vsel %vm949, %v1033, %v1009
        %v1035 = vsel %vm948, %v539, %v1032
        %v1036 = vsel %vm948, 0, %v1034
        %v1037 = vcosq.f32.pop %v1035
        %v1038 = vsinq.f32.pop %v1035
        %vm1039 = vweird.f32 %v539
        %v1040 = vadd.s32 %v1036, 3
        %v1041 = vand.u32 %v1040, 3
        %vm1042 = vcmp.lt.s32.totalorder %v1041, 2
        %vm1043 = vcmp.eq.s32.totalorder %v1041, 0
        %v1044 = vxor.u32 %v1038, 2147483648
        %v1045 = vsel %vm1043, %v1037, %v1044
        %vm1046 = vcmp.eq.s32.totalorder %v1041, 2
        %v1047 = vxor.u32 %v1037, 2147483648
        %v1048 = vsel %vm1046, %v1047, %v1038
        %v1049 = vsel %vm1042, %v1045, %v1048
        %v1050 = vsel %vm1039, nan, %v1049
        %v1051 = vand.u32 2147483647, %v541
        %vm1052 = vcmp.le.f32.partialorder %v1051, 0.7853982
        %vm1053 = vcmp.lt.s32.totalorder %v541, 0
        %v1054 = vand.u32 %v541, 2139095040
        %v1055 = vshrl.u32 %v1054, 23
        %v1056 = vsub.s32 %v1055, 127
        %v1057 = vand.u32 2147483647, %v541
        %v1058 = vand.u32 %v1057, 8388607
        %v1059 = vor.u32 %v1058, 8388608
        %v1060 = vsub.s32 0, %v1059
        %v1061 = vadd.s32 %v1056, 1
        %vm1062 = vcmp.gt.s32.totalorder %v1061, 0
        %v1063 = vsel %vm1062, %v1061, 0
        %v1064 = vshrl.u32 %v1063, 5
        %v1065 = vand.u32 %v1063, 31
        %v1066 = vsub.s32 32, %v1065
        %v1067 = vshrl.u32 683565275, %v1066
        %v1068 = vshll.u32 683565275, %v1065
        %v1069 = vshrl.u32 2475754826, %v1066
        %v1070 = vor.u32 %v1068, %v1069
        %v1071 = vshll.u32 2475754826, %v1065
        %v1072 = vshrl.u32 2131351028, %v1066
        %v1073 = vor.u32 %v1071, %v1072
        %v1074 = vshll.u32 2131351028, %v1065
        %v1075 = vshrl.u32 2102212464, %v1066
        %v1076 = vor.u32 %v1074, %v1075
        %v1077 = vshll.u32 2102212464, %v1065
        %v1078 = vshrl.u32 920167782, %v1066
        %v1079 = vor.u32 %v1077, %v1078
        %v1080 = vshll.u32 920167782, %v1065
        %v1081 = vshrl.u32 1326507024, %v1066
        %v1082 = vor.u32 %v1080, %v1081
        %vm1083 = vcmp.lt.s32.totalorder %v1064, 1
        %vm1084 = vcmp.lt.s32.totalorder %v1064, 2
        %vm1085 = vcmp.lt.s32.totalorder %v1064, 3
        %vm1086 = vcmp.lt.s32.totalorder %v1064, 4
        %v1087 = vsel %vm1083, %v1067, %v1070
        %v1088 = vsel %vm1086, %v1076, 2102212464
        %v1089 = vsel %vm1085, %v1073, %v1088
        %v1090 = vsel %vm1084, %v1087, %v1089
        %v1091 = vsel %vm1083, %v1070, %v1073
        %v1092 = vsel %vm1086, %v1079, 920167782
        %v1093 = vsel %vm1085, %v1076, %v1092
        %v1094 = vsel %vm1084, %v1091, %v1093
        %v1095 = vsel %vm1083, %v1073, %v1076
        %v1096 = vsel %vm1086, %v1082, 1326507024
        %v1097 = vsel %vm1085, %v1079, %v1096
        %v1098 = vsel %vm1084, %v1095, %v1097
        %v1099 = vshll.u32 %v1059, 8
        %v1100 = vmul.u32.u64.compose %v1099, %v1098
        %v1101 = vextract.low.u32 %v1100
        %v1102 = vextract.high.u32 %v1100
        %v1103 = vmul.u32.u64.compose %v1099, %v1094
        %v1104 = vextract.low.u32 %v1103
        %v1105 = vextract.high.u32 %v1103
        %v1106 = vmul.u32 %v1099, %v1090
        %v1107 = vadd.s32 %v1102, %v1104
        %vm1108 = vc.u32 %v1102, %v1104
        %v1109 = vadd.s32 %v1105, 1
        %v1110 = vsel %vm1108, %v1109, %v1105
        %v1111 = vadd.s32 %v1106, %v1110
        %v1112 = vadd.s32 %v1111, 536870912
        %v1113 = vshrl.u32 %v1112, 30
        %v1114 = vshll.u32 %v1113, 30
        %v1115 = vsub.s32 %v1111, %v1114
        %vm1116 = vcmp.lt.s32.totalorder %v1115, 0
        %v1117 = vsub.s32 0, %v1115
        %v1118 = vsel %vm1116, %v1117, %v1115
        %v1119 = vclz %v1118
        %v1120 = vsub.s32 %v1119, 2
        %vm1121 = vcmp.gt.s32.totalorder 0, %v1120
        %v1122 = vsel %vm1121, 0, %v1120
        %v1123 = vsub.s32 32, %v1122
        %v1124 = vshll.u32 %v1115, %v1122
        %v1125 = vshrl.u32 %v1107, %v1123
        %v1126 = vor.u32 %v1124, %v1125
        %v1127 = vsub.s32 4294967266, %v1122
        %v1128 = vadd.s32 %v1127, 127
        %v1129 = vshll.u32 %v1128, 23
        %v1130 = vor.u32 4788187, %v1129
        %v1131 = vand.u32 2147483647, %v1130
        %v1133 = vcvt.s32.f32 %v1126
        %v1134 = vmul.f32 %v1133, %v1131
        %v1135 = vxor.u32 %v1134, 2147483648
        %v1136 = vsel %vm1053, %v1135, %v1134
        %v1137 = vsub.s32 4, %v1113
        %v1138 = vsel %vm1053, %v1137, %v1113
        %v1139 = vsel %vm1052, %v541, %v1136
        %v1140 = vsel %vm1052, 0, %v1138
        %v1141 = vcosq.f32.pop %v1139
        %v1142 = vsinq.f32.pop %v1139
        %vm1143 = vweird.f32 %v541
        %v1144 = vadd.s32 %v1140, 3
        %v1145 = vand.u32 %v1144, 3
        %vm1146 = vcmp.lt.s32.totalorder %v1145, 2
        %vm1147 = vcmp.eq.s32.totalorder %v1145, 0
        %v1148 = vxor.u32 %v1142, 2147483648
        %v1149 = vsel %vm1147, %v1141, %v1148
        %vm1150 = vcmp.eq.s32.totalorder %v1145, 2
        %v1151 = vxor.u32 %v1141, 2147483648
        %v1152 = vsel %vm1150, %v1151, %v1142
        %v1153 = vsel %vm1146, %v1149, %v1152
        %v1154 = vsel %vm1143, nan, %v1153
        %v1155 = vand.u32 2147483647, %v628
        %vm1156 = vcmp.le.f32.partialorder %v1155, 0.7853982
        %vm1157 = vcmp.lt.s32.totalorder %v628, 0
        %v1158 = vand.u32 %v628, 2139095040
        %v1159 = vshrl.u32 %v1158, 23
        %v1160 = vsub.s32 %v1159, 127
        %v1161 = vand.u32 2147483647, %v628
        %v1162 = vand.u32 %v1161, 8388607
        %v1163 = vor.u32 %v1162, 8388608
        %v1164 = vsub.s32 0, %v1163
        %v1165 = vadd.s32 %v1160, 1
        %vm1166 = vcmp.gt.s32.totalorder %v1165, 0
        %v1167 = vsel %vm1166, %v1165, 0
        %v1168 = vshrl.u32 %v1167, 5
        %v1169 = vand.u32 %v1167, 31
        %v1170 = vsub.s32 32, %v1169
        %v1171 = vshrl.u32 683565275, %v1170
        %v1172 = vshll.u32 683565275, %v1169
        %v1173 = vshrl.u32 2475754826, %v1170
        %v1174 = vor.u32 %v1172, %v1173
        %v1175 = vshll.u32 2475754826, %v1169
        %v1176 = vshrl.u32 2131351028, %v1170
        %v1177 = vor.u32 %v1175, %v1176
        %v1178 = vshll.u32 2131351028, %v1169
        %v1179 = vshrl.u32 2102212464, %v1170
        %v1180 = vor.u32 %v1178, %v1179
        %v1181 = vshll.u32 2102212464, %v1169
        %v1182 = vshrl.u32 920167782, %v1170
        %v1183 = vor.u32 %v1181, %v1182
        %v1184 = vshll.u32 920167782, %v1169
        %v1185 = vshrl.u32 1326507024, %v1170
        %v1186 = vor.u32 %v1184, %v1185
        %vm1187 = vcmp.lt.s32.totalorder %v1168, 1
        %vm1188 = vcmp.lt.s32.totalorder %v1168, 2
        %vm1189 = vcmp.lt.s32.totalorder %v1168, 3
        %vm1190 = vcmp.lt.s32.totalorder %v1168, 4
        %v1191 = vsel %vm1187, %v1171, %v1174
        %v1192 = vsel %vm1190, %v1180, 2102212464
        %v1193 = vsel %vm1189, %v1177, %v1192
        %v1194 = vsel %vm1188, %v1191, %v1193
        %v1195 = vsel %vm1187, %v1174, %v1177
        %v1196 = vsel %vm1190, %v1183, 920167782
        %v1197 = vsel %vm1189, %v1180, %v1196
        %v1198 = vsel %vm1188, %v1195, %v1197
        %v1199 = vsel %vm1187, %v1177, %v1180
        %v1200 = vsel %vm1190, %v1186, 1326507024
        %v1201 = vsel %vm1189, %v1183, %v1200
        %v1202 = vsel %vm1188, %v1199, %v1201
        %v1203 = vshll.u32 %v1163, 8
        %v1204 = vmul.u32.u64.compose %v1203, %v1202
        %v1205 = vextract.low.u32 %v1204
        %v1206 = vextract.high.u32 %v1204
        %v1207 = vmul.u32.u64.compose %v1203, %v1198
        %v1208 = vextract.low.u32 %v1207
        %v1209 = vextract.high.u32 %v1207
        %v1210 = vmul.u32 %v1203, %v1194
        %v1211 = vadd.s32 %v1206, %v1208
        %vm1212 = vc.u32 %v1206, %v1208
        %v1213 = vadd.s32 %v1209, 1
        %v1214 = vsel %vm1212, %v1213, %v1209
        %v1215 = vadd.s32 %v1210, %v1214
        %v1216 = vadd.s32 %v1215, 536870912
        %v1217 = vshrl.u32 %v1216, 30
        %v1218 = vshll.u32 %v1217, 30
        %v1219 = vsub.s32 %v1215, %v1218
        %vm1220 = vcmp.lt.s32.totalorder %v1219, 0
        %v1221 = vsub.s32 0, %v1219
        %v1222 = vsel %vm1220, %v1221, %v1219
        %v1223 = vclz %v1222
        %v1224 = vsub.s32 %v1223, 2
        %vm1225 = vcmp.gt.s32.totalorder 0, %v1224
        %v1226 = vsel %vm1225, 0, %v1224
        %v1227 = vsub.s32 32, %v1226
        %v1228 = vshll.u32 %v1219, %v1226
        %v1229 = vshrl.u32 %v1211, %v1227
        %v1230 = vor.u32 %v1228, %v1229
        %v1231 = vsub.s32 4294967266, %v1226
        %v1232 = vadd.s32 %v1231, 127
        %v1233 = vshll.u32 %v1232, 23
        %v1234 = vor.u32 4788187, %v1233
        %v1235 = vand.u32 2147483647, %v1234
        %v1237 = vcvt.s32.f32 %v1230
        %v1238 = vmul.f32 %v1237, %v1235
        %v1239 = vxor.u32 %v1238, 2147483648
        %v1240 = vsel %vm1157, %v1239, %v1238
        %v1241 = vsub.s32 4, %v1217
        %v1242 = vsel %vm1157, %v1241, %v1217
        %v1243 = vsel %vm1156, %v628, %v1240
        %v1244 = vsel %vm1156, 0, %v1242
        %v1245 = vcosq.f32.pop %v1243
        %v1246 = vsinq.f32.pop %v1243
        %vm1247 = vweird.f32 %v628
        %v1248 = vadd.s32 %v1244, 3
        %v1249 = vand.u32 %v1248, 3
        %vm1250 = vcmp.lt.s32.totalorder %v1249, 2
        %vm1251 = vcmp.eq.s32.totalorder %v1249, 0
        %v1252 = vxor.u32 %v1246, 2147483648
        %v1253 = vsel %vm1251, %v1245, %v1252
        %vm1254 = vcmp.eq.s32.totalorder %v1249, 2
        %v1255 = vxor.u32 %v1245, 2147483648
        %v1256 = vsel %vm1254, %v1255, %v1246
        %v1257 = vsel %vm1250, %v1253, %v1256
        %v1258 = vsel %vm1247, nan, %v1257
        %v1259 = vand.u32 2147483647, %v630
        %vm1260 = vcmp.le.f32.partialorder %v1259, 0.7853982
        %vm1261 = vcmp.lt.s32.totalorder %v630, 0
        %v1262 = vand.u32 %v630, 2139095040
        %v1263 = vshrl.u32 %v1262, 23
        %v1264 = vsub.s32 %v1263, 127
        %v1265 = vand.u32 2147483647, %v630
        %v1266 = vand.u32 %v1265, 8388607
        %v1267 = vor.u32 %v1266, 8388608
        %v1268 = vsub.s32 0, %v1267
        %v1269 = vadd.s32 %v1264, 1
        %vm1270 = vcmp.gt.s32.totalorder %v1269, 0
        %v1271 = vsel %vm1270, %v1269, 0
        %v1272 = vshrl.u32 %v1271, 5
        %v1273 = vand.u32 %v1271, 31
        %v1274 = vsub.s32 32, %v1273
        %v1275 = vshrl.u32 683565275, %v1274
        %v1276 = vshll.u32 683565275, %v1273
        %v1277 = vshrl.u32 2475754826, %v1274
        %v1278 = vor.u32 %v1276, %v1277
        %v1279 = vshll.u32 2475754826, %v1273
        %v1280 = vshrl.u32 2131351028, %v1274
        %v1281 = vor.u32 %v1279, %v1280
        %v1282 = vshll.u32 2131351028, %v1273
        %v1283 = vshrl.u32 2102212464, %v1274
        %v1284 = vor.u32 %v1282, %v1283
        %v1285 = vshll.u32 2102212464, %v1273
        %v1286 = vshrl.u32 920167782, %v1274
        %v1287 = vor.u32 %v1285, %v1286
        %v1288 = vshll.u32 920167782, %v1273
        %v1289 = vshrl.u32 1326507024, %v1274
        %v1290 = vor.u32 %v1288, %v1289
        %vm1291 = vcmp.lt.s32.totalorder %v1272, 1
        %vm1292 = vcmp.lt.s32.totalorder %v1272, 2
        %vm1293 = vcmp.lt.s32.totalorder %v1272, 3
        %vm1294 = vcmp.lt.s32.totalorder %v1272, 4
        %v1295 = vsel %vm1291, %v1275, %v1278
        %v1296 = vsel %vm1294, %v1284, 2102212464
        %v1297 = vsel %vm1293, %v1281, %v1296
        %v1298 = vsel %vm1292, %v1295, %v1297
        %v1299 = vsel %vm1291, %v1278, %v1281
        %v1300 = vsel %vm1294, %v1287, 920167782
        %v1301 = vsel %vm1293, %v1284, %v1300
        %v1302 = vsel %vm1292, %v1299, %v1301
        %v1303 = vsel %vm1291, %v1281, %v1284
        %v1304 = vsel %vm1294, %v1290, 1326507024
        %v1305 = vsel %vm1293, %v1287, %v1304
        %v1306 = vsel %vm1292, %v1303, %v1305
        %v1307 = vshll.u32 %v1267, 8
        %v1308 = vmul.u32.u64.compose %v1307, %v1306
        %v1309 = vextract.low.u32 %v1308
        %v1310 = vextract.high.u32 %v1308
        %v1311 = vmul.u32.u64.compose %v1307, %v1302
        %v1312 = vextract.low.u32 %v1311
        %v1313 = vextract.high.u32 %v1311
        %v1314 = vmul.u32 %v1307, %v1298
        %v1315 = vadd.s32 %v1310, %v1312
        %vm1316 = vc.u32 %v1310, %v1312
        %v1317 = vadd.s32 %v1313, 1
        %v1318 = vsel %vm1316, %v1317, %v1313
        %v1319 = vadd.s32 %v1314, %v1318
        %v1320 = vadd.s32 %v1319, 536870912
        %v1321 = vshrl.u32 %v1320, 30
        %v1322 = vshll.u32 %v1321, 30
        %v1323 = vsub.s32 %v1319, %v1322
        %vm1324 = vcmp.lt.s32.totalorder %v1323, 0
        %v1325 = vsub.s32 0, %v1323
        %v1326 = vsel %vm1324, %v1325, %v1323
        %v1327 = vclz %v1326
        %v1328 = vsub.s32 %v1327, 2
        %vm1329 = vcmp.gt.s32.totalorder 0, %v1328
        %v1330 = vsel %vm1329, 0, %v1328
        %v1331 = vsub.s32 32, %v1330
        %v1332 = vshll.u32 %v1323, %v1330
        %v1333 = vshrl.u32 %v1315, %v1331
        %v1334 = vor.u32 %v1332, %v1333
        %v1335 = vsub.s32 4294967266, %v1330
        %v1336 = vadd.s32 %v1335, 127
        %v1337 = vshll.u32 %v1336, 23
        %v1338 = vor.u32 4788187, %v1337
        %v1339 = vand.u32 2147483647, %v1338
        %v1341 = vcvt.s32.f32 %v1334
        %v1342 = vmul.f32 %v1341, %v1339
        %v1343 = vxor.u32 %v1342, 2147483648
        %v1344 = vsel %vm1261, %v1343, %v1342
        %v1345 = vsub.s32 4, %v1321
        %v1346 = vsel %vm1261, %v1345, %v1321
        %v1347 = vsel %vm1260, %v630, %v1344
        %v1348 = vsel %vm1260, 0, %v1346
        %v1349 = vcosq.f32.pop %v1347
        %v1350 = vsinq.f32.pop %v1347
        %vm1351 = vweird.f32 %v630
        %v1352 = vadd.s32 %v1348, 3
        %v1353 = vand.u32 %v1352, 3
        %vm1354 = vcmp.lt.s32.totalorder %v1353, 2
        %vm1355 = vcmp.eq.s32.totalorder %v1353, 0
        %v1356 = vxor.u32 %v1350, 2147483648
        %v1357 = vsel %vm1355, %v1349, %v1356
        %vm1358 = vcmp.eq.s32.totalorder %v1353, 2
        %v1359 = vxor.u32 %v1349, 2147483648
        %v1360 = vsel %vm1358, %v1359, %v1350
        %v1361 = vsel %vm1354, %v1357, %v1360
        %v1362 = vsel %vm1351, nan, %v1361
        %v1363 = vand.u32 2147483647, %v717
        %vm1364 = vcmp.le.f32.partialorder %v1363, 0.7853982
        %vm1365 = vcmp.lt.s32.totalorder %v717, 0
        %v1366 = vand.u32 %v717, 2139095040
        %v1367 = vshrl.u32 %v1366, 23
        %v1368 = vsub.s32 %v1367, 127
        %v1369 = vand.u32 2147483647, %v717
        %v1370 = vand.u32 %v1369, 8388607
        %v1371 = vor.u32 %v1370, 8388608
        %v1372 = vsub.s32 0, %v1371
        %v1373 = vadd.s32 %v1368, 1
        %vm1374 = vcmp.gt.s32.totalorder %v1373, 0
        %v1375 = vsel %vm1374, %v1373, 0
        %v1376 = vshrl.u32 %v1375, 5
        %v1377 = vand.u32 %v1375, 31
        %v1378 = vsub.s32 32, %v1377
        %v1379 = vshrl.u32 683565275, %v1378
        %v1380 = vshll.u32 683565275, %v1377
        %v1381 = vshrl.u32 2475754826, %v1378
        %v1382 = vor.u32 %v1380, %v1381
        %v1383 = vshll.u32 2475754826, %v1377
        %v1384 = vshrl.u32 2131351028, %v1378
        %v1385 = vor.u32 %v1383, %v1384
        %v1386 = vshll.u32 2131351028, %v1377
        %v1387 = vshrl.u32 2102212464, %v1378
        %v1388 = vor.u32 %v1386, %v1387
        %v1389 = vshll.u32 2102212464, %v1377
        %v1390 = vshrl.u32 920167782, %v1378
        %v1391 = vor.u32 %v1389, %v1390
        %v1392 = vshll.u32 920167782, %v1377
        %v1393 = vshrl.u32 1326507024, %v1378
        %v1394 = vor.u32 %v1392, %v1393
        %vm1395 = vcmp.lt.s32.totalorder %v1376, 1
        %vm1396 = vcmp.lt.s32.totalorder %v1376, 2
        %vm1397 = vcmp.lt.s32.totalorder %v1376, 3
        %vm1398 = vcmp.lt.s32.totalorder %v1376, 4
        %v1399 = vsel %vm1395, %v1379, %v1382
        %v1400 = vsel %vm1398, %v1388, 2102212464
        %v1401 = vsel %vm1397, %v1385, %v1400
        %v1402 = vsel %vm1396, %v1399, %v1401
        %v1403 = vsel %vm1395, %v1382, %v1385
        %v1404 = vsel %vm1398, %v1391, 920167782
        %v1405 = vsel %vm1397, %v1388, %v1404
        %v1406 = vsel %vm1396, %v1403, %v1405
        %v1407 = vsel %vm1395, %v1385, %v1388
        %v1408 = vsel %vm1398, %v1394, 1326507024
        %v1409 = vsel %vm1397, %v1391, %v1408
        %v1410 = vsel %vm1396, %v1407, %v1409
        %v1411 = vshll.u32 %v1371, 8
        %v1412 = vmul.u32.u64.compose %v1411, %v1410
        %v1413 = vextract.low.u32 %v1412
        %v1414 = vextract.high.u32 %v1412
        %v1415 = vmul.u32.u64.compose %v1411, %v1406
        %v1416 = vextract.low.u32 %v1415
        %v1417 = vextract.high.u32 %v1415
        %v1418 = vmul.u32 %v1411, %v1402
        %v1419 = vadd.s32 %v1414, %v1416
        %vm1420 = vc.u32 %v1414, %v1416
        %v1421 = vadd.s32 %v1417, 1
        %v1422 = vsel %vm1420, %v1421, %v1417
        %v1423 = vadd.s32 %v1418, %v1422
        %v1424 = vadd.s32 %v1423, 536870912
        %v1425 = vshrl.u32 %v1424, 30
        %v1426 = vshll.u32 %v1425, 30
        %v1427 = vsub.s32 %v1423, %v1426
        %vm1428 = vcmp.lt.s32.totalorder %v1427, 0
        %v1429 = vsub.s32 0, %v1427
        %v1430 = vsel %vm1428, %v1429, %v1427
        %v1431 = vclz %v1430
        %v1432 = vsub.s32 %v1431, 2
        %vm1433 = vcmp.gt.s32.totalorder 0, %v1432
        %v1434 = vsel %vm1433, 0, %v1432
        %v1435 = vsub.s32 32, %v1434
        %v1436 = vshll.u32 %v1427, %v1434
        %v1437 = vshrl.u32 %v1419, %v1435
        %v1438 = vor.u32 %v1436, %v1437
        %v1439 = vsub.s32 4294967266, %v1434
        %v1440 = vadd.s32 %v1439, 127
        %v1441 = vshll.u32 %v1440, 23
        %v1442 = vor.u32 4788187, %v1441
        %v1443 = vand.u32 2147483647, %v1442
        %v1445 = vcvt.s32.f32 %v1438
        %v1446 = vmul.f32 %v1445, %v1443
        %v1447 = vxor.u32 %v1446, 2147483648
        %v1448 = vsel %vm1365, %v1447, %v1446
        %v1449 = vsub.s32 4, %v1425
        %v1450 = vsel %vm1365, %v1449, %v1425
        %v1451 = vsel %vm1364, %v717, %v1448
        %v1452 = vsel %vm1364, 0, %v1450
        %v1453 = vcosq.f32.pop %v1451
        %v1454 = vsinq.f32.pop %v1451
        %vm1455 = vweird.f32 %v717
        %v1456 = vadd.s32 %v1452, 3
        %v1457 = vand.u32 %v1456, 3
        %vm1458 = vcmp.lt.s32.totalorder %v1457, 2
        %vm1459 = vcmp.eq.s32.totalorder %v1457, 0
        %v1460 = vxor.u32 %v1454, 2147483648
        %v1461 = vsel %vm1459, %v1453, %v1460
        %vm1462 = vcmp.eq.s32.totalorder %v1457, 2
        %v1463 = vxor.u32 %v1453, 2147483648
        %v1464 = vsel %vm1462, %v1463, %v1454
        %v1465 = vsel %vm1458, %v1461, %v1464
        %v1466 = vsel %vm1455, nan, %v1465
        %v1467 = vand.u32 2147483647, %v719
        %vm1468 = vcmp.le.f32.partialorder %v1467, 0.7853982
        %vm1469 = vcmp.lt.s32.totalorder %v719, 0
        %v1470 = vand.u32 %v719, 2139095040
        %v1471 = vshrl.u32 %v1470, 23
        %v1472 = vsub.s32 %v1471, 127
        %v1473 = vand.u32 2147483647, %v719
        %v1474 = vand.u32 %v1473, 8388607
        %v1475 = vor.u32 %v1474, 8388608
        %v1476 = vsub.s32 0, %v1475
        %v1477 = vadd.s32 %v1472, 1
        %vm1478 = vcmp.gt.s32.totalorder %v1477, 0
        %v1479 = vsel %vm1478, %v1477, 0
        %v1480 = vshrl.u32 %v1479, 5
        %v1481 = vand.u32 %v1479, 31
        %v1482 = vsub.s32 32, %v1481
        %v1483 = vshrl.u32 683565275, %v1482
        %v1484 = vshll.u32 683565275, %v1481
        %v1485 = vshrl.u32 2475754826, %v1482
        %v1486 = vor.u32 %v1484, %v1485
        %v1487 = vshll.u32 2475754826, %v1481
        %v1488 = vshrl.u32 2131351028, %v1482
        %v1489 = vor.u32 %v1487, %v1488
        %v1490 = vshll.u32 2131351028, %v1481
        %v1491 = vshrl.u32 2102212464, %v1482
        %v1492 = vor.u32 %v1490, %v1491
        %v1493 = vshll.u32 2102212464, %v1481
        %v1494 = vshrl.u32 920167782, %v1482
        %v1495 = vor.u32 %v1493, %v1494
        %v1496 = vshll.u32 920167782, %v1481
        %v1497 = vshrl.u32 1326507024, %v1482
        %v1498 = vor.u32 %v1496, %v1497
        %vm1499 = vcmp.lt.s32.totalorder %v1480, 1
        %vm1500 = vcmp.lt.s32.totalorder %v1480, 2
        %vm1501 = vcmp.lt.s32.totalorder %v1480, 3
        %vm1502 = vcmp.lt.s32.totalorder %v1480, 4
        %v1503 = vsel %vm1499, %v1483, %v1486
        %v1504 = vsel %vm1502, %v1492, 2102212464
        %v1505 = vsel %vm1501, %v1489, %v1504
        %v1506 = vsel %vm1500, %v1503, %v1505
        %v1507 = vsel %vm1499, %v1486, %v1489
        %v1508 = vsel %vm1502, %v1495, 920167782
        %v1509 = vsel %vm1501, %v1492, %v1508
        %v1510 = vsel %vm1500, %v1507, %v1509
        %v1511 = vsel %vm1499, %v1489, %v1492
        %v1512 = vsel %vm1502, %v1498, 1326507024
        %v1513 = vsel %vm1501, %v1495, %v1512
        %v1514 = vsel %vm1500, %v1511, %v1513
        %v1515 = vshll.u32 %v1475, 8
        %v1516 = vmul.u32.u64.compose %v1515, %v1514
        %v1517 = vextract.low.u32 %v1516
        %v1518 = vextract.high.u32 %v1516
        %v1519 = vmul.u32.u64.compose %v1515, %v1510
        %v1520 = vextract.low.u32 %v1519
        %v1521 = vextract.high.u32 %v1519
        %v1522 = vmul.u32 %v1515, %v1506
        %v1523 = vadd.s32 %v1518, %v1520
        %vm1524 = vc.u32 %v1518, %v1520
        %v1525 = vadd.s32 %v1521, 1
        %v1526 = vsel %vm1524, %v1525, %v1521
        %v1527 = vadd.s32 %v1522, %v1526
        %v1528 = vadd.s32 %v1527, 536870912
        %v1529 = vshrl.u32 %v1528, 30
        %v1530 = vshll.u32 %v1529, 30
        %v1531 = vsub.s32 %v1527, %v1530
        %vm1532 = vcmp.lt.s32.totalorder %v1531, 0
        %v1533 = vsub.s32 0, %v1531
        %v1534 = vsel %vm1532, %v1533, %v1531
        %v1535 = vclz %v1534
        %v1536 = vsub.s32 %v1535, 2
        %vm1537 = vcmp.gt.s32.totalorder 0, %v1536
        %v1538 = vsel %vm1537, 0, %v1536
        %v1539 = vsub.s32 32, %v1538
        %v1540 = vshll.u32 %v1531, %v1538
        %v1541 = vshrl.u32 %v1523, %v1539
        %v1542 = vor.u32 %v1540, %v1541
        %v1543 = vsub.s32 4294967266, %v1538
        %v1544 = vadd.s32 %v1543, 127
        %v1545 = vshll.u32 %v1544, 23
        %v1546 = vor.u32 4788187, %v1545
        %v1547 = vand.u32 2147483647, %v1546
        %v1549 = vcvt.s32.f32 %v1542
        %v1550 = vmul.f32 %v1549, %v1547
        %v1551 = vxor.u32 %v1550, 2147483648
        %v1552 = vsel %vm1469, %v1551, %v1550
        %v1553 = vsub.s32 4, %v1529
        %v1554 = vsel %vm1469, %v1553, %v1529
        %v1555 = vsel %vm1468, %v719, %v1552
        %v1556 = vsel %vm1468, 0, %v1554
        %v1557 = vcosq.f32.pop %v1555
        %v1558 = vsinq.f32.pop %v1555
        %vm1559 = vweird.f32 %v719
        %v1560 = vadd.s32 %v1556, 3
        %v1561 = vand.u32 %v1560, 3
        %vm1562 = vcmp.lt.s32.totalorder %v1561, 2
        %vm1563 = vcmp.eq.s32.totalorder %v1561, 0
        %v1564 = vxor.u32 %v1558, 2147483648
        %v1565 = vsel %vm1563, %v1557, %v1564
        %vm1566 = vcmp.eq.s32.totalorder %v1561, 2
        %v1567 = vxor.u32 %v1557, 2147483648
        %v1568 = vsel %vm1566, %v1567, %v1558
        %v1569 = vsel %vm1562, %v1565, %v1568
        %v1570 = vsel %vm1559, nan, %v1569
        %v1571 = vand.u32 2147483647, %v456
        %vm1572 = vcmp.le.f32.partialorder %v1571, 0.7853982
        %vm1573 = vcmp.lt.s32.totalorder %v456, 0
        %v1574 = vand.u32 %v456, 2139095040
        %v1575 = vshrl.u32 %v1574, 23
        %v1576 = vsub.s32 %v1575, 127
        %v1577 = vand.u32 2147483647, %v456
        %v1578 = vand.u32 %v1577, 8388607
        %v1579 = vor.u32 %v1578, 8388608
        %v1580 = vsub.s32 0, %v1579
        %v1581 = vadd.s32 %v1576, 1
        %vm1582 = vcmp.gt.s32.totalorder %v1581, 0
        %v1583 = vsel %vm1582, %v1581, 0
        %v1584 = vshrl.u32 %v1583, 5
        %v1585 = vand.u32 %v1583, 31
        %v1586 = vsub.s32 32, %v1585
        %v1587 = vshrl.u32 683565275, %v1586
        %v1588 = vshll.u32 683565275, %v1585
        %v1589 = vshrl.u32 2475754826, %v1586
        %v1590 = vor.u32 %v1588, %v1589
        %v1591 = vshll.u32 2475754826, %v1585
        %v1592 = vshrl.u32 2131351028, %v1586
        %v1593 = vor.u32 %v1591, %v1592
        %v1594 = vshll.u32 2131351028, %v1585
        %v1595 = vshrl.u32 2102212464, %v1586
        %v1596 = vor.u32 %v1594, %v1595
        %v1597 = vshll.u32 2102212464, %v1585
        %v1598 = vshrl.u32 920167782, %v1586
        %v1599 = vor.u32 %v1597, %v1598
        %v1600 = vshll.u32 920167782, %v1585
        %v1601 = vshrl.u32 1326507024, %v1586
        %v1602 = vor.u32 %v1600, %v1601
        %vm1603 = vcmp.lt.s32.totalorder %v1584, 1
        %vm1604 = vcmp.lt.s32.totalorder %v1584, 2
        %vm1605 = vcmp.lt.s32.totalorder %v1584, 3
        %vm1606 = vcmp.lt.s32.totalorder %v1584, 4
        %v1607 = vsel %vm1603, %v1587, %v1590
        %v1608 = vsel %vm1606, %v1596, 2102212464
        %v1609 = vsel %vm1605, %v1593, %v1608
        %v1610 = vsel %vm1604, %v1607, %v1609
        %v1611 = vsel %vm1603, %v1590, %v1593
        %v1612 = vsel %vm1606, %v1599, 920167782
        %v1613 = vsel %vm1605, %v1596, %v1612
        %v1614 = vsel %vm1604, %v1611, %v1613
        %v1615 = vsel %vm1603, %v1593, %v1596
        %v1616 = vsel %vm1606, %v1602, 1326507024
        %v1617 = vsel %vm1605, %v1599, %v1616
        %v1618 = vsel %vm1604, %v1615, %v1617
        %v1619 = vshll.u32 %v1579, 8
        %v1620 = vmul.u32.u64.compose %v1619, %v1618
        %v1621 = vextract.low.u32 %v1620
        %v1622 = vextract.high.u32 %v1620
        %v1623 = vmul.u32.u64.compose %v1619, %v1614
        %v1624 = vextract.low.u32 %v1623
        %v1625 = vextract.high.u32 %v1623
        %v1626 = vmul.u32 %v1619, %v1610
        %v1627 = vadd.s32 %v1622, %v1624
        %vm1628 = vc.u32 %v1622, %v1624
        %v1629 = vadd.s32 %v1625, 1
        %v1630 = vsel %vm1628, %v1629, %v1625
        %v1631 = vadd.s32 %v1626, %v1630
        %v1632 = vadd.s32 %v1631, 536870912
        %v1633 = vshrl.u32 %v1632, 30
        %v1634 = vshll.u32 %v1633, 30
        %v1635 = vsub.s32 %v1631, %v1634
        %vm1636 = vcmp.lt.s32.totalorder %v1635, 0
        %v1637 = vsub.s32 0, %v1635
        %v1638 = vsel %vm1636, %v1637, %v1635
        %v1639 = vclz %v1638
        %v1640 = vsub.s32 %v1639, 2
        %vm1641 = vcmp.gt.s32.totalorder 0, %v1640
        %v1642 = vsel %vm1641, 0, %v1640
        %v1643 = vsub.s32 32, %v1642
        %v1644 = vshll.u32 %v1635, %v1642
        %v1645 = vshrl.u32 %v1627, %v1643
        %v1646 = vor.u32 %v1644, %v1645
        %v1647 = vsub.s32 4294967266, %v1642
        %v1648 = vadd.s32 %v1647, 127
        %v1649 = vshll.u32 %v1648, 23
        %v1650 = vor.u32 4788187, %v1649
        %v1651 = vand.u32 2147483647, %v1650
        %v1653 = vcvt.s32.f32 %v1646
        %v1654 = vmul.f32 %v1653, %v1651
        %v1655 = vxor.u32 %v1654, 2147483648
        %v1656 = vsel %vm1573, %v1655, %v1654
        %v1657 = vsub.s32 4, %v1633
        %v1658 = vsel %vm1573, %v1657, %v1633
        %v1659 = vsel %vm1572, %v456, %v1656
        %v1660 = vsel %vm1572, 0, %v1658
        %v1661 = vcosq.f32.pop %v1659
        %v1662 = vsinq.f32.pop %v1659
        %vm1663 = vweird.f32 %v456
        %v1664 = vadd.s32 %v1660, 3
        %v1665 = vand.u32 %v1664, 3
        %vm1666 = vcmp.lt.s32.totalorder %v1665, 2
        %vm1667 = vcmp.eq.s32.totalorder %v1665, 0
        %v1668 = vxor.u32 %v1662, 2147483648
        %v1669 = vsel %vm1667, %v1661, %v1668
        %vm1670 = vcmp.eq.s32.totalorder %v1665, 2
        %v1671 = vxor.u32 %v1661, 2147483648
        %v1672 = vsel %vm1670, %v1671, %v1662
        %v1673 = vsel %vm1666, %v1669, %v1672
        %v1674 = vsel %vm1663, nan, %v1673
        %v1675 = vand.u32 2147483647, %v458
        %vm1676 = vcmp.le.f32.partialorder %v1675, 0.7853982
        %vm1677 = vcmp.lt.s32.totalorder %v458, 0
        %v1678 = vand.u32 %v458, 2139095040
        %v1679 = vshrl.u32 %v1678, 23
        %v1680 = vsub.s32 %v1679, 127
        %v1681 = vand.u32 2147483647, %v458
        %v1682 = vand.u32 %v1681, 8388607
        %v1683 = vor.u32 %v1682, 8388608
        %v1684 = vsub.s32 0, %v1683
        %v1685 = vadd.s32 %v1680, 1
        %vm1686 = vcmp.gt.s32.totalorder %v1685, 0
        %v1687 = vsel %vm1686, %v1685, 0
        %v1688 = vshrl.u32 %v1687, 5
        %v1689 = vand.u32 %v1687, 31
        %v1690 = vsub.s32 32, %v1689
        %v1691 = vshrl.u32 683565275, %v1690
        %v1692 = vshll.u32 683565275, %v1689
        %v1693 = vshrl.u32 2475754826, %v1690
        %v1694 = vor.u32 %v1692, %v1693
        %v1695 = vshll.u32 2475754826, %v1689
        %v1696 = vshrl.u32 2131351028, %v1690
        %v1697 = vor.u32 %v1695, %v1696
        %v1698 = vshll.u32 2131351028, %v1689
        %v1699 = vshrl.u32 2102212464, %v1690
        %v1700 = vor.u32 %v1698, %v1699
        %v1701 = vshll.u32 2102212464, %v1689
        %v1702 = vshrl.u32 920167782, %v1690
        %v1703 = vor.u32 %v1701, %v1702
        %v1704 = vshll.u32 920167782, %v1689
        %v1705 = vshrl.u32 1326507024, %v1690
        %v1706 = vor.u32 %v1704, %v1705
        %vm1707 = vcmp.lt.s32.totalorder %v1688, 1
        %vm1708 = vcmp.lt.s32.totalorder %v1688, 2
        %vm1709 = vcmp.lt.s32.totalorder %v1688, 3
        %vm1710 = vcmp.lt.s32.totalorder %v1688, 4
        %v1711 = vsel %vm1707, %v1691, %v1694
        %v1712 = vsel %vm1710, %v1700, 2102212464
        %v1713 = vsel %vm1709, %v1697, %v1712
        %v1714 = vsel %vm1708, %v1711, %v1713
        %v1715 = vsel %vm1707, %v1694, %v1697
        %v1716 = vsel %vm1710, %v1703, 920167782
        %v1717 = vsel %vm1709, %v1700, %v1716
        %v1718 = vsel %vm1708, %v1715, %v1717
        %v1719 = vsel %vm1707, %v1697, %v1700
        %v1720 = vsel %vm1710, %v1706, 1326507024
        %v1721 = vsel %vm1709, %v1703, %v1720
        %v1722 = vsel %vm1708, %v1719, %v1721
        %v1723 = vshll.u32 %v1683, 8
        %v1724 = vmul.u32.u64.compose %v1723, %v1722
        %v1725 = vextract.low.u32 %v1724
        %v1726 = vextract.high.u32 %v1724
        %v1727 = vmul.u32.u64.compose %v1723, %v1718
        %v1728 = vextract.low.u32 %v1727
        %v1729 = vextract.high.u32 %v1727
        %v1730 = vmul.u32 %v1723, %v1714
        %v1731 = vadd.s32 %v1726, %v1728
        %vm1732 = vc.u32 %v1726, %v1728
        %v1733 = vadd.s32 %v1729, 1
        %v1734 = vsel %vm1732, %v1733, %v1729
        %v1735 = vadd.s32 %v1730, %v1734
        %v1736 = vadd.s32 %v1735, 536870912
        %v1737 = vshrl.u32 %v1736, 30
        %v1738 = vshll.u32 %v1737, 30
        %v1739 = vsub.s32 %v1735, %v1738
        %vm1740 = vcmp.lt.s32.totalorder %v1739, 0
        %v1741 = vsub.s32 0, %v1739
        %v1742 = vsel %vm1740, %v1741, %v1739
        %v1743 = vclz %v1742
        %v1744 = vsub.s32 %v1743, 2
        %vm1745 = vcmp.gt.s32.totalorder 0, %v1744
        %v1746 = vsel %vm1745, 0, %v1744
        %v1747 = vsub.s32 32, %v1746
        %v1748 = vshll.u32 %v1739, %v1746
        %v1749 = vshrl.u32 %v1731, %v1747
        %v1750 = vor.u32 %v1748, %v1749
        %v1751 = vsub.s32 4294967266, %v1746
        %v1752 = vadd.s32 %v1751, 127
        %v1753 = vshll.u32 %v1752, 23
        %v1754 = vor.u32 4788187, %v1753
        %v1755 = vand.u32 2147483647, %v1754
        %v1757 = vcvt.s32.f32 %v1750
        %v1758 = vmul.f32 %v1757, %v1755
        %v1759 = vxor.u32 %v1758, 2147483648
        %v1760 = vsel %vm1677, %v1759, %v1758
        %v1761 = vsub.s32 4, %v1737
        %v1762 = vsel %vm1677, %v1761, %v1737
        %v1763 = vsel %vm1676, %v458, %v1760
        %v1764 = vsel %vm1676, 0, %v1762
        %v1765 = vcosq.f32.pop %v1763
        %v1766 = vsinq.f32.pop %v1763
        %vm1767 = vweird.f32 %v458
        %v1768 = vadd.s32 %v1764, 3
        %v1769 = vand.u32 %v1768, 3
        %vm1770 = vcmp.lt.s32.totalorder %v1769, 2
        %vm1771 = vcmp.eq.s32.totalorder %v1769, 0
        %v1772 = vxor.u32 %v1766, 2147483648
        %v1773 = vsel %vm1771, %v1765, %v1772
        %vm1774 = vcmp.eq.s32.totalorder %v1769, 2
        %v1775 = vxor.u32 %v1765, 2147483648
        %v1776 = vsel %vm1774, %v1775, %v1766
        %v1777 = vsel %vm1770, %v1773, %v1776
        %v1778 = vsel %vm1767, nan, %v1777
        %v1779 = vand.u32 2147483647, %v545
        %vm1780 = vcmp.le.f32.partialorder %v1779, 0.7853982
        %vm1781 = vcmp.lt.s32.totalorder %v545, 0
        %v1782 = vand.u32 %v545, 2139095040
        %v1783 = vshrl.u32 %v1782, 23
        %v1784 = vsub.s32 %v1783, 127
        %v1785 = vand.u32 2147483647, %v545
        %v1786 = vand.u32 %v1785, 8388607
        %v1787 = vor.u32 %v1786, 8388608
        %v1788 = vsub.s32 0, %v1787
        %v1789 = vadd.s32 %v1784, 1
        %vm1790 = vcmp.gt.s32.totalorder %v1789, 0
        %v1791 = vsel %vm1790, %v1789, 0
        %v1792 = vshrl.u32 %v1791, 5
        %v1793 = vand.u32 %v1791, 31
        %v1794 = vsub.s32 32, %v1793
        %v1795 = vshrl.u32 683565275, %v1794
        %v1796 = vshll.u32 683565275, %v1793
        %v1797 = vshrl.u32 2475754826, %v1794
        %v1798 = vor.u32 %v1796, %v1797
        %v1799 = vshll.u32 2475754826, %v1793
        %v1800 = vshrl.u32 2131351028, %v1794
        %v1801 = vor.u32 %v1799, %v1800
        %v1802 = vshll.u32 2131351028, %v1793
        %v1803 = vshrl.u32 2102212464, %v1794
        %v1804 = vor.u32 %v1802, %v1803
        %v1805 = vshll.u32 2102212464, %v1793
        %v1806 = vshrl.u32 920167782, %v1794
        %v1807 = vor.u32 %v1805, %v1806
        %v1808 = vshll.u32 920167782, %v1793
        %v1809 = vshrl.u32 1326507024, %v1794
        %v1810 = vor.u32 %v1808, %v1809
        %vm1811 = vcmp.lt.s32.totalorder %v1792, 1
        %vm1812 = vcmp.lt.s32.totalorder %v1792, 2
        %vm1813 = vcmp.lt.s32.totalorder %v1792, 3
        %vm1814 = vcmp.lt.s32.totalorder %v1792, 4
        %v1815 = vsel %vm1811, %v1795, %v1798
        %v1816 = vsel %vm1814, %v1804, 2102212464
        %v1817 = vsel %vm1813, %v1801, %v1816
        %v1818 = vsel %vm1812, %v1815, %v1817
        %v1819 = vsel %vm1811, %v1798, %v1801
        %v1820 = vsel %vm1814, %v1807, 920167782
        %v1821 = vsel %vm1813, %v1804, %v1820
        %v1822 = vsel %vm1812, %v1819, %v1821
        %v1823 = vsel %vm1811, %v1801, %v1804
        %v1824 = vsel %vm1814, %v1810, 1326507024
        %v1825 = vsel %vm1813, %v1807, %v1824
        %v1826 = vsel %vm1812, %v1823, %v1825
        %v1827 = vshll.u32 %v1787, 8
        %v1828 = vmul.u32.u64.compose %v1827, %v1826
        %v1829 = vextract.low.u32 %v1828
        %v1830 = vextract.high.u32 %v1828
        %v1831 = vmul.u32.u64.compose %v1827, %v1822
        %v1832 = vextract.low.u32 %v1831
        %v1833 = vextract.high.u32 %v1831
        %v1834 = vmul.u32 %v1827, %v1818
        %v1835 = vadd.s32 %v1830, %v1832
        %vm1836 = vc.u32 %v1830, %v1832
        %v1837 = vadd.s32 %v1833, 1
        %v1838 = vsel %vm1836, %v1837, %v1833
        %v1839 = vadd.s32 %v1834, %v1838
        %v1840 = vadd.s32 %v1839, 536870912
        %v1841 = vshrl.u32 %v1840, 30
        %v1842 = vshll.u32 %v1841, 30
        %v1843 = vsub.s32 %v1839, %v1842
        %vm1844 = vcmp.lt.s32.totalorder %v1843, 0
        %v1845 = vsub.s32 0, %v1843
        %v1846 = vsel %vm1844, %v1845, %v1843
        %v1847 = vclz %v1846
        %v1848 = vsub.s32 %v1847, 2
        %vm1849 = vcmp.gt.s32.totalorder 0, %v1848
        %v1850 = vsel %vm1849, 0, %v1848
        %v1851 = vsub.s32 32, %v1850
        %v1852 = vshll.u32 %v1843, %v1850
        %v1853 = vshrl.u32 %v1835, %v1851
        %v1854 = vor.u32 %v1852, %v1853
        %v1855 = vsub.s32 4294967266, %v1850
        %v1856 = vadd.s32 %v1855, 127
        %v1857 = vshll.u32 %v1856, 23
        %v1858 = vor.u32 4788187, %v1857
        %v1859 = vand.u32 2147483647, %v1858
        %v1861 = vcvt.s32.f32 %v1854
        %v1862 = vmul.f32 %v1861, %v1859
        %v1863 = vxor.u32 %v1862, 2147483648
        %v1864 = vsel %vm1781, %v1863, %v1862
        %v1865 = vsub.s32 4, %v1841
        %v1866 = vsel %vm1781, %v1865, %v1841
        %v1867 = vsel %vm1780, %v545, %v1864
        %v1868 = vsel %vm1780, 0, %v1866
        %v1869 = vcosq.f32.pop %v1867
        %v1870 = vsinq.f32.pop %v1867
        %vm1871 = vweird.f32 %v545
        %v1872 = vadd.s32 %v1868, 3
        %v1873 = vand.u32 %v1872, 3
        %vm1874 = vcmp.lt.s32.totalorder %v1873, 2
        %vm1875 = vcmp.eq.s32.totalorder %v1873, 0
        %v1876 = vxor.u32 %v1870, 2147483648
        %v1877 = vsel %vm1875, %v1869, %v1876
        %vm1878 = vcmp.eq.s32.totalorder %v1873, 2
        %v1879 = vxor.u32 %v1869, 2147483648
        %v1880 = vsel %vm1878, %v1879, %v1870
        %v1881 = vsel %vm1874, %v1877, %v1880
        %v1882 = vsel %vm1871, nan, %v1881
        %v1883 = vand.u32 2147483647, %v547
        %vm1884 = vcmp.le.f32.partialorder %v1883, 0.7853982
        %vm1885 = vcmp.lt.s32.totalorder %v547, 0
        %v1886 = vand.u32 %v547, 2139095040
        %v1887 = vshrl.u32 %v1886, 23
        %v1888 = vsub.s32 %v1887, 127
        %v1889 = vand.u32 2147483647, %v547
        %v1890 = vand.u32 %v1889, 8388607
        %v1891 = vor.u32 %v1890, 8388608
        %v1892 = vsub.s32 0, %v1891
        %v1893 = vadd.s32 %v1888, 1
        %vm1894 = vcmp.gt.s32.totalorder %v1893, 0
        %v1895 = vsel %vm1894, %v1893, 0
        %v1896 = vshrl.u32 %v1895, 5
        %v1897 = vand.u32 %v1895, 31
        %v1898 = vsub.s32 32, %v1897
        %v1899 = vshrl.u32 683565275, %v1898
        %v1900 = vshll.u32 683565275, %v1897
        %v1901 = vshrl.u32 2475754826, %v1898
        %v1902 = vor.u32 %v1900, %v1901
        %v1903 = vshll.u32 2475754826, %v1897
        %v1904 = vshrl.u32 2131351028, %v1898
        %v1905 = vor.u32 %v1903, %v1904
        %v1906 = vshll.u32 2131351028, %v1897
        %v1907 = vshrl.u32 2102212464, %v1898
        %v1908 = vor.u32 %v1906, %v1907
        %v1909 = vshll.u32 2102212464, %v1897
        %v1910 = vshrl.u32 920167782, %v1898
        %v1911 = vor.u32 %v1909, %v1910
        %v1912 = vshll.u32 920167782, %v1897
        %v1913 = vshrl.u32 1326507024, %v1898
        %v1914 = vor.u32 %v1912, %v1913
        %vm1915 = vcmp.lt.s32.totalorder %v1896, 1
        %vm1916 = vcmp.lt.s32.totalorder %v1896, 2
        %vm1917 = vcmp.lt.s32.totalorder %v1896, 3
        %vm1918 = vcmp.lt.s32.totalorder %v1896, 4
        %v1919 = vsel %vm1915, %v1899, %v1902
        %v1920 = vsel %vm1918, %v1908, 2102212464
        %v1921 = vsel %vm1917, %v1905, %v1920
        %v1922 = vsel %vm1916, %v1919, %v1921
        %v1923 = vsel %vm1915, %v1902, %v1905
        %v1924 = vsel %vm1918, %v1911, 920167782
        %v1925 = vsel %vm1917, %v1908, %v1924
        %v1926 = vsel %vm1916, %v1923, %v1925
        %v1927 = vsel %vm1915, %v1905, %v1908
        %v1928 = vsel %vm1918, %v1914, 1326507024
        %v1929 = vsel %vm1917, %v1911, %v1928
        %v1930 = vsel %vm1916, %v1927, %v1929
        %v1931 = vshll.u32 %v1891, 8
        %v1932 = vmul.u32.u64.compose %v1931, %v1930
        %v1933 = vextract.low.u32 %v1932
        %v1934 = vextract.high.u32 %v1932
        %v1935 = vmul.u32.u64.compose %v1931, %v1926
        %v1936 = vextract.low.u32 %v1935
        %v1937 = vextract.high.u32 %v1935
        %v1938 = vmul.u32 %v1931, %v1922
        %v1939 = vadd.s32 %v1934, %v1936
        %vm1940 = vc.u32 %v1934, %v1936
        %v1941 = vadd.s32 %v1937, 1
        %v1942 = vsel %vm1940, %v1941, %v1937
        %v1943 = vadd.s32 %v1938, %v1942
        %v1944 = vadd.s32 %v1943, 536870912
        %v1945 = vshrl.u32 %v1944, 30
        %v1946 = vshll.u32 %v1945, 30
        %v1947 = vsub.s32 %v1943, %v1946
        %vm1948 = vcmp.lt.s32.totalorder %v1947, 0
        %v1949 = vsub.s32 0, %v1947
        %v1950 = vsel %vm1948, %v1949, %v1947
        %v1951 = vclz %v1950
        %v1952 = vsub.s32 %v1951, 2
        %vm1953 = vcmp.gt.s32.totalorder 0, %v1952
        %v1954 = vsel %vm1953, 0, %v1952
        %v1955 = vsub.s32 32, %v1954
        %v1956 = vshll.u32 %v1947, %v1954
        %v1957 = vshrl.u32 %v1939, %v1955
        %v1958 = vor.u32 %v1956, %v1957
        %v1959 = vsub.s32 4294967266, %v1954
        %v1960 = vadd.s32 %v1959, 127
        %v1961 = vshll.u32 %v1960, 23
        %v1962 = vor.u32 4788187, %v1961
        %v1963 = vand.u32 2147483647, %v1962
        %v1965 = vcvt.s32.f32 %v1958
        %v1966 = vmul.f32 %v1965, %v1963
        %v1967 = vxor.u32 %v1966, 2147483648
        %v1968 = vsel %vm1885, %v1967, %v1966
        %v1969 = vsub.s32 4, %v1945
        %v1970 = vsel %vm1885, %v1969, %v1945
        %v1971 = vsel %vm1884, %v547, %v1968
        %v1972 = vsel %vm1884, 0, %v1970
        %v1973 = vcosq.f32.pop %v1971
        %v1974 = vsinq.f32.pop %v1971
        %vm1975 = vweird.f32 %v547
        %v1976 = vadd.s32 %v1972, 3
        %v1977 = vand.u32 %v1976, 3
        %vm1978 = vcmp.lt.s32.totalorder %v1977, 2
        %vm1979 = vcmp.eq.s32.totalorder %v1977, 0
        %v1980 = vxor.u32 %v1974, 2147483648
        %v1981 = vsel %vm1979, %v1973, %v1980
        %vm1982 = vcmp.eq.s32.totalorder %v1977, 2
        %v1983 = vxor.u32 %v1973, 2147483648
        %v1984 = vsel %vm1982, %v1983, %v1974
        %v1985 = vsel %vm1978, %v1981, %v1984
        %v1986 = vsel %vm1975, nan, %v1985
        %v1987 = vand.u32 2147483647, %v634
        %vm1988 = vcmp.le.f32.partialorder %v1987, 0.7853982
        %vm1989 = vcmp.lt.s32.totalorder %v634, 0
        %v1990 = vand.u32 %v634, 2139095040
        %v1991 = vshrl.u32 %v1990, 23
        %v1992 = vsub.s32 %v1991, 127
        %v1993 = vand.u32 2147483647, %v634
        %v1994 = vand.u32 %v1993, 8388607
        %v1995 = vor.u32 %v1994, 8388608
        %v1996 = vsub.s32 0, %v1995
        %v1997 = vadd.s32 %v1992, 1
        %vm1998 = vcmp.gt.s32.totalorder %v1997, 0
        %v1999 = vsel %vm1998, %v1997, 0
        %v2000 = vshrl.u32 %v1999, 5
        %v2001 = vand.u32 %v1999, 31
        %v2002 = vsub.s32 32, %v2001
        %v2003 = vshrl.u32 683565275, %v2002
        %v2004 = vshll.u32 683565275, %v2001
        %v2005 = vshrl.u32 2475754826, %v2002
        %v2006 = vor.u32 %v2004, %v2005
        %v2007 = vshll.u32 2475754826, %v2001
        %v2008 = vshrl.u32 2131351028, %v2002
        %v2009 = vor.u32 %v2007, %v2008
        %v2010 = vshll.u32 2131351028, %v2001
        %v2011 = vshrl.u32 2102212464, %v2002
        %v2012 = vor.u32 %v2010, %v2011
        %v2013 = vshll.u32 2102212464, %v2001
        %v2014 = vshrl.u32 920167782, %v2002
        %v2015 = vor.u32 %v2013, %v2014
        %v2016 = vshll.u32 920167782, %v2001
        %v2017 = vshrl.u32 1326507024, %v2002
        %v2018 = vor.u32 %v2016, %v2017
        %vm2019 = vcmp.lt.s32.totalorder %v2000, 1
        %vm2020 = vcmp.lt.s32.totalorder %v2000, 2
        %vm2021 = vcmp.lt.s32.totalorder %v2000, 3
        %vm2022 = vcmp.lt.s32.totalorder %v2000, 4
        %v2023 = vsel %vm2019, %v2003, %v2006
        %v2024 = vsel %vm2022, %v2012, 2102212464
        %v2025 = vsel %vm2021, %v2009, %v2024
        %v2026 = vsel %vm2020, %v2023, %v2025
        %v2027 = vsel %vm2019, %v2006, %v2009
        %v2028 = vsel %vm2022, %v2015, 920167782
        %v2029 = vsel %vm2021, %v2012, %v2028
        %v2030 = vsel %vm2020, %v2027, %v2029
        %v2031 = vsel %vm2019, %v2009, %v2012
        %v2032 = vsel %vm2022, %v2018, 1326507024
        %v2033 = vsel %vm2021, %v2015, %v2032
        %v2034 = vsel %vm2020, %v2031, %v2033
        %v2035 = vshll.u32 %v1995, 8
        %v2036 = vmul.u32.u64.compose %v2035, %v2034
        %v2037 = vextract.low.u32 %v2036
        %v2038 = vextract.high.u32 %v2036
        %v2039 = vmul.u32.u64.compose %v2035, %v2030
        %v2040 = vextract.low.u32 %v2039
        %v2041 = vextract.high.u32 %v2039
        %v2042 = vmul.u32 %v2035, %v2026
        %v2043 = vadd.s32 %v2038, %v2040
        %vm2044 = vc.u32 %v2038, %v2040
        %v2045 = vadd.s32 %v2041, 1
        %v2046 = vsel %vm2044, %v2045, %v2041
        %v2047 = vadd.s32 %v2042, %v2046
        %v2048 = vadd.s32 %v2047, 536870912
        %v2049 = vshrl.u32 %v2048, 30
        %v2050 = vshll.u32 %v2049, 30
        %v2051 = vsub.s32 %v2047, %v2050
        %vm2052 = vcmp.lt.s32.totalorder %v2051, 0
        %v2053 = vsub.s32 0, %v2051
        %v2054 = vsel %vm2052, %v2053, %v2051
        %v2055 = vclz %v2054
        %v2056 = vsub.s32 %v2055, 2
        %vm2057 = vcmp.gt.s32.totalorder 0, %v2056
        %v2058 = vsel %vm2057, 0, %v2056
        %v2059 = vsub.s32 32, %v2058
        %v2060 = vshll.u32 %v2051, %v2058
        %v2061 = vshrl.u32 %v2043, %v2059
        %v2062 = vor.u32 %v2060, %v2061
        %v2063 = vsub.s32 4294967266, %v2058
        %v2064 = vadd.s32 %v2063, 127
        %v2065 = vshll.u32 %v2064, 23
        %v2066 = vor.u32 4788187, %v2065
        %v2067 = vand.u32 2147483647, %v2066
        %v2069 = vcvt.s32.f32 %v2062
        %v2070 = vmul.f32 %v2069, %v2067
        %v2071 = vxor.u32 %v2070, 2147483648
        %v2072 = vsel %vm1989, %v2071, %v2070
        %v2073 = vsub.s32 4, %v2049
        %v2074 = vsel %vm1989, %v2073, %v2049
        %v2075 = vsel %vm1988, %v634, %v2072
        %v2076 = vsel %vm1988, 0, %v2074
        %v2077 = vcosq.f32.pop %v2075
        %v2078 = vsinq.f32.pop %v2075
        %vm2079 = vweird.f32 %v634
        %v2080 = vadd.s32 %v2076, 3
        %v2081 = vand.u32 %v2080, 3
        %vm2082 = vcmp.lt.s32.totalorder %v2081, 2
        %vm2083 = vcmp.eq.s32.totalorder %v2081, 0
        %v2084 = vxor.u32 %v2078, 2147483648
        %v2085 = vsel %vm2083, %v2077, %v2084
        %vm2086 = vcmp.eq.s32.totalorder %v2081, 2
        %v2087 = vxor.u32 %v2077, 2147483648
        %v2088 = vsel %vm2086, %v2087, %v2078
        %v2089 = vsel %vm2082, %v2085, %v2088
        %v2090 = vsel %vm2079, nan, %v2089
        %v2091 = vand.u32 2147483647, %v636
        %vm2092 = vcmp.le.f32.partialorder %v2091, 0.7853982
        %vm2093 = vcmp.lt.s32.totalorder %v636, 0
        %v2094 = vand.u32 %v636, 2139095040
        %v2095 = vshrl.u32 %v2094, 23
        %v2096 = vsub.s32 %v2095, 127
        %v2097 = vand.u32 2147483647, %v636
        %v2098 = vand.u32 %v2097, 8388607
        %v2099 = vor.u32 %v2098, 8388608
        %v2100 = vsub.s32 0, %v2099
        %v2101 = vadd.s32 %v2096, 1
        %vm2102 = vcmp.gt.s32.totalorder %v2101, 0
        %v2103 = vsel %vm2102, %v2101, 0
        %v2104 = vshrl.u32 %v2103, 5
        %v2105 = vand.u32 %v2103, 31
        %v2106 = vsub.s32 32, %v2105
        %v2107 = vshrl.u32 683565275, %v2106
        %v2108 = vshll.u32 683565275, %v2105
        %v2109 = vshrl.u32 2475754826, %v2106
        %v2110 = vor.u32 %v2108, %v2109
        %v2111 = vshll.u32 2475754826, %v2105
        %v2112 = vshrl.u32 2131351028, %v2106
        %v2113 = vor.u32 %v2111, %v2112
        %v2114 = vshll.u32 2131351028, %v2105
        %v2115 = vshrl.u32 2102212464, %v2106
        %v2116 = vor.u32 %v2114, %v2115
        %v2117 = vshll.u32 2102212464, %v2105
        %v2118 = vshrl.u32 920167782, %v2106
        %v2119 = vor.u32 %v2117, %v2118
        %v2120 = vshll.u32 920167782, %v2105
        %v2121 = vshrl.u32 1326507024, %v2106
        %v2122 = vor.u32 %v2120, %v2121
        %vm2123 = vcmp.lt.s32.totalorder %v2104, 1
        %vm2124 = vcmp.lt.s32.totalorder %v2104, 2
        %vm2125 = vcmp.lt.s32.totalorder %v2104, 3
        %vm2126 = vcmp.lt.s32.totalorder %v2104, 4
        %v2127 = vsel %vm2123, %v2107, %v2110
        %v2128 = vsel %vm2126, %v2116, 2102212464
        %v2129 = vsel %vm2125, %v2113, %v2128
        %v2130 = vsel %vm2124, %v2127, %v2129
        %v2131 = vsel %vm2123, %v2110, %v2113
        %v2132 = vsel %vm2126, %v2119, 920167782
        %v2133 = vsel %vm2125, %v2116, %v2132
        %v2134 = vsel %vm2124, %v2131, %v2133
        %v2135 = vsel %vm2123, %v2113, %v2116
        %v2136 = vsel %vm2126, %v2122, 1326507024
        %v2137 = vsel %vm2125, %v2119, %v2136
        %v2138 = vsel %vm2124, %v2135, %v2137
        %v2139 = vshll.u32 %v2099, 8
        %v2140 = vmul.u32.u64.compose %v2139, %v2138
        %v2141 = vextract.low.u32 %v2140
        %v2142 = vextract.high.u32 %v2140
        %v2143 = vmul.u32.u64.compose %v2139, %v2134
        %v2144 = vextract.low.u32 %v2143
        %v2145 = vextract.high.u32 %v2143
        %v2146 = vmul.u32 %v2139, %v2130
        %v2147 = vadd.s32 %v2142, %v2144
        %vm2148 = vc.u32 %v2142, %v2144
        %v2149 = vadd.s32 %v2145, 1
        %v2150 = vsel %vm2148, %v2149, %v2145
        %v2151 = vadd.s32 %v2146, %v2150
        %v2152 = vadd.s32 %v2151, 536870912
        %v2153 = vshrl.u32 %v2152, 30
        %v2154 = vshll.u32 %v2153, 30
        %v2155 = vsub.s32 %v2151, %v2154
        %vm2156 = vcmp.lt.s32.totalorder %v2155, 0
        %v2157 = vsub.s32 0, %v2155
        %v2158 = vsel %vm2156, %v2157, %v2155
        %v2159 = vclz %v2158
        %v2160 = vsub.s32 %v2159, 2
        %vm2161 = vcmp.gt.s32.totalorder 0, %v2160
        %v2162 = vsel %vm2161, 0, %v2160
        %v2163 = vsub.s32 32, %v2162
        %v2164 = vshll.u32 %v2155, %v2162
        %v2165 = vshrl.u32 %v2147, %v2163
        %v2166 = vor.u32 %v2164, %v2165
        %v2167 = vsub.s32 4294967266, %v2162
        %v2168 = vadd.s32 %v2167, 127
        %v2169 = vshll.u32 %v2168, 23
        %v2170 = vor.u32 4788187, %v2169
        %v2171 = vand.u32 2147483647, %v2170
        %v2173 = vcvt.s32.f32 %v2166
        %v2174 = vmul.f32 %v2173, %v2171
        %v2175 = vxor.u32 %v2174, 2147483648
        %v2176 = vsel %vm2093, %v2175, %v2174
        %v2177 = vsub.s32 4, %v2153
        %v2178 = vsel %vm2093, %v2177, %v2153
        %v2179 = vsel %vm2092, %v636, %v2176
        %v2180 = vsel %vm2092, 0, %v2178
        %v2181 = vcosq.f32.pop %v2179
        %v2182 = vsinq.f32.pop %v2179
        %vm2183 = vweird.f32 %v636
        %v2184 = vadd.s32 %v2180, 3
        %v2185 = vand.u32 %v2184, 3
        %vm2186 = vcmp.lt.s32.totalorder %v2185, 2
        %vm2187 = vcmp.eq.s32.totalorder %v2185, 0
        %v2188 = vxor.u32 %v2182, 2147483648
        %v2189 = vsel %vm2187, %v2181, %v2188
        %vm2190 = vcmp.eq.s32.totalorder %v2185, 2
        %v2191 = vxor.u32 %v2181, 2147483648
        %v2192 = vsel %vm2190, %v2191, %v2182
        %v2193 = vsel %vm2186, %v2189, %v2192
        %v2194 = vsel %vm2183, nan, %v2193
        %v2195 = vand.u32 2147483647, %v723
        %vm2196 = vcmp.le.f32.partialorder %v2195, 0.7853982
        %vm2197 = vcmp.lt.s32.totalorder %v723, 0
        %v2198 = vand.u32 %v723, 2139095040
        %v2199 = vshrl.u32 %v2198, 23
        %v2200 = vsub.s32 %v2199, 127
        %v2201 = vand.u32 2147483647, %v723
        %v2202 = vand.u32 %v2201, 8388607
        %v2203 = vor.u32 %v2202, 8388608
        %v2204 = vsub.s32 0, %v2203
        %v2205 = vadd.s32 %v2200, 1
        %vm2206 = vcmp.gt.s32.totalorder %v2205, 0
        %v2207 = vsel %vm2206, %v2205, 0
        %v2208 = vshrl.u32 %v2207, 5
        %v2209 = vand.u32 %v2207, 31
        %v2210 = vsub.s32 32, %v2209
        %v2211 = vshrl.u32 683565275, %v2210
        %v2212 = vshll.u32 683565275, %v2209
        %v2213 = vshrl.u32 2475754826, %v2210
        %v2214 = vor.u32 %v2212, %v2213
        %v2215 = vshll.u32 2475754826, %v2209
        %v2216 = vshrl.u32 2131351028, %v2210
        %v2217 = vor.u32 %v2215, %v2216
        %v2218 = vshll.u32 2131351028, %v2209
        %v2219 = vshrl.u32 2102212464, %v2210
        %v2220 = vor.u32 %v2218, %v2219
        %v2221 = vshll.u32 2102212464, %v2209
        %v2222 = vshrl.u32 920167782, %v2210
        %v2223 = vor.u32 %v2221, %v2222
        %v2224 = vshll.u32 920167782, %v2209
        %v2225 = vshrl.u32 1326507024, %v2210
        %v2226 = vor.u32 %v2224, %v2225
        %vm2227 = vcmp.lt.s32.totalorder %v2208, 1
        %vm2228 = vcmp.lt.s32.totalorder %v2208, 2
        %vm2229 = vcmp.lt.s32.totalorder %v2208, 3
        %vm2230 = vcmp.lt.s32.totalorder %v2208, 4
        %v2231 = vsel %vm2227, %v2211, %v2214
        %v2232 = vsel %vm2230, %v2220, 2102212464
        %v2233 = vsel %vm2229, %v2217, %v2232
        %v2234 = vsel %vm2228, %v2231, %v2233
        %v2235 = vsel %vm2227, %v2214, %v2217
        %v2236 = vsel %vm2230, %v2223, 920167782
        %v2237 = vsel %vm2229, %v2220, %v2236
        %v2238 = vsel %vm2228, %v2235, %v2237
        %v2239 = vsel %vm2227, %v2217, %v2220
        %v2240 = vsel %vm2230, %v2226, 1326507024
        %v2241 = vsel %vm2229, %v2223, %v2240
        %v2242 = vsel %vm2228, %v2239, %v2241
        %v2243 = vshll.u32 %v2203, 8
        %v2244 = vmul.u32.u64.compose %v2243, %v2242
        %v2245 = vextract.low.u32 %v2244
        %v2246 = vextract.high.u32 %v2244
        %v2247 = vmul.u32.u64.compose %v2243, %v2238
        %v2248 = vextract.low.u32 %v2247
        %v2249 = vextract.high.u32 %v2247
        %v2250 = vmul.u32 %v2243, %v2234
        %v2251 = vadd.s32 %v2246, %v2248
        %vm2252 = vc.u32 %v2246, %v2248
        %v2253 = vadd.s32 %v2249, 1
        %v2254 = vsel %vm2252, %v2253, %v2249
        %v2255 = vadd.s32 %v2250, %v2254
        %v2256 = vadd.s32 %v2255, 536870912
        %v2257 = vshrl.u32 %v2256, 30
        %v2258 = vshll.u32 %v2257, 30
        %v2259 = vsub.s32 %v2255, %v2258
        %vm2260 = vcmp.lt.s32.totalorder %v2259, 0
        %v2261 = vsub.s32 0, %v2259
        %v2262 = vsel %vm2260, %v2261, %v2259
        %v2263 = vclz %v2262
        %v2264 = vsub.s32 %v2263, 2
        %vm2265 = vcmp.gt.s32.totalorder 0, %v2264
        %v2266 = vsel %vm2265, 0, %v2264
        %v2267 = vsub.s32 32, %v2266
        %v2268 = vshll.u32 %v2259, %v2266
        %v2269 = vshrl.u32 %v2251, %v2267
        %v2270 = vor.u32 %v2268, %v2269
        %v2271 = vsub.s32 4294967266, %v2266
        %v2272 = vadd.s32 %v2271, 127
        %v2273 = vshll.u32 %v2272, 23
        %v2274 = vor.u32 4788187, %v2273
        %v2275 = vand.u32 2147483647, %v2274
        %v2277 = vcvt.s32.f32 %v2270
        %v2278 = vmul.f32 %v2277, %v2275
        %v2279 = vxor.u32 %v2278, 2147483648
        %v2280 = vsel %vm2197, %v2279, %v2278
        %v2281 = vsub.s32 4, %v2257
        %v2282 = vsel %vm2197, %v2281, %v2257
        %v2283 = vsel %vm2196, %v723, %v2280
        %v2284 = vsel %vm2196, 0, %v2282
        %v2285 = vcosq.f32.pop %v2283
        %v2286 = vsinq.f32.pop %v2283
        %vm2287 = vweird.f32 %v723
        %v2288 = vadd.s32 %v2284, 3
        %v2289 = vand.u32 %v2288, 3
        %vm2290 = vcmp.lt.s32.totalorder %v2289, 2
        %vm2291 = vcmp.eq.s32.totalorder %v2289, 0
        %v2292 = vxor.u32 %v2286, 2147483648
        %v2293 = vsel %vm2291, %v2285, %v2292
        %vm2294 = vcmp.eq.s32.totalorder %v2289, 2
        %v2295 = vxor.u32 %v2285, 2147483648
        %v2296 = vsel %vm2294, %v2295, %v2286
        %v2297 = vsel %vm2290, %v2293, %v2296
        %v2298 = vsel %vm2287, nan, %v2297
        %v2299 = vand.u32 2147483647, %v725
        %vm2300 = vcmp.le.f32.partialorder %v2299, 0.7853982
        %vm2301 = vcmp.lt.s32.totalorder %v725, 0
        %v2302 = vand.u32 %v725, 2139095040
        %v2303 = vshrl.u32 %v2302, 23
        %v2304 = vsub.s32 %v2303, 127
        %v2305 = vand.u32 2147483647, %v725
        %v2306 = vand.u32 %v2305, 8388607
        %v2307 = vor.u32 %v2306, 8388608
        %v2308 = vsub.s32 0, %v2307
        %v2309 = vadd.s32 %v2304, 1
        %vm2310 = vcmp.gt.s32.totalorder %v2309, 0
        %v2311 = vsel %vm2310, %v2309, 0
        %v2312 = vshrl.u32 %v2311, 5
        %v2313 = vand.u32 %v2311, 31
        %v2314 = vsub.s32 32, %v2313
        %v2315 = vshrl.u32 683565275, %v2314
        %v2316 = vshll.u32 683565275, %v2313
        %v2317 = vshrl.u32 2475754826, %v2314
        %v2318 = vor.u32 %v2316, %v2317
        %v2319 = vshll.u32 2475754826, %v2313
        %v2320 = vshrl.u32 2131351028, %v2314
        %v2321 = vor.u32 %v2319, %v2320
        %v2322 = vshll.u32 2131351028, %v2313
        %v2323 = vshrl.u32 2102212464, %v2314
        %v2324 = vor.u32 %v2322, %v2323
        %v2325 = vshll.u32 2102212464, %v2313
        %v2326 = vshrl.u32 920167782, %v2314
        %v2327 = vor.u32 %v2325, %v2326
        %v2328 = vshll.u32 920167782, %v2313
        %v2329 = vshrl.u32 1326507024, %v2314
        %v2330 = vor.u32 %v2328, %v2329
        %vm2331 = vcmp.lt.s32.totalorder %v2312, 1
        %vm2332 = vcmp.lt.s32.totalorder %v2312, 2
        %vm2333 = vcmp.lt.s32.totalorder %v2312, 3
        %vm2334 = vcmp.lt.s32.totalorder %v2312, 4
        %v2335 = vsel %vm2331, %v2315, %v2318
        %v2336 = vsel %vm2334, %v2324, 2102212464
        %v2337 = vsel %vm2333, %v2321, %v2336
        %v2338 = vsel %vm2332, %v2335, %v2337
        %v2339 = vsel %vm2331, %v2318, %v2321
        %v2340 = vsel %vm2334, %v2327, 920167782
        %v2341 = vsel %vm2333, %v2324, %v2340
        %v2342 = vsel %vm2332, %v2339, %v2341
        %v2343 = vsel %vm2331, %v2321, %v2324
        %v2344 = vsel %vm2334, %v2330, 1326507024
        %v2345 = vsel %vm2333, %v2327, %v2344
        %v2346 = vsel %vm2332, %v2343, %v2345
        %v2347 = vshll.u32 %v2307, 8
        %v2348 = vmul.u32.u64.compose %v2347, %v2346
        %v2349 = vextract.low.u32 %v2348
        %v2350 = vextract.high.u32 %v2348
        %v2351 = vmul.u32.u64.compose %v2347, %v2342
        %v2352 = vextract.low.u32 %v2351
        %v2353 = vextract.high.u32 %v2351
        %v2354 = vmul.u32 %v2347, %v2338
        %v2355 = vadd.s32 %v2350, %v2352
        %vm2356 = vc.u32 %v2350, %v2352
        %v2357 = vadd.s32 %v2353, 1
        %v2358 = vsel %vm2356, %v2357, %v2353
        %v2359 = vadd.s32 %v2354, %v2358
        %v2360 = vadd.s32 %v2359, 536870912
        %v2361 = vshrl.u32 %v2360, 30
        %v2362 = vshll.u32 %v2361, 30
        %v2363 = vsub.s32 %v2359, %v2362
        %vm2364 = vcmp.lt.s32.totalorder %v2363, 0
        %v2365 = vsub.s32 0, %v2363
        %v2366 = vsel %vm2364, %v2365, %v2363
        %v2367 = vclz %v2366
        %v2368 = vsub.s32 %v2367, 2
        %vm2369 = vcmp.gt.s32.totalorder 0, %v2368
        %v2370 = vsel %vm2369, 0, %v2368
        %v2371 = vsub.s32 32, %v2370
        %v2372 = vshll.u32 %v2363, %v2370
        %v2373 = vshrl.u32 %v2355, %v2371
        %v2374 = vor.u32 %v2372, %v2373
        %v2375 = vsub.s32 4294967266, %v2370
        %v2376 = vadd.s32 %v2375, 127
        %v2377 = vshll.u32 %v2376, 23
        %v2378 = vor.u32 4788187, %v2377
        %v2379 = vand.u32 2147483647, %v2378
        %v2381 = vcvt.s32.f32 %v2374
        %v2382 = vmul.f32 %v2381, %v2379
        %v2383 = vxor.u32 %v2382, 2147483648
        %v2384 = vsel %vm2301, %v2383, %v2382
        %v2385 = vsub.s32 4, %v2361
        %v2386 = vsel %vm2301, %v2385, %v2361
        %v2387 = vsel %vm2300, %v725, %v2384
        %v2388 = vsel %vm2300, 0, %v2386
        %v2389 = vcosq.f32.pop %v2387
        %v2390 = vsinq.f32.pop %v2387
        %vm2391 = vweird.f32 %v725
        %v2392 = vadd.s32 %v2388, 3
        %v2393 = vand.u32 %v2392, 3
        %vm2394 = vcmp.lt.s32.totalorder %v2393, 2
        %vm2395 = vcmp.eq.s32.totalorder %v2393, 0
        %v2396 = vxor.u32 %v2390, 2147483648
        %v2397 = vsel %vm2395, %v2389, %v2396
        %vm2398 = vcmp.eq.s32.totalorder %v2393, 2
        %v2399 = vxor.u32 %v2389, 2147483648
        %v2400 = vsel %vm2398, %v2399, %v2390
        %v2401 = vsel %vm2394, %v2397, %v2400
        %v2402 = vsel %vm2391, nan, %v2401
        %v2403 = vand.u32 2147483647, %v462
        %vm2404 = vcmp.le.f32.partialorder %v2403, 0.7853982
        %vm2405 = vcmp.lt.s32.totalorder %v462, 0
        %v2406 = vand.u32 %v462, 2139095040
        %v2407 = vshrl.u32 %v2406, 23
        %v2408 = vsub.s32 %v2407, 127
        %v2409 = vand.u32 2147483647, %v462
        %v2410 = vand.u32 %v2409, 8388607
        %v2411 = vor.u32 %v2410, 8388608
        %v2412 = vsub.s32 0, %v2411
        %v2413 = vadd.s32 %v2408, 1
        %vm2414 = vcmp.gt.s32.totalorder %v2413, 0
        %v2415 = vsel %vm2414, %v2413, 0
        %v2416 = vshrl.u32 %v2415, 5
        %v2417 = vand.u32 %v2415, 31
        %v2418 = vsub.s32 32, %v2417
        %v2419 = vshrl.u32 683565275, %v2418
        %v2420 = vshll.u32 683565275, %v2417
        %v2421 = vshrl.u32 2475754826, %v2418
        %v2422 = vor.u32 %v2420, %v2421
        %v2423 = vshll.u32 2475754826, %v2417
        %v2424 = vshrl.u32 2131351028, %v2418
        %v2425 = vor.u32 %v2423, %v2424
        %v2426 = vshll.u32 2131351028, %v2417
        %v2427 = vshrl.u32 2102212464, %v2418
        %v2428 = vor.u32 %v2426, %v2427
        %v2429 = vshll.u32 2102212464, %v2417
        %v2430 = vshrl.u32 920167782, %v2418
        %v2431 = vor.u32 %v2429, %v2430
        %v2432 = vshll.u32 920167782, %v2417
        %v2433 = vshrl.u32 1326507024, %v2418
        %v2434 = vor.u32 %v2432, %v2433
        %vm2435 = vcmp.lt.s32.totalorder %v2416, 1
        %vm2436 = vcmp.lt.s32.totalorder %v2416, 2
        %vm2437 = vcmp.lt.s32.totalorder %v2416, 3
        %vm2438 = vcmp.lt.s32.totalorder %v2416, 4
        %v2439 = vsel %vm2435, %v2419, %v2422
        %v2440 = vsel %vm2438, %v2428, 2102212464
        %v2441 = vsel %vm2437, %v2425, %v2440
        %v2442 = vsel %vm2436, %v2439, %v2441
        %v2443 = vsel %vm2435, %v2422, %v2425
        %v2444 = vsel %vm2438, %v2431, 920167782
        %v2445 = vsel %vm2437, %v2428, %v2444
        %v2446 = vsel %vm2436, %v2443, %v2445
        %v2447 = vsel %vm2435, %v2425, %v2428
        %v2448 = vsel %vm2438, %v2434, 1326507024
        %v2449 = vsel %vm2437, %v2431, %v2448
        %v2450 = vsel %vm2436, %v2447, %v2449
        %v2451 = vshll.u32 %v2411, 8
        %v2452 = vmul.u32.u64.compose %v2451, %v2450
        %v2453 = vextract.low.u32 %v2452
        %v2454 = vextract.high.u32 %v2452
        %v2455 = vmul.u32.u64.compose %v2451, %v2446
        %v2456 = vextract.low.u32 %v2455
        %v2457 = vextract.high.u32 %v2455
        %v2458 = vmul.u32 %v2451, %v2442
        %v2459 = vadd.s32 %v2454, %v2456
        %vm2460 = vc.u32 %v2454, %v2456
        %v2461 = vadd.s32 %v2457, 1
        %v2462 = vsel %vm2460, %v2461, %v2457
        %v2463 = vadd.s32 %v2458, %v2462
        %v2464 = vadd.s32 %v2463, 536870912
        %v2465 = vshrl.u32 %v2464, 30
        %v2466 = vshll.u32 %v2465, 30
        %v2467 = vsub.s32 %v2463, %v2466
        %vm2468 = vcmp.lt.s32.totalorder %v2467, 0
        %v2469 = vsub.s32 0, %v2467
        %v2470 = vsel %vm2468, %v2469, %v2467
        %v2471 = vclz %v2470
        %v2472 = vsub.s32 %v2471, 2
        %vm2473 = vcmp.gt.s32.totalorder 0, %v2472
        %v2474 = vsel %vm2473, 0, %v2472
        %v2475 = vsub.s32 32, %v2474
        %v2476 = vshll.u32 %v2467, %v2474
        %v2477 = vshrl.u32 %v2459, %v2475
        %v2478 = vor.u32 %v2476, %v2477
        %v2479 = vsub.s32 4294967266, %v2474
        %v2480 = vadd.s32 %v2479, 127
        %v2481 = vshll.u32 %v2480, 23
        %v2482 = vor.u32 4788187, %v2481
        %v2483 = vand.u32 2147483647, %v2482
        %v2485 = vcvt.s32.f32 %v2478
        %v2486 = vmul.f32 %v2485, %v2483
        %v2487 = vxor.u32 %v2486, 2147483648
        %v2488 = vsel %vm2405, %v2487, %v2486
        %v2489 = vsub.s32 4, %v2465
        %v2490 = vsel %vm2405, %v2489, %v2465
        %v2491 = vsel %vm2404, %v462, %v2488
        %v2492 = vsel %vm2404, 0, %v2490
        %v2493 = vcosq.f32.pop %v2491
        %v2494 = vsinq.f32.pop %v2491
        %vm2495 = vweird.f32 %v462
        %v2496 = vadd.s32 %v2492, 3
        %v2497 = vand.u32 %v2496, 3
        %vm2498 = vcmp.lt.s32.totalorder %v2497, 2
        %vm2499 = vcmp.eq.s32.totalorder %v2497, 0
        %v2500 = vxor.u32 %v2494, 2147483648
        %v2501 = vsel %vm2499, %v2493, %v2500
        %vm2502 = vcmp.eq.s32.totalorder %v2497, 2
        %v2503 = vxor.u32 %v2493, 2147483648
        %v2504 = vsel %vm2502, %v2503, %v2494
        %v2505 = vsel %vm2498, %v2501, %v2504
        %v2506 = vsel %vm2495, nan, %v2505
        %v2507 = vand.u32 2147483647, %v464
        %vm2508 = vcmp.le.f32.partialorder %v2507, 0.7853982
        %vm2509 = vcmp.lt.s32.totalorder %v464, 0
        %v2510 = vand.u32 %v464, 2139095040
        %v2511 = vshrl.u32 %v2510, 23
        %v2512 = vsub.s32 %v2511, 127
        %v2513 = vand.u32 2147483647, %v464
        %v2514 = vand.u32 %v2513, 8388607
        %v2515 = vor.u32 %v2514, 8388608
        %v2516 = vsub.s32 0, %v2515
        %v2517 = vadd.s32 %v2512, 1
        %vm2518 = vcmp.gt.s32.totalorder %v2517, 0
        %v2519 = vsel %vm2518, %v2517, 0
        %v2520 = vshrl.u32 %v2519, 5
        %v2521 = vand.u32 %v2519, 31
        %v2522 = vsub.s32 32, %v2521
        %v2523 = vshrl.u32 683565275, %v2522
        %v2524 = vshll.u32 683565275, %v2521
        %v2525 = vshrl.u32 2475754826, %v2522
        %v2526 = vor.u32 %v2524, %v2525
        %v2527 = vshll.u32 2475754826, %v2521
        %v2528 = vshrl.u32 2131351028, %v2522
        %v2529 = vor.u32 %v2527, %v2528
        %v2530 = vshll.u32 2131351028, %v2521
        %v2531 = vshrl.u32 2102212464, %v2522
        %v2532 = vor.u32 %v2530, %v2531
        %v2533 = vshll.u32 2102212464, %v2521
        %v2534 = vshrl.u32 920167782, %v2522
        %v2535 = vor.u32 %v2533, %v2534
        %v2536 = vshll.u32 920167782, %v2521
        %v2537 = vshrl.u32 1326507024, %v2522
        %v2538 = vor.u32 %v2536, %v2537
        %vm2539 = vcmp.lt.s32.totalorder %v2520, 1
        %vm2540 = vcmp.lt.s32.totalorder %v2520, 2
        %vm2541 = vcmp.lt.s32.totalorder %v2520, 3
        %vm2542 = vcmp.lt.s32.totalorder %v2520, 4
        %v2543 = vsel %vm2539, %v2523, %v2526
        %v2544 = vsel %vm2542, %v2532, 2102212464
        %v2545 = vsel %vm2541, %v2529, %v2544
        %v2546 = vsel %vm2540, %v2543, %v2545
        %v2547 = vsel %vm2539, %v2526, %v2529
        %v2548 = vsel %vm2542, %v2535, 920167782
        %v2549 = vsel %vm2541, %v2532, %v2548
        %v2550 = vsel %vm2540, %v2547, %v2549
        %v2551 = vsel %vm2539, %v2529, %v2532
        %v2552 = vsel %vm2542, %v2538, 1326507024
        %v2553 = vsel %vm2541, %v2535, %v2552
        %v2554 = vsel %vm2540, %v2551, %v2553
        %v2555 = vshll.u32 %v2515, 8
        %v2556 = vmul.u32.u64.compose %v2555, %v2554
        %v2557 = vextract.low.u32 %v2556
        %v2558 = vextract.high.u32 %v2556
        %v2559 = vmul.u32.u64.compose %v2555, %v2550
        %v2560 = vextract.low.u32 %v2559
        %v2561 = vextract.high.u32 %v2559
        %v2562 = vmul.u32 %v2555, %v2546
        %v2563 = vadd.s32 %v2558, %v2560
        %vm2564 = vc.u32 %v2558, %v2560
        %v2565 = vadd.s32 %v2561, 1
        %v2566 = vsel %vm2564, %v2565, %v2561
        %v2567 = vadd.s32 %v2562, %v2566
        %v2568 = vadd.s32 %v2567, 536870912
        %v2569 = vshrl.u32 %v2568, 30
        %v2570 = vshll.u32 %v2569, 30
        %v2571 = vsub.s32 %v2567, %v2570
        %vm2572 = vcmp.lt.s32.totalorder %v2571, 0
        %v2573 = vsub.s32 0, %v2571
        %v2574 = vsel %vm2572, %v2573, %v2571
        %v2575 = vclz %v2574
        %v2576 = vsub.s32 %v2575, 2
        %vm2577 = vcmp.gt.s32.totalorder 0, %v2576
        %v2578 = vsel %vm2577, 0, %v2576
        %v2579 = vsub.s32 32, %v2578
        %v2580 = vshll.u32 %v2571, %v2578
        %v2581 = vshrl.u32 %v2563, %v2579
        %v2582 = vor.u32 %v2580, %v2581
        %v2583 = vsub.s32 4294967266, %v2578
        %v2584 = vadd.s32 %v2583, 127
        %v2585 = vshll.u32 %v2584, 23
        %v2586 = vor.u32 4788187, %v2585
        %v2587 = vand.u32 2147483647, %v2586
        %v2589 = vcvt.s32.f32 %v2582
        %v2590 = vmul.f32 %v2589, %v2587
        %v2591 = vxor.u32 %v2590, 2147483648
        %v2592 = vsel %vm2509, %v2591, %v2590
        %v2593 = vsub.s32 4, %v2569
        %v2594 = vsel %vm2509, %v2593, %v2569
        %v2595 = vsel %vm2508, %v464, %v2592
        %v2596 = vsel %vm2508, 0, %v2594
        %v2597 = vcosq.f32.pop %v2595
        %v2598 = vsinq.f32.pop %v2595
        %vm2599 = vweird.f32 %v464
        %v2600 = vadd.s32 %v2596, 3
        %v2601 = vand.u32 %v2600, 3
        %vm2602 = vcmp.lt.s32.totalorder %v2601, 2
        %vm2603 = vcmp.eq.s32.totalorder %v2601, 0
        %v2604 = vxor.u32 %v2598, 2147483648
        %v2605 = vsel %vm2603, %v2597, %v2604
        %vm2606 = vcmp.eq.s32.totalorder %v2601, 2
        %v2607 = vxor.u32 %v2597, 2147483648
        %v2608 = vsel %vm2606, %v2607, %v2598
        %v2609 = vsel %vm2602, %v2605, %v2608
        %v2610 = vsel %vm2599, nan, %v2609
        %v2611 = vand.u32 2147483647, %v551
        %vm2612 = vcmp.le.f32.partialorder %v2611, 0.7853982
        %vm2613 = vcmp.lt.s32.totalorder %v551, 0
        %v2614 = vand.u32 %v551, 2139095040
        %v2615 = vshrl.u32 %v2614, 23
        %v2616 = vsub.s32 %v2615, 127
        %v2617 = vand.u32 2147483647, %v551
        %v2618 = vand.u32 %v2617, 8388607
        %v2619 = vor.u32 %v2618, 8388608
        %v2620 = vsub.s32 0, %v2619
        %v2621 = vadd.s32 %v2616, 1
        %vm2622 = vcmp.gt.s32.totalorder %v2621, 0
        %v2623 = vsel %vm2622, %v2621, 0
        %v2624 = vshrl.u32 %v2623, 5
        %v2625 = vand.u32 %v2623, 31
        %v2626 = vsub.s32 32, %v2625
        %v2627 = vshrl.u32 683565275, %v2626
        %v2628 = vshll.u32 683565275, %v2625
        %v2629 = vshrl.u32 2475754826, %v2626
        %v2630 = vor.u32 %v2628, %v2629
        %v2631 = vshll.u32 2475754826, %v2625
        %v2632 = vshrl.u32 2131351028, %v2626
        %v2633 = vor.u32 %v2631, %v2632
        %v2634 = vshll.u32 2131351028, %v2625
        %v2635 = vshrl.u32 2102212464, %v2626
        %v2636 = vor.u32 %v2634, %v2635
        %v2637 = vshll.u32 2102212464, %v2625
        %v2638 = vshrl.u32 920167782, %v2626
        %v2639 = vor.u32 %v2637, %v2638
        %v2640 = vshll.u32 920167782, %v2625
        %v2641 = vshrl.u32 1326507024, %v2626
        %v2642 = vor.u32 %v2640, %v2641
        %vm2643 = vcmp.lt.s32.totalorder %v2624, 1
        %vm2644 = vcmp.lt.s32.totalorder %v2624, 2
        %vm2645 = vcmp.lt.s32.totalorder %v2624, 3
        %vm2646 = vcmp.lt.s32.totalorder %v2624, 4
        %v2647 = vsel %vm2643, %v2627, %v2630
        %v2648 = vsel %vm2646, %v2636, 2102212464
        %v2649 = vsel %vm2645, %v2633, %v2648
        %v2650 = vsel %vm2644, %v2647, %v2649
        %v2651 = vsel %vm2643, %v2630, %v2633
        %v2652 = vsel %vm2646, %v2639, 920167782
        %v2653 = vsel %vm2645, %v2636, %v2652
        %v2654 = vsel %vm2644, %v2651, %v2653
        %v2655 = vsel %vm2643, %v2633, %v2636
        %v2656 = vsel %vm2646, %v2642, 1326507024
        %v2657 = vsel %vm2645, %v2639, %v2656
        %v2658 = vsel %vm2644, %v2655, %v2657
        %v2659 = vshll.u32 %v2619, 8
        %v2660 = vmul.u32.u64.compose %v2659, %v2658
        %v2661 = vextract.low.u32 %v2660
        %v2662 = vextract.high.u32 %v2660
        %v2663 = vmul.u32.u64.compose %v2659, %v2654
        %v2664 = vextract.low.u32 %v2663
        %v2665 = vextract.high.u32 %v2663
        %v2666 = vmul.u32 %v2659, %v2650
        %v2667 = vadd.s32 %v2662, %v2664
        %vm2668 = vc.u32 %v2662, %v2664
        %v2669 = vadd.s32 %v2665, 1
        %v2670 = vsel %vm2668, %v2669, %v2665
        %v2671 = vadd.s32 %v2666, %v2670
        %v2672 = vadd.s32 %v2671, 536870912
        %v2673 = vshrl.u32 %v2672, 30
        %v2674 = vshll.u32 %v2673, 30
        %v2675 = vsub.s32 %v2671, %v2674
        %vm2676 = vcmp.lt.s32.totalorder %v2675, 0
        %v2677 = vsub.s32 0, %v2675
        %v2678 = vsel %vm2676, %v2677, %v2675
        %v2679 = vclz %v2678
        %v2680 = vsub.s32 %v2679, 2
        %vm2681 = vcmp.gt.s32.totalorder 0, %v2680
        %v2682 = vsel %vm2681, 0, %v2680
        %v2683 = vsub.s32 32, %v2682
        %v2684 = vshll.u32 %v2675, %v2682
        %v2685 = vshrl.u32 %v2667, %v2683
        %v2686 = vor.u32 %v2684, %v2685
        %v2687 = vsub.s32 4294967266, %v2682
        %v2688 = vadd.s32 %v2687, 127
        %v2689 = vshll.u32 %v2688, 23
        %v2690 = vor.u32 4788187, %v2689
        %v2691 = vand.u32 2147483647, %v2690
        %v2693 = vcvt.s32.f32 %v2686
        %v2694 = vmul.f32 %v2693, %v2691
        %v2695 = vxor.u32 %v2694, 2147483648
        %v2696 = vsel %vm2613, %v2695, %v2694
        %v2697 = vsub.s32 4, %v2673
        %v2698 = vsel %vm2613, %v2697, %v2673
        %v2699 = vsel %vm2612, %v551, %v2696
        %v2700 = vsel %vm2612, 0, %v2698
        %v2701 = vcosq.f32.pop %v2699
        %v2702 = vsinq.f32.pop %v2699
        %vm2703 = vweird.f32 %v551
        %v2704 = vadd.s32 %v2700, 3
        %v2705 = vand.u32 %v2704, 3
        %vm2706 = vcmp.lt.s32.totalorder %v2705, 2
        %vm2707 = vcmp.eq.s32.totalorder %v2705, 0
        %v2708 = vxor.u32 %v2702, 2147483648
        %v2709 = vsel %vm2707, %v2701, %v2708
        %vm2710 = vcmp.eq.s32.totalorder %v2705, 2
        %v2711 = vxor.u32 %v2701, 2147483648
        %v2712 = vsel %vm2710, %v2711, %v2702
        %v2713 = vsel %vm2706, %v2709, %v2712
        %v2714 = vsel %vm2703, nan, %v2713
        %v2715 = vand.u32 2147483647, %v553
        %vm2716 = vcmp.le.f32.partialorder %v2715, 0.7853982
        %vm2717 = vcmp.lt.s32.totalorder %v553, 0
        %v2718 = vand.u32 %v553, 2139095040
        %v2719 = vshrl.u32 %v2718, 23
        %v2720 = vsub.s32 %v2719, 127
        %v2721 = vand.u32 2147483647, %v553
        %v2722 = vand.u32 %v2721, 8388607
        %v2723 = vor.u32 %v2722, 8388608
        %v2724 = vsub.s32 0, %v2723
        %v2725 = vadd.s32 %v2720, 1
        %vm2726 = vcmp.gt.s32.totalorder %v2725, 0
        %v2727 = vsel %vm2726, %v2725, 0
        %v2728 = vshrl.u32 %v2727, 5
        %v2729 = vand.u32 %v2727, 31
        %v2730 = vsub.s32 32, %v2729
        %v2731 = vshrl.u32 683565275, %v2730
        %v2732 = vshll.u32 683565275, %v2729
        %v2733 = vshrl.u32 2475754826, %v2730
        %v2734 = vor.u32 %v2732, %v2733
        %v2735 = vshll.u32 2475754826, %v2729
        %v2736 = vshrl.u32 2131351028, %v2730
        %v2737 = vor.u32 %v2735, %v2736
        %v2738 = vshll.u32 2131351028, %v2729
        %v2739 = vshrl.u32 2102212464, %v2730
        %v2740 = vor.u32 %v2738, %v2739
        %v2741 = vshll.u32 2102212464, %v2729
        %v2742 = vshrl.u32 920167782, %v2730
        %v2743 = vor.u32 %v2741, %v2742
        %v2744 = vshll.u32 920167782, %v2729
        %v2745 = vshrl.u32 1326507024, %v2730
        %v2746 = vor.u32 %v2744, %v2745
        %vm2747 = vcmp.lt.s32.totalorder %v2728, 1
        %vm2748 = vcmp.lt.s32.totalorder %v2728, 2
        %vm2749 = vcmp.lt.s32.totalorder %v2728, 3
        %vm2750 = vcmp.lt.s32.totalorder %v2728, 4
        %v2751 = vsel %vm2747, %v2731, %v2734
        %v2752 = vsel %vm2750, %v2740, 2102212464
        %v2753 = vsel %vm2749, %v2737, %v2752
        %v2754 = vsel %vm2748, %v2751, %v2753
        %v2755 = vsel %vm2747, %v2734, %v2737
        %v2756 = vsel %vm2750, %v2743, 920167782
        %v2757 = vsel %vm2749, %v2740, %v2756
        %v2758 = vsel %vm2748, %v2755, %v2757
        %v2759 = vsel %vm2747, %v2737, %v2740
        %v2760 = vsel %vm2750, %v2746, 1326507024
        %v2761 = vsel %vm2749, %v2743, %v2760
        %v2762 = vsel %vm2748, %v2759, %v2761
        %v2763 = vshll.u32 %v2723, 8
        %v2764 = vmul.u32.u64.compose %v2763, %v2762
        %v2765 = vextract.low.u32 %v2764
        %v2766 = vextract.high.u32 %v2764
        %v2767 = vmul.u32.u64.compose %v2763, %v2758
        %v2768 = vextract.low.u32 %v2767
        %v2769 = vextract.high.u32 %v2767
        %v2770 = vmul.u32 %v2763, %v2754
        %v2771 = vadd.s32 %v2766, %v2768
        %vm2772 = vc.u32 %v2766, %v2768
        %v2773 = vadd.s32 %v2769, 1
        %v2774 = vsel %vm2772, %v2773, %v2769
        %v2775 = vadd.s32 %v2770, %v2774
        %v2776 = vadd.s32 %v2775, 536870912
        %v2777 = vshrl.u32 %v2776, 30
        %v2778 = vshll.u32 %v2777, 30
        %v2779 = vsub.s32 %v2775, %v2778
        %vm2780 = vcmp.lt.s32.totalorder %v2779, 0
        %v2781 = vsub.s32 0, %v2779
        %v2782 = vsel %vm2780, %v2781, %v2779
        %v2783 = vclz %v2782
        %v2784 = vsub.s32 %v2783, 2
        %vm2785 = vcmp.gt.s32.totalorder 0, %v2784
        %v2786 = vsel %vm2785, 0, %v2784
        %v2787 = vsub.s32 32, %v2786
        %v2788 = vshll.u32 %v2779, %v2786
        %v2789 = vshrl.u32 %v2771, %v2787
        %v2790 = vor.u32 %v2788, %v2789
        %v2791 = vsub.s32 4294967266, %v2786
        %v2792 = vadd.s32 %v2791, 127
        %v2793 = vshll.u32 %v2792, 23
        %v2794 = vor.u32 4788187, %v2793
        %v2795 = vand.u32 2147483647, %v2794
        %v2797 = vcvt.s32.f32 %v2790
        %v2798 = vmul.f32 %v2797, %v2795
        %v2799 = vxor.u32 %v2798, 2147483648
        %v2800 = vsel %vm2717, %v2799, %v2798
        %v2801 = vsub.s32 4, %v2777
        %v2802 = vsel %vm2717, %v2801, %v2777
        %v2803 = vsel %vm2716, %v553, %v2800
        %v2804 = vsel %vm2716, 0, %v2802
        %v2805 = vcosq.f32.pop %v2803
        %v2806 = vsinq.f32.pop %v2803
        %vm2807 = vweird.f32 %v553
        %v2808 = vadd.s32 %v2804, 3
        %v2809 = vand.u32 %v2808, 3
        %vm2810 = vcmp.lt.s32.totalorder %v2809, 2
        %vm2811 = vcmp.eq.s32.totalorder %v2809, 0
        %v2812 = vxor.u32 %v2806, 2147483648
        %v2813 = vsel %vm2811, %v2805, %v2812
        %vm2814 = vcmp.eq.s32.totalorder %v2809, 2
        %v2815 = vxor.u32 %v2805, 2147483648
        %v2816 = vsel %vm2814, %v2815, %v2806
        %v2817 = vsel %vm2810, %v2813, %v2816
        %v2818 = vsel %vm2807, nan, %v2817
        %v2819 = vand.u32 2147483647, %v640
        %vm2820 = vcmp.le.f32.partialorder %v2819, 0.7853982
        %vm2821 = vcmp.lt.s32.totalorder %v640, 0
        %v2822 = vand.u32 %v640, 2139095040
        %v2823 = vshrl.u32 %v2822, 23
        %v2824 = vsub.s32 %v2823, 127
        %v2825 = vand.u32 2147483647, %v640
        %v2826 = vand.u32 %v2825, 8388607
        %v2827 = vor.u32 %v2826, 8388608
        %v2828 = vsub.s32 0, %v2827
        %v2829 = vadd.s32 %v2824, 1
        %vm2830 = vcmp.gt.s32.totalorder %v2829, 0
        %v2831 = vsel %vm2830, %v2829, 0
        %v2832 = vshrl.u32 %v2831, 5
        %v2833 = vand.u32 %v2831, 31
        %v2834 = vsub.s32 32, %v2833
        %v2835 = vshrl.u32 683565275, %v2834
        %v2836 = vshll.u32 683565275, %v2833
        %v2837 = vshrl.u32 2475754826, %v2834
        %v2838 = vor.u32 %v2836, %v2837
        %v2839 = vshll.u32 2475754826, %v2833
        %v2840 = vshrl.u32 2131351028, %v2834
        %v2841 = vor.u32 %v2839, %v2840
        %v2842 = vshll.u32 2131351028, %v2833
        %v2843 = vshrl.u32 2102212464, %v2834
        %v2844 = vor.u32 %v2842, %v2843
        %v2845 = vshll.u32 2102212464, %v2833
        %v2846 = vshrl.u32 920167782, %v2834
        %v2847 = vor.u32 %v2845, %v2846
        %v2848 = vshll.u32 920167782, %v2833
        %v2849 = vshrl.u32 1326507024, %v2834
        %v2850 = vor.u32 %v2848, %v2849
        %vm2851 = vcmp.lt.s32.totalorder %v2832, 1
        %vm2852 = vcmp.lt.s32.totalorder %v2832, 2
        %vm2853 = vcmp.lt.s32.totalorder %v2832, 3
        %vm2854 = vcmp.lt.s32.totalorder %v2832, 4
        %v2855 = vsel %vm2851, %v2835, %v2838
        %v2856 = vsel %vm2854, %v2844, 2102212464
        %v2857 = vsel %vm2853, %v2841, %v2856
        %v2858 = vsel %vm2852, %v2855, %v2857
        %v2859 = vsel %vm2851, %v2838, %v2841
        %v2860 = vsel %vm2854, %v2847, 920167782
        %v2861 = vsel %vm2853, %v2844, %v2860
        %v2862 = vsel %vm2852, %v2859, %v2861
        %v2863 = vsel %vm2851, %v2841, %v2844
        %v2864 = vsel %vm2854, %v2850, 1326507024
        %v2865 = vsel %vm2853, %v2847, %v2864
        %v2866 = vsel %vm2852, %v2863, %v2865
        %v2867 = vshll.u32 %v2827, 8
        %v2868 = vmul.u32.u64.compose %v2867, %v2866
        %v2869 = vextract.low.u32 %v2868
        %v2870 = vextract.high.u32 %v2868
        %v2871 = vmul.u32.u64.compose %v2867, %v2862
        %v2872 = vextract.low.u32 %v2871
        %v2873 = vextract.high.u32 %v2871
        %v2874 = vmul.u32 %v2867, %v2858
        %v2875 = vadd.s32 %v2870, %v2872
        %vm2876 = vc.u32 %v2870, %v2872
        %v2877 = vadd.s32 %v2873, 1
        %v2878 = vsel %vm2876, %v2877, %v2873
        %v2879 = vadd.s32 %v2874, %v2878
        %v2880 = vadd.s32 %v2879, 536870912
        %v2881 = vshrl.u32 %v2880, 30
        %v2882 = vshll.u32 %v2881, 30
        %v2883 = vsub.s32 %v2879, %v2882
        %vm2884 = vcmp.lt.s32.totalorder %v2883, 0
        %v2885 = vsub.s32 0, %v2883
        %v2886 = vsel %vm2884, %v2885, %v2883
        %v2887 = vclz %v2886
        %v2888 = vsub.s32 %v2887, 2
        %vm2889 = vcmp.gt.s32.totalorder 0, %v2888
        %v2890 = vsel %vm2889, 0, %v2888
        %v2891 = vsub.s32 32, %v2890
        %v2892 = vshll.u32 %v2883, %v2890
        %v2893 = vshrl.u32 %v2875, %v2891
        %v2894 = vor.u32 %v2892, %v2893
        %v2895 = vsub.s32 4294967266, %v2890
        %v2896 = vadd.s32 %v2895, 127
        %v2897 = vshll.u32 %v2896, 23
        %v2898 = vor.u32 4788187, %v2897
        %v2899 = vand.u32 2147483647, %v2898
        %v2901 = vcvt.s32.f32 %v2894
        %v2902 = vmul.f32 %v2901, %v2899
        %v2903 = vxor.u32 %v2902, 2147483648
        %v2904 = vsel %vm2821, %v2903, %v2902
        %v2905 = vsub.s32 4, %v2881
        %v2906 = vsel %vm2821, %v2905, %v2881
        %v2907 = vsel %vm2820, %v640, %v2904
        %v2908 = vsel %vm2820, 0, %v2906
        %v2909 = vcosq.f32.pop %v2907
        %v2910 = vsinq.f32.pop %v2907
        %vm2911 = vweird.f32 %v640
        %v2912 = vadd.s32 %v2908, 3
        %v2913 = vand.u32 %v2912, 3
        %vm2914 = vcmp.lt.s32.totalorder %v2913, 2
        %vm2915 = vcmp.eq.s32.totalorder %v2913, 0
        %v2916 = vxor.u32 %v2910, 2147483648
        %v2917 = vsel %vm2915, %v2909, %v2916
        %vm2918 = vcmp.eq.s32.totalorder %v2913, 2
        %v2919 = vxor.u32 %v2909, 2147483648
        %v2920 = vsel %vm2918, %v2919, %v2910
        %v2921 = vsel %vm2914, %v2917, %v2920
        %v2922 = vsel %vm2911, nan, %v2921
        %v2923 = vand.u32 2147483647, %v642
        %vm2924 = vcmp.le.f32.partialorder %v2923, 0.7853982
        %vm2925 = vcmp.lt.s32.totalorder %v642, 0
        %v2926 = vand.u32 %v642, 2139095040
        %v2927 = vshrl.u32 %v2926, 23
        %v2928 = vsub.s32 %v2927, 127
        %v2929 = vand.u32 2147483647, %v642
        %v2930 = vand.u32 %v2929, 8388607
        %v2931 = vor.u32 %v2930, 8388608
        %v2932 = vsub.s32 0, %v2931
        %v2933 = vadd.s32 %v2928, 1
        %vm2934 = vcmp.gt.s32.totalorder %v2933, 0
        %v2935 = vsel %vm2934, %v2933, 0
        %v2936 = vshrl.u32 %v2935, 5
        %v2937 = vand.u32 %v2935, 31
        %v2938 = vsub.s32 32, %v2937
        %v2939 = vshrl.u32 683565275, %v2938
        %v2940 = vshll.u32 683565275, %v2937
        %v2941 = vshrl.u32 2475754826, %v2938
        %v2942 = vor.u32 %v2940, %v2941
        %v2943 = vshll.u32 2475754826, %v2937
        %v2944 = vshrl.u32 2131351028, %v2938
        %v2945 = vor.u32 %v2943, %v2944
        %v2946 = vshll.u32 2131351028, %v2937
        %v2947 = vshrl.u32 2102212464, %v2938
        %v2948 = vor.u32 %v2946, %v2947
        %v2949 = vshll.u32 2102212464, %v2937
        %v2950 = vshrl.u32 920167782, %v2938
        %v2951 = vor.u32 %v2949, %v2950
        %v2952 = vshll.u32 920167782, %v2937
        %v2953 = vshrl.u32 1326507024, %v2938
        %v2954 = vor.u32 %v2952, %v2953
        %vm2955 = vcmp.lt.s32.totalorder %v2936, 1
        %vm2956 = vcmp.lt.s32.totalorder %v2936, 2
        %vm2957 = vcmp.lt.s32.totalorder %v2936, 3
        %vm2958 = vcmp.lt.s32.totalorder %v2936, 4
        %v2959 = vsel %vm2955, %v2939, %v2942
        %v2960 = vsel %vm2958, %v2948, 2102212464
        %v2961 = vsel %vm2957, %v2945, %v2960
        %v2962 = vsel %vm2956, %v2959, %v2961
        %v2963 = vsel %vm2955, %v2942, %v2945
        %v2964 = vsel %vm2958, %v2951, 920167782
        %v2965 = vsel %vm2957, %v2948, %v2964
        %v2966 = vsel %vm2956, %v2963, %v2965
        %v2967 = vsel %vm2955, %v2945, %v2948
        %v2968 = vsel %vm2958, %v2954, 1326507024
        %v2969 = vsel %vm2957, %v2951, %v2968
        %v2970 = vsel %vm2956, %v2967, %v2969
        %v2971 = vshll.u32 %v2931, 8
        %v2972 = vmul.u32.u64.compose %v2971, %v2970
        %v2973 = vextract.low.u32 %v2972
        %v2974 = vextract.high.u32 %v2972
        %v2975 = vmul.u32.u64.compose %v2971, %v2966
        %v2976 = vextract.low.u32 %v2975
        %v2977 = vextract.high.u32 %v2975
        %v2978 = vmul.u32 %v2971, %v2962
        %v2979 = vadd.s32 %v2974, %v2976
        %vm2980 = vc.u32 %v2974, %v2976
        %v2981 = vadd.s32 %v2977, 1
        %v2982 = vsel %vm2980, %v2981, %v2977
        %v2983 = vadd.s32 %v2978, %v2982
        %v2984 = vadd.s32 %v2983, 536870912
        %v2985 = vshrl.u32 %v2984, 30
        %v2986 = vshll.u32 %v2985, 30
        %v2987 = vsub.s32 %v2983, %v2986
        %vm2988 = vcmp.lt.s32.totalorder %v2987, 0
        %v2989 = vsub.s32 0, %v2987
        %v2990 = vsel %vm2988, %v2989, %v2987
        %v2991 = vclz %v2990
        %v2992 = vsub.s32 %v2991, 2
        %vm2993 = vcmp.gt.s32.totalorder 0, %v2992
        %v2994 = vsel %vm2993, 0, %v2992
        %v2995 = vsub.s32 32, %v2994
        %v2996 = vshll.u32 %v2987, %v2994
        %v2997 = vshrl.u32 %v2979, %v2995
        %v2998 = vor.u32 %v2996, %v2997
        %v2999 = vsub.s32 4294967266, %v2994
        %v3000 = vadd.s32 %v2999, 127
        %v3001 = vshll.u32 %v3000, 23
        %v3002 = vor.u32 4788187, %v3001
        %v3003 = vand.u32 2147483647, %v3002
        %v3005 = vcvt.s32.f32 %v2998
        %v3006 = vmul.f32 %v3005, %v3003
        %v3007 = vxor.u32 %v3006, 2147483648
        %v3008 = vsel %vm2925, %v3007, %v3006
        %v3009 = vsub.s32 4, %v2985
        %v3010 = vsel %vm2925, %v3009, %v2985
        %v3011 = vsel %vm2924, %v642, %v3008
        %v3012 = vsel %vm2924, 0, %v3010
        %v3013 = vcosq.f32.pop %v3011
        %v3014 = vsinq.f32.pop %v3011
        %vm3015 = vweird.f32 %v642
        %v3016 = vadd.s32 %v3012, 3
        %v3017 = vand.u32 %v3016, 3
        %vm3018 = vcmp.lt.s32.totalorder %v3017, 2
        %vm3019 = vcmp.eq.s32.totalorder %v3017, 0
        %v3020 = vxor.u32 %v3014, 2147483648
        %v3021 = vsel %vm3019, %v3013, %v3020
        %vm3022 = vcmp.eq.s32.totalorder %v3017, 2
        %v3023 = vxor.u32 %v3013, 2147483648
        %v3024 = vsel %vm3022, %v3023, %v3014
        %v3025 = vsel %vm3018, %v3021, %v3024
        %v3026 = vsel %vm3015, nan, %v3025
        %v3027 = vand.u32 2147483647, %v729
        %vm3028 = vcmp.le.f32.partialorder %v3027, 0.7853982
        %vm3029 = vcmp.lt.s32.totalorder %v729, 0
        %v3030 = vand.u32 %v729, 2139095040
        %v3031 = vshrl.u32 %v3030, 23
        %v3032 = vsub.s32 %v3031, 127
        %v3033 = vand.u32 2147483647, %v729
        %v3034 = vand.u32 %v3033, 8388607
        %v3035 = vor.u32 %v3034, 8388608
        %v3036 = vsub.s32 0, %v3035
        %v3037 = vadd.s32 %v3032, 1
        %vm3038 = vcmp.gt.s32.totalorder %v3037, 0
        %v3039 = vsel %vm3038, %v3037, 0
        %v3040 = vshrl.u32 %v3039, 5
        %v3041 = vand.u32 %v3039, 31
        %v3042 = vsub.s32 32, %v3041
        %v3043 = vshrl.u32 683565275, %v3042
        %v3044 = vshll.u32 683565275, %v3041
        %v3045 = vshrl.u32 2475754826, %v3042
        %v3046 = vor.u32 %v3044, %v3045
        %v3047 = vshll.u32 2475754826, %v3041
        %v3048 = vshrl.u32 2131351028, %v3042
        %v3049 = vor.u32 %v3047, %v3048
        %v3050 = vshll.u32 2131351028, %v3041
        %v3051 = vshrl.u32 2102212464, %v3042
        %v3052 = vor.u32 %v3050, %v3051
        %v3053 = vshll.u32 2102212464, %v3041
        %v3054 = vshrl.u32 920167782, %v3042
        %v3055 = vor.u32 %v3053, %v3054
        %v3056 = vshll.u32 920167782, %v3041
        %v3057 = vshrl.u32 1326507024, %v3042
        %v3058 = vor.u32 %v3056, %v3057
        %vm3059 = vcmp.lt.s32.totalorder %v3040, 1
        %vm3060 = vcmp.lt.s32.totalorder %v3040, 2
        %vm3061 = vcmp.lt.s32.totalorder %v3040, 3
        %vm3062 = vcmp.lt.s32.totalorder %v3040, 4
        %v3063 = vsel %vm3059, %v3043, %v3046
        %v3064 = vsel %vm3062, %v3052, 2102212464
        %v3065 = vsel %vm3061, %v3049, %v3064
        %v3066 = vsel %vm3060, %v3063, %v3065
        %v3067 = vsel %vm3059, %v3046, %v3049
        %v3068 = vsel %vm3062, %v3055, 920167782
        %v3069 = vsel %vm3061, %v3052, %v3068
        %v3070 = vsel %vm3060, %v3067, %v3069
        %v3071 = vsel %vm3059, %v3049, %v3052
        %v3072 = vsel %vm3062, %v3058, 1326507024
        %v3073 = vsel %vm3061, %v3055, %v3072
        %v3074 = vsel %vm3060, %v3071, %v3073
        %v3075 = vshll.u32 %v3035, 8
        %v3076 = vmul.u32.u64.compose %v3075, %v3074
        %v3077 = vextract.low.u32 %v3076
        %v3078 = vextract.high.u32 %v3076
        %v3079 = vmul.u32.u64.compose %v3075, %v3070
        %v3080 = vextract.low.u32 %v3079
        %v3081 = vextract.high.u32 %v3079
        %v3082 = vmul.u32 %v3075, %v3066
        %v3083 = vadd.s32 %v3078, %v3080
        %vm3084 = vc.u32 %v3078, %v3080
        %v3085 = vadd.s32 %v3081, 1
        %v3086 = vsel %vm3084, %v3085, %v3081
        %v3087 = vadd.s32 %v3082, %v3086
        %v3088 = vadd.s32 %v3087, 536870912
        %v3089 = vshrl.u32 %v3088, 30
        %v3090 = vshll.u32 %v3089, 30
        %v3091 = vsub.s32 %v3087, %v3090
        %vm3092 = vcmp.lt.s32.totalorder %v3091, 0
        %v3093 = vsub.s32 0, %v3091
        %v3094 = vsel %vm3092, %v3093, %v3091
        %v3095 = vclz %v3094
        %v3096 = vsub.s32 %v3095, 2
        %vm3097 = vcmp.gt.s32.totalorder 0, %v3096
        %v3098 = vsel %vm3097, 0, %v3096
        %v3099 = vsub.s32 32, %v3098
        %v3100 = vshll.u32 %v3091, %v3098
        %v3101 = vshrl.u32 %v3083, %v3099
        %v3102 = vor.u32 %v3100, %v3101
        %v3103 = vsub.s32 4294967266, %v3098
        %v3104 = vadd.s32 %v3103, 127
        %v3105 = vshll.u32 %v3104, 23
        %v3106 = vor.u32 4788187, %v3105
        %v3107 = vand.u32 2147483647, %v3106
        %v3109 = vcvt.s32.f32 %v3102
        %v3110 = vmul.f32 %v3109, %v3107
        %v3111 = vxor.u32 %v3110, 2147483648
        %v3112 = vsel %vm3029, %v3111, %v3110
        %v3113 = vsub.s32 4, %v3089
        %v3114 = vsel %vm3029, %v3113, %v3089
        %v3115 = vsel %vm3028, %v729, %v3112
        %v3116 = vsel %vm3028, 0, %v3114
        %v3117 = vcosq.f32.pop %v3115
        %v3118 = vsinq.f32.pop %v3115
        %vm3119 = vweird.f32 %v729
        %v3120 = vadd.s32 %v3116, 3
        %v3121 = vand.u32 %v3120, 3
        %vm3122 = vcmp.lt.s32.totalorder %v3121, 2
        %vm3123 = vcmp.eq.s32.totalorder %v3121, 0
        %v3124 = vxor.u32 %v3118, 2147483648
        %v3125 = vsel %vm3123, %v3117, %v3124
        %vm3126 = vcmp.eq.s32.totalorder %v3121, 2
        %v3127 = vxor.u32 %v3117, 2147483648
        %v3128 = vsel %vm3126, %v3127, %v3118
        %v3129 = vsel %vm3122, %v3125, %v3128
        %v3130 = vsel %vm3119, nan, %v3129
        %v3131 = vand.u32 2147483647, %v731
        %vm3132 = vcmp.le.f32.partialorder %v3131, 0.7853982
        %vm3133 = vcmp.lt.s32.totalorder %v731, 0
        %v3134 = vand.u32 %v731, 2139095040
        %v3135 = vshrl.u32 %v3134, 23
        %v3136 = vsub.s32 %v3135, 127
        %v3137 = vand.u32 2147483647, %v731
        %v3138 = vand.u32 %v3137, 8388607
        %v3139 = vor.u32 %v3138, 8388608
        %v3140 = vsub.s32 0, %v3139
        %v3141 = vadd.s32 %v3136, 1
        %vm3142 = vcmp.gt.s32.totalorder %v3141, 0
        %v3143 = vsel %vm3142, %v3141, 0
        %v3144 = vshrl.u32 %v3143, 5
        %v3145 = vand.u32 %v3143, 31
        %v3146 = vsub.s32 32, %v3145
        %v3147 = vshrl.u32 683565275, %v3146
        %v3148 = vshll.u32 683565275, %v3145
        %v3149 = vshrl.u32 2475754826, %v3146
        %v3150 = vor.u32 %v3148, %v3149
        %v3151 = vshll.u32 2475754826, %v3145
        %v3152 = vshrl.u32 2131351028, %v3146
        %v3153 = vor.u32 %v3151, %v3152
        %v3154 = vshll.u32 2131351028, %v3145
        %v3155 = vshrl.u32 2102212464, %v3146
        %v3156 = vor.u32 %v3154, %v3155
        %v3157 = vshll.u32 2102212464, %v3145
        %v3158 = vshrl.u32 920167782, %v3146
        %v3159 = vor.u32 %v3157, %v3158
        %v3160 = vshll.u32 920167782, %v3145
        %v3161 = vshrl.u32 1326507024, %v3146
        %v3162 = vor.u32 %v3160, %v3161
        %vm3163 = vcmp.lt.s32.totalorder %v3144, 1
        %vm3164 = vcmp.lt.s32.totalorder %v3144, 2
        %vm3165 = vcmp.lt.s32.totalorder %v3144, 3
        %vm3166 = vcmp.lt.s32.totalorder %v3144, 4
        %v3167 = vsel %vm3163, %v3147, %v3150
        %v3168 = vsel %vm3166, %v3156, 2102212464
        %v3169 = vsel %vm3165, %v3153, %v3168
        %v3170 = vsel %vm3164, %v3167, %v3169
        %v3171 = vsel %vm3163, %v3150, %v3153
        %v3172 = vsel %vm3166, %v3159, 920167782
        %v3173 = vsel %vm3165, %v3156, %v3172
        %v3174 = vsel %vm3164, %v3171, %v3173
        %v3175 = vsel %vm3163, %v3153, %v3156
        %v3176 = vsel %vm3166, %v3162, 1326507024
        %v3177 = vsel %vm3165, %v3159, %v3176
        %v3178 = vsel %vm3164, %v3175, %v3177
        %v3179 = vshll.u32 %v3139, 8
        %v3180 = vmul.u32.u64.compose %v3179, %v3178
        %v3181 = vextract.low.u32 %v3180
        %v3182 = vextract.high.u32 %v3180
        %v3183 = vmul.u32.u64.compose %v3179, %v3174
        %v3184 = vextract.low.u32 %v3183
        %v3185 = vextract.high.u32 %v3183
        %v3186 = vmul.u32 %v3179, %v3170
        %v3187 = vadd.s32 %v3182, %v3184
        %vm3188 = vc.u32 %v3182, %v3184
        %v3189 = vadd.s32 %v3185, 1
        %v3190 = vsel %vm3188, %v3189, %v3185
        %v3191 = vadd.s32 %v3186, %v3190
        %v3192 = vadd.s32 %v3191, 536870912
        %v3193 = vshrl.u32 %v3192, 30
        %v3194 = vshll.u32 %v3193, 30
        %v3195 = vsub.s32 %v3191, %v3194
        %vm3196 = vcmp.lt.s32.totalorder %v3195, 0
        %v3197 = vsub.s32 0, %v3195
        %v3198 = vsel %vm3196, %v3197, %v3195
        %v3199 = vclz %v3198
        %v3200 = vsub.s32 %v3199, 2
        %vm3201 = vcmp.gt.s32.totalorder 0, %v3200
        %v3202 = vsel %vm3201, 0, %v3200
        %v3203 = vsub.s32 32, %v3202
        %v3204 = vshll.u32 %v3195, %v3202
        %v3205 = vshrl.u32 %v3187, %v3203
        %v3206 = vor.u32 %v3204, %v3205
        %v3207 = vsub.s32 4294967266, %v3202
        %v3208 = vadd.s32 %v3207, 127
        %v3209 = vshll.u32 %v3208, 23
        %v3210 = vor.u32 4788187, %v3209
        %v3211 = vand.u32 2147483647, %v3210
        %v3213 = vcvt.s32.f32 %v3206
        %v3214 = vmul.f32 %v3213, %v3211
        %v3215 = vxor.u32 %v3214, 2147483648
        %v3216 = vsel %vm3133, %v3215, %v3214
        %v3217 = vsub.s32 4, %v3193
        %v3218 = vsel %vm3133, %v3217, %v3193
        %v3219 = vsel %vm3132, %v731, %v3216
        %v3220 = vsel %vm3132, 0, %v3218
        %v3221 = vcosq.f32.pop %v3219
        %v3222 = vsinq.f32.pop %v3219
        %vm3223 = vweird.f32 %v731
        %v3224 = vadd.s32 %v3220, 3
        %v3225 = vand.u32 %v3224, 3
        %vm3226 = vcmp.lt.s32.totalorder %v3225, 2
        %vm3227 = vcmp.eq.s32.totalorder %v3225, 0
        %v3228 = vxor.u32 %v3222, 2147483648
        %v3229 = vsel %vm3227, %v3221, %v3228
        %vm3230 = vcmp.eq.s32.totalorder %v3225, 2
        %v3231 = vxor.u32 %v3221, 2147483648
        %v3232 = vsel %vm3230, %v3231, %v3222
        %v3233 = vsel %vm3226, %v3229, %v3232
        %v3234 = vsel %vm3223, nan, %v3233
        %v3235 = vand.u32 2147483647, %v468
        %vm3236 = vcmp.le.f32.partialorder %v3235, 0.7853982
        %vm3237 = vcmp.lt.s32.totalorder %v468, 0
        %v3238 = vand.u32 %v468, 2139095040
        %v3239 = vshrl.u32 %v3238, 23
        %v3240 = vsub.s32 %v3239, 127
        %v3241 = vand.u32 2147483647, %v468
        %v3242 = vand.u32 %v3241, 8388607
        %v3243 = vor.u32 %v3242, 8388608
        %v3244 = vsub.s32 0, %v3243
        %v3245 = vadd.s32 %v3240, 1
        %vm3246 = vcmp.gt.s32.totalorder %v3245, 0
        %v3247 = vsel %vm3246, %v3245, 0
        %v3248 = vshrl.u32 %v3247, 5
        %v3249 = vand.u32 %v3247, 31
        %v3250 = vsub.s32 32, %v3249
        %v3251 = vshrl.u32 683565275, %v3250
        %v3252 = vshll.u32 683565275, %v3249
        %v3253 = vshrl.u32 2475754826, %v3250
        %v3254 = vor.u32 %v3252, %v3253
        %v3255 = vshll.u32 2475754826, %v3249
        %v3256 = vshrl.u32 2131351028, %v3250
        %v3257 = vor.u32 %v3255, %v3256
        %v3258 = vshll.u32 2131351028, %v3249
        %v3259 = vshrl.u32 2102212464, %v3250
        %v3260 = vor.u32 %v3258, %v3259
        %v3261 = vshll.u32 2102212464, %v3249
        %v3262 = vshrl.u32 920167782, %v3250
        %v3263 = vor.u32 %v3261, %v3262
        %v3264 = vshll.u32 920167782, %v3249
        %v3265 = vshrl.u32 1326507024, %v3250
        %v3266 = vor.u32 %v3264, %v3265
        %vm3267 = vcmp.lt.s32.totalorder %v3248, 1
        %vm3268 = vcmp.lt.s32.totalorder %v3248, 2
        %vm3269 = vcmp.lt.s32.totalorder %v3248, 3
        %vm3270 = vcmp.lt.s32.totalorder %v3248, 4
        %v3271 = vsel %vm3267, %v3251, %v3254
        %v3272 = vsel %vm3270, %v3260, 2102212464
        %v3273 = vsel %vm3269, %v3257, %v3272
        %v3274 = vsel %vm3268, %v3271, %v3273
        %v3275 = vsel %vm3267, %v3254, %v3257
        %v3276 = vsel %vm3270, %v3263, 920167782
        %v3277 = vsel %vm3269, %v3260, %v3276
        %v3278 = vsel %vm3268, %v3275, %v3277
        %v3279 = vsel %vm3267, %v3257, %v3260
        %v3280 = vsel %vm3270, %v3266, 1326507024
        %v3281 = vsel %vm3269, %v3263, %v3280
        %v3282 = vsel %vm3268, %v3279, %v3281
        %v3283 = vshll.u32 %v3243, 8
        %v3284 = vmul.u32.u64.compose %v3283, %v3282
        %v3285 = vextract.low.u32 %v3284
        %v3286 = vextract.high.u32 %v3284
        %v3287 = vmul.u32.u64.compose %v3283, %v3278
        %v3288 = vextract.low.u32 %v3287
        %v3289 = vextract.high.u32 %v3287
        %v3290 = vmul.u32 %v3283, %v3274
        %v3291 = vadd.s32 %v3286, %v3288
        %vm3292 = vc.u32 %v3286, %v3288
        %v3293 = vadd.s32 %v3289, 1
        %v3294 = vsel %vm3292, %v3293, %v3289
        %v3295 = vadd.s32 %v3290, %v3294
        %v3296 = vadd.s32 %v3295, 536870912
        %v3297 = vshrl.u32 %v3296, 30
        %v3298 = vshll.u32 %v3297, 30
        %v3299 = vsub.s32 %v3295, %v3298
        %vm3300 = vcmp.lt.s32.totalorder %v3299, 0
        %v3301 = vsub.s32 0, %v3299
        %v3302 = vsel %vm3300, %v3301, %v3299
        %v3303 = vclz %v3302
        %v3304 = vsub.s32 %v3303, 2
        %vm3305 = vcmp.gt.s32.totalorder 0, %v3304
        %v3306 = vsel %vm3305, 0, %v3304
        %v3307 = vsub.s32 32, %v3306
        %v3308 = vshll.u32 %v3299, %v3306
        %v3309 = vshrl.u32 %v3291, %v3307
        %v3310 = vor.u32 %v3308, %v3309
        %v3311 = vsub.s32 4294967266, %v3306
        %v3312 = vadd.s32 %v3311, 127
        %v3313 = vshll.u32 %v3312, 23
        %v3314 = vor.u32 4788187, %v3313
        %v3315 = vand.u32 2147483647, %v3314
        %v3317 = vcvt.s32.f32 %v3310
        %v3318 = vmul.f32 %v3317, %v3315
        %v3319 = vxor.u32 %v3318, 2147483648
        %v3320 = vsel %vm3237, %v3319, %v3318
        %v3321 = vsub.s32 4, %v3297
        %v3322 = vsel %vm3237, %v3321, %v3297
        %v3323 = vsel %vm3236, %v468, %v3320
        %v3324 = vsel %vm3236, 0, %v3322
        %v3325 = vcosq.f32.pop %v3323
        %v3326 = vsinq.f32.pop %v3323
        %vm3327 = vweird.f32 %v468
        %v3328 = vadd.s32 %v3324, 3
        %v3329 = vand.u32 %v3328, 3
        %vm3330 = vcmp.lt.s32.totalorder %v3329, 2
        %vm3331 = vcmp.eq.s32.totalorder %v3329, 0
        %v3332 = vxor.u32 %v3326, 2147483648
        %v3333 = vsel %vm3331, %v3325, %v3332
        %vm3334 = vcmp.eq.s32.totalorder %v3329, 2
        %v3335 = vxor.u32 %v3325, 2147483648
        %v3336 = vsel %vm3334, %v3335, %v3326
        %v3337 = vsel %vm3330, %v3333, %v3336
        %v3338 = vsel %vm3327, nan, %v3337
        %v3339 = vand.u32 2147483647, %v470
        %vm3340 = vcmp.le.f32.partialorder %v3339, 0.7853982
        %vm3341 = vcmp.lt.s32.totalorder %v470, 0
        %v3342 = vand.u32 %v470, 2139095040
        %v3343 = vshrl.u32 %v3342, 23
        %v3344 = vsub.s32 %v3343, 127
        %v3345 = vand.u32 2147483647, %v470
        %v3346 = vand.u32 %v3345, 8388607
        %v3347 = vor.u32 %v3346, 8388608
        %v3348 = vsub.s32 0, %v3347
        %v3349 = vadd.s32 %v3344, 1
        %vm3350 = vcmp.gt.s32.totalorder %v3349, 0
        %v3351 = vsel %vm3350, %v3349, 0
        %v3352 = vshrl.u32 %v3351, 5
        %v3353 = vand.u32 %v3351, 31
        %v3354 = vsub.s32 32, %v3353
        %v3355 = vshrl.u32 683565275, %v3354
        %v3356 = vshll.u32 683565275, %v3353
        %v3357 = vshrl.u32 2475754826, %v3354
        %v3358 = vor.u32 %v3356, %v3357
        %v3359 = vshll.u32 2475754826, %v3353
        %v3360 = vshrl.u32 2131351028, %v3354
        %v3361 = vor.u32 %v3359, %v3360
        %v3362 = vshll.u32 2131351028, %v3353
        %v3363 = vshrl.u32 2102212464, %v3354
        %v3364 = vor.u32 %v3362, %v3363
        %v3365 = vshll.u32 2102212464, %v3353
        %v3366 = vshrl.u32 920167782, %v3354
        %v3367 = vor.u32 %v3365, %v3366
        %v3368 = vshll.u32 920167782, %v3353
        %v3369 = vshrl.u32 1326507024, %v3354
        %v3370 = vor.u32 %v3368, %v3369
        %vm3371 = vcmp.lt.s32.totalorder %v3352, 1
        %vm3372 = vcmp.lt.s32.totalorder %v3352, 2
        %vm3373 = vcmp.lt.s32.totalorder %v3352, 3
        %vm3374 = vcmp.lt.s32.totalorder %v3352, 4
        %v3375 = vsel %vm3371, %v3355, %v3358
        %v3376 = vsel %vm3374, %v3364, 2102212464
        %v3377 = vsel %vm3373, %v3361, %v3376
        %v3378 = vsel %vm3372, %v3375, %v3377
        %v3379 = vsel %vm3371, %v3358, %v3361
        %v3380 = vsel %vm3374, %v3367, 920167782
        %v3381 = vsel %vm3373, %v3364, %v3380
        %v3382 = vsel %vm3372, %v3379, %v3381
        %v3383 = vsel %vm3371, %v3361, %v3364
        %v3384 = vsel %vm3374, %v3370, 1326507024
        %v3385 = vsel %vm3373, %v3367, %v3384
        %v3386 = vsel %vm3372, %v3383, %v3385
        %v3387 = vshll.u32 %v3347, 8
        %v3388 = vmul.u32.u64.compose %v3387, %v3386
        %v3389 = vextract.low.u32 %v3388
        %v3390 = vextract.high.u32 %v3388
        %v3391 = vmul.u32.u64.compose %v3387, %v3382
        %v3392 = vextract.low.u32 %v3391
        %v3393 = vextract.high.u32 %v3391
        %v3394 = vmul.u32 %v3387, %v3378
        %v3395 = vadd.s32 %v3390, %v3392
        %vm3396 = vc.u32 %v3390, %v3392
        %v3397 = vadd.s32 %v3393, 1
        %v3398 = vsel %vm3396, %v3397, %v3393
        %v3399 = vadd.s32 %v3394, %v3398
        %v3400 = vadd.s32 %v3399, 536870912
        %v3401 = vshrl.u32 %v3400, 30
        %v3402 = vshll.u32 %v3401, 30
        %v3403 = vsub.s32 %v3399, %v3402
        %vm3404 = vcmp.lt.s32.totalorder %v3403, 0
        %v3405 = vsub.s32 0, %v3403
        %v3406 = vsel %vm3404, %v3405, %v3403
        %v3407 = vclz %v3406
        %v3408 = vsub.s32 %v3407, 2
        %vm3409 = vcmp.gt.s32.totalorder 0, %v3408
        %v3410 = vsel %vm3409, 0, %v3408
        %v3411 = vsub.s32 32, %v3410
        %v3412 = vshll.u32 %v3403, %v3410
        %v3413 = vshrl.u32 %v3395, %v3411
        %v3414 = vor.u32 %v3412, %v3413
        %v3415 = vsub.s32 4294967266, %v3410
        %v3416 = vadd.s32 %v3415, 127
        %v3417 = vshll.u32 %v3416, 23
        %v3418 = vor.u32 4788187, %v3417
        %v3419 = vand.u32 2147483647, %v3418
        %v3421 = vcvt.s32.f32 %v3414
        %v3422 = vmul.f32 %v3421, %v3419
        %v3423 = vxor.u32 %v3422, 2147483648
        %v3424 = vsel %vm3341, %v3423, %v3422
        %v3425 = vsub.s32 4, %v3401
        %v3426 = vsel %vm3341, %v3425, %v3401
        %v3427 = vsel %vm3340, %v470, %v3424
        %v3428 = vsel %vm3340, 0, %v3426
        %v3429 = vcosq.f32.pop %v3427
        %v3430 = vsinq.f32.pop %v3427
        %vm3431 = vweird.f32 %v470
        %v3432 = vadd.s32 %v3428, 3
        %v3433 = vand.u32 %v3432, 3
        %vm3434 = vcmp.lt.s32.totalorder %v3433, 2
        %vm3435 = vcmp.eq.s32.totalorder %v3433, 0
        %v3436 = vxor.u32 %v3430, 2147483648
        %v3437 = vsel %vm3435, %v3429, %v3436
        %vm3438 = vcmp.eq.s32.totalorder %v3433, 2
        %v3439 = vxor.u32 %v3429, 2147483648
        %v3440 = vsel %vm3438, %v3439, %v3430
        %v3441 = vsel %vm3434, %v3437, %v3440
        %v3442 = vsel %vm3431, nan, %v3441
        %v3443 = vand.u32 2147483647, %v557
        %vm3444 = vcmp.le.f32.partialorder %v3443, 0.7853982
        %vm3445 = vcmp.lt.s32.totalorder %v557, 0
        %v3446 = vand.u32 %v557, 2139095040
        %v3447 = vshrl.u32 %v3446, 23
        %v3448 = vsub.s32 %v3447, 127
        %v3449 = vand.u32 2147483647, %v557
        %v3450 = vand.u32 %v3449, 8388607
        %v3451 = vor.u32 %v3450, 8388608
        %v3452 = vsub.s32 0, %v3451
        %v3453 = vadd.s32 %v3448, 1
        %vm3454 = vcmp.gt.s32.totalorder %v3453, 0
        %v3455 = vsel %vm3454, %v3453, 0
        %v3456 = vshrl.u32 %v3455, 5
        %v3457 = vand.u32 %v3455, 31
        %v3458 = vsub.s32 32, %v3457
        %v3459 = vshrl.u32 683565275, %v3458
        %v3460 = vshll.u32 683565275, %v3457
        %v3461 = vshrl.u32 2475754826, %v3458
        %v3462 = vor.u32 %v3460, %v3461
        %v3463 = vshll.u32 2475754826, %v3457
        %v3464 = vshrl.u32 2131351028, %v3458
        %v3465 = vor.u32 %v3463, %v3464
        %v3466 = vshll.u32 2131351028, %v3457
        %v3467 = vshrl.u32 2102212464, %v3458
        %v3468 = vor.u32 %v3466, %v3467
        %v3469 = vshll.u32 2102212464, %v3457
        %v3470 = vshrl.u32 920167782, %v3458
        %v3471 = vor.u32 %v3469, %v3470
        %v3472 = vshll.u32 920167782, %v3457
        %v3473 = vshrl.u32 1326507024, %v3458
        %v3474 = vor.u32 %v3472, %v3473
        %vm3475 = vcmp.lt.s32.totalorder %v3456, 1
        %vm3476 = vcmp.lt.s32.totalorder %v3456, 2
        %vm3477 = vcmp.lt.s32.totalorder %v3456, 3
        %vm3478 = vcmp.lt.s32.totalorder %v3456, 4
        %v3479 = vsel %vm3475, %v3459, %v3462
        %v3480 = vsel %vm3478, %v3468, 2102212464
        %v3481 = vsel %vm3477, %v3465, %v3480
        %v3482 = vsel %vm3476, %v3479, %v3481
        %v3483 = vsel %vm3475, %v3462, %v3465
        %v3484 = vsel %vm3478, %v3471, 920167782
        %v3485 = vsel %vm3477, %v3468, %v3484
        %v3486 = vsel %vm3476, %v3483, %v3485
        %v3487 = vsel %vm3475, %v3465, %v3468
        %v3488 = vsel %vm3478, %v3474, 1326507024
        %v3489 = vsel %vm3477, %v3471, %v3488
        %v3490 = vsel %vm3476, %v3487, %v3489
        %v3491 = vshll.u32 %v3451, 8
        %v3492 = vmul.u32.u64.compose %v3491, %v3490
        %v3493 = vextract.low.u32 %v3492
        %v3494 = vextract.high.u32 %v3492
        %v3495 = vmul.u32.u64.compose %v3491, %v3486
        %v3496 = vextract.low.u32 %v3495
        %v3497 = vextract.high.u32 %v3495
        %v3498 = vmul.u32 %v3491, %v3482
        %v3499 = vadd.s32 %v3494, %v3496
        %vm3500 = vc.u32 %v3494, %v3496
        %v3501 = vadd.s32 %v3497, 1
        %v3502 = vsel %vm3500, %v3501, %v3497
        %v3503 = vadd.s32 %v3498, %v3502
        %v3504 = vadd.s32 %v3503, 536870912
        %v3505 = vshrl.u32 %v3504, 30
        %v3506 = vshll.u32 %v3505, 30
        %v3507 = vsub.s32 %v3503, %v3506
        %vm3508 = vcmp.lt.s32.totalorder %v3507, 0
        %v3509 = vsub.s32 0, %v3507
        %v3510 = vsel %vm3508, %v3509, %v3507
        %v3511 = vclz %v3510
        %v3512 = vsub.s32 %v3511, 2
        %vm3513 = vcmp.gt.s32.totalorder 0, %v3512
        %v3514 = vsel %vm3513, 0, %v3512
        %v3515 = vsub.s32 32, %v3514
        %v3516 = vshll.u32 %v3507, %v3514
        %v3517 = vshrl.u32 %v3499, %v3515
        %v3518 = vor.u32 %v3516, %v3517
        %v3519 = vsub.s32 4294967266, %v3514
        %v3520 = vadd.s32 %v3519, 127
        %v3521 = vshll.u32 %v3520, 23
        %v3522 = vor.u32 4788187, %v3521
        %v3523 = vand.u32 2147483647, %v3522
        %v3525 = vcvt.s32.f32 %v3518
        %v3526 = vmul.f32 %v3525, %v3523
        %v3527 = vxor.u32 %v3526, 2147483648
        %v3528 = vsel %vm3445, %v3527, %v3526
        %v3529 = vsub.s32 4, %v3505
        %v3530 = vsel %vm3445, %v3529, %v3505
        %v3531 = vsel %vm3444, %v557, %v3528
        %v3532 = vsel %vm3444, 0, %v3530
        %v3533 = vcosq.f32.pop %v3531
        %v3534 = vsinq.f32.pop %v3531
        %vm3535 = vweird.f32 %v557
        %v3536 = vadd.s32 %v3532, 3
        %v3537 = vand.u32 %v3536, 3
        %vm3538 = vcmp.lt.s32.totalorder %v3537, 2
        %vm3539 = vcmp.eq.s32.totalorder %v3537, 0
        %v3540 = vxor.u32 %v3534, 2147483648
        %v3541 = vsel %vm3539, %v3533, %v3540
        %vm3542 = vcmp.eq.s32.totalorder %v3537, 2
        %v3543 = vxor.u32 %v3533, 2147483648
        %v3544 = vsel %vm3542, %v3543, %v3534
        %v3545 = vsel %vm3538, %v3541, %v3544
        %v3546 = vsel %vm3535, nan, %v3545
        %v3547 = vand.u32 2147483647, %v559
        %vm3548 = vcmp.le.f32.partialorder %v3547, 0.7853982
        %vm3549 = vcmp.lt.s32.totalorder %v559, 0
        %v3550 = vand.u32 %v559, 2139095040
        %v3551 = vshrl.u32 %v3550, 23
        %v3552 = vsub.s32 %v3551, 127
        %v3553 = vand.u32 2147483647, %v559
        %v3554 = vand.u32 %v3553, 8388607
        %v3555 = vor.u32 %v3554, 8388608
        %v3556 = vsub.s32 0, %v3555
        %v3557 = vadd.s32 %v3552, 1
        %vm3558 = vcmp.gt.s32.totalorder %v3557, 0
        %v3559 = vsel %vm3558, %v3557, 0
        %v3560 = vshrl.u32 %v3559, 5
        %v3561 = vand.u32 %v3559, 31
        %v3562 = vsub.s32 32, %v3561
        %v3563 = vshrl.u32 683565275, %v3562
        %v3564 = vshll.u32 683565275, %v3561
        %v3565 = vshrl.u32 2475754826, %v3562
        %v3566 = vor.u32 %v3564, %v3565
        %v3567 = vshll.u32 2475754826, %v3561
        %v3568 = vshrl.u32 2131351028, %v3562
        %v3569 = vor.u32 %v3567, %v3568
        %v3570 = vshll.u32 2131351028, %v3561
        %v3571 = vshrl.u32 2102212464, %v3562
        %v3572 = vor.u32 %v3570, %v3571
        %v3573 = vshll.u32 2102212464, %v3561
        %v3574 = vshrl.u32 920167782, %v3562
        %v3575 = vor.u32 %v3573, %v3574
        %v3576 = vshll.u32 920167782, %v3561
        %v3577 = vshrl.u32 1326507024, %v3562
        %v3578 = vor.u32 %v3576, %v3577
        %vm3579 = vcmp.lt.s32.totalorder %v3560, 1
        %vm3580 = vcmp.lt.s32.totalorder %v3560, 2
        %vm3581 = vcmp.lt.s32.totalorder %v3560, 3
        %vm3582 = vcmp.lt.s32.totalorder %v3560, 4
        %v3583 = vsel %vm3579, %v3563, %v3566
        %v3584 = vsel %vm3582, %v3572, 2102212464
        %v3585 = vsel %vm3581, %v3569, %v3584
        %v3586 = vsel %vm3580, %v3583, %v3585
        %v3587 = vsel %vm3579, %v3566, %v3569
        %v3588 = vsel %vm3582, %v3575, 920167782
        %v3589 = vsel %vm3581, %v3572, %v3588
        %v3590 = vsel %vm3580, %v3587, %v3589
        %v3591 = vsel %vm3579, %v3569, %v3572
        %v3592 = vsel %vm3582, %v3578, 1326507024
        %v3593 = vsel %vm3581, %v3575, %v3592
        %v3594 = vsel %vm3580, %v3591, %v3593
        %v3595 = vshll.u32 %v3555, 8
        %v3596 = vmul.u32.u64.compose %v3595, %v3594
        %v3597 = vextract.low.u32 %v3596
        %v3598 = vextract.high.u32 %v3596
        %v3599 = vmul.u32.u64.compose %v3595, %v3590
        %v3600 = vextract.low.u32 %v3599
        %v3601 = vextract.high.u32 %v3599
        %v3602 = vmul.u32 %v3595, %v3586
        %v3603 = vadd.s32 %v3598, %v3600
        %vm3604 = vc.u32 %v3598, %v3600
        %v3605 = vadd.s32 %v3601, 1
        %v3606 = vsel %vm3604, %v3605, %v3601
        %v3607 = vadd.s32 %v3602, %v3606
        %v3608 = vadd.s32 %v3607, 536870912
        %v3609 = vshrl.u32 %v3608, 30
        %v3610 = vshll.u32 %v3609, 30
        %v3611 = vsub.s32 %v3607, %v3610
        %vm3612 = vcmp.lt.s32.totalorder %v3611, 0
        %v3613 = vsub.s32 0, %v3611
        %v3614 = vsel %vm3612, %v3613, %v3611
        %v3615 = vclz %v3614
        %v3616 = vsub.s32 %v3615, 2
        %vm3617 = vcmp.gt.s32.totalorder 0, %v3616
        %v3618 = vsel %vm3617, 0, %v3616
        %v3619 = vsub.s32 32, %v3618
        %v3620 = vshll.u32 %v3611, %v3618
        %v3621 = vshrl.u32 %v3603, %v3619
        %v3622 = vor.u32 %v3620, %v3621
        %v3623 = vsub.s32 4294967266, %v3618
        %v3624 = vadd.s32 %v3623, 127
        %v3625 = vshll.u32 %v3624, 23
        %v3626 = vor.u32 4788187, %v3625
        %v3627 = vand.u32 2147483647, %v3626
        %v3629 = vcvt.s32.f32 %v3622
        %v3630 = vmul.f32 %v3629, %v3627
        %v3631 = vxor.u32 %v3630, 2147483648
        %v3632 = vsel %vm3549, %v3631, %v3630
        %v3633 = vsub.s32 4, %v3609
        %v3634 = vsel %vm3549, %v3633, %v3609
        %v3635 = vsel %vm3548, %v559, %v3632
        %v3636 = vsel %vm3548, 0, %v3634
        %v3637 = vcosq.f32.pop %v3635
        %v3638 = vsinq.f32.pop %v3635
        %vm3639 = vweird.f32 %v559
        %v3640 = vadd.s32 %v3636, 3
        %v3641 = vand.u32 %v3640, 3
        %vm3642 = vcmp.lt.s32.totalorder %v3641, 2
        %vm3643 = vcmp.eq.s32.totalorder %v3641, 0
        %v3644 = vxor.u32 %v3638, 2147483648
        %v3645 = vsel %vm3643, %v3637, %v3644
        %vm3646 = vcmp.eq.s32.totalorder %v3641, 2
        %v3647 = vxor.u32 %v3637, 2147483648
        %v3648 = vsel %vm3646, %v3647, %v3638
        %v3649 = vsel %vm3642, %v3645, %v3648
        %v3650 = vsel %vm3639, nan, %v3649
        %v3651 = vand.u32 2147483647, %v646
        %vm3652 = vcmp.le.f32.partialorder %v3651, 0.7853982
        %vm3653 = vcmp.lt.s32.totalorder %v646, 0
        %v3654 = vand.u32 %v646, 2139095040
        %v3655 = vshrl.u32 %v3654, 23
        %v3656 = vsub.s32 %v3655, 127
        %v3657 = vand.u32 2147483647, %v646
        %v3658 = vand.u32 %v3657, 8388607
        %v3659 = vor.u32 %v3658, 8388608
        %v3660 = vsub.s32 0, %v3659
        %v3661 = vadd.s32 %v3656, 1
        %vm3662 = vcmp.gt.s32.totalorder %v3661, 0
        %v3663 = vsel %vm3662, %v3661, 0
        %v3664 = vshrl.u32 %v3663, 5
        %v3665 = vand.u32 %v3663, 31
        %v3666 = vsub.s32 32, %v3665
        %v3667 = vshrl.u32 683565275, %v3666
        %v3668 = vshll.u32 683565275, %v3665
        %v3669 = vshrl.u32 2475754826, %v3666
        %v3670 = vor.u32 %v3668, %v3669
        %v3671 = vshll.u32 2475754826, %v3665
        %v3672 = vshrl.u32 2131351028, %v3666
        %v3673 = vor.u32 %v3671, %v3672
        %v3674 = vshll.u32 2131351028, %v3665
        %v3675 = vshrl.u32 2102212464, %v3666
        %v3676 = vor.u32 %v3674, %v3675
        %v3677 = vshll.u32 2102212464, %v3665
        %v3678 = vshrl.u32 920167782, %v3666
        %v3679 = vor.u32 %v3677, %v3678
        %v3680 = vshll.u32 920167782, %v3665
        %v3681 = vshrl.u32 1326507024, %v3666
        %v3682 = vor.u32 %v3680, %v3681
        %vm3683 = vcmp.lt.s32.totalorder %v3664, 1
        %vm3684 = vcmp.lt.s32.totalorder %v3664, 2
        %vm3685 = vcmp.lt.s32.totalorder %v3664, 3
        %vm3686 = vcmp.lt.s32.totalorder %v3664, 4
        %v3687 = vsel %vm3683, %v3667, %v3670
        %v3688 = vsel %vm3686, %v3676, 2102212464
        %v3689 = vsel %vm3685, %v3673, %v3688
        %v3690 = vsel %vm3684, %v3687, %v3689
        %v3691 = vsel %vm3683, %v3670, %v3673
        %v3692 = vsel %vm3686, %v3679, 920167782
        %v3693 = vsel %vm3685, %v3676, %v3692
        %v3694 = vsel %vm3684, %v3691, %v3693
        %v3695 = vsel %vm3683, %v3673, %v3676
        %v3696 = vsel %vm3686, %v3682, 1326507024
        %v3697 = vsel %vm3685, %v3679, %v3696
        %v3698 = vsel %vm3684, %v3695, %v3697
        %v3699 = vshll.u32 %v3659, 8
        %v3700 = vmul.u32.u64.compose %v3699, %v3698
        %v3701 = vextract.low.u32 %v3700
        %v3702 = vextract.high.u32 %v3700
        %v3703 = vmul.u32.u64.compose %v3699, %v3694
        %v3704 = vextract.low.u32 %v3703
        %v3705 = vextract.high.u32 %v3703
        %v3706 = vmul.u32 %v3699, %v3690
        %v3707 = vadd.s32 %v3702, %v3704
        %vm3708 = vc.u32 %v3702, %v3704
        %v3709 = vadd.s32 %v3705, 1
        %v3710 = vsel %vm3708, %v3709, %v3705
        %v3711 = vadd.s32 %v3706, %v3710
        %v3712 = vadd.s32 %v3711, 536870912
        %v3713 = vshrl.u32 %v3712, 30
        %v3714 = vshll.u32 %v3713, 30
        %v3715 = vsub.s32 %v3711, %v3714
        %vm3716 = vcmp.lt.s32.totalorder %v3715, 0
        %v3717 = vsub.s32 0, %v3715
        %v3718 = vsel %vm3716, %v3717, %v3715
        %v3719 = vclz %v3718
        %v3720 = vsub.s32 %v3719, 2
        %vm3721 = vcmp.gt.s32.totalorder 0, %v3720
        %v3722 = vsel %vm3721, 0, %v3720
        %v3723 = vsub.s32 32, %v3722
        %v3724 = vshll.u32 %v3715, %v3722
        %v3725 = vshrl.u32 %v3707, %v3723
        %v3726 = vor.u32 %v3724, %v3725
        %v3727 = vsub.s32 4294967266, %v3722
        %v3728 = vadd.s32 %v3727, 127
        %v3729 = vshll.u32 %v3728, 23
        %v3730 = vor.u32 4788187, %v3729
        %v3731 = vand.u32 2147483647, %v3730
        %v3733 = vcvt.s32.f32 %v3726
        %v3734 = vmul.f32 %v3733, %v3731
        %v3735 = vxor.u32 %v3734, 2147483648
        %v3736 = vsel %vm3653, %v3735, %v3734
        %v3737 = vsub.s32 4, %v3713
        %v3738 = vsel %vm3653, %v3737, %v3713
        %v3739 = vsel %vm3652, %v646, %v3736
        %v3740 = vsel %vm3652, 0, %v3738
        %v3741 = vcosq.f32.pop %v3739
        %v3742 = vsinq.f32.pop %v3739
        %vm3743 = vweird.f32 %v646
        %v3744 = vadd.s32 %v3740, 3
        %v3745 = vand.u32 %v3744, 3
        %vm3746 = vcmp.lt.s32.totalorder %v3745, 2
        %vm3747 = vcmp.eq.s32.totalorder %v3745, 0
        %v3748 = vxor.u32 %v3742, 2147483648
        %v3749 = vsel %vm3747, %v3741, %v3748
        %vm3750 = vcmp.eq.s32.totalorder %v3745, 2
        %v3751 = vxor.u32 %v3741, 2147483648
        %v3752 = vsel %vm3750, %v3751, %v3742
        %v3753 = vsel %vm3746, %v3749, %v3752
        %v3754 = vsel %vm3743, nan, %v3753
        %v3755 = vand.u32 2147483647, %v648
        %vm3756 = vcmp.le.f32.partialorder %v3755, 0.7853982
        %vm3757 = vcmp.lt.s32.totalorder %v648, 0
        %v3758 = vand.u32 %v648, 2139095040
        %v3759 = vshrl.u32 %v3758, 23
        %v3760 = vsub.s32 %v3759, 127
        %v3761 = vand.u32 2147483647, %v648
        %v3762 = vand.u32 %v3761, 8388607
        %v3763 = vor.u32 %v3762, 8388608
        %v3764 = vsub.s32 0, %v3763
        %v3765 = vadd.s32 %v3760, 1
        %vm3766 = vcmp.gt.s32.totalorder %v3765, 0
        %v3767 = vsel %vm3766, %v3765, 0
        %v3768 = vshrl.u32 %v3767, 5
        %v3769 = vand.u32 %v3767, 31
        %v3770 = vsub.s32 32, %v3769
        %v3771 = vshrl.u32 683565275, %v3770
        %v3772 = vshll.u32 683565275, %v3769
        %v3773 = vshrl.u32 2475754826, %v3770
        %v3774 = vor.u32 %v3772, %v3773
        %v3775 = vshll.u32 2475754826, %v3769
        %v3776 = vshrl.u32 2131351028, %v3770
        %v3777 = vor.u32 %v3775, %v3776
        %v3778 = vshll.u32 2131351028, %v3769
        %v3779 = vshrl.u32 2102212464, %v3770
        %v3780 = vor.u32 %v3778, %v3779
        %v3781 = vshll.u32 2102212464, %v3769
        %v3782 = vshrl.u32 920167782, %v3770
        %v3783 = vor.u32 %v3781, %v3782
        %v3784 = vshll.u32 920167782, %v3769
        %v3785 = vshrl.u32 1326507024, %v3770
        %v3786 = vor.u32 %v3784, %v3785
        %vm3787 = vcmp.lt.s32.totalorder %v3768, 1
        %vm3788 = vcmp.lt.s32.totalorder %v3768, 2
        %vm3789 = vcmp.lt.s32.totalorder %v3768, 3
        %vm3790 = vcmp.lt.s32.totalorder %v3768, 4
        %v3791 = vsel %vm3787, %v3771, %v3774
        %v3792 = vsel %vm3790, %v3780, 2102212464
        %v3793 = vsel %vm3789, %v3777, %v3792
        %v3794 = vsel %vm3788, %v3791, %v3793
        %v3795 = vsel %vm3787, %v3774, %v3777
        %v3796 = vsel %vm3790, %v3783, 920167782
        %v3797 = vsel %vm3789, %v3780, %v3796
        %v3798 = vsel %vm3788, %v3795, %v3797
        %v3799 = vsel %vm3787, %v3777, %v3780
        %v3800 = vsel %vm3790, %v3786, 1326507024
        %v3801 = vsel %vm3789, %v3783, %v3800
        %v3802 = vsel %vm3788, %v3799, %v3801
        %v3803 = vshll.u32 %v3763, 8
        %v3804 = vmul.u32.u64.compose %v3803, %v3802
        %v3805 = vextract.low.u32 %v3804
        %v3806 = vextract.high.u32 %v3804
        %v3807 = vmul.u32.u64.compose %v3803, %v3798
        %v3808 = vextract.low.u32 %v3807
        %v3809 = vextract.high.u32 %v3807
        %v3810 = vmul.u32 %v3803, %v3794
        %v3811 = vadd.s32 %v3806, %v3808
        %vm3812 = vc.u32 %v3806, %v3808
        %v3813 = vadd.s32 %v3809, 1
        %v3814 = vsel %vm3812, %v3813, %v3809
        %v3815 = vadd.s32 %v3810, %v3814
        %v3816 = vadd.s32 %v3815, 536870912
        %v3817 = vshrl.u32 %v3816, 30
        %v3818 = vshll.u32 %v3817, 30
        %v3819 = vsub.s32 %v3815, %v3818
        %vm3820 = vcmp.lt.s32.totalorder %v3819, 0
        %v3821 = vsub.s32 0, %v3819
        %v3822 = vsel %vm3820, %v3821, %v3819
        %v3823 = vclz %v3822
        %v3824 = vsub.s32 %v3823, 2
        %vm3825 = vcmp.gt.s32.totalorder 0, %v3824
        %v3826 = vsel %vm3825, 0, %v3824
        %v3827 = vsub.s32 32, %v3826
        %v3828 = vshll.u32 %v3819, %v3826
        %v3829 = vshrl.u32 %v3811, %v3827
        %v3830 = vor.u32 %v3828, %v3829
        %v3831 = vsub.s32 4294967266, %v3826
        %v3832 = vadd.s32 %v3831, 127
        %v3833 = vshll.u32 %v3832, 23
        %v3834 = vor.u32 4788187, %v3833
        %v3835 = vand.u32 2147483647, %v3834
        %v3837 = vcvt.s32.f32 %v3830
        %v3838 = vmul.f32 %v3837, %v3835
        %v3839 = vxor.u32 %v3838, 2147483648
        %v3840 = vsel %vm3757, %v3839, %v3838
        %v3841 = vsub.s32 4, %v3817
        %v3842 = vsel %vm3757, %v3841, %v3817
        %v3843 = vsel %vm3756, %v648, %v3840
        %v3844 = vsel %vm3756, 0, %v3842
        %v3845 = vcosq.f32.pop %v3843
        %v3846 = vsinq.f32.pop %v3843
        %vm3847 = vweird.f32 %v648
        %v3848 = vadd.s32 %v3844, 3
        %v3849 = vand.u32 %v3848, 3
        %vm3850 = vcmp.lt.s32.totalorder %v3849, 2
        %vm3851 = vcmp.eq.s32.totalorder %v3849, 0
        %v3852 = vxor.u32 %v3846, 2147483648
        %v3853 = vsel %vm3851, %v3845, %v3852
        %vm3854 = vcmp.eq.s32.totalorder %v3849, 2
        %v3855 = vxor.u32 %v3845, 2147483648
        %v3856 = vsel %vm3854, %v3855, %v3846
        %v3857 = vsel %vm3850, %v3853, %v3856
        %v3858 = vsel %vm3847, nan, %v3857
        %v3859 = vand.u32 2147483647, %v735
        %vm3860 = vcmp.le.f32.partialorder %v3859, 0.7853982
        %vm3861 = vcmp.lt.s32.totalorder %v735, 0
        %v3862 = vand.u32 %v735, 2139095040
        %v3863 = vshrl.u32 %v3862, 23
        %v3864 = vsub.s32 %v3863, 127
        %v3865 = vand.u32 2147483647, %v735
        %v3866 = vand.u32 %v3865, 8388607
        %v3867 = vor.u32 %v3866, 8388608
        %v3868 = vsub.s32 0, %v3867
        %v3869 = vadd.s32 %v3864, 1
        %vm3870 = vcmp.gt.s32.totalorder %v3869, 0
        %v3871 = vsel %vm3870, %v3869, 0
        %v3872 = vshrl.u32 %v3871, 5
        %v3873 = vand.u32 %v3871, 31
        %v3874 = vsub.s32 32, %v3873
        %v3875 = vshrl.u32 683565275, %v3874
        %v3876 = vshll.u32 683565275, %v3873
        %v3877 = vshrl.u32 2475754826, %v3874
        %v3878 = vor.u32 %v3876, %v3877
        %v3879 = vshll.u32 2475754826, %v3873
        %v3880 = vshrl.u32 2131351028, %v3874
        %v3881 = vor.u32 %v3879, %v3880
        %v3882 = vshll.u32 2131351028, %v3873
        %v3883 = vshrl.u32 2102212464, %v3874
        %v3884 = vor.u32 %v3882, %v3883
        %v3885 = vshll.u32 2102212464, %v3873
        %v3886 = vshrl.u32 920167782, %v3874
        %v3887 = vor.u32 %v3885, %v3886
        %v3888 = vshll.u32 920167782, %v3873
        %v3889 = vshrl.u32 1326507024, %v3874
        %v3890 = vor.u32 %v3888, %v3889
        %vm3891 = vcmp.lt.s32.totalorder %v3872, 1
        %vm3892 = vcmp.lt.s32.totalorder %v3872, 2
        %vm3893 = vcmp.lt.s32.totalorder %v3872, 3
        %vm3894 = vcmp.lt.s32.totalorder %v3872, 4
        %v3895 = vsel %vm3891, %v3875, %v3878
        %v3896 = vsel %vm3894, %v3884, 2102212464
        %v3897 = vsel %vm3893, %v3881, %v3896
        %v3898 = vsel %vm3892, %v3895, %v3897
        %v3899 = vsel %vm3891, %v3878, %v3881
        %v3900 = vsel %vm3894, %v3887, 920167782
        %v3901 = vsel %vm3893, %v3884, %v3900
        %v3902 = vsel %vm3892, %v3899, %v3901
        %v3903 = vsel %vm3891, %v3881, %v3884
        %v3904 = vsel %vm3894, %v3890, 1326507024
        %v3905 = vsel %vm3893, %v3887, %v3904
        %v3906 = vsel %vm3892, %v3903, %v3905
        %v3907 = vshll.u32 %v3867, 8
        %v3908 = vmul.u32.u64.compose %v3907, %v3906
        %v3909 = vextract.low.u32 %v3908
        %v3910 = vextract.high.u32 %v3908
        %v3911 = vmul.u32.u64.compose %v3907, %v3902
        %v3912 = vextract.low.u32 %v3911
        %v3913 = vextract.high.u32 %v3911
        %v3914 = vmul.u32 %v3907, %v3898
        %v3915 = vadd.s32 %v3910, %v3912
        %vm3916 = vc.u32 %v3910, %v3912
        %v3917 = vadd.s32 %v3913, 1
        %v3918 = vsel %vm3916, %v3917, %v3913
        %v3919 = vadd.s32 %v3914, %v3918
        %v3920 = vadd.s32 %v3919, 536870912
        %v3921 = vshrl.u32 %v3920, 30
        %v3922 = vshll.u32 %v3921, 30
        %v3923 = vsub.s32 %v3919, %v3922
        %vm3924 = vcmp.lt.s32.totalorder %v3923, 0
        %v3925 = vsub.s32 0, %v3923
        %v3926 = vsel %vm3924, %v3925, %v3923
        %v3927 = vclz %v3926
        %v3928 = vsub.s32 %v3927, 2
        %vm3929 = vcmp.gt.s32.totalorder 0, %v3928
        %v3930 = vsel %vm3929, 0, %v3928
        %v3931 = vsub.s32 32, %v3930
        %v3932 = vshll.u32 %v3923, %v3930
        %v3933 = vshrl.u32 %v3915, %v3931
        %v3934 = vor.u32 %v3932, %v3933
        %v3935 = vsub.s32 4294967266, %v3930
        %v3936 = vadd.s32 %v3935, 127
        %v3937 = vshll.u32 %v3936, 23
        %v3938 = vor.u32 4788187, %v3937
        %v3939 = vand.u32 2147483647, %v3938
        %v3941 = vcvt.s32.f32 %v3934
        %v3942 = vmul.f32 %v3941, %v3939
        %v3943 = vxor.u32 %v3942, 2147483648
        %v3944 = vsel %vm3861, %v3943, %v3942
        %v3945 = vsub.s32 4, %v3921
        %v3946 = vsel %vm3861, %v3945, %v3921
        %v3947 = vsel %vm3860, %v735, %v3944
        %v3948 = vsel %vm3860, 0, %v3946
        %v3949 = vcosq.f32.pop %v3947
        %v3950 = vsinq.f32.pop %v3947
        %vm3951 = vweird.f32 %v735
        %v3952 = vadd.s32 %v3948, 3
        %v3953 = vand.u32 %v3952, 3
        %vm3954 = vcmp.lt.s32.totalorder %v3953, 2
        %vm3955 = vcmp.eq.s32.totalorder %v3953, 0
        %v3956 = vxor.u32 %v3950, 2147483648
        %v3957 = vsel %vm3955, %v3949, %v3956
        %vm3958 = vcmp.eq.s32.totalorder %v3953, 2
        %v3959 = vxor.u32 %v3949, 2147483648
        %v3960 = vsel %vm3958, %v3959, %v3950
        %v3961 = vsel %vm3954, %v3957, %v3960
        %v3962 = vsel %vm3951, nan, %v3961
        %v3963 = vand.u32 2147483647, %v737
        %vm3964 = vcmp.le.f32.partialorder %v3963, 0.7853982
        %vm3965 = vcmp.lt.s32.totalorder %v737, 0
        %v3966 = vand.u32 %v737, 2139095040
        %v3967 = vshrl.u32 %v3966, 23
        %v3968 = vsub.s32 %v3967, 127
        %v3969 = vand.u32 2147483647, %v737
        %v3970 = vand.u32 %v3969, 8388607
        %v3971 = vor.u32 %v3970, 8388608
        %v3972 = vsub.s32 0, %v3971
        %v3973 = vadd.s32 %v3968, 1
        %vm3974 = vcmp.gt.s32.totalorder %v3973, 0
        %v3975 = vsel %vm3974, %v3973, 0
        %v3976 = vshrl.u32 %v3975, 5
        %v3977 = vand.u32 %v3975, 31
        %v3978 = vsub.s32 32, %v3977
        %v3979 = vshrl.u32 683565275, %v3978
        %v3980 = vshll.u32 683565275, %v3977
        %v3981 = vshrl.u32 2475754826, %v3978
        %v3982 = vor.u32 %v3980, %v3981
        %v3983 = vshll.u32 2475754826, %v3977
        %v3984 = vshrl.u32 2131351028, %v3978
        %v3985 = vor.u32 %v3983, %v3984
        %v3986 = vshll.u32 2131351028, %v3977
        %v3987 = vshrl.u32 2102212464, %v3978
        %v3988 = vor.u32 %v3986, %v3987
        %v3989 = vshll.u32 2102212464, %v3977
        %v3990 = vshrl.u32 920167782, %v3978
        %v3991 = vor.u32 %v3989, %v3990
        %v3992 = vshll.u32 920167782, %v3977
        %v3993 = vshrl.u32 1326507024, %v3978
        %v3994 = vor.u32 %v3992, %v3993
        %vm3995 = vcmp.lt.s32.totalorder %v3976, 1
        %vm3996 = vcmp.lt.s32.totalorder %v3976, 2
        %vm3997 = vcmp.lt.s32.totalorder %v3976, 3
        %vm3998 = vcmp.lt.s32.totalorder %v3976, 4
        %v3999 = vsel %vm3995, %v3979, %v3982
        %v4000 = vsel %vm3998, %v3988, 2102212464
        %v4001 = vsel %vm3997, %v3985, %v4000
        %v4002 = vsel %vm3996, %v3999, %v4001
        %v4003 = vsel %vm3995, %v3982, %v3985
        %v4004 = vsel %vm3998, %v3991, 920167782
        %v4005 = vsel %vm3997, %v3988, %v4004
        %v4006 = vsel %vm3996, %v4003, %v4005
        %v4007 = vsel %vm3995, %v3985, %v3988
        %v4008 = vsel %vm3998, %v3994, 1326507024
        %v4009 = vsel %vm3997, %v3991, %v4008
        %v4010 = vsel %vm3996, %v4007, %v4009
        %v4011 = vshll.u32 %v3971, 8
        %v4012 = vmul.u32.u64.compose %v4011, %v4010
        %v4013 = vextract.low.u32 %v4012
        %v4014 = vextract.high.u32 %v4012
        %v4015 = vmul.u32.u64.compose %v4011, %v4006
        %v4016 = vextract.low.u32 %v4015
        %v4017 = vextract.high.u32 %v4015
        %v4018 = vmul.u32 %v4011, %v4002
        %v4019 = vadd.s32 %v4014, %v4016
        %vm4020 = vc.u32 %v4014, %v4016
        %v4021 = vadd.s32 %v4017, 1
        %v4022 = vsel %vm4020, %v4021, %v4017
        %v4023 = vadd.s32 %v4018, %v4022
        %v4024 = vadd.s32 %v4023, 536870912
        %v4025 = vshrl.u32 %v4024, 30
        %v4026 = vshll.u32 %v4025, 30
        %v4027 = vsub.s32 %v4023, %v4026
        %vm4028 = vcmp.lt.s32.totalorder %v4027, 0
        %v4029 = vsub.s32 0, %v4027
        %v4030 = vsel %vm4028, %v4029, %v4027
        %v4031 = vclz %v4030
        %v4032 = vsub.s32 %v4031, 2
        %vm4033 = vcmp.gt.s32.totalorder 0, %v4032
        %v4034 = vsel %vm4033, 0, %v4032
        %v4035 = vsub.s32 32, %v4034
        %v4036 = vshll.u32 %v4027, %v4034
        %v4037 = vshrl.u32 %v4019, %v4035
        %v4038 = vor.u32 %v4036, %v4037
        %v4039 = vsub.s32 4294967266, %v4034
        %v4040 = vadd.s32 %v4039, 127
        %v4041 = vshll.u32 %v4040, 23
        %v4042 = vor.u32 4788187, %v4041
        %v4043 = vand.u32 2147483647, %v4042
        %v4045 = vcvt.s32.f32 %v4038
        %v4046 = vmul.f32 %v4045, %v4043
        %v4047 = vxor.u32 %v4046, 2147483648
        %v4048 = vsel %vm3965, %v4047, %v4046
        %v4049 = vsub.s32 4, %v4025
        %v4050 = vsel %vm3965, %v4049, %v4025
        %v4051 = vsel %vm3964, %v737, %v4048
        %v4052 = vsel %vm3964, 0, %v4050
        %v4053 = vcosq.f32.pop %v4051
        %v4054 = vsinq.f32.pop %v4051
        %vm4055 = vweird.f32 %v737
        %v4056 = vadd.s32 %v4052, 3
        %v4057 = vand.u32 %v4056, 3
        %vm4058 = vcmp.lt.s32.totalorder %v4057, 2
        %vm4059 = vcmp.eq.s32.totalorder %v4057, 0
        %v4060 = vxor.u32 %v4054, 2147483648
        %v4061 = vsel %vm4059, %v4053, %v4060
        %vm4062 = vcmp.eq.s32.totalorder %v4057, 2
        %v4063 = vxor.u32 %v4053, 2147483648
        %v4064 = vsel %vm4062, %v4063, %v4054
        %v4065 = vsel %vm4058, %v4061, %v4064
        %v4066 = vsel %vm4055, nan, %v4065
        %v4067 = vld [vmem:[%s3] sm:$0xff]
        %v4068 = vld [vmem:[%s3 + $0x8] sm:$0xff]
        %v4069 = vld [vmem:[%s3 + $0x10] sm:$0xff]
        %v4070 = vld [vmem:[%s3 + $0x18] sm:$0xff]
        %v4071 = vld [vmem:[%s4] sm:$0xff]
        %v4072 = vld [vmem:[%s4 + $0x8] sm:$0xff]
        %v4073 = vld [vmem:[%s4 + $0x10] sm:$0xff]
        %v4074 = vld [vmem:[%s4 + $0x18] sm:$0xff]
        %4076 = vset.pattern.permute.xlu0 0
        %4077 = vperm.xlu0 %4076, %v4071
        %v4078 = vpop.permute.xlu0 %4077
        %4081 = vset.pattern.permute.xlu0 0
        %4082 = vperm.xlu0 %4081, %v4072
        %v4083 = vpop.permute.xlu0 %4082
        %4086 = vset.pattern.permute.xlu0 0
        %4087 = vperm.xlu0 %4086, %v4073
        %v4088 = vpop.permute.xlu0 %4087
        %4091 = vset.pattern.permute.xlu0 0
        %4092 = vperm.xlu0 %4091, %v4074
        %v4093 = vpop.permute.xlu0 %4092
        %vm4095 = vcmask 261120
        %v4097 = vsel %vm4095, %v4067, 0
        %v4100 = vsel %vm4095, %v4068, 0
        %v4103 = vsel %vm4095, %v4069, 0
        %v4106 = vsel %vm4095, %v4070, 0
        %4108 = vmatprep.subr.mxu0 %v946
        %4109 = vmatpush1.msra.mxu0 %v842
        %4110 = vmatprep.subr.mxu0 %v1778
        %4111 = vmatpush1.msra.mxu0 %v1674
        %4112 = vmatprep.subr.mxu0 %v2610
        %4113 = vmatpush1.msra.mxu0 %v2506
        %4114 = vmatprep.subr.mxu0 %v3442
        %4115 = vmatpush1.msra.mxu0 %v3338
        %4116 = vmatprep.subr.mxu0 0.0
        %4117 = vmatpush1.msra.mxu0 0.0
        %4118 = vmatprep.subr.mxu0 0.0
        %4119 = vmatpush1.msra.mxu0 0.0
        %4120 = vmatprep.subr.mxu0 0.0
        %4121 = vmatpush1.msra.mxu0 0.0
        %4122 = vmatprep.subr.mxu0 0.0
        %4123 = vmatpush1.msra.mxu0 0.0
        %4124 = vmatprep.subr.mxu0 0.0
        %4125 = vmatpush1.msra.mxu0 0.0
        %4126 = vmatprep.subr.mxu0 0.0
        %4127 = vmatpush1.msra.mxu0 0.0
        %4128 = vmatprep.subr.mxu0 0.0
        %4129 = vmatpush1.msra.mxu0 0.0
        %4130 = vmatprep.subr.mxu0 0.0
        %4131 = vmatpush1.msra.mxu0 0.0
        %4132 = vmatprep.subr.mxu0 0.0
        %4133 = vmatpush1.msra.mxu0 0.0
        %4134 = vmatprep.subr.mxu0 0.0
        %4135 = vmatpush1.msra.mxu0 0.0
        %4136 = vmatprep.subr.mxu0 0.0
        %4137 = vmatpush1.msra.mxu0 0.0
        %4138 = vmatprep.subr.mxu0 0.0
        %4139 = vmatpush1.msra.mxu0 0.0
        %4140 = vmatprep.subr.mxu0 0.0
        %4141 = vmatpush1.msra.mxu0 0.0
        %4142 = vmatprep.subr.mxu0 0.0
        %4143 = vmatpush1.msra.mxu0 0.0
        %4144 = vmatprep.subr.mxu0 0.0
        %4145 = vmatpush1.msra.mxu0 0.0
        %4146 = vmatprep.subr.mxu0 0.0
        %4147 = vmatpush1.msra.mxu0 0.0
        %4148 = vmatprep.subr.mxu0 0.0
        %4149 = vmatpush1.msra.mxu0 0.0
        %4150 = vmatprep.subr.mxu0 0.0
        %4151 = vmatpush1.msra.mxu0 0.0
        %4152 = vmatprep.subr.mxu0 0.0
        %4153 = vmatpush1.msra.mxu0 0.0
        %4154 = vmatprep.subr.mxu0 0.0
        %4155 = vmatpush1.msra.mxu0 0.0
        %4156 = vmatprep.subr.mxu0 0.0
        %4157 = vmatpush1.msra.mxu0 0.0
        %4158 = vmatprep.subr.mxu0 0.0
        %4159 = vmatpush1.msra.mxu0 0.0
        %4160 = vmatprep.subr.mxu0 0.0
        %4161 = vmatpush1.msra.mxu0 0.0
        %4162 = vmatprep.subr.mxu0 0.0
        %4163 = vmatpush1.msra.mxu0 0.0
        %4164 = vmatprep.subr.mxu0 0.0
        %4165 = vmatpush1.msra.mxu0 0.0
        %4166 = vmatprep.subr.mxu0 0.0
        %4167 = vmatpush1.msra.mxu0 0.0
        %4168 = vmatprep.subr.mxu0 0.0
        %4169 = vmatpush1.msra.mxu0 0.0
        %4170 = vmatprep.subr.mxu0 0.0
        %4171 = vmatpush1.msra.mxu0 0.0
        %4172 = vmatprep.mubr.f32.mxu0 0.0
        %4173 = vmatmul.mubr.f32.gmra.mrb[0].mxu0 %v4097
        %v4174 = vpop.f32.mrb[0].mxu0
        %v4175 = vadd.f32 %v4078, %v4174
        %v4176 = vpop.f32.mrb[0].mxu0
        %v4177 = vadd.f32 %v4078, %v4176
        %4178 = vmatprep.mubr.f32.mxu0 0.0
        %4179 = vmatmul.mubr.f32.gmra.mrb[0].mxu0 %v4100
        %v4180 = vpop.f32.mrb[0].mxu0
        %v4181 = vadd.f32 %v4083, %v4180
        %v4182 = vpop.f32.mrb[0].mxu0
        %v4183 = vadd.f32 %v4083, %v4182
        %4184 = vmatprep.mubr.f32.mxu0 0.0
        %4185 = vmatmul.mubr.f32.gmra.mrb[0].mxu0 %v4103
        %v4186 = vpop.f32.mrb[0].mxu0
        %v4187 = vadd.f32 %v4088, %v4186
        %v4188 = vpop.f32.mrb[0].mxu0
        %v4189 = vadd.f32 %v4088, %v4188
        %4190 = vmatprep.mubr.f32.mxu0 0.0
        %4191 = vmatmul.mubr.f32.gmra.mrb[0].mxu0 %v4106
        %v4192 = vpop.f32.mrb[0].mxu0
        %v4193 = vadd.f32 %v4093, %v4192
        %v4194 = vpop.f32.mrb[0].mxu0
        %v4195 = vadd.f32 %v4093, %v4194
        %4196 = vdwg.mxu0
        %4197 = vmatprep.subr.mxu0 %v1154
        %4198 = vmatpush1.msra.mxu0 %v1050
        %4199 = vmatprep.subr.mxu0 %v1986
        %4200 = vmatpush1.msra.mxu0 %v1882
        %4201 = vmatprep.subr.mxu0 %v2818
        %4202 = vmatpush1.msra.mxu0 %v2714
        %4203 = vmatprep.subr.mxu0 %v3650
        %4204 = vmatpush1.msra.mxu0 %v3546
        %4205 = vmatprep.subr.mxu0 0.0
        %4206 = vmatpush1.msra.mxu0 0.0
        %4207 = vmatprep.subr.mxu0 0.0
        %4208 = vmatpush1.msra.mxu0 0.0
        %4209 = vmatprep.subr.mxu0 0.0
        %4210 = vmatpush1.msra.mxu0 0.0
        %4211 = vmatprep.subr.mxu0 0.0
        %4212 = vmatpush1.msra.mxu0 0.0
        %4213 = vmatprep.subr.mxu0 0.0
        %4214 = vmatpush1.msra.mxu0 0.0
        %4215 = vmatprep.subr.mxu0 0.0
        %4216 = vmatpush1.msra.mxu0 0.0
        %4217 = vmatprep.subr.mxu0 0.0
        %4218 = vmatpush1.msra.mxu0 0.0
        %4219 = vmatprep.subr.mxu0 0.0
        %4220 = vmatpush1.msra.mxu0 0.0
        %4221 = vmatprep.subr.mxu0 0.0
        %4222 = vmatpush1.msra.mxu0 0.0
        %4223 = vmatprep.subr.mxu0 0.0
        %4224 = vmatpush1.msra.mxu0 0.0
        %4225 = vmatprep.subr.mxu0 0.0
        %4226 = vmatpush1.msra.mxu0 0.0
        %4227 = vmatprep.subr.mxu0 0.0
        %4228 = vmatpush1.msra.mxu0 0.0
        %4229 = vmatprep.subr.mxu0 0.0
        %4230 = vmatpush1.msra.mxu0 0.0
        %4231 = vmatprep.subr.mxu0 0.0
        %4232 = vmatpush1.msra.mxu0 0.0
        %4233 = vmatprep.subr.mxu0 0.0
        %4234 = vmatpush1.msra.mxu0 0.0
        %4235 = vmatprep.subr.mxu0 0.0
        %4236 = vmatpush1.msra.mxu0 0.0
        %4237 = vmatprep.subr.mxu0 0.0
        %4238 = vmatpush1.msra.mxu0 0.0
        %4239 = vmatprep.subr.mxu0 0.0
        %4240 = vmatpush1.msra.mxu0 0.0
        %4241 = vmatprep.subr.mxu0 0.0
        %4242 = vmatpush1.msra.mxu0 0.0
        %4243 = vmatprep.subr.mxu0 0.0
        %4244 = vmatpush1.msra.mxu0 0.0
        %4245 = vmatprep.subr.mxu0 0.0
        %4246 = vmatpush1.msra.mxu0 0.0
        %4247 = vmatprep.subr.mxu0 0.0
        %4248 = vmatpush1.msra.mxu0 0.0
        %4249 = vmatprep.subr.mxu0 0.0
        %4250 = vmatpush1.msra.mxu0 0.0
        %4251 = vmatprep.subr.mxu0 0.0
        %4252 = vmatpush1.msra.mxu0 0.0
        %4253 = vmatprep.subr.mxu0 0.0
        %4254 = vmatpush1.msra.mxu0 0.0
        %4255 = vmatprep.subr.mxu0 0.0
        %4256 = vmatpush1.msra.mxu0 0.0
        %4257 = vmatprep.subr.mxu0 0.0
        %4258 = vmatpush1.msra.mxu0 0.0
        %4259 = vmatprep.subr.mxu0 0.0
        %4260 = vmatpush1.msra.mxu0 0.0
        %4261 = vmatprep.mubr.f32.mxu0 0.0
        %4262 = vmatmul.mubr.f32.gmra.mrb[0].mxu0 %v4097
        %v4263 = vpop.f32.mrb[0].mxu0
        %v4264 = vadd.f32 %v4078, %v4263
        %v4265 = vpop.f32.mrb[0].mxu0
        %v4266 = vadd.f32 %v4078, %v4265
        %4267 = vmatprep.mubr.f32.mxu0 0.0
        %4268 = vmatmul.mubr.f32.gmra.mrb[0].mxu0 %v4100
        %v4269 = vpop.f32.mrb[0].mxu0
        %v4270 = vadd.f32 %v4083, %v4269
        %v4271 = vpop.f32.mrb[0].mxu0
        %v4272 = vadd.f32 %v4083, %v4271
        %4273 = vmatprep.mubr.f32.mxu0 0.0
        %4274 = vmatmul.mubr.f32.gmra.mrb[0].mxu0 %v4103
        %v4275 = vpop.f32.mrb[0].mxu0
        %v4276 = vadd.f32 %v4088, %v4275
        %v4277 = vpop.f32.mrb[0].mxu0
        %v4278 = vadd.f32 %v4088, %v4277
        %4279 = vmatprep.mubr.f32.mxu0 0.0
        %4280 = vmatmul.mubr.f32.gmra.mrb[0].mxu0 %v4106
        %v4281 = vpop.f32.mrb[0].mxu0
        %v4282 = vadd.f32 %v4093, %v4281
        %v4283 = vpop.f32.mrb[0].mxu0
        %v4284 = vadd.f32 %v4093, %v4283
        %4285 = vdwg.mxu0
        %4286 = vmatprep.subr.mxu0 %v1362
        %4287 = vmatpush1.msra.mxu0 %v1258
        %4288 = vmatprep.subr.mxu0 %v2194
        %4289 = vmatpush1.msra.mxu0 %v2090
        %4290 = vmatprep.subr.mxu0 %v3026
        %4291 = vmatpush1.msra.mxu0 %v2922
        %4292 = vmatprep.subr.mxu0 %v3858
        %4293 = vmatpush1.msra.mxu0 %v3754
        %4294 = vmatprep.subr.mxu0 0.0
        %4295 = vmatpush1.msra.mxu0 0.0
        %4296 = vmatprep.subr.mxu0 0.0
        %4297 = vmatpush1.msra.mxu0 0.0
        %4298 = vmatprep.subr.mxu0 0.0
        %4299 = vmatpush1.msra.mxu0 0.0
        %4300 = vmatprep.subr.mxu0 0.0
        %4301 = vmatpush1.msra.mxu0 0.0
        %4302 = vmatprep.subr.mxu0 0.0
        %4303 = vmatpush1.msra.mxu0 0.0
        %4304 = vmatprep.subr.mxu0 0.0
        %4305 = vmatpush1.msra.mxu0 0.0
        %4306 = vmatprep.subr.mxu0 0.0
        %4307 = vmatpush1.msra.mxu0 0.0
        %4308 = vmatprep.subr.mxu0 0.0
        %4309 = vmatpush1.msra.mxu0 0.0
        %4310 = vmatprep.subr.mxu0 0.0
        %4311 = vmatpush1.msra.mxu0 0.0
        %4312 = vmatprep.subr.mxu0 0.0
        %4313 = vmatpush1.msra.mxu0 0.0
        %4314 = vmatprep.subr.mxu0 0.0
        %4315 = vmatpush1.msra.mxu0 0.0
        %4316 = vmatprep.subr.mxu0 0.0
        %4317 = vmatpush1.msra.mxu0 0.0
        %4318 = vmatprep.subr.mxu0 0.0
        %4319 = vmatpush1.msra.mxu0 0.0
        %4320 = vmatprep.subr.mxu0 0.0
        %4321 = vmatpush1.msra.mxu0 0.0
        %4322 = vmatprep.subr.mxu0 0.0
        %4323 = vmatpush1.msra.mxu0 0.0
        %4324 = vmatprep.subr.mxu0 0.0
        %4325 = vmatpush1.msra.mxu0 0.0
        %4326 = vmatprep.subr.mxu0 0.0
        %4327 = vmatpush1.msra.mxu0 0.0
        %4328 = vmatprep.subr.mxu0 0.0
        %4329 = vmatpush1.msra.mxu0 0.0
        %4330 = vmatprep.subr.mxu0 0.0
        %4331 = vmatpush1.msra.mxu0 0.0
        %4332 = vmatprep.subr.mxu0 0.0
        %4333 = vmatpush1.msra.mxu0 0.0
        %4334 = vmatprep.subr.mxu0 0.0
        %4335 = vmatpush1.msra.mxu0 0.0
        %4336 = vmatprep.subr.mxu0 0.0
        %4337 = vmatpush1.msra.mxu0 0.0
        %4338 = vmatprep.subr.mxu0 0.0
        %4339 = vmatpush1.msra.mxu0 0.0
        %4340 = vmatprep.subr.mxu0 0.0
        %4341 = vmatpush1.msra.mxu0 0.0
        %4342 = vmatprep.subr.mxu0 0.0
        %4343 = vmatpush1.msra.mxu0 0.0
        %4344 = vmatprep.subr.mxu0 0.0
        %4345 = vmatpush1.msra.mxu0 0.0
        %4346 = vmatprep.subr.mxu0 0.0
        %4347 = vmatpush1.msra.mxu0 0.0
        %4348 = vmatprep.subr.mxu0 0.0
        %4349 = vmatpush1.msra.mxu0 0.0
        %4350 = vmatprep.mubr.f32.mxu0 0.0
        %4351 = vmatmul.mubr.f32.gmra.mrb[0].mxu0 %v4097
        %v4352 = vpop.f32.mrb[0].mxu0
        %v4353 = vadd.f32 %v4078, %v4352
        %v4354 = vpop.f32.mrb[0].mxu0
        %v4355 = vadd.f32 %v4078, %v4354
        %4356 = vmatprep.mubr.f32.mxu0 0.0
        %4357 = vmatmul.mubr.f32.gmra.mrb[0].mxu0 %v4100
        %v4358 = vpop.f32.mrb[0].mxu0
        %v4359 = vadd.f32 %v4083, %v4358
        %v4360 = vpop.f32.mrb[0].mxu0
        %v4361 = vadd.f32 %v4083, %v4360
        %4362 = vmatprep.mubr.f32.mxu0 0.0
        %4363 = vmatmul.mubr.f32.gmra.mrb[0].mxu0 %v4103
        %v4364 = vpop.f32.mrb[0].mxu0
        %v4365 = vadd.f32 %v4088, %v4364
        %v4366 = vpop.f32.mrb[0].mxu0
        %v4367 = vadd.f32 %v4088, %v4366
        %4368 = vmatprep.mubr.f32.mxu0 0.0
        %4369 = vmatmul.mubr.f32.gmra.mrb[0].mxu0 %v4106
        %v4370 = vpop.f32.mrb[0].mxu0
        %v4371 = vadd.f32 %v4093, %v4370
        %v4372 = vpop.f32.mrb[0].mxu0
        %v4373 = vadd.f32 %v4093, %v4372
        %4374 = vdwg.mxu0
        %4375 = vmatprep.subr.mxu0 %v1570
        %4376 = vmatpush1.msra.mxu0 %v1466
        %4377 = vmatprep.subr.mxu0 %v2402
        %4378 = vmatpush1.msra.mxu0 %v2298
        %4379 = vmatprep.subr.mxu0 %v3234
        %4380 = vmatpush1.msra.mxu0 %v3130
        %4381 = vmatprep.subr.mxu0 %v4066
        %4382 = vmatpush1.msra.mxu0 %v3962
        %4383 = vmatprep.subr.mxu0 0.0
        %4384 = vmatpush1.msra.mxu0 0.0
        %4385 = vmatprep.subr.mxu0 0.0
        %4386 = vmatpush1.msra.mxu0 0.0
        %4387 = vmatprep.subr.mxu0 0.0
        %4388 = vmatpush1.msra.mxu0 0.0
        %4389 = vmatprep.subr.mxu0 0.0
        %4390 = vmatpush1.msra.mxu0 0.0
        %4391 = vmatprep.subr.mxu0 0.0
        %4392 = vmatpush1.msra.mxu0 0.0
        %4393 = vmatprep.subr.mxu0 0.0
        %4394 = vmatpush1.msra.mxu0 0.0
        %4395 = vmatprep.subr.mxu0 0.0
        %4396 = vmatpush1.msra.mxu0 0.0
        %4397 = vmatprep.subr.mxu0 0.0
        %4398 = vmatpush1.msra.mxu0 0.0
        %4399 = vmatprep.subr.mxu0 0.0
        %4400 = vmatpush1.msra.mxu0 0.0
        %4401 = vmatprep.subr.mxu0 0.0
        %4402 = vmatpush1.msra.mxu0 0.0
        %4403 = vmatprep.subr.mxu0 0.0
        %4404 = vmatpush1.msra.mxu0 0.0
        %4405 = vmatprep.subr.mxu0 0.0
        %4406 = vmatpush1.msra.mxu0 0.0
        %4407 = vmatprep.subr.mxu0 0.0
        %4408 = vmatpush1.msra.mxu0 0.0
        %4409 = vmatprep.subr.mxu0 0.0
        %4410 = vmatpush1.msra.mxu0 0.0
        %4411 = vmatprep.subr.mxu0 0.0
        %4412 = vmatpush1.msra.mxu0 0.0
        %4413 = vmatprep.subr.mxu0 0.0
        %4414 = vmatpush1.msra.mxu0 0.0
        %4415 = vmatprep.subr.mxu0 0.0
        %4416 = vmatpush1.msra.mxu0 0.0
        %4417 = vmatprep.subr.mxu0 0.0
        %4418 = vmatpush1.msra.mxu0 0.0
        %4419 = vmatprep.subr.mxu0 0.0
        %4420 = vmatpush1.msra.mxu0 0.0
        %4421 = vmatprep.subr.mxu0 0.0
        %4422 = vmatpush1.msra.mxu0 0.0
        %4423 = vmatprep.subr.mxu0 0.0
        %4424 = vmatpush1.msra.mxu0 0.0
        %4425 = vmatprep.subr.mxu0 0.0
        %4426 = vmatpush1.msra.mxu0 0.0
        %4427 = vmatprep.subr.mxu0 0.0
        %4428 = vmatpush1.msra.mxu0 0.0
        %4429 = vmatprep.subr.mxu0 0.0
        %4430 = vmatpush1.msra.mxu0 0.0
        %4431 = vmatprep.subr.mxu0 0.0
        %4432 = vmatpush1.msra.mxu0 0.0
        %4433 = vmatprep.subr.mxu0 0.0
        %4434 = vmatpush1.msra.mxu0 0.0
        %4435 = vmatprep.subr.mxu0 0.0
        %4436 = vmatpush1.msra.mxu0 0.0
        %4437 = vmatprep.subr.mxu0 0.0
        %4438 = vmatpush1.msra.mxu0 0.0
        %4439 = vmatprep.mubr.f32.mxu0 0.0
        %4440 = vmatmul.mubr.f32.gmra.mrb[0].mxu0 %v4097
        %v4441 = vpop.f32.mrb[0].mxu0
        %v4442 = vadd.f32 %v4078, %v4441
        %v4443 = vpop.f32.mrb[0].mxu0
        %v4444 = vadd.f32 %v4078, %v4443
        %4445 = vmatprep.mubr.f32.mxu0 0.0
        %4446 = vmatmul.mubr.f32.gmra.mrb[0].mxu0 %v4100
        %v4447 = vpop.f32.mrb[0].mxu0
        %v4448 = vadd.f32 %v4083, %v4447
        %v4449 = vpop.f32.mrb[0].mxu0
        %v4450 = vadd.f32 %v4083, %v4449
        %4451 = vmatprep.mubr.f32.mxu0 0.0
        %4452 = vmatmul.mubr.f32.gmra.mrb[0].mxu0 %v4103
        %v4453 = vpop.f32.mrb[0].mxu0
        %v4454 = vadd.f32 %v4088, %v4453
        %v4455 = vpop.f32.mrb[0].mxu0
        %v4456 = vadd.f32 %v4088, %v4455
        %4457 = vmatprep.mubr.f32.mxu0 0.0
        %4458 = vmatmul.mubr.f32.gmra.mrb[0].mxu0 %v4106
        %v4459 = vpop.f32.mrb[0].mxu0
        %v4460 = vadd.f32 %v4093, %v4459
        %v4461 = vpop.f32.mrb[0].mxu0
        %v4462 = vadd.f32 %v4093, %v4461
        %4463 = vdwg.mxu0
        %v4464 = vand.u32 2147483647, %v4175
        %vm4465 = vcmp.le.f32.partialorder %v4464, 0.7853982
        %vm4466 = vcmp.lt.s32.totalorder %v4175, 0
        %v4467 = vand.u32 %v4175, 2139095040
        %v4468 = vshrl.u32 %v4467, 23
        %v4469 = vsub.s32 %v4468, 127
        %v4470 = vand.u32 2147483647, %v4175
        %v4471 = vand.u32 %v4470, 8388607
        %v4472 = vor.u32 %v4471, 8388608
        %v4473 = vsub.s32 0, %v4472
        %v4474 = vadd.s32 %v4469, 1
        %vm4475 = vcmp.gt.s32.totalorder %v4474, 0
        %v4476 = vsel %vm4475, %v4474, 0
        %v4477 = vshrl.u32 %v4476, 5
        %v4478 = vand.u32 %v4476, 31
        %v4479 = vsub.s32 32, %v4478
        %v4480 = vshrl.u32 683565275, %v4479
        %v4481 = vshll.u32 683565275, %v4478
        %v4482 = vshrl.u32 2475754826, %v4479
        %v4483 = vor.u32 %v4481, %v4482
        %v4484 = vshll.u32 2475754826, %v4478
        %v4485 = vshrl.u32 2131351028, %v4479
        %v4486 = vor.u32 %v4484, %v4485
        %v4487 = vshll.u32 2131351028, %v4478
        %v4488 = vshrl.u32 2102212464, %v4479
        %v4489 = vor.u32 %v4487, %v4488
        %v4490 = vshll.u32 2102212464, %v4478
        %v4491 = vshrl.u32 920167782, %v4479
        %v4492 = vor.u32 %v4490, %v4491
        %v4493 = vshll.u32 920167782, %v4478
        %v4494 = vshrl.u32 1326507024, %v4479
        %v4495 = vor.u32 %v4493, %v4494
        %vm4496 = vcmp.lt.s32.totalorder %v4477, 1
        %vm4497 = vcmp.lt.s32.totalorder %v4477, 2
        %vm4498 = vcmp.lt.s32.totalorder %v4477, 3
        %vm4499 = vcmp.lt.s32.totalorder %v4477, 4
        %v4500 = vsel %vm4496, %v4480, %v4483
        %v4501 = vsel %vm4499, %v4489, 2102212464
        %v4502 = vsel %vm4498, %v4486, %v4501
        %v4503 = vsel %vm4497, %v4500, %v4502
        %v4504 = vsel %vm4496, %v4483, %v4486
        %v4505 = vsel %vm4499, %v4492, 920167782
        %v4506 = vsel %vm4498, %v4489, %v4505
        %v4507 = vsel %vm4497, %v4504, %v4506
        %v4508 = vsel %vm4496, %v4486, %v4489
        %v4509 = vsel %vm4499, %v4495, 1326507024
        %v4510 = vsel %vm4498, %v4492, %v4509
        %v4511 = vsel %vm4497, %v4508, %v4510
        %v4512 = vshll.u32 %v4472, 8
        %v4513 = vmul.u32.u64.compose %v4512, %v4511
        %v4514 = vextract.low.u32 %v4513
        %v4515 = vextract.high.u32 %v4513
        %v4516 = vmul.u32.u64.compose %v4512, %v4507
        %v4517 = vextract.low.u32 %v4516
        %v4518 = vextract.high.u32 %v4516
        %v4519 = vmul.u32 %v4512, %v4503
        %v4520 = vadd.s32 %v4515, %v4517
        %vm4521 = vc.u32 %v4515, %v4517
        %v4522 = vadd.s32 %v4518, 1
        %v4523 = vsel %vm4521, %v4522, %v4518
        %v4524 = vadd.s32 %v4519, %v4523
        %v4525 = vadd.s32 %v4524, 536870912
        %v4526 = vshrl.u32 %v4525, 30
        %v4527 = vshll.u32 %v4526, 30
        %v4528 = vsub.s32 %v4524, %v4527
        %vm4529 = vcmp.lt.s32.totalorder %v4528, 0
        %v4530 = vsub.s32 0, %v4528
        %v4531 = vsel %vm4529, %v4530, %v4528
        %v4532 = vclz %v4531
        %v4533 = vsub.s32 %v4532, 2
        %vm4534 = vcmp.gt.s32.totalorder 0, %v4533
        %v4535 = vsel %vm4534, 0, %v4533
        %v4536 = vsub.s32 32, %v4535
        %v4537 = vshll.u32 %v4528, %v4535
        %v4538 = vshrl.u32 %v4520, %v4536
        %v4539 = vor.u32 %v4537, %v4538
        %v4540 = vsub.s32 4294967266, %v4535
        %v4541 = vadd.s32 %v4540, 127
        %v4542 = vshll.u32 %v4541, 23
        %v4543 = vor.u32 4788187, %v4542
        %v4544 = vand.u32 2147483647, %v4543
        %v4546 = vcvt.s32.f32 %v4539
        %v4547 = vmul.f32 %v4546, %v4544
        %v4548 = vxor.u32 %v4547, 2147483648
        %v4549 = vsel %vm4466, %v4548, %v4547
        %v4550 = vsub.s32 4, %v4526
        %v4551 = vsel %vm4466, %v4550, %v4526
        %v4552 = vsel %vm4465, %v4175, %v4549
        %v4553 = vsel %vm4465, 0, %v4551
        %v4554 = vcosq.f32.pop %v4552
        %v4555 = vsinq.f32.pop %v4552
        %vm4556 = vweird.f32 %v4175
        %v4557 = vadd.s32 %v4553, 3
        %v4558 = vand.u32 %v4557, 3
        %vm4559 = vcmp.lt.s32.totalorder %v4558, 2
        %vm4560 = vcmp.eq.s32.totalorder %v4558, 0
        %v4561 = vxor.u32 %v4555, 2147483648
        %v4562 = vsel %vm4560, %v4554, %v4561
        %vm4563 = vcmp.eq.s32.totalorder %v4558, 2
        %v4564 = vxor.u32 %v4554, 2147483648
        %v4565 = vsel %vm4563, %v4564, %v4555
        %v4566 = vsel %vm4559, %v4562, %v4565
        %v4567 = vsel %vm4556, nan, %v4566
        %v4568 = vand.u32 2147483647, %v4177
        %vm4569 = vcmp.le.f32.partialorder %v4568, 0.7853982
        %vm4570 = vcmp.lt.s32.totalorder %v4177, 0
        %v4571 = vand.u32 %v4177, 2139095040
        %v4572 = vshrl.u32 %v4571, 23
        %v4573 = vsub.s32 %v4572, 127
        %v4574 = vand.u32 2147483647, %v4177
        %v4575 = vand.u32 %v4574, 8388607
        %v4576 = vor.u32 %v4575, 8388608
        %v4577 = vsub.s32 0, %v4576
        %v4578 = vadd.s32 %v4573, 1
        %vm4579 = vcmp.gt.s32.totalorder %v4578, 0
        %v4580 = vsel %vm4579, %v4578, 0
        %v4581 = vshrl.u32 %v4580, 5
        %v4582 = vand.u32 %v4580, 31
        %v4583 = vsub.s32 32, %v4582
        %v4584 = vshrl.u32 683565275, %v4583
        %v4585 = vshll.u32 683565275, %v4582
        %v4586 = vshrl.u32 2475754826, %v4583
        %v4587 = vor.u32 %v4585, %v4586
        %v4588 = vshll.u32 2475754826, %v4582
        %v4589 = vshrl.u32 2131351028, %v4583
        %v4590 = vor.u32 %v4588, %v4589
        %v4591 = vshll.u32 2131351028, %v4582
        %v4592 = vshrl.u32 2102212464, %v4583
        %v4593 = vor.u32 %v4591, %v4592
        %v4594 = vshll.u32 2102212464, %v4582
        %v4595 = vshrl.u32 920167782, %v4583
        %v4596 = vor.u32 %v4594, %v4595
        %v4597 = vshll.u32 920167782, %v4582
        %v4598 = vshrl.u32 1326507024, %v4583
        %v4599 = vor.u32 %v4597, %v4598
        %vm4600 = vcmp.lt.s32.totalorder %v4581, 1
        %vm4601 = vcmp.lt.s32.totalorder %v4581, 2
        %vm4602 = vcmp.lt.s32.totalorder %v4581, 3
        %vm4603 = vcmp.lt.s32.totalorder %v4581, 4
        %v4604 = vsel %vm4600, %v4584, %v4587
        %v4605 = vsel %vm4603, %v4593, 2102212464
        %v4606 = vsel %vm4602, %v4590, %v4605
        %v4607 = vsel %vm4601, %v4604, %v4606
        %v4608 = vsel %vm4600, %v4587, %v4590
        %v4609 = vsel %vm4603, %v4596, 920167782
        %v4610 = vsel %vm4602, %v4593, %v4609
        %v4611 = vsel %vm4601, %v4608, %v4610
        %v4612 = vsel %vm4600, %v4590, %v4593
        %v4613 = vsel %vm4603, %v4599, 1326507024
        %v4614 = vsel %vm4602, %v4596, %v4613
        %v4615 = vsel %vm4601, %v4612, %v4614
        %v4616 = vshll.u32 %v4576, 8
        %v4617 = vmul.u32.u64.compose %v4616, %v4615
        %v4618 = vextract.low.u32 %v4617
        %v4619 = vextract.high.u32 %v4617
        %v4620 = vmul.u32.u64.compose %v4616, %v4611
        %v4621 = vextract.low.u32 %v4620
        %v4622 = vextract.high.u32 %v4620
        %v4623 = vmul.u32 %v4616, %v4607
        %v4624 = vadd.s32 %v4619, %v4621
        %vm4625 = vc.u32 %v4619, %v4621
        %v4626 = vadd.s32 %v4622, 1
        %v4627 = vsel %vm4625, %v4626, %v4622
        %v4628 = vadd.s32 %v4623, %v4627
        %v4629 = vadd.s32 %v4628, 536870912
        %v4630 = vshrl.u32 %v4629, 30
        %v4631 = vshll.u32 %v4630, 30
        %v4632 = vsub.s32 %v4628, %v4631
        %vm4633 = vcmp.lt.s32.totalorder %v4632, 0
        %v4634 = vsub.s32 0, %v4632
        %v4635 = vsel %vm4633, %v4634, %v4632
        %v4636 = vclz %v4635
        %v4637 = vsub.s32 %v4636, 2
        %vm4638 = vcmp.gt.s32.totalorder 0, %v4637
        %v4639 = vsel %vm4638, 0, %v4637
        %v4640 = vsub.s32 32, %v4639
        %v4641 = vshll.u32 %v4632, %v4639
        %v4642 = vshrl.u32 %v4624, %v4640
        %v4643 = vor.u32 %v4641, %v4642
        %v4644 = vsub.s32 4294967266, %v4639
        %v4645 = vadd.s32 %v4644, 127
        %v4646 = vshll.u32 %v4645, 23
        %v4647 = vor.u32 4788187, %v4646
        %v4648 = vand.u32 2147483647, %v4647
        %v4650 = vcvt.s32.f32 %v4643
        %v4651 = vmul.f32 %v4650, %v4648
        %v4652 = vxor.u32 %v4651, 2147483648
        %v4653 = vsel %vm4570, %v4652, %v4651
        %v4654 = vsub.s32 4, %v4630
        %v4655 = vsel %vm4570, %v4654, %v4630
        %v4656 = vsel %vm4569, %v4177, %v4653
        %v4657 = vsel %vm4569, 0, %v4655
        %v4658 = vcosq.f32.pop %v4656
        %v4659 = vsinq.f32.pop %v4656
        %vm4660 = vweird.f32 %v4177
        %v4661 = vadd.s32 %v4657, 3
        %v4662 = vand.u32 %v4661, 3
        %vm4663 = vcmp.lt.s32.totalorder %v4662, 2
        %vm4664 = vcmp.eq.s32.totalorder %v4662, 0
        %v4665 = vxor.u32 %v4659, 2147483648
        %v4666 = vsel %vm4664, %v4658, %v4665
        %vm4667 = vcmp.eq.s32.totalorder %v4662, 2
        %v4668 = vxor.u32 %v4658, 2147483648
        %v4669 = vsel %vm4667, %v4668, %v4659
        %v4670 = vsel %vm4663, %v4666, %v4669
        %v4671 = vsel %vm4660, nan, %v4670
        %v4672 = vand.u32 2147483647, %v4264
        %vm4673 = vcmp.le.f32.partialorder %v4672, 0.7853982
        %vm4674 = vcmp.lt.s32.totalorder %v4264, 0
        %v4675 = vand.u32 %v4264, 2139095040
        %v4676 = vshrl.u32 %v4675, 23
        %v4677 = vsub.s32 %v4676, 127
        %v4678 = vand.u32 2147483647, %v4264
        %v4679 = vand.u32 %v4678, 8388607
        %v4680 = vor.u32 %v4679, 8388608
        %v4681 = vsub.s32 0, %v4680
        %v4682 = vadd.s32 %v4677, 1
        %vm4683 = vcmp.gt.s32.totalorder %v4682, 0
        %v4684 = vsel %vm4683, %v4682, 0
        %v4685 = vshrl.u32 %v4684, 5
        %v4686 = vand.u32 %v4684, 31
        %v4687 = vsub.s32 32, %v4686
        %v4688 = vshrl.u32 683565275, %v4687
        %v4689 = vshll.u32 683565275, %v4686
        %v4690 = vshrl.u32 2475754826, %v4687
        %v4691 = vor.u32 %v4689, %v4690
        %v4692 = vshll.u32 2475754826, %v4686
        %v4693 = vshrl.u32 2131351028, %v4687
        %v4694 = vor.u32 %v4692, %v4693
        %v4695 = vshll.u32 2131351028, %v4686
        %v4696 = vshrl.u32 2102212464, %v4687
        %v4697 = vor.u32 %v4695, %v4696
        %v4698 = vshll.u32 2102212464, %v4686
        %v4699 = vshrl.u32 920167782, %v4687
        %v4700 = vor.u32 %v4698, %v4699
        %v4701 = vshll.u32 920167782, %v4686
        %v4702 = vshrl.u32 1326507024, %v4687
        %v4703 = vor.u32 %v4701, %v4702
        %vm4704 = vcmp.lt.s32.totalorder %v4685, 1
        %vm4705 = vcmp.lt.s32.totalorder %v4685, 2
        %vm4706 = vcmp.lt.s32.totalorder %v4685, 3
        %vm4707 = vcmp.lt.s32.totalorder %v4685, 4
        %v4708 = vsel %vm4704, %v4688, %v4691
        %v4709 = vsel %vm4707, %v4697, 2102212464
        %v4710 = vsel %vm4706, %v4694, %v4709
        %v4711 = vsel %vm4705, %v4708, %v4710
        %v4712 = vsel %vm4704, %v4691, %v4694
        %v4713 = vsel %vm4707, %v4700, 920167782
        %v4714 = vsel %vm4706, %v4697, %v4713
        %v4715 = vsel %vm4705, %v4712, %v4714
        %v4716 = vsel %vm4704, %v4694, %v4697
        %v4717 = vsel %vm4707, %v4703, 1326507024
        %v4718 = vsel %vm4706, %v4700, %v4717
        %v4719 = vsel %vm4705, %v4716, %v4718
        %v4720 = vshll.u32 %v4680, 8
        %v4721 = vmul.u32.u64.compose %v4720, %v4719
        %v4722 = vextract.low.u32 %v4721
        %v4723 = vextract.high.u32 %v4721
        %v4724 = vmul.u32.u64.compose %v4720, %v4715
        %v4725 = vextract.low.u32 %v4724
        %v4726 = vextract.high.u32 %v4724
        %v4727 = vmul.u32 %v4720, %v4711
        %v4728 = vadd.s32 %v4723, %v4725
        %vm4729 = vc.u32 %v4723, %v4725
        %v4730 = vadd.s32 %v4726, 1
        %v4731 = vsel %vm4729, %v4730, %v4726
        %v4732 = vadd.s32 %v4727, %v4731
        %v4733 = vadd.s32 %v4732, 536870912
        %v4734 = vshrl.u32 %v4733, 30
        %v4735 = vshll.u32 %v4734, 30
        %v4736 = vsub.s32 %v4732, %v4735
        %vm4737 = vcmp.lt.s32.totalorder %v4736, 0
        %v4738 = vsub.s32 0, %v4736
        %v4739 = vsel %vm4737, %v4738, %v4736
        %v4740 = vclz %v4739
        %v4741 = vsub.s32 %v4740, 2
        %vm4742 = vcmp.gt.s32.totalorder 0, %v4741
        %v4743 = vsel %vm4742, 0, %v4741
        %v4744 = vsub.s32 32, %v4743
        %v4745 = vshll.u32 %v4736, %v4743
        %v4746 = vshrl.u32 %v4728, %v4744
        %v4747 = vor.u32 %v4745, %v4746
        %v4748 = vsub.s32 4294967266, %v4743
        %v4749 = vadd.s32 %v4748, 127
        %v4750 = vshll.u32 %v4749, 23
        %v4751 = vor.u32 4788187, %v4750
        %v4752 = vand.u32 2147483647, %v4751
        %v4754 = vcvt.s32.f32 %v4747
        %v4755 = vmul.f32 %v4754, %v4752
        %v4756 = vxor.u32 %v4755, 2147483648
        %v4757 = vsel %vm4674, %v4756, %v4755
        %v4758 = vsub.s32 4, %v4734
        %v4759 = vsel %vm4674, %v4758, %v4734
        %v4760 = vsel %vm4673, %v4264, %v4757
        %v4761 = vsel %vm4673, 0, %v4759
        %v4762 = vcosq.f32.pop %v4760
        %v4763 = vsinq.f32.pop %v4760
        %vm4764 = vweird.f32 %v4264
        %v4765 = vadd.s32 %v4761, 3
        %v4766 = vand.u32 %v4765, 3
        %vm4767 = vcmp.lt.s32.totalorder %v4766, 2
        %vm4768 = vcmp.eq.s32.totalorder %v4766, 0
        %v4769 = vxor.u32 %v4763, 2147483648
        %v4770 = vsel %vm4768, %v4762, %v4769
        %vm4771 = vcmp.eq.s32.totalorder %v4766, 2
        %v4772 = vxor.u32 %v4762, 2147483648
        %v4773 = vsel %vm4771, %v4772, %v4763
        %v4774 = vsel %vm4767, %v4770, %v4773
        %v4775 = vsel %vm4764, nan, %v4774
        %v4776 = vand.u32 2147483647, %v4266
        %vm4777 = vcmp.le.f32.partialorder %v4776, 0.7853982
        %vm4778 = vcmp.lt.s32.totalorder %v4266, 0
        %v4779 = vand.u32 %v4266, 2139095040
        %v4780 = vshrl.u32 %v4779, 23
        %v4781 = vsub.s32 %v4780, 127
        %v4782 = vand.u32 2147483647, %v4266
        %v4783 = vand.u32 %v4782, 8388607
        %v4784 = vor.u32 %v4783, 8388608
        %v4785 = vsub.s32 0, %v4784
        %v4786 = vadd.s32 %v4781, 1
        %vm4787 = vcmp.gt.s32.totalorder %v4786, 0
        %v4788 = vsel %vm4787, %v4786, 0
        %v4789 = vshrl.u32 %v4788, 5
        %v4790 = vand.u32 %v4788, 31
        %v4791 = vsub.s32 32, %v4790
        %v4792 = vshrl.u32 683565275, %v4791
        %v4793 = vshll.u32 683565275, %v4790
        %v4794 = vshrl.u32 2475754826, %v4791
        %v4795 = vor.u32 %v4793, %v4794
        %v4796 = vshll.u32 2475754826, %v4790
        %v4797 = vshrl.u32 2131351028, %v4791
        %v4798 = vor.u32 %v4796, %v4797
        %v4799 = vshll.u32 2131351028, %v4790
        %v4800 = vshrl.u32 2102212464, %v4791
        %v4801 = vor.u32 %v4799, %v4800
        %v4802 = vshll.u32 2102212464, %v4790
        %v4803 = vshrl.u32 920167782, %v4791
        %v4804 = vor.u32 %v4802, %v4803
        %v4805 = vshll.u32 920167782, %v4790
        %v4806 = vshrl.u32 1326507024, %v4791
        %v4807 = vor.u32 %v4805, %v4806
        %vm4808 = vcmp.lt.s32.totalorder %v4789, 1
        %vm4809 = vcmp.lt.s32.totalorder %v4789, 2
        %vm4810 = vcmp.lt.s32.totalorder %v4789, 3
        %vm4811 = vcmp.lt.s32.totalorder %v4789, 4
        %v4812 = vsel %vm4808, %v4792, %v4795
        %v4813 = vsel %vm4811, %v4801, 2102212464
        %v4814 = vsel %vm4810, %v4798, %v4813
        %v4815 = vsel %vm4809, %v4812, %v4814
        %v4816 = vsel %vm4808, %v4795, %v4798
        %v4817 = vsel %vm4811, %v4804, 920167782
        %v4818 = vsel %vm4810, %v4801, %v4817
        %v4819 = vsel %vm4809, %v4816, %v4818
        %v4820 = vsel %vm4808, %v4798, %v4801
        %v4821 = vsel %vm4811, %v4807, 1326507024
        %v4822 = vsel %vm4810, %v4804, %v4821
        %v4823 = vsel %vm4809, %v4820, %v4822
        %v4824 = vshll.u32 %v4784, 8
        %v4825 = vmul.u32.u64.compose %v4824, %v4823
        %v4826 = vextract.low.u32 %v4825
        %v4827 = vextract.high.u32 %v4825
        %v4828 = vmul.u32.u64.compose %v4824, %v4819
        %v4829 = vextract.low.u32 %v4828
        %v4830 = vextract.high.u32 %v4828
        %v4831 = vmul.u32 %v4824, %v4815
        %v4832 = vadd.s32 %v4827, %v4829
        %vm4833 = vc.u32 %v4827, %v4829
        %v4834 = vadd.s32 %v4830, 1
        %v4835 = vsel %vm4833, %v4834, %v4830
        %v4836 = vadd.s32 %v4831, %v4835
        %v4837 = vadd.s32 %v4836, 536870912
        %v4838 = vshrl.u32 %v4837, 30
        %v4839 = vshll.u32 %v4838, 30
        %v4840 = vsub.s32 %v4836, %v4839
        %vm4841 = vcmp.lt.s32.totalorder %v4840, 0
        %v4842 = vsub.s32 0, %v4840
        %v4843 = vsel %vm4841, %v4842, %v4840
        %v4844 = vclz %v4843
        %v4845 = vsub.s32 %v4844, 2
        %vm4846 = vcmp.gt.s32.totalorder 0, %v4845
        %v4847 = vsel %vm4846, 0, %v4845
        %v4848 = vsub.s32 32, %v4847
        %v4849 = vshll.u32 %v4840, %v4847
        %v4850 = vshrl.u32 %v4832, %v4848
        %v4851 = vor.u32 %v4849, %v4850
        %v4852 = vsub.s32 4294967266, %v4847
        %v4853 = vadd.s32 %v4852, 127
        %v4854 = vshll.u32 %v4853, 23
        %v4855 = vor.u32 4788187, %v4854
        %v4856 = vand.u32 2147483647, %v4855
        %v4858 = vcvt.s32.f32 %v4851
        %v4859 = vmul.f32 %v4858, %v4856
        %v4860 = vxor.u32 %v4859, 2147483648
        %v4861 = vsel %vm4778, %v4860, %v4859
        %v4862 = vsub.s32 4, %v4838
        %v4863 = vsel %vm4778, %v4862, %v4838
        %v4864 = vsel %vm4777, %v4266, %v4861
        %v4865 = vsel %vm4777, 0, %v4863
        %v4866 = vcosq.f32.pop %v4864
        %v4867 = vsinq.f32.pop %v4864
        %vm4868 = vweird.f32 %v4266
        %v4869 = vadd.s32 %v4865, 3
        %v4870 = vand.u32 %v4869, 3
        %vm4871 = vcmp.lt.s32.totalorder %v4870, 2
        %vm4872 = vcmp.eq.s32.totalorder %v4870, 0
        %v4873 = vxor.u32 %v4867, 2147483648
        %v4874 = vsel %vm4872, %v4866, %v4873
        %vm4875 = vcmp.eq.s32.totalorder %v4870, 2
        %v4876 = vxor.u32 %v4866, 2147483648
        %v4877 = vsel %vm4875, %v4876, %v4867
        %v4878 = vsel %vm4871, %v4874, %v4877
        %v4879 = vsel %vm4868, nan, %v4878
        %v4880 = vand.u32 2147483647, %v4353
        %vm4881 = vcmp.le.f32.partialorder %v4880, 0.7853982
        %vm4882 = vcmp.lt.s32.totalorder %v4353, 0
        %v4883 = vand.u32 %v4353, 2139095040
        %v4884 = vshrl.u32 %v4883, 23
        %v4885 = vsub.s32 %v4884, 127
        %v4886 = vand.u32 2147483647, %v4353
        %v4887 = vand.u32 %v4886, 8388607
        %v4888 = vor.u32 %v4887, 8388608
        %v4889 = vsub.s32 0, %v4888
        %v4890 = vadd.s32 %v4885, 1
        %vm4891 = vcmp.gt.s32.totalorder %v4890, 0
        %v4892 = vsel %vm4891, %v4890, 0
        %v4893 = vshrl.u32 %v4892, 5
        %v4894 = vand.u32 %v4892, 31
        %v4895 = vsub.s32 32, %v4894
        %v4896 = vshrl.u32 683565275, %v4895
        %v4897 = vshll.u32 683565275, %v4894
        %v4898 = vshrl.u32 2475754826, %v4895
        %v4899 = vor.u32 %v4897, %v4898
        %v4900 = vshll.u32 2475754826, %v4894
        %v4901 = vshrl.u32 2131351028, %v4895
        %v4902 = vor.u32 %v4900, %v4901
        %v4903 = vshll.u32 2131351028, %v4894
        %v4904 = vshrl.u32 2102212464, %v4895
        %v4905 = vor.u32 %v4903, %v4904
        %v4906 = vshll.u32 2102212464, %v4894
        %v4907 = vshrl.u32 920167782, %v4895
        %v4908 = vor.u32 %v4906, %v4907
        %v4909 = vshll.u32 920167782, %v4894
        %v4910 = vshrl.u32 1326507024, %v4895
        %v4911 = vor.u32 %v4909, %v4910
        %vm4912 = vcmp.lt.s32.totalorder %v4893, 1
        %vm4913 = vcmp.lt.s32.totalorder %v4893, 2
        %vm4914 = vcmp.lt.s32.totalorder %v4893, 3
        %vm4915 = vcmp.lt.s32.totalorder %v4893, 4
        %v4916 = vsel %vm4912, %v4896, %v4899
        %v4917 = vsel %vm4915, %v4905, 2102212464
        %v4918 = vsel %vm4914, %v4902, %v4917
        %v4919 = vsel %vm4913, %v4916, %v4918
        %v4920 = vsel %vm4912, %v4899, %v4902
        %v4921 = vsel %vm4915, %v4908, 920167782
        %v4922 = vsel %vm4914, %v4905, %v4921
        %v4923 = vsel %vm4913, %v4920, %v4922
        %v4924 = vsel %vm4912, %v4902, %v4905
        %v4925 = vsel %vm4915, %v4911, 1326507024
        %v4926 = vsel %vm4914, %v4908, %v4925
        %v4927 = vsel %vm4913, %v4924, %v4926
        %v4928 = vshll.u32 %v4888, 8
        %v4929 = vmul.u32.u64.compose %v4928, %v4927
        %v4930 = vextract.low.u32 %v4929
        %v4931 = vextract.high.u32 %v4929
        %v4932 = vmul.u32.u64.compose %v4928, %v4923
        %v4933 = vextract.low.u32 %v4932
        %v4934 = vextract.high.u32 %v4932
        %v4935 = vmul.u32 %v4928, %v4919
        %v4936 = vadd.s32 %v4931, %v4933
        %vm4937 = vc.u32 %v4931, %v4933
        %v4938 = vadd.s32 %v4934, 1
        %v4939 = vsel %vm4937, %v4938, %v4934
        %v4940 = vadd.s32 %v4935, %v4939
        %v4941 = vadd.s32 %v4940, 536870912
        %v4942 = vshrl.u32 %v4941, 30
        %v4943 = vshll.u32 %v4942, 30
        %v4944 = vsub.s32 %v4940, %v4943
        %vm4945 = vcmp.lt.s32.totalorder %v4944, 0
        %v4946 = vsub.s32 0, %v4944
        %v4947 = vsel %vm4945, %v4946, %v4944
        %v4948 = vclz %v4947
        %v4949 = vsub.s32 %v4948, 2
        %vm4950 = vcmp.gt.s32.totalorder 0, %v4949
        %v4951 = vsel %vm4950, 0, %v4949
        %v4952 = vsub.s32 32, %v4951
        %v4953 = vshll.u32 %v4944, %v4951
        %v4954 = vshrl.u32 %v4936, %v4952
        %v4955 = vor.u32 %v4953, %v4954
        %v4956 = vsub.s32 4294967266, %v4951
        %v4957 = vadd.s32 %v4956, 127
        %v4958 = vshll.u32 %v4957, 23
        %v4959 = vor.u32 4788187, %v4958
        %v4960 = vand.u32 2147483647, %v4959
        %v4962 = vcvt.s32.f32 %v4955
        %v4963 = vmul.f32 %v4962, %v4960
        %v4964 = vxor.u32 %v4963, 2147483648
        %v4965 = vsel %vm4882, %v4964, %v4963
        %v4966 = vsub.s32 4, %v4942
        %v4967 = vsel %vm4882, %v4966, %v4942
        %v4968 = vsel %vm4881, %v4353, %v4965
        %v4969 = vsel %vm4881, 0, %v4967
        %v4970 = vcosq.f32.pop %v4968
        %v4971 = vsinq.f32.pop %v4968
        %vm4972 = vweird.f32 %v4353
        %v4973 = vadd.s32 %v4969, 3
        %v4974 = vand.u32 %v4973, 3
        %vm4975 = vcmp.lt.s32.totalorder %v4974, 2
        %vm4976 = vcmp.eq.s32.totalorder %v4974, 0
        %v4977 = vxor.u32 %v4971, 2147483648
        %v4978 = vsel %vm4976, %v4970, %v4977
        %vm4979 = vcmp.eq.s32.totalorder %v4974, 2
        %v4980 = vxor.u32 %v4970, 2147483648
        %v4981 = vsel %vm4979, %v4980, %v4971
        %v4982 = vsel %vm4975, %v4978, %v4981
        %v4983 = vsel %vm4972, nan, %v4982
        %v4984 = vand.u32 2147483647, %v4355
        %vm4985 = vcmp.le.f32.partialorder %v4984, 0.7853982
        %vm4986 = vcmp.lt.s32.totalorder %v4355, 0
        %v4987 = vand.u32 %v4355, 2139095040
        %v4988 = vshrl.u32 %v4987, 23
        %v4989 = vsub.s32 %v4988, 127
        %v4990 = vand.u32 2147483647, %v4355
        %v4991 = vand.u32 %v4990, 8388607
        %v4992 = vor.u32 %v4991, 8388608
        %v4993 = vsub.s32 0, %v4992
        %v4994 = vadd.s32 %v4989, 1
        %vm4995 = vcmp.gt.s32.totalorder %v4994, 0
        %v4996 = vsel %vm4995, %v4994, 0
        %v4997 = vshrl.u32 %v4996, 5
        %v4998 = vand.u32 %v4996, 31
        %v4999 = vsub.s32 32, %v4998
        %v5000 = vshrl.u32 683565275, %v4999
        %v5001 = vshll.u32 683565275, %v4998
        %v5002 = vshrl.u32 2475754826, %v4999
        %v5003 = vor.u32 %v5001, %v5002
        %v5004 = vshll.u32 2475754826, %v4998
        %v5005 = vshrl.u32 2131351028, %v4999
        %v5006 = vor.u32 %v5004, %v5005
        %v5007 = vshll.u32 2131351028, %v4998
        %v5008 = vshrl.u32 2102212464, %v4999
        %v5009 = vor.u32 %v5007, %v5008
        %v5010 = vshll.u32 2102212464, %v4998
        %v5011 = vshrl.u32 920167782, %v4999
        %v5012 = vor.u32 %v5010, %v5011
        %v5013 = vshll.u32 920167782, %v4998
        %v5014 = vshrl.u32 1326507024, %v4999
        %v5015 = vor.u32 %v5013, %v5014
        %vm5016 = vcmp.lt.s32.totalorder %v4997, 1
        %vm5017 = vcmp.lt.s32.totalorder %v4997, 2
        %vm5018 = vcmp.lt.s32.totalorder %v4997, 3
        %vm5019 = vcmp.lt.s32.totalorder %v4997, 4
        %v5020 = vsel %vm5016, %v5000, %v5003
        %v5021 = vsel %vm5019, %v5009, 2102212464
        %v5022 = vsel %vm5018, %v5006, %v5021
        %v5023 = vsel %vm5017, %v5020, %v5022
        %v5024 = vsel %vm5016, %v5003, %v5006
        %v5025 = vsel %vm5019, %v5012, 920167782
        %v5026 = vsel %vm5018, %v5009, %v5025
        %v5027 = vsel %vm5017, %v5024, %v5026
        %v5028 = vsel %vm5016, %v5006, %v5009
        %v5029 = vsel %vm5019, %v5015, 1326507024
        %v5030 = vsel %vm5018, %v5012, %v5029
        %v5031 = vsel %vm5017, %v5028, %v5030
        %v5032 = vshll.u32 %v4992, 8
        %v5033 = vmul.u32.u64.compose %v5032, %v5031
        %v5034 = vextract.low.u32 %v5033
        %v5035 = vextract.high.u32 %v5033
        %v5036 = vmul.u32.u64.compose %v5032, %v5027
        %v5037 = vextract.low.u32 %v5036
        %v5038 = vextract.high.u32 %v5036
        %v5039 = vmul.u32 %v5032, %v5023
        %v5040 = vadd.s32 %v5035, %v5037
        %vm5041 = vc.u32 %v5035, %v5037
        %v5042 = vadd.s32 %v5038, 1
        %v5043 = vsel %vm5041, %v5042, %v5038
        %v5044 = vadd.s32 %v5039, %v5043
        %v5045 = vadd.s32 %v5044, 536870912
        %v5046 = vshrl.u32 %v5045, 30
        %v5047 = vshll.u32 %v5046, 30
        %v5048 = vsub.s32 %v5044, %v5047
        %vm5049 = vcmp.lt.s32.totalorder %v5048, 0
        %v5050 = vsub.s32 0, %v5048
        %v5051 = vsel %vm5049, %v5050, %v5048
        %v5052 = vclz %v5051
        %v5053 = vsub.s32 %v5052, 2
        %vm5054 = vcmp.gt.s32.totalorder 0, %v5053
        %v5055 = vsel %vm5054, 0, %v5053
        %v5056 = vsub.s32 32, %v5055
        %v5057 = vshll.u32 %v5048, %v5055
        %v5058 = vshrl.u32 %v5040, %v5056
        %v5059 = vor.u32 %v5057, %v5058
        %v5060 = vsub.s32 4294967266, %v5055
        %v5061 = vadd.s32 %v5060, 127
        %v5062 = vshll.u32 %v5061, 23
        %v5063 = vor.u32 4788187, %v5062
        %v5064 = vand.u32 2147483647, %v5063
        %v5066 = vcvt.s32.f32 %v5059
        %v5067 = vmul.f32 %v5066, %v5064
        %v5068 = vxor.u32 %v5067, 2147483648
        %v5069 = vsel %vm4986, %v5068, %v5067
        %v5070 = vsub.s32 4, %v5046
        %v5071 = vsel %vm4986, %v5070, %v5046
        %v5072 = vsel %vm4985, %v4355, %v5069
        %v5073 = vsel %vm4985, 0, %v5071
        %v5074 = vcosq.f32.pop %v5072
        %v5075 = vsinq.f32.pop %v5072
        %vm5076 = vweird.f32 %v4355
        %v5077 = vadd.s32 %v5073, 3
        %v5078 = vand.u32 %v5077, 3
        %vm5079 = vcmp.lt.s32.totalorder %v5078, 2
        %vm5080 = vcmp.eq.s32.totalorder %v5078, 0
        %v5081 = vxor.u32 %v5075, 2147483648
        %v5082 = vsel %vm5080, %v5074, %v5081
        %vm5083 = vcmp.eq.s32.totalorder %v5078, 2
        %v5084 = vxor.u32 %v5074, 2147483648
        %v5085 = vsel %vm5083, %v5084, %v5075
        %v5086 = vsel %vm5079, %v5082, %v5085
        %v5087 = vsel %vm5076, nan, %v5086
        %v5088 = vand.u32 2147483647, %v4442
        %vm5089 = vcmp.le.f32.partialorder %v5088, 0.7853982
        %vm5090 = vcmp.lt.s32.totalorder %v4442, 0
        %v5091 = vand.u32 %v4442, 2139095040
        %v5092 = vshrl.u32 %v5091, 23
        %v5093 = vsub.s32 %v5092, 127
        %v5094 = vand.u32 2147483647, %v4442
        %v5095 = vand.u32 %v5094, 8388607
        %v5096 = vor.u32 %v5095, 8388608
        %v5097 = vsub.s32 0, %v5096
        %v5098 = vadd.s32 %v5093, 1
        %vm5099 = vcmp.gt.s32.totalorder %v5098, 0
        %v5100 = vsel %vm5099, %v5098, 0
        %v5101 = vshrl.u32 %v5100, 5
        %v5102 = vand.u32 %v5100, 31
        %v5103 = vsub.s32 32, %v5102
        %v5104 = vshrl.u32 683565275, %v5103
        %v5105 = vshll.u32 683565275, %v5102
        %v5106 = vshrl.u32 2475754826, %v5103
        %v5107 = vor.u32 %v5105, %v5106
        %v5108 = vshll.u32 2475754826, %v5102
        %v5109 = vshrl.u32 2131351028, %v5103
        %v5110 = vor.u32 %v5108, %v5109
        %v5111 = vshll.u32 2131351028, %v5102
        %v5112 = vshrl.u32 2102212464, %v5103
        %v5113 = vor.u32 %v5111, %v5112
        %v5114 = vshll.u32 2102212464, %v5102
        %v5115 = vshrl.u32 920167782, %v5103
        %v5116 = vor.u32 %v5114, %v5115
        %v5117 = vshll.u32 920167782, %v5102
        %v5118 = vshrl.u32 1326507024, %v5103
        %v5119 = vor.u32 %v5117, %v5118
        %vm5120 = vcmp.lt.s32.totalorder %v5101, 1
        %vm5121 = vcmp.lt.s32.totalorder %v5101, 2
        %vm5122 = vcmp.lt.s32.totalorder %v5101, 3
        %vm5123 = vcmp.lt.s32.totalorder %v5101, 4
        %v5124 = vsel %vm5120, %v5104, %v5107
        %v5125 = vsel %vm5123, %v5113, 2102212464
        %v5126 = vsel %vm5122, %v5110, %v5125
        %v5127 = vsel %vm5121, %v5124, %v5126
        %v5128 = vsel %vm5120, %v5107, %v5110
        %v5129 = vsel %vm5123, %v5116, 920167782
        %v5130 = vsel %vm5122, %v5113, %v5129
        %v5131 = vsel %vm5121, %v5128, %v5130
        %v5132 = vsel %vm5120, %v5110, %v5113
        %v5133 = vsel %vm5123, %v5119, 1326507024
        %v5134 = vsel %vm5122, %v5116, %v5133
        %v5135 = vsel %vm5121, %v5132, %v5134
        %v5136 = vshll.u32 %v5096, 8
        %v5137 = vmul.u32.u64.compose %v5136, %v5135
        %v5138 = vextract.low.u32 %v5137
        %v5139 = vextract.high.u32 %v5137
        %v5140 = vmul.u32.u64.compose %v5136, %v5131
        %v5141 = vextract.low.u32 %v5140
        %v5142 = vextract.high.u32 %v5140
        %v5143 = vmul.u32 %v5136, %v5127
        %v5144 = vadd.s32 %v5139, %v5141
        %vm5145 = vc.u32 %v5139, %v5141
        %v5146 = vadd.s32 %v5142, 1
        %v5147 = vsel %vm5145, %v5146, %v5142
        %v5148 = vadd.s32 %v5143, %v5147
        %v5149 = vadd.s32 %v5148, 536870912
        %v5150 = vshrl.u32 %v5149, 30
        %v5151 = vshll.u32 %v5150, 30
        %v5152 = vsub.s32 %v5148, %v5151
        %vm5153 = vcmp.lt.s32.totalorder %v5152, 0
        %v5154 = vsub.s32 0, %v5152
        %v5155 = vsel %vm5153, %v5154, %v5152
        %v5156 = vclz %v5155
        %v5157 = vsub.s32 %v5156, 2
        %vm5158 = vcmp.gt.s32.totalorder 0, %v5157
        %v5159 = vsel %vm5158, 0, %v5157
        %v5160 = vsub.s32 32, %v5159
        %v5161 = vshll.u32 %v5152, %v5159
        %v5162 = vshrl.u32 %v5144, %v5160
        %v5163 = vor.u32 %v5161, %v5162
        %v5164 = vsub.s32 4294967266, %v5159
        %v5165 = vadd.s32 %v5164, 127
        %v5166 = vshll.u32 %v5165, 23
        %v5167 = vor.u32 4788187, %v5166
        %v5168 = vand.u32 2147483647, %v5167
        %v5170 = vcvt.s32.f32 %v5163
        %v5171 = vmul.f32 %v5170, %v5168
        %v5172 = vxor.u32 %v5171, 2147483648
        %v5173 = vsel %vm5090, %v5172, %v5171
        %v5174 = vsub.s32 4, %v5150
        %v5175 = vsel %vm5090, %v5174, %v5150
        %v5176 = vsel %vm5089, %v4442, %v5173
        %v5177 = vsel %vm5089, 0, %v5175
        %v5178 = vcosq.f32.pop %v5176
        %v5179 = vsinq.f32.pop %v5176
        %vm5180 = vweird.f32 %v4442
        %v5181 = vadd.s32 %v5177, 3
        %v5182 = vand.u32 %v5181, 3
        %vm5183 = vcmp.lt.s32.totalorder %v5182, 2
        %vm5184 = vcmp.eq.s32.totalorder %v5182, 0
        %v5185 = vxor.u32 %v5179, 2147483648
        %v5186 = vsel %vm5184, %v5178, %v5185
        %vm5187 = vcmp.eq.s32.totalorder %v5182, 2
        %v5188 = vxor.u32 %v5178, 2147483648
        %v5189 = vsel %vm5187, %v5188, %v5179
        %v5190 = vsel %vm5183, %v5186, %v5189
        %v5191 = vsel %vm5180, nan, %v5190
        %v5192 = vand.u32 2147483647, %v4444
        %vm5193 = vcmp.le.f32.partialorder %v5192, 0.7853982
        %vm5194 = vcmp.lt.s32.totalorder %v4444, 0
        %v5195 = vand.u32 %v4444, 2139095040
        %v5196 = vshrl.u32 %v5195, 23
        %v5197 = vsub.s32 %v5196, 127
        %v5198 = vand.u32 2147483647, %v4444
        %v5199 = vand.u32 %v5198, 8388607
        %v5200 = vor.u32 %v5199, 8388608
        %v5201 = vsub.s32 0, %v5200
        %v5202 = vadd.s32 %v5197, 1
        %vm5203 = vcmp.gt.s32.totalorder %v5202, 0
        %v5204 = vsel %vm5203, %v5202, 0
        %v5205 = vshrl.u32 %v5204, 5
        %v5206 = vand.u32 %v5204, 31
        %v5207 = vsub.s32 32, %v5206
        %v5208 = vshrl.u32 683565275, %v5207
        %v5209 = vshll.u32 683565275, %v5206
        %v5210 = vshrl.u32 2475754826, %v5207
        %v5211 = vor.u32 %v5209, %v5210
        %v5212 = vshll.u32 2475754826, %v5206
        %v5213 = vshrl.u32 2131351028, %v5207
        %v5214 = vor.u32 %v5212, %v5213
        %v5215 = vshll.u32 2131351028, %v5206
        %v5216 = vshrl.u32 2102212464, %v5207
        %v5217 = vor.u32 %v5215, %v5216
        %v5218 = vshll.u32 2102212464, %v5206
        %v5219 = vshrl.u32 920167782, %v5207
        %v5220 = vor.u32 %v5218, %v5219
        %v5221 = vshll.u32 920167782, %v5206
        %v5222 = vshrl.u32 1326507024, %v5207
        %v5223 = vor.u32 %v5221, %v5222
        %vm5224 = vcmp.lt.s32.totalorder %v5205, 1
        %vm5225 = vcmp.lt.s32.totalorder %v5205, 2
        %vm5226 = vcmp.lt.s32.totalorder %v5205, 3
        %vm5227 = vcmp.lt.s32.totalorder %v5205, 4
        %v5228 = vsel %vm5224, %v5208, %v5211
        %v5229 = vsel %vm5227, %v5217, 2102212464
        %v5230 = vsel %vm5226, %v5214, %v5229
        %v5231 = vsel %vm5225, %v5228, %v5230
        %v5232 = vsel %vm5224, %v5211, %v5214
        %v5233 = vsel %vm5227, %v5220, 920167782
        %v5234 = vsel %vm5226, %v5217, %v5233
        %v5235 = vsel %vm5225, %v5232, %v5234
        %v5236 = vsel %vm5224, %v5214, %v5217
        %v5237 = vsel %vm5227, %v5223, 1326507024
        %v5238 = vsel %vm5226, %v5220, %v5237
        %v5239 = vsel %vm5225, %v5236, %v5238
        %v5240 = vshll.u32 %v5200, 8
        %v5241 = vmul.u32.u64.compose %v5240, %v5239
        %v5242 = vextract.low.u32 %v5241
        %v5243 = vextract.high.u32 %v5241
        %v5244 = vmul.u32.u64.compose %v5240, %v5235
        %v5245 = vextract.low.u32 %v5244
        %v5246 = vextract.high.u32 %v5244
        %v5247 = vmul.u32 %v5240, %v5231
        %v5248 = vadd.s32 %v5243, %v5245
        %vm5249 = vc.u32 %v5243, %v5245
        %v5250 = vadd.s32 %v5246, 1
        %v5251 = vsel %vm5249, %v5250, %v5246
        %v5252 = vadd.s32 %v5247, %v5251
        %v5253 = vadd.s32 %v5252, 536870912
        %v5254 = vshrl.u32 %v5253, 30
        %v5255 = vshll.u32 %v5254, 30
        %v5256 = vsub.s32 %v5252, %v5255
        %vm5257 = vcmp.lt.s32.totalorder %v5256, 0
        %v5258 = vsub.s32 0, %v5256
        %v5259 = vsel %vm5257, %v5258, %v5256
        %v5260 = vclz %v5259
        %v5261 = vsub.s32 %v5260, 2
        %vm5262 = vcmp.gt.s32.totalorder 0, %v5261
        %v5263 = vsel %vm5262, 0, %v5261
        %v5264 = vsub.s32 32, %v5263
        %v5265 = vshll.u32 %v5256, %v5263
        %v5266 = vshrl.u32 %v5248, %v5264
        %v5267 = vor.u32 %v5265, %v5266
        %v5268 = vsub.s32 4294967266, %v5263
        %v5269 = vadd.s32 %v5268, 127
        %v5270 = vshll.u32 %v5269, 23
        %v5271 = vor.u32 4788187, %v5270
        %v5272 = vand.u32 2147483647, %v5271
        %v5274 = vcvt.s32.f32 %v5267
        %v5275 = vmul.f32 %v5274, %v5272
        %v5276 = vxor.u32 %v5275, 2147483648
        %v5277 = vsel %vm5194, %v5276, %v5275
        %v5278 = vsub.s32 4, %v5254
        %v5279 = vsel %vm5194, %v5278, %v5254
        %v5280 = vsel %vm5193, %v4444, %v5277
        %v5281 = vsel %vm5193, 0, %v5279
        %v5282 = vcosq.f32.pop %v5280
        %v5283 = vsinq.f32.pop %v5280
        %vm5284 = vweird.f32 %v4444
        %v5285 = vadd.s32 %v5281, 3
        %v5286 = vand.u32 %v5285, 3
        %vm5287 = vcmp.lt.s32.totalorder %v5286, 2
        %vm5288 = vcmp.eq.s32.totalorder %v5286, 0
        %v5289 = vxor.u32 %v5283, 2147483648
        %v5290 = vsel %vm5288, %v5282, %v5289
        %vm5291 = vcmp.eq.s32.totalorder %v5286, 2
        %v5292 = vxor.u32 %v5282, 2147483648
        %v5293 = vsel %vm5291, %v5292, %v5283
        %v5294 = vsel %vm5287, %v5290, %v5293
        %v5295 = vsel %vm5284, nan, %v5294
        %v5296 = vand.u32 2147483647, %v4181
        %vm5297 = vcmp.le.f32.partialorder %v5296, 0.7853982
        %vm5298 = vcmp.lt.s32.totalorder %v4181, 0
        %v5299 = vand.u32 %v4181, 2139095040
        %v5300 = vshrl.u32 %v5299, 23
        %v5301 = vsub.s32 %v5300, 127
        %v5302 = vand.u32 2147483647, %v4181
        %v5303 = vand.u32 %v5302, 8388607
        %v5304 = vor.u32 %v5303, 8388608
        %v5305 = vsub.s32 0, %v5304
        %v5306 = vadd.s32 %v5301, 1
        %vm5307 = vcmp.gt.s32.totalorder %v5306, 0
        %v5308 = vsel %vm5307, %v5306, 0
        %v5309 = vshrl.u32 %v5308, 5
        %v5310 = vand.u32 %v5308, 31
        %v5311 = vsub.s32 32, %v5310
        %v5312 = vshrl.u32 683565275, %v5311
        %v5313 = vshll.u32 683565275, %v5310
        %v5314 = vshrl.u32 2475754826, %v5311
        %v5315 = vor.u32 %v5313, %v5314
        %v5316 = vshll.u32 2475754826, %v5310
        %v5317 = vshrl.u32 2131351028, %v5311
        %v5318 = vor.u32 %v5316, %v5317
        %v5319 = vshll.u32 2131351028, %v5310
        %v5320 = vshrl.u32 2102212464, %v5311
        %v5321 = vor.u32 %v5319, %v5320
        %v5322 = vshll.u32 2102212464, %v5310
        %v5323 = vshrl.u32 920167782, %v5311
        %v5324 = vor.u32 %v5322, %v5323
        %v5325 = vshll.u32 920167782, %v5310
        %v5326 = vshrl.u32 1326507024, %v5311
        %v5327 = vor.u32 %v5325, %v5326
        %vm5328 = vcmp.lt.s32.totalorder %v5309, 1
        %vm5329 = vcmp.lt.s32.totalorder %v5309, 2
        %vm5330 = vcmp.lt.s32.totalorder %v5309, 3
        %vm5331 = vcmp.lt.s32.totalorder %v5309, 4
        %v5332 = vsel %vm5328, %v5312, %v5315
        %v5333 = vsel %vm5331, %v5321, 2102212464
        %v5334 = vsel %vm5330, %v5318, %v5333
        %v5335 = vsel %vm5329, %v5332, %v5334
        %v5336 = vsel %vm5328, %v5315, %v5318
        %v5337 = vsel %vm5331, %v5324, 920167782
        %v5338 = vsel %vm5330, %v5321, %v5337
        %v5339 = vsel %vm5329, %v5336, %v5338
        %v5340 = vsel %vm5328, %v5318, %v5321
        %v5341 = vsel %vm5331, %v5327, 1326507024
        %v5342 = vsel %vm5330, %v5324, %v5341
        %v5343 = vsel %vm5329, %v5340, %v5342
        %v5344 = vshll.u32 %v5304, 8
        %v5345 = vmul.u32.u64.compose %v5344, %v5343
        %v5346 = vextract.low.u32 %v5345
        %v5347 = vextract.high.u32 %v5345
        %v5348 = vmul.u32.u64.compose %v5344, %v5339
        %v5349 = vextract.low.u32 %v5348
        %v5350 = vextract.high.u32 %v5348
        %v5351 = vmul.u32 %v5344, %v5335
        %v5352 = vadd.s32 %v5347, %v5349
        %vm5353 = vc.u32 %v5347, %v5349
        %v5354 = vadd.s32 %v5350, 1
        %v5355 = vsel %vm5353, %v5354, %v5350
        %v5356 = vadd.s32 %v5351, %v5355
        %v5357 = vadd.s32 %v5356, 536870912
        %v5358 = vshrl.u32 %v5357, 30
        %v5359 = vshll.u32 %v5358, 30
        %v5360 = vsub.s32 %v5356, %v5359
        %vm5361 = vcmp.lt.s32.totalorder %v5360, 0
        %v5362 = vsub.s32 0, %v5360
        %v5363 = vsel %vm5361, %v5362, %v5360
        %v5364 = vclz %v5363
        %v5365 = vsub.s32 %v5364, 2
        %vm5366 = vcmp.gt.s32.totalorder 0, %v5365
        %v5367 = vsel %vm5366, 0, %v5365
        %v5368 = vsub.s32 32, %v5367
        %v5369 = vshll.u32 %v5360, %v5367
        %v5370 = vshrl.u32 %v5352, %v5368
        %v5371 = vor.u32 %v5369, %v5370
        %v5372 = vsub.s32 4294967266, %v5367
        %v5373 = vadd.s32 %v5372, 127
        %v5374 = vshll.u32 %v5373, 23
        %v5375 = vor.u32 4788187, %v5374
        %v5376 = vand.u32 2147483647, %v5375
        %v5378 = vcvt.s32.f32 %v5371
        %v5379 = vmul.f32 %v5378, %v5376
        %v5380 = vxor.u32 %v5379, 2147483648
        %v5381 = vsel %vm5298, %v5380, %v5379
        %v5382 = vsub.s32 4, %v5358
        %v5383 = vsel %vm5298, %v5382, %v5358
        %v5384 = vsel %vm5297, %v4181, %v5381
        %v5385 = vsel %vm5297, 0, %v5383
        %v5386 = vcosq.f32.pop %v5384
        %v5387 = vsinq.f32.pop %v5384
        %vm5388 = vweird.f32 %v4181
        %v5389 = vadd.s32 %v5385, 3
        %v5390 = vand.u32 %v5389, 3
        %vm5391 = vcmp.lt.s32.totalorder %v5390, 2
        %vm5392 = vcmp.eq.s32.totalorder %v5390, 0
        %v5393 = vxor.u32 %v5387, 2147483648
        %v5394 = vsel %vm5392, %v5386, %v5393
        %vm5395 = vcmp.eq.s32.totalorder %v5390, 2
        %v5396 = vxor.u32 %v5386, 2147483648
        %v5397 = vsel %vm5395, %v5396, %v5387
        %v5398 = vsel %vm5391, %v5394, %v5397
        %v5399 = vsel %vm5388, nan, %v5398
        %v5400 = vand.u32 2147483647, %v4183
        %vm5401 = vcmp.le.f32.partialorder %v5400, 0.7853982
        %vm5402 = vcmp.lt.s32.totalorder %v4183, 0
        %v5403 = vand.u32 %v4183, 2139095040
        %v5404 = vshrl.u32 %v5403, 23
        %v5405 = vsub.s32 %v5404, 127
        %v5406 = vand.u32 2147483647, %v4183
        %v5407 = vand.u32 %v5406, 8388607
        %v5408 = vor.u32 %v5407, 8388608
        %v5409 = vsub.s32 0, %v5408
        %v5410 = vadd.s32 %v5405, 1
        %vm5411 = vcmp.gt.s32.totalorder %v5410, 0
        %v5412 = vsel %vm5411, %v5410, 0
        %v5413 = vshrl.u32 %v5412, 5
        %v5414 = vand.u32 %v5412, 31
        %v5415 = vsub.s32 32, %v5414
        %v5416 = vshrl.u32 683565275, %v5415
        %v5417 = vshll.u32 683565275, %v5414
        %v5418 = vshrl.u32 2475754826, %v5415
        %v5419 = vor.u32 %v5417, %v5418
        %v5420 = vshll.u32 2475754826, %v5414
        %v5421 = vshrl.u32 2131351028, %v5415
        %v5422 = vor.u32 %v5420, %v5421
        %v5423 = vshll.u32 2131351028, %v5414
        %v5424 = vshrl.u32 2102212464, %v5415
        %v5425 = vor.u32 %v5423, %v5424
        %v5426 = vshll.u32 2102212464, %v5414
        %v5427 = vshrl.u32 920167782, %v5415
        %v5428 = vor.u32 %v5426, %v5427
        %v5429 = vshll.u32 920167782, %v5414
        %v5430 = vshrl.u32 1326507024, %v5415
        %v5431 = vor.u32 %v5429, %v5430
        %vm5432 = vcmp.lt.s32.totalorder %v5413, 1
        %vm5433 = vcmp.lt.s32.totalorder %v5413, 2
        %vm5434 = vcmp.lt.s32.totalorder %v5413, 3
        %vm5435 = vcmp.lt.s32.totalorder %v5413, 4
        %v5436 = vsel %vm5432, %v5416, %v5419
        %v5437 = vsel %vm5435, %v5425, 2102212464
        %v5438 = vsel %vm5434, %v5422, %v5437
        %v5439 = vsel %vm5433, %v5436, %v5438
        %v5440 = vsel %vm5432, %v5419, %v5422
        %v5441 = vsel %vm5435, %v5428, 920167782
        %v5442 = vsel %vm5434, %v5425, %v5441
        %v5443 = vsel %vm5433, %v5440, %v5442
        %v5444 = vsel %vm5432, %v5422, %v5425
        %v5445 = vsel %vm5435, %v5431, 1326507024
        %v5446 = vsel %vm5434, %v5428, %v5445
        %v5447 = vsel %vm5433, %v5444, %v5446
        %v5448 = vshll.u32 %v5408, 8
        %v5449 = vmul.u32.u64.compose %v5448, %v5447
        %v5450 = vextract.low.u32 %v5449
        %v5451 = vextract.high.u32 %v5449
        %v5452 = vmul.u32.u64.compose %v5448, %v5443
        %v5453 = vextract.low.u32 %v5452
        %v5454 = vextract.high.u32 %v5452
        %v5455 = vmul.u32 %v5448, %v5439
        %v5456 = vadd.s32 %v5451, %v5453
        %vm5457 = vc.u32 %v5451, %v5453
        %v5458 = vadd.s32 %v5454, 1
        %v5459 = vsel %vm5457, %v5458, %v5454
        %v5460 = vadd.s32 %v5455, %v5459
        %v5461 = vadd.s32 %v5460, 536870912
        %v5462 = vshrl.u32 %v5461, 30
        %v5463 = vshll.u32 %v5462, 30
        %v5464 = vsub.s32 %v5460, %v5463
        %vm5465 = vcmp.lt.s32.totalorder %v5464, 0
        %v5466 = vsub.s32 0, %v5464
        %v5467 = vsel %vm5465, %v5466, %v5464
        %v5468 = vclz %v5467
        %v5469 = vsub.s32 %v5468, 2
        %vm5470 = vcmp.gt.s32.totalorder 0, %v5469
        %v5471 = vsel %vm5470, 0, %v5469
        %v5472 = vsub.s32 32, %v5471
        %v5473 = vshll.u32 %v5464, %v5471
        %v5474 = vshrl.u32 %v5456, %v5472
        %v5475 = vor.u32 %v5473, %v5474
        %v5476 = vsub.s32 4294967266, %v5471
        %v5477 = vadd.s32 %v5476, 127
        %v5478 = vshll.u32 %v5477, 23
        %v5479 = vor.u32 4788187, %v5478
        %v5480 = vand.u32 2147483647, %v5479
        %v5482 = vcvt.s32.f32 %v5475
        %v5483 = vmul.f32 %v5482, %v5480
        %v5484 = vxor.u32 %v5483, 2147483648
        %v5485 = vsel %vm5402, %v5484, %v5483
        %v5486 = vsub.s32 4, %v5462
        %v5487 = vsel %vm5402, %v5486, %v5462
        %v5488 = vsel %vm5401, %v4183, %v5485
        %v5489 = vsel %vm5401, 0, %v5487
        %v5490 = vcosq.f32.pop %v5488
        %v5491 = vsinq.f32.pop %v5488
        %vm5492 = vweird.f32 %v4183
        %v5493 = vadd.s32 %v5489, 3
        %v5494 = vand.u32 %v5493, 3
        %vm5495 = vcmp.lt.s32.totalorder %v5494, 2
        %vm5496 = vcmp.eq.s32.totalorder %v5494, 0
        %v5497 = vxor.u32 %v5491, 2147483648
        %v5498 = vsel %vm5496, %v5490, %v5497
        %vm5499 = vcmp.eq.s32.totalorder %v5494, 2
        %v5500 = vxor.u32 %v5490, 2147483648
        %v5501 = vsel %vm5499, %v5500, %v5491
        %v5502 = vsel %vm5495, %v5498, %v5501
        %v5503 = vsel %vm5492, nan, %v5502
        %v5504 = vand.u32 2147483647, %v4270
        %vm5505 = vcmp.le.f32.partialorder %v5504, 0.7853982
        %vm5506 = vcmp.lt.s32.totalorder %v4270, 0
        %v5507 = vand.u32 %v4270, 2139095040
        %v5508 = vshrl.u32 %v5507, 23
        %v5509 = vsub.s32 %v5508, 127
        %v5510 = vand.u32 2147483647, %v4270
        %v5511 = vand.u32 %v5510, 8388607
        %v5512 = vor.u32 %v5511, 8388608
        %v5513 = vsub.s32 0, %v5512
        %v5514 = vadd.s32 %v5509, 1
        %vm5515 = vcmp.gt.s32.totalorder %v5514, 0
        %v5516 = vsel %vm5515, %v5514, 0
        %v5517 = vshrl.u32 %v5516, 5
        %v5518 = vand.u32 %v5516, 31
        %v5519 = vsub.s32 32, %v5518
        %v5520 = vshrl.u32 683565275, %v5519
        %v5521 = vshll.u32 683565275, %v5518
        %v5522 = vshrl.u32 2475754826, %v5519
        %v5523 = vor.u32 %v5521, %v5522
        %v5524 = vshll.u32 2475754826, %v5518
        %v5525 = vshrl.u32 2131351028, %v5519
        %v5526 = vor.u32 %v5524, %v5525
        %v5527 = vshll.u32 2131351028, %v5518
        %v5528 = vshrl.u32 2102212464, %v5519
        %v5529 = vor.u32 %v5527, %v5528
        %v5530 = vshll.u32 2102212464, %v5518
        %v5531 = vshrl.u32 920167782, %v5519
        %v5532 = vor.u32 %v5530, %v5531
        %v5533 = vshll.u32 920167782, %v5518
        %v5534 = vshrl.u32 1326507024, %v5519
        %v5535 = vor.u32 %v5533, %v5534
        %vm5536 = vcmp.lt.s32.totalorder %v5517, 1
        %vm5537 = vcmp.lt.s32.totalorder %v5517, 2
        %vm5538 = vcmp.lt.s32.totalorder %v5517, 3
        %vm5539 = vcmp.lt.s32.totalorder %v5517, 4
        %v5540 = vsel %vm5536, %v5520, %v5523
        %v5541 = vsel %vm5539, %v5529, 2102212464
        %v5542 = vsel %vm5538, %v5526, %v5541
        %v5543 = vsel %vm5537, %v5540, %v5542
        %v5544 = vsel %vm5536, %v5523, %v5526
        %v5545 = vsel %vm5539, %v5532, 920167782
        %v5546 = vsel %vm5538, %v5529, %v5545
        %v5547 = vsel %vm5537, %v5544, %v5546
        %v5548 = vsel %vm5536, %v5526, %v5529
        %v5549 = vsel %vm5539, %v5535, 1326507024
        %v5550 = vsel %vm5538, %v5532, %v5549
        %v5551 = vsel %vm5537, %v5548, %v5550
        %v5552 = vshll.u32 %v5512, 8
        %v5553 = vmul.u32.u64.compose %v5552, %v5551
        %v5554 = vextract.low.u32 %v5553
        %v5555 = vextract.high.u32 %v5553
        %v5556 = vmul.u32.u64.compose %v5552, %v5547
        %v5557 = vextract.low.u32 %v5556
        %v5558 = vextract.high.u32 %v5556
        %v5559 = vmul.u32 %v5552, %v5543
        %v5560 = vadd.s32 %v5555, %v5557
        %vm5561 = vc.u32 %v5555, %v5557
        %v5562 = vadd.s32 %v5558, 1
        %v5563 = vsel %vm5561, %v5562, %v5558
        %v5564 = vadd.s32 %v5559, %v5563
        %v5565 = vadd.s32 %v5564, 536870912
        %v5566 = vshrl.u32 %v5565, 30
        %v5567 = vshll.u32 %v5566, 30
        %v5568 = vsub.s32 %v5564, %v5567
        %vm5569 = vcmp.lt.s32.totalorder %v5568, 0
        %v5570 = vsub.s32 0, %v5568
        %v5571 = vsel %vm5569, %v5570, %v5568
        %v5572 = vclz %v5571
        %v5573 = vsub.s32 %v5572, 2
        %vm5574 = vcmp.gt.s32.totalorder 0, %v5573
        %v5575 = vsel %vm5574, 0, %v5573
        %v5576 = vsub.s32 32, %v5575
        %v5577 = vshll.u32 %v5568, %v5575
        %v5578 = vshrl.u32 %v5560, %v5576
        %v5579 = vor.u32 %v5577, %v5578
        %v5580 = vsub.s32 4294967266, %v5575
        %v5581 = vadd.s32 %v5580, 127
        %v5582 = vshll.u32 %v5581, 23
        %v5583 = vor.u32 4788187, %v5582
        %v5584 = vand.u32 2147483647, %v5583
        %v5586 = vcvt.s32.f32 %v5579
        %v5587 = vmul.f32 %v5586, %v5584
        %v5588 = vxor.u32 %v5587, 2147483648
        %v5589 = vsel %vm5506, %v5588, %v5587
        %v5590 = vsub.s32 4, %v5566
        %v5591 = vsel %vm5506, %v5590, %v5566
        %v5592 = vsel %vm5505, %v4270, %v5589
        %v5593 = vsel %vm5505, 0, %v5591
        %v5594 = vcosq.f32.pop %v5592
        %v5595 = vsinq.f32.pop %v5592
        %vm5596 = vweird.f32 %v4270
        %v5597 = vadd.s32 %v5593, 3
        %v5598 = vand.u32 %v5597, 3
        %vm5599 = vcmp.lt.s32.totalorder %v5598, 2
        %vm5600 = vcmp.eq.s32.totalorder %v5598, 0
        %v5601 = vxor.u32 %v5595, 2147483648
        %v5602 = vsel %vm5600, %v5594, %v5601
        %vm5603 = vcmp.eq.s32.totalorder %v5598, 2
        %v5604 = vxor.u32 %v5594, 2147483648
        %v5605 = vsel %vm5603, %v5604, %v5595
        %v5606 = vsel %vm5599, %v5602, %v5605
        %v5607 = vsel %vm5596, nan, %v5606
        %v5608 = vand.u32 2147483647, %v4272
        %vm5609 = vcmp.le.f32.partialorder %v5608, 0.7853982
        %vm5610 = vcmp.lt.s32.totalorder %v4272, 0
        %v5611 = vand.u32 %v4272, 2139095040
        %v5612 = vshrl.u32 %v5611, 23
        %v5613 = vsub.s32 %v5612, 127
        %v5614 = vand.u32 2147483647, %v4272
        %v5615 = vand.u32 %v5614, 8388607
        %v5616 = vor.u32 %v5615, 8388608
        %v5617 = vsub.s32 0, %v5616
        %v5618 = vadd.s32 %v5613, 1
        %vm5619 = vcmp.gt.s32.totalorder %v5618, 0
        %v5620 = vsel %vm5619, %v5618, 0
        %v5621 = vshrl.u32 %v5620, 5
        %v5622 = vand.u32 %v5620, 31
        %v5623 = vsub.s32 32, %v5622
        %v5624 = vshrl.u32 683565275, %v5623
        %v5625 = vshll.u32 683565275, %v5622
        %v5626 = vshrl.u32 2475754826, %v5623
        %v5627 = vor.u32 %v5625, %v5626
        %v5628 = vshll.u32 2475754826, %v5622
        %v5629 = vshrl.u32 2131351028, %v5623
        %v5630 = vor.u32 %v5628, %v5629
        %v5631 = vshll.u32 2131351028, %v5622
        %v5632 = vshrl.u32 2102212464, %v5623
        %v5633 = vor.u32 %v5631, %v5632
        %v5634 = vshll.u32 2102212464, %v5622
        %v5635 = vshrl.u32 920167782, %v5623
        %v5636 = vor.u32 %v5634, %v5635
        %v5637 = vshll.u32 920167782, %v5622
        %v5638 = vshrl.u32 1326507024, %v5623
        %v5639 = vor.u32 %v5637, %v5638
        %vm5640 = vcmp.lt.s32.totalorder %v5621, 1
        %vm5641 = vcmp.lt.s32.totalorder %v5621, 2
        %vm5642 = vcmp.lt.s32.totalorder %v5621, 3
        %vm5643 = vcmp.lt.s32.totalorder %v5621, 4
        %v5644 = vsel %vm5640, %v5624, %v5627
        %v5645 = vsel %vm5643, %v5633, 2102212464
        %v5646 = vsel %vm5642, %v5630, %v5645
        %v5647 = vsel %vm5641, %v5644, %v5646
        %v5648 = vsel %vm5640, %v5627, %v5630
        %v5649 = vsel %vm5643, %v5636, 920167782
        %v5650 = vsel %vm5642, %v5633, %v5649
        %v5651 = vsel %vm5641, %v5648, %v5650
        %v5652 = vsel %vm5640, %v5630, %v5633
        %v5653 = vsel %vm5643, %v5639, 1326507024
        %v5654 = vsel %vm5642, %v5636, %v5653
        %v5655 = vsel %vm5641, %v5652, %v5654
        %v5656 = vshll.u32 %v5616, 8
        %v5657 = vmul.u32.u64.compose %v5656, %v5655
        %v5658 = vextract.low.u32 %v5657
        %v5659 = vextract.high.u32 %v5657
        %v5660 = vmul.u32.u64.compose %v5656, %v5651
        %v5661 = vextract.low.u32 %v5660
        %v5662 = vextract.high.u32 %v5660
        %v5663 = vmul.u32 %v5656, %v5647
        %v5664 = vadd.s32 %v5659, %v5661
        %vm5665 = vc.u32 %v5659, %v5661
        %v5666 = vadd.s32 %v5662, 1
        %v5667 = vsel %vm5665, %v5666, %v5662
        %v5668 = vadd.s32 %v5663, %v5667
        %v5669 = vadd.s32 %v5668, 536870912
        %v5670 = vshrl.u32 %v5669, 30
        %v5671 = vshll.u32 %v5670, 30
        %v5672 = vsub.s32 %v5668, %v5671
        %vm5673 = vcmp.lt.s32.totalorder %v5672, 0
        %v5674 = vsub.s32 0, %v5672
        %v5675 = vsel %vm5673, %v5674, %v5672
        %v5676 = vclz %v5675
        %v5677 = vsub.s32 %v5676, 2
        %vm5678 = vcmp.gt.s32.totalorder 0, %v5677
        %v5679 = vsel %vm5678, 0, %v5677
        %v5680 = vsub.s32 32, %v5679
        %v5681 = vshll.u32 %v5672, %v5679
        %v5682 = vshrl.u32 %v5664, %v5680
        %v5683 = vor.u32 %v5681, %v5682
        %v5684 = vsub.s32 4294967266, %v5679
        %v5685 = vadd.s32 %v5684, 127
        %v5686 = vshll.u32 %v5685, 23
        %v5687 = vor.u32 4788187, %v5686
        %v5688 = vand.u32 2147483647, %v5687
        %v5690 = vcvt.s32.f32 %v5683
        %v5691 = vmul.f32 %v5690, %v5688
        %v5692 = vxor.u32 %v5691, 2147483648
        %v5693 = vsel %vm5610, %v5692, %v5691
        %v5694 = vsub.s32 4, %v5670
        %v5695 = vsel %vm5610, %v5694, %v5670
        %v5696 = vsel %vm5609, %v4272, %v5693
        %v5697 = vsel %vm5609, 0, %v5695
        %v5698 = vcosq.f32.pop %v5696
        %v5699 = vsinq.f32.pop %v5696
        %vm5700 = vweird.f32 %v4272
        %v5701 = vadd.s32 %v5697, 3
        %v5702 = vand.u32 %v5701, 3
        %vm5703 = vcmp.lt.s32.totalorder %v5702, 2
        %vm5704 = vcmp.eq.s32.totalorder %v5702, 0
        %v5705 = vxor.u32 %v5699, 2147483648
        %v5706 = vsel %vm5704, %v5698, %v5705
        %vm5707 = vcmp.eq.s32.totalorder %v5702, 2
        %v5708 = vxor.u32 %v5698, 2147483648
        %v5709 = vsel %vm5707, %v5708, %v5699
        %v5710 = vsel %vm5703, %v5706, %v5709
        %v5711 = vsel %vm5700, nan, %v5710
        %v5712 = vand.u32 2147483647, %v4359
        %vm5713 = vcmp.le.f32.partialorder %v5712, 0.7853982
        %vm5714 = vcmp.lt.s32.totalorder %v4359, 0
        %v5715 = vand.u32 %v4359, 2139095040
        %v5716 = vshrl.u32 %v5715, 23
        %v5717 = vsub.s32 %v5716, 127
        %v5718 = vand.u32 2147483647, %v4359
        %v5719 = vand.u32 %v5718, 8388607
        %v5720 = vor.u32 %v5719, 8388608
        %v5721 = vsub.s32 0, %v5720
        %v5722 = vadd.s32 %v5717, 1
        %vm5723 = vcmp.gt.s32.totalorder %v5722, 0
        %v5724 = vsel %vm5723, %v5722, 0
        %v5725 = vshrl.u32 %v5724, 5
        %v5726 = vand.u32 %v5724, 31
        %v5727 = vsub.s32 32, %v5726
        %v5728 = vshrl.u32 683565275, %v5727
        %v5729 = vshll.u32 683565275, %v5726
        %v5730 = vshrl.u32 2475754826, %v5727
        %v5731 = vor.u32 %v5729, %v5730
        %v5732 = vshll.u32 2475754826, %v5726
        %v5733 = vshrl.u32 2131351028, %v5727
        %v5734 = vor.u32 %v5732, %v5733
        %v5735 = vshll.u32 2131351028, %v5726
        %v5736 = vshrl.u32 2102212464, %v5727
        %v5737 = vor.u32 %v5735, %v5736
        %v5738 = vshll.u32 2102212464, %v5726
        %v5739 = vshrl.u32 920167782, %v5727
        %v5740 = vor.u32 %v5738, %v5739
        %v5741 = vshll.u32 920167782, %v5726
        %v5742 = vshrl.u32 1326507024, %v5727
        %v5743 = vor.u32 %v5741, %v5742
        %vm5744 = vcmp.lt.s32.totalorder %v5725, 1
        %vm5745 = vcmp.lt.s32.totalorder %v5725, 2
        %vm5746 = vcmp.lt.s32.totalorder %v5725, 3
        %vm5747 = vcmp.lt.s32.totalorder %v5725, 4
        %v5748 = vsel %vm5744, %v5728, %v5731
        %v5749 = vsel %vm5747, %v5737, 2102212464
        %v5750 = vsel %vm5746, %v5734, %v5749
        %v5751 = vsel %vm5745, %v5748, %v5750
        %v5752 = vsel %vm5744, %v5731, %v5734
        %v5753 = vsel %vm5747, %v5740, 920167782
        %v5754 = vsel %vm5746, %v5737, %v5753
        %v5755 = vsel %vm5745, %v5752, %v5754
        %v5756 = vsel %vm5744, %v5734, %v5737
        %v5757 = vsel %vm5747, %v5743, 1326507024
        %v5758 = vsel %vm5746, %v5740, %v5757
        %v5759 = vsel %vm5745, %v5756, %v5758
        %v5760 = vshll.u32 %v5720, 8
        %v5761 = vmul.u32.u64.compose %v5760, %v5759
        %v5762 = vextract.low.u32 %v5761
        %v5763 = vextract.high.u32 %v5761
        %v5764 = vmul.u32.u64.compose %v5760, %v5755
        %v5765 = vextract.low.u32 %v5764
        %v5766 = vextract.high.u32 %v5764
        %v5767 = vmul.u32 %v5760, %v5751
        %v5768 = vadd.s32 %v5763, %v5765
        %vm5769 = vc.u32 %v5763, %v5765
        %v5770 = vadd.s32 %v5766, 1
        %v5771 = vsel %vm5769, %v5770, %v5766
        %v5772 = vadd.s32 %v5767, %v5771
        %v5773 = vadd.s32 %v5772, 536870912
        %v5774 = vshrl.u32 %v5773, 30
        %v5775 = vshll.u32 %v5774, 30
        %v5776 = vsub.s32 %v5772, %v5775
        %vm5777 = vcmp.lt.s32.totalorder %v5776, 0
        %v5778 = vsub.s32 0, %v5776
        %v5779 = vsel %vm5777, %v5778, %v5776
        %v5780 = vclz %v5779
        %v5781 = vsub.s32 %v5780, 2
        %vm5782 = vcmp.gt.s32.totalorder 0, %v5781
        %v5783 = vsel %vm5782, 0, %v5781
        %v5784 = vsub.s32 32, %v5783
        %v5785 = vshll.u32 %v5776, %v5783
        %v5786 = vshrl.u32 %v5768, %v5784
        %v5787 = vor.u32 %v5785, %v5786
        %v5788 = vsub.s32 4294967266, %v5783
        %v5789 = vadd.s32 %v5788, 127
        %v5790 = vshll.u32 %v5789, 23
        %v5791 = vor.u32 4788187, %v5790
        %v5792 = vand.u32 2147483647, %v5791
        %v5794 = vcvt.s32.f32 %v5787
        %v5795 = vmul.f32 %v5794, %v5792
        %v5796 = vxor.u32 %v5795, 2147483648
        %v5797 = vsel %vm5714, %v5796, %v5795
        %v5798 = vsub.s32 4, %v5774
        %v5799 = vsel %vm5714, %v5798, %v5774
        %v5800 = vsel %vm5713, %v4359, %v5797
        %v5801 = vsel %vm5713, 0, %v5799
        %v5802 = vcosq.f32.pop %v5800
        %v5803 = vsinq.f32.pop %v5800
        %vm5804 = vweird.f32 %v4359
        %v5805 = vadd.s32 %v5801, 3
        %v5806 = vand.u32 %v5805, 3
        %vm5807 = vcmp.lt.s32.totalorder %v5806, 2
        %vm5808 = vcmp.eq.s32.totalorder %v5806, 0
        %v5809 = vxor.u32 %v5803, 2147483648
        %v5810 = vsel %vm5808, %v5802, %v5809
        %vm5811 = vcmp.eq.s32.totalorder %v5806, 2
        %v5812 = vxor.u32 %v5802, 2147483648
        %v5813 = vsel %vm5811, %v5812, %v5803
        %v5814 = vsel %vm5807, %v5810, %v5813
        %v5815 = vsel %vm5804, nan, %v5814
        %v5816 = vand.u32 2147483647, %v4361
        %vm5817 = vcmp.le.f32.partialorder %v5816, 0.7853982
        %vm5818 = vcmp.lt.s32.totalorder %v4361, 0
        %v5819 = vand.u32 %v4361, 2139095040
        %v5820 = vshrl.u32 %v5819, 23
        %v5821 = vsub.s32 %v5820, 127
        %v5822 = vand.u32 2147483647, %v4361
        %v5823 = vand.u32 %v5822, 8388607
        %v5824 = vor.u32 %v5823, 8388608
        %v5825 = vsub.s32 0, %v5824
        %v5826 = vadd.s32 %v5821, 1
        %vm5827 = vcmp.gt.s32.totalorder %v5826, 0
        %v5828 = vsel %vm5827, %v5826, 0
        %v5829 = vshrl.u32 %v5828, 5
        %v5830 = vand.u32 %v5828, 31
        %v5831 = vsub.s32 32, %v5830
        %v5832 = vshrl.u32 683565275, %v5831
        %v5833 = vshll.u32 683565275, %v5830
        %v5834 = vshrl.u32 2475754826, %v5831
        %v5835 = vor.u32 %v5833, %v5834
        %v5836 = vshll.u32 2475754826, %v5830
        %v5837 = vshrl.u32 2131351028, %v5831
        %v5838 = vor.u32 %v5836, %v5837
        %v5839 = vshll.u32 2131351028, %v5830
        %v5840 = vshrl.u32 2102212464, %v5831
        %v5841 = vor.u32 %v5839, %v5840
        %v5842 = vshll.u32 2102212464, %v5830
        %v5843 = vshrl.u32 920167782, %v5831
        %v5844 = vor.u32 %v5842, %v5843
        %v5845 = vshll.u32 920167782, %v5830
        %v5846 = vshrl.u32 1326507024, %v5831
        %v5847 = vor.u32 %v5845, %v5846
        %vm5848 = vcmp.lt.s32.totalorder %v5829, 1
        %vm5849 = vcmp.lt.s32.totalorder %v5829, 2
        %vm5850 = vcmp.lt.s32.totalorder %v5829, 3
        %vm5851 = vcmp.lt.s32.totalorder %v5829, 4
        %v5852 = vsel %vm5848, %v5832, %v5835
        %v5853 = vsel %vm5851, %v5841, 2102212464
        %v5854 = vsel %vm5850, %v5838, %v5853
        %v5855 = vsel %vm5849, %v5852, %v5854
        %v5856 = vsel %vm5848, %v5835, %v5838
        %v5857 = vsel %vm5851, %v5844, 920167782
        %v5858 = vsel %vm5850, %v5841, %v5857
        %v5859 = vsel %vm5849, %v5856, %v5858
        %v5860 = vsel %vm5848, %v5838, %v5841
        %v5861 = vsel %vm5851, %v5847, 1326507024
        %v5862 = vsel %vm5850, %v5844, %v5861
        %v5863 = vsel %vm5849, %v5860, %v5862
        %v5864 = vshll.u32 %v5824, 8
        %v5865 = vmul.u32.u64.compose %v5864, %v5863
        %v5866 = vextract.low.u32 %v5865
        %v5867 = vextract.high.u32 %v5865
        %v5868 = vmul.u32.u64.compose %v5864, %v5859
        %v5869 = vextract.low.u32 %v5868
        %v5870 = vextract.high.u32 %v5868
        %v5871 = vmul.u32 %v5864, %v5855
        %v5872 = vadd.s32 %v5867, %v5869
        %vm5873 = vc.u32 %v5867, %v5869
        %v5874 = vadd.s32 %v5870, 1
        %v5875 = vsel %vm5873, %v5874, %v5870
        %v5876 = vadd.s32 %v5871, %v5875
        %v5877 = vadd.s32 %v5876, 536870912
        %v5878 = vshrl.u32 %v5877, 30
        %v5879 = vshll.u32 %v5878, 30
        %v5880 = vsub.s32 %v5876, %v5879
        %vm5881 = vcmp.lt.s32.totalorder %v5880, 0
        %v5882 = vsub.s32 0, %v5880
        %v5883 = vsel %vm5881, %v5882, %v5880
        %v5884 = vclz %v5883
        %v5885 = vsub.s32 %v5884, 2
        %vm5886 = vcmp.gt.s32.totalorder 0, %v5885
        %v5887 = vsel %vm5886, 0, %v5885
        %v5888 = vsub.s32 32, %v5887
        %v5889 = vshll.u32 %v5880, %v5887
        %v5890 = vshrl.u32 %v5872, %v5888
        %v5891 = vor.u32 %v5889, %v5890
        %v5892 = vsub.s32 4294967266, %v5887
        %v5893 = vadd.s32 %v5892, 127
        %v5894 = vshll.u32 %v5893, 23
        %v5895 = vor.u32 4788187, %v5894
        %v5896 = vand.u32 2147483647, %v5895
        %v5898 = vcvt.s32.f32 %v5891
        %v5899 = vmul.f32 %v5898, %v5896
        %v5900 = vxor.u32 %v5899, 2147483648
        %v5901 = vsel %vm5818, %v5900, %v5899
        %v5902 = vsub.s32 4, %v5878
        %v5903 = vsel %vm5818, %v5902, %v5878
        %v5904 = vsel %vm5817, %v4361, %v5901
        %v5905 = vsel %vm5817, 0, %v5903
        %v5906 = vcosq.f32.pop %v5904
        %v5907 = vsinq.f32.pop %v5904
        %vm5908 = vweird.f32 %v4361
        %v5909 = vadd.s32 %v5905, 3
        %v5910 = vand.u32 %v5909, 3
        %vm5911 = vcmp.lt.s32.totalorder %v5910, 2
        %vm5912 = vcmp.eq.s32.totalorder %v5910, 0
        %v5913 = vxor.u32 %v5907, 2147483648
        %v5914 = vsel %vm5912, %v5906, %v5913
        %vm5915 = vcmp.eq.s32.totalorder %v5910, 2
        %v5916 = vxor.u32 %v5906, 2147483648
        %v5917 = vsel %vm5915, %v5916, %v5907
        %v5918 = vsel %vm5911, %v5914, %v5917
        %v5919 = vsel %vm5908, nan, %v5918
        %v5920 = vand.u32 2147483647, %v4448
        %vm5921 = vcmp.le.f32.partialorder %v5920, 0.7853982
        %vm5922 = vcmp.lt.s32.totalorder %v4448, 0
        %v5923 = vand.u32 %v4448, 2139095040
        %v5924 = vshrl.u32 %v5923, 23
        %v5925 = vsub.s32 %v5924, 127
        %v5926 = vand.u32 2147483647, %v4448
        %v5927 = vand.u32 %v5926, 8388607
        %v5928 = vor.u32 %v5927, 8388608
        %v5929 = vsub.s32 0, %v5928
        %v5930 = vadd.s32 %v5925, 1
        %vm5931 = vcmp.gt.s32.totalorder %v5930, 0
        %v5932 = vsel %vm5931, %v5930, 0
        %v5933 = vshrl.u32 %v5932, 5
        %v5934 = vand.u32 %v5932, 31
        %v5935 = vsub.s32 32, %v5934
        %v5936 = vshrl.u32 683565275, %v5935
        %v5937 = vshll.u32 683565275, %v5934
        %v5938 = vshrl.u32 2475754826, %v5935
        %v5939 = vor.u32 %v5937, %v5938
        %v5940 = vshll.u32 2475754826, %v5934
        %v5941 = vshrl.u32 2131351028, %v5935
        %v5942 = vor.u32 %v5940, %v5941
        %v5943 = vshll.u32 2131351028, %v5934
        %v5944 = vshrl.u32 2102212464, %v5935
        %v5945 = vor.u32 %v5943, %v5944
        %v5946 = vshll.u32 2102212464, %v5934
        %v5947 = vshrl.u32 920167782, %v5935
        %v5948 = vor.u32 %v5946, %v5947
        %v5949 = vshll.u32 920167782, %v5934
        %v5950 = vshrl.u32 1326507024, %v5935
        %v5951 = vor.u32 %v5949, %v5950
        %vm5952 = vcmp.lt.s32.totalorder %v5933, 1
        %vm5953 = vcmp.lt.s32.totalorder %v5933, 2
        %vm5954 = vcmp.lt.s32.totalorder %v5933, 3
        %vm5955 = vcmp.lt.s32.totalorder %v5933, 4
        %v5956 = vsel %vm5952, %v5936, %v5939
        %v5957 = vsel %vm5955, %v5945, 2102212464
        %v5958 = vsel %vm5954, %v5942, %v5957
        %v5959 = vsel %vm5953, %v5956, %v5958
        %v5960 = vsel %vm5952, %v5939, %v5942
        %v5961 = vsel %vm5955, %v5948, 920167782
        %v5962 = vsel %vm5954, %v5945, %v5961
        %v5963 = vsel %vm5953, %v5960, %v5962
        %v5964 = vsel %vm5952, %v5942, %v5945
        %v5965 = vsel %vm5955, %v5951, 1326507024
        %v5966 = vsel %vm5954, %v5948, %v5965
        %v5967 = vsel %vm5953, %v5964, %v5966
        %v5968 = vshll.u32 %v5928, 8
        %v5969 = vmul.u32.u64.compose %v5968, %v5967
        %v5970 = vextract.low.u32 %v5969
        %v5971 = vextract.high.u32 %v5969
        %v5972 = vmul.u32.u64.compose %v5968, %v5963
        %v5973 = vextract.low.u32 %v5972
        %v5974 = vextract.high.u32 %v5972
        %v5975 = vmul.u32 %v5968, %v5959
        %v5976 = vadd.s32 %v5971, %v5973
        %vm5977 = vc.u32 %v5971, %v5973
        %v5978 = vadd.s32 %v5974, 1
        %v5979 = vsel %vm5977, %v5978, %v5974
        %v5980 = vadd.s32 %v5975, %v5979
        %v5981 = vadd.s32 %v5980, 536870912
        %v5982 = vshrl.u32 %v5981, 30
        %v5983 = vshll.u32 %v5982, 30
        %v5984 = vsub.s32 %v5980, %v5983
        %vm5985 = vcmp.lt.s32.totalorder %v5984, 0
        %v5986 = vsub.s32 0, %v5984
        %v5987 = vsel %vm5985, %v5986, %v5984
        %v5988 = vclz %v5987
        %v5989 = vsub.s32 %v5988, 2
        %vm5990 = vcmp.gt.s32.totalorder 0, %v5989
        %v5991 = vsel %vm5990, 0, %v5989
        %v5992 = vsub.s32 32, %v5991
        %v5993 = vshll.u32 %v5984, %v5991
        %v5994 = vshrl.u32 %v5976, %v5992
        %v5995 = vor.u32 %v5993, %v5994
        %v5996 = vsub.s32 4294967266, %v5991
        %v5997 = vadd.s32 %v5996, 127
        %v5998 = vshll.u32 %v5997, 23
        %v5999 = vor.u32 4788187, %v5998
        %v6000 = vand.u32 2147483647, %v5999
        %v6002 = vcvt.s32.f32 %v5995
        %v6003 = vmul.f32 %v6002, %v6000
        %v6004 = vxor.u32 %v6003, 2147483648
        %v6005 = vsel %vm5922, %v6004, %v6003
        %v6006 = vsub.s32 4, %v5982
        %v6007 = vsel %vm5922, %v6006, %v5982
        %v6008 = vsel %vm5921, %v4448, %v6005
        %v6009 = vsel %vm5921, 0, %v6007
        %v6010 = vcosq.f32.pop %v6008
        %v6011 = vsinq.f32.pop %v6008
        %vm6012 = vweird.f32 %v4448
        %v6013 = vadd.s32 %v6009, 3
        %v6014 = vand.u32 %v6013, 3
        %vm6015 = vcmp.lt.s32.totalorder %v6014, 2
        %vm6016 = vcmp.eq.s32.totalorder %v6014, 0
        %v6017 = vxor.u32 %v6011, 2147483648
        %v6018 = vsel %vm6016, %v6010, %v6017
        %vm6019 = vcmp.eq.s32.totalorder %v6014, 2
        %v6020 = vxor.u32 %v6010, 2147483648
        %v6021 = vsel %vm6019, %v6020, %v6011
        %v6022 = vsel %vm6015, %v6018, %v6021
        %v6023 = vsel %vm6012, nan, %v6022
        %v6024 = vand.u32 2147483647, %v4450
        %vm6025 = vcmp.le.f32.partialorder %v6024, 0.7853982
        %vm6026 = vcmp.lt.s32.totalorder %v4450, 0
        %v6027 = vand.u32 %v4450, 2139095040
        %v6028 = vshrl.u32 %v6027, 23
        %v6029 = vsub.s32 %v6028, 127
        %v6030 = vand.u32 2147483647, %v4450
        %v6031 = vand.u32 %v6030, 8388607
        %v6032 = vor.u32 %v6031, 8388608
        %v6033 = vsub.s32 0, %v6032
        %v6034 = vadd.s32 %v6029, 1
        %vm6035 = vcmp.gt.s32.totalorder %v6034, 0
        %v6036 = vsel %vm6035, %v6034, 0
        %v6037 = vshrl.u32 %v6036, 5
        %v6038 = vand.u32 %v6036, 31
        %v6039 = vsub.s32 32, %v6038
        %v6040 = vshrl.u32 683565275, %v6039
        %v6041 = vshll.u32 683565275, %v6038
        %v6042 = vshrl.u32 2475754826, %v6039
        %v6043 = vor.u32 %v6041, %v6042
        %v6044 = vshll.u32 2475754826, %v6038
        %v6045 = vshrl.u32 2131351028, %v6039
        %v6046 = vor.u32 %v6044, %v6045
        %v6047 = vshll.u32 2131351028, %v6038
        %v6048 = vshrl.u32 2102212464, %v6039
        %v6049 = vor.u32 %v6047, %v6048
        %v6050 = vshll.u32 2102212464, %v6038
        %v6051 = vshrl.u32 920167782, %v6039
        %v6052 = vor.u32 %v6050, %v6051
        %v6053 = vshll.u32 920167782, %v6038
        %v6054 = vshrl.u32 1326507024, %v6039
        %v6055 = vor.u32 %v6053, %v6054
        %vm6056 = vcmp.lt.s32.totalorder %v6037, 1
        %vm6057 = vcmp.lt.s32.totalorder %v6037, 2
        %vm6058 = vcmp.lt.s32.totalorder %v6037, 3
        %vm6059 = vcmp.lt.s32.totalorder %v6037, 4
        %v6060 = vsel %vm6056, %v6040, %v6043
        %v6061 = vsel %vm6059, %v6049, 2102212464
        %v6062 = vsel %vm6058, %v6046, %v6061
        %v6063 = vsel %vm6057, %v6060, %v6062
        %v6064 = vsel %vm6056, %v6043, %v6046
        %v6065 = vsel %vm6059, %v6052, 920167782
        %v6066 = vsel %vm6058, %v6049, %v6065
        %v6067 = vsel %vm6057, %v6064, %v6066
        %v6068 = vsel %vm6056, %v6046, %v6049
        %v6069 = vsel %vm6059, %v6055, 1326507024
        %v6070 = vsel %vm6058, %v6052, %v6069
        %v6071 = vsel %vm6057, %v6068, %v6070
        %v6072 = vshll.u32 %v6032, 8
        %v6073 = vmul.u32.u64.compose %v6072, %v6071
        %v6074 = vextract.low.u32 %v6073
        %v6075 = vextract.high.u32 %v6073
        %v6076 = vmul.u32.u64.compose %v6072, %v6067
        %v6077 = vextract.low.u32 %v6076
        %v6078 = vextract.high.u32 %v6076
        %v6079 = vmul.u32 %v6072, %v6063
        %v6080 = vadd.s32 %v6075, %v6077
        %vm6081 = vc.u32 %v6075, %v6077
        %v6082 = vadd.s32 %v6078, 1
        %v6083 = vsel %vm6081, %v6082, %v6078
        %v6084 = vadd.s32 %v6079, %v6083
        %v6085 = vadd.s32 %v6084, 536870912
        %v6086 = vshrl.u32 %v6085, 30
        %v6087 = vshll.u32 %v6086, 30
        %v6088 = vsub.s32 %v6084, %v6087
        %vm6089 = vcmp.lt.s32.totalorder %v6088, 0
        %v6090 = vsub.s32 0, %v6088
        %v6091 = vsel %vm6089, %v6090, %v6088
        %v6092 = vclz %v6091
        %v6093 = vsub.s32 %v6092, 2
        %vm6094 = vcmp.gt.s32.totalorder 0, %v6093
        %v6095 = vsel %vm6094, 0, %v6093
        %v6096 = vsub.s32 32, %v6095
        %v6097 = vshll.u32 %v6088, %v6095
        %v6098 = vshrl.u32 %v6080, %v6096
        %v6099 = vor.u32 %v6097, %v6098
        %v6100 = vsub.s32 4294967266, %v6095
        %v6101 = vadd.s32 %v6100, 127
        %v6102 = vshll.u32 %v6101, 23
        %v6103 = vor.u32 4788187, %v6102
        %v6104 = vand.u32 2147483647, %v6103
        %v6106 = vcvt.s32.f32 %v6099
        %v6107 = vmul.f32 %v6106, %v6104
        %v6108 = vxor.u32 %v6107, 2147483648
        %v6109 = vsel %vm6026, %v6108, %v6107
        %v6110 = vsub.s32 4, %v6086
        %v6111 = vsel %vm6026, %v6110, %v6086
        %v6112 = vsel %vm6025, %v4450, %v6109
        %v6113 = vsel %vm6025, 0, %v6111
        %v6114 = vcosq.f32.pop %v6112
        %v6115 = vsinq.f32.pop %v6112
        %vm6116 = vweird.f32 %v4450
        %v6117 = vadd.s32 %v6113, 3
        %v6118 = vand.u32 %v6117, 3
        %vm6119 = vcmp.lt.s32.totalorder %v6118, 2
        %vm6120 = vcmp.eq.s32.totalorder %v6118, 0
        %v6121 = vxor.u32 %v6115, 2147483648
        %v6122 = vsel %vm6120, %v6114, %v6121
        %vm6123 = vcmp.eq.s32.totalorder %v6118, 2
        %v6124 = vxor.u32 %v6114, 2147483648
        %v6125 = vsel %vm6123, %v6124, %v6115
        %v6126 = vsel %vm6119, %v6122, %v6125
        %v6127 = vsel %vm6116, nan, %v6126
        %v6128 = vand.u32 2147483647, %v4187
        %vm6129 = vcmp.le.f32.partialorder %v6128, 0.7853982
        %vm6130 = vcmp.lt.s32.totalorder %v4187, 0
        %v6131 = vand.u32 %v4187, 2139095040
        %v6132 = vshrl.u32 %v6131, 23
        %v6133 = vsub.s32 %v6132, 127
        %v6134 = vand.u32 2147483647, %v4187
        %v6135 = vand.u32 %v6134, 8388607
        %v6136 = vor.u32 %v6135, 8388608
        %v6137 = vsub.s32 0, %v6136
        %v6138 = vadd.s32 %v6133, 1
        %vm6139 = vcmp.gt.s32.totalorder %v6138, 0
        %v6140 = vsel %vm6139, %v6138, 0
        %v6141 = vshrl.u32 %v6140, 5
        %v6142 = vand.u32 %v6140, 31
        %v6143 = vsub.s32 32, %v6142
        %v6144 = vshrl.u32 683565275, %v6143
        %v6145 = vshll.u32 683565275, %v6142
        %v6146 = vshrl.u32 2475754826, %v6143
        %v6147 = vor.u32 %v6145, %v6146
        %v6148 = vshll.u32 2475754826, %v6142
        %v6149 = vshrl.u32 2131351028, %v6143
        %v6150 = vor.u32 %v6148, %v6149
        %v6151 = vshll.u32 2131351028, %v6142
        %v6152 = vshrl.u32 2102212464, %v6143
        %v6153 = vor.u32 %v6151, %v6152
        %v6154 = vshll.u32 2102212464, %v6142
        %v6155 = vshrl.u32 920167782, %v6143
        %v6156 = vor.u32 %v6154, %v6155
        %v6157 = vshll.u32 920167782, %v6142
        %v6158 = vshrl.u32 1326507024, %v6143
        %v6159 = vor.u32 %v6157, %v6158
        %vm6160 = vcmp.lt.s32.totalorder %v6141, 1
        %vm6161 = vcmp.lt.s32.totalorder %v6141, 2
        %vm6162 = vcmp.lt.s32.totalorder %v6141, 3
        %vm6163 = vcmp.lt.s32.totalorder %v6141, 4
        %v6164 = vsel %vm6160, %v6144, %v6147
        %v6165 = vsel %vm6163, %v6153, 2102212464
        %v6166 = vsel %vm6162, %v6150, %v6165
        %v6167 = vsel %vm6161, %v6164, %v6166
        %v6168 = vsel %vm6160, %v6147, %v6150
        %v6169 = vsel %vm6163, %v6156, 920167782
        %v6170 = vsel %vm6162, %v6153, %v6169
        %v6171 = vsel %vm6161, %v6168, %v6170
        %v6172 = vsel %vm6160, %v6150, %v6153
        %v6173 = vsel %vm6163, %v6159, 1326507024
        %v6174 = vsel %vm6162, %v6156, %v6173
        %v6175 = vsel %vm6161, %v6172, %v6174
        %v6176 = vshll.u32 %v6136, 8
        %v6177 = vmul.u32.u64.compose %v6176, %v6175
        %v6178 = vextract.low.u32 %v6177
        %v6179 = vextract.high.u32 %v6177
        %v6180 = vmul.u32.u64.compose %v6176, %v6171
        %v6181 = vextract.low.u32 %v6180
        %v6182 = vextract.high.u32 %v6180
        %v6183 = vmul.u32 %v6176, %v6167
        %v6184 = vadd.s32 %v6179, %v6181
        %vm6185 = vc.u32 %v6179, %v6181
        %v6186 = vadd.s32 %v6182, 1
        %v6187 = vsel %vm6185, %v6186, %v6182
        %v6188 = vadd.s32 %v6183, %v6187
        %v6189 = vadd.s32 %v6188, 536870912
        %v6190 = vshrl.u32 %v6189, 30
        %v6191 = vshll.u32 %v6190, 30
        %v6192 = vsub.s32 %v6188, %v6191
        %vm6193 = vcmp.lt.s32.totalorder %v6192, 0
        %v6194 = vsub.s32 0, %v6192
        %v6195 = vsel %vm6193, %v6194, %v6192
        %v6196 = vclz %v6195
        %v6197 = vsub.s32 %v6196, 2
        %vm6198 = vcmp.gt.s32.totalorder 0, %v6197
        %v6199 = vsel %vm6198, 0, %v6197
        %v6200 = vsub.s32 32, %v6199
        %v6201 = vshll.u32 %v6192, %v6199
        %v6202 = vshrl.u32 %v6184, %v6200
        %v6203 = vor.u32 %v6201, %v6202
        %v6204 = vsub.s32 4294967266, %v6199
        %v6205 = vadd.s32 %v6204, 127
        %v6206 = vshll.u32 %v6205, 23
        %v6207 = vor.u32 4788187, %v6206
        %v6208 = vand.u32 2147483647, %v6207
        %v6210 = vcvt.s32.f32 %v6203
        %v6211 = vmul.f32 %v6210, %v6208
        %v6212 = vxor.u32 %v6211, 2147483648
        %v6213 = vsel %vm6130, %v6212, %v6211
        %v6214 = vsub.s32 4, %v6190
        %v6215 = vsel %vm6130, %v6214, %v6190
        %v6216 = vsel %vm6129, %v4187, %v6213
        %v6217 = vsel %vm6129, 0, %v6215
        %v6218 = vcosq.f32.pop %v6216
        %v6219 = vsinq.f32.pop %v6216
        %vm6220 = vweird.f32 %v4187
        %v6221 = vadd.s32 %v6217, 3
        %v6222 = vand.u32 %v6221, 3
        %vm6223 = vcmp.lt.s32.totalorder %v6222, 2
        %vm6224 = vcmp.eq.s32.totalorder %v6222, 0
        %v6225 = vxor.u32 %v6219, 2147483648
        %v6226 = vsel %vm6224, %v6218, %v6225
        %vm6227 = vcmp.eq.s32.totalorder %v6222, 2
        %v6228 = vxor.u32 %v6218, 2147483648
        %v6229 = vsel %vm6227, %v6228, %v6219
        %v6230 = vsel %vm6223, %v6226, %v6229
        %v6231 = vsel %vm6220, nan, %v6230
        %v6232 = vand.u32 2147483647, %v4189
        %vm6233 = vcmp.le.f32.partialorder %v6232, 0.7853982
        %vm6234 = vcmp.lt.s32.totalorder %v4189, 0
        %v6235 = vand.u32 %v4189, 2139095040
        %v6236 = vshrl.u32 %v6235, 23
        %v6237 = vsub.s32 %v6236, 127
        %v6238 = vand.u32 2147483647, %v4189
        %v6239 = vand.u32 %v6238, 8388607
        %v6240 = vor.u32 %v6239, 8388608
        %v6241 = vsub.s32 0, %v6240
        %v6242 = vadd.s32 %v6237, 1
        %vm6243 = vcmp.gt.s32.totalorder %v6242, 0
        %v6244 = vsel %vm6243, %v6242, 0
        %v6245 = vshrl.u32 %v6244, 5
        %v6246 = vand.u32 %v6244, 31
        %v6247 = vsub.s32 32, %v6246
        %v6248 = vshrl.u32 683565275, %v6247
        %v6249 = vshll.u32 683565275, %v6246
        %v6250 = vshrl.u32 2475754826, %v6247
        %v6251 = vor.u32 %v6249, %v6250
        %v6252 = vshll.u32 2475754826, %v6246
        %v6253 = vshrl.u32 2131351028, %v6247
        %v6254 = vor.u32 %v6252, %v6253
        %v6255 = vshll.u32 2131351028, %v6246
        %v6256 = vshrl.u32 2102212464, %v6247
        %v6257 = vor.u32 %v6255, %v6256
        %v6258 = vshll.u32 2102212464, %v6246
        %v6259 = vshrl.u32 920167782, %v6247
        %v6260 = vor.u32 %v6258, %v6259
        %v6261 = vshll.u32 920167782, %v6246
        %v6262 = vshrl.u32 1326507024, %v6247
        %v6263 = vor.u32 %v6261, %v6262
        %vm6264 = vcmp.lt.s32.totalorder %v6245, 1
        %vm6265 = vcmp.lt.s32.totalorder %v6245, 2
        %vm6266 = vcmp.lt.s32.totalorder %v6245, 3
        %vm6267 = vcmp.lt.s32.totalorder %v6245, 4
        %v6268 = vsel %vm6264, %v6248, %v6251
        %v6269 = vsel %vm6267, %v6257, 2102212464
        %v6270 = vsel %vm6266, %v6254, %v6269
        %v6271 = vsel %vm6265, %v6268, %v6270
        %v6272 = vsel %vm6264, %v6251, %v6254
        %v6273 = vsel %vm6267, %v6260, 920167782
        %v6274 = vsel %vm6266, %v6257, %v6273
        %v6275 = vsel %vm6265, %v6272, %v6274
        %v6276 = vsel %vm6264, %v6254, %v6257
        %v6277 = vsel %vm6267, %v6263, 1326507024
        %v6278 = vsel %vm6266, %v6260, %v6277
        %v6279 = vsel %vm6265, %v6276, %v6278
        %v6280 = vshll.u32 %v6240, 8
        %v6281 = vmul.u32.u64.compose %v6280, %v6279
        %v6282 = vextract.low.u32 %v6281
        %v6283 = vextract.high.u32 %v6281
        %v6284 = vmul.u32.u64.compose %v6280, %v6275
        %v6285 = vextract.low.u32 %v6284
        %v6286 = vextract.high.u32 %v6284
        %v6287 = vmul.u32 %v6280, %v6271
        %v6288 = vadd.s32 %v6283, %v6285
        %vm6289 = vc.u32 %v6283, %v6285
        %v6290 = vadd.s32 %v6286, 1
        %v6291 = vsel %vm6289, %v6290, %v6286
        %v6292 = vadd.s32 %v6287, %v6291
        %v6293 = vadd.s32 %v6292, 536870912
        %v6294 = vshrl.u32 %v6293, 30
        %v6295 = vshll.u32 %v6294, 30
        %v6296 = vsub.s32 %v6292, %v6295
        %vm6297 = vcmp.lt.s32.totalorder %v6296, 0
        %v6298 = vsub.s32 0, %v6296
        %v6299 = vsel %vm6297, %v6298, %v6296
        %v6300 = vclz %v6299
        %v6301 = vsub.s32 %v6300, 2
        %vm6302 = vcmp.gt.s32.totalorder 0, %v6301
        %v6303 = vsel %vm6302, 0, %v6301
        %v6304 = vsub.s32 32, %v6303
        %v6305 = vshll.u32 %v6296, %v6303
        %v6306 = vshrl.u32 %v6288, %v6304
        %v6307 = vor.u32 %v6305, %v6306
        %v6308 = vsub.s32 4294967266, %v6303
        %v6309 = vadd.s32 %v6308, 127
        %v6310 = vshll.u32 %v6309, 23
        %v6311 = vor.u32 4788187, %v6310
        %v6312 = vand.u32 2147483647, %v6311
        %v6314 = vcvt.s32.f32 %v6307
        %v6315 = vmul.f32 %v6314, %v6312
        %v6316 = vxor.u32 %v6315, 2147483648
        %v6317 = vsel %vm6234, %v6316, %v6315
        %v6318 = vsub.s32 4, %v6294
        %v6319 = vsel %vm6234, %v6318, %v6294
        %v6320 = vsel %vm6233, %v4189, %v6317
        %v6321 = vsel %vm6233, 0, %v6319
        %v6322 = vcosq.f32.pop %v6320
        %v6323 = vsinq.f32.pop %v6320
        %vm6324 = vweird.f32 %v4189
        %v6325 = vadd.s32 %v6321, 3
        %v6326 = vand.u32 %v6325, 3
        %vm6327 = vcmp.lt.s32.totalorder %v6326, 2
        %vm6328 = vcmp.eq.s32.totalorder %v6326, 0
        %v6329 = vxor.u32 %v6323, 2147483648
        %v6330 = vsel %vm6328, %v6322, %v6329
        %vm6331 = vcmp.eq.s32.totalorder %v6326, 2
        %v6332 = vxor.u32 %v6322, 2147483648
        %v6333 = vsel %vm6331, %v6332, %v6323
        %v6334 = vsel %vm6327, %v6330, %v6333
        %v6335 = vsel %vm6324, nan, %v6334
        %v6336 = vand.u32 2147483647, %v4276
        %vm6337 = vcmp.le.f32.partialorder %v6336, 0.7853982
        %vm6338 = vcmp.lt.s32.totalorder %v4276, 0
        %v6339 = vand.u32 %v4276, 2139095040
        %v6340 = vshrl.u32 %v6339, 23
        %v6341 = vsub.s32 %v6340, 127
        %v6342 = vand.u32 2147483647, %v4276
        %v6343 = vand.u32 %v6342, 8388607
        %v6344 = vor.u32 %v6343, 8388608
        %v6345 = vsub.s32 0, %v6344
        %v6346 = vadd.s32 %v6341, 1
        %vm6347 = vcmp.gt.s32.totalorder %v6346, 0
        %v6348 = vsel %vm6347, %v6346, 0
        %v6349 = vshrl.u32 %v6348, 5
        %v6350 = vand.u32 %v6348, 31
        %v6351 = vsub.s32 32, %v6350
        %v6352 = vshrl.u32 683565275, %v6351
        %v6353 = vshll.u32 683565275, %v6350
        %v6354 = vshrl.u32 2475754826, %v6351
        %v6355 = vor.u32 %v6353, %v6354
        %v6356 = vshll.u32 2475754826, %v6350
        %v6357 = vshrl.u32 2131351028, %v6351
        %v6358 = vor.u32 %v6356, %v6357
        %v6359 = vshll.u32 2131351028, %v6350
        %v6360 = vshrl.u32 2102212464, %v6351
        %v6361 = vor.u32 %v6359, %v6360
        %v6362 = vshll.u32 2102212464, %v6350
        %v6363 = vshrl.u32 920167782, %v6351
        %v6364 = vor.u32 %v6362, %v6363
        %v6365 = vshll.u32 920167782, %v6350
        %v6366 = vshrl.u32 1326507024, %v6351
        %v6367 = vor.u32 %v6365, %v6366
        %vm6368 = vcmp.lt.s32.totalorder %v6349, 1
        %vm6369 = vcmp.lt.s32.totalorder %v6349, 2
        %vm6370 = vcmp.lt.s32.totalorder %v6349, 3
        %vm6371 = vcmp.lt.s32.totalorder %v6349, 4
        %v6372 = vsel %vm6368, %v6352, %v6355
        %v6373 = vsel %vm6371, %v6361, 2102212464
        %v6374 = vsel %vm6370, %v6358, %v6373
        %v6375 = vsel %vm6369, %v6372, %v6374
        %v6376 = vsel %vm6368, %v6355, %v6358
        %v6377 = vsel %vm6371, %v6364, 920167782
        %v6378 = vsel %vm6370, %v6361, %v6377
        %v6379 = vsel %vm6369, %v6376, %v6378
        %v6380 = vsel %vm6368, %v6358, %v6361
        %v6381 = vsel %vm6371, %v6367, 1326507024
        %v6382 = vsel %vm6370, %v6364, %v6381
        %v6383 = vsel %vm6369, %v6380, %v6382
        %v6384 = vshll.u32 %v6344, 8
        %v6385 = vmul.u32.u64.compose %v6384, %v6383
        %v6386 = vextract.low.u32 %v6385
        %v6387 = vextract.high.u32 %v6385
        %v6388 = vmul.u32.u64.compose %v6384, %v6379
        %v6389 = vextract.low.u32 %v6388
        %v6390 = vextract.high.u32 %v6388
        %v6391 = vmul.u32 %v6384, %v6375
        %v6392 = vadd.s32 %v6387, %v6389
        %vm6393 = vc.u32 %v6387, %v6389
        %v6394 = vadd.s32 %v6390, 1
        %v6395 = vsel %vm6393, %v6394, %v6390
        %v6396 = vadd.s32 %v6391, %v6395
        %v6397 = vadd.s32 %v6396, 536870912
        %v6398 = vshrl.u32 %v6397, 30
        %v6399 = vshll.u32 %v6398, 30
        %v6400 = vsub.s32 %v6396, %v6399
        %vm6401 = vcmp.lt.s32.totalorder %v6400, 0
        %v6402 = vsub.s32 0, %v6400
        %v6403 = vsel %vm6401, %v6402, %v6400
        %v6404 = vclz %v6403
        %v6405 = vsub.s32 %v6404, 2
        %vm6406 = vcmp.gt.s32.totalorder 0, %v6405
        %v6407 = vsel %vm6406, 0, %v6405
        %v6408 = vsub.s32 32, %v6407
        %v6409 = vshll.u32 %v6400, %v6407
        %v6410 = vshrl.u32 %v6392, %v6408
        %v6411 = vor.u32 %v6409, %v6410
        %v6412 = vsub.s32 4294967266, %v6407
        %v6413 = vadd.s32 %v6412, 127
        %v6414 = vshll.u32 %v6413, 23
        %v6415 = vor.u32 4788187, %v6414
        %v6416 = vand.u32 2147483647, %v6415
        %v6418 = vcvt.s32.f32 %v6411
        %v6419 = vmul.f32 %v6418, %v6416
        %v6420 = vxor.u32 %v6419, 2147483648
        %v6421 = vsel %vm6338, %v6420, %v6419
        %v6422 = vsub.s32 4, %v6398
        %v6423 = vsel %vm6338, %v6422, %v6398
        %v6424 = vsel %vm6337, %v4276, %v6421
        %v6425 = vsel %vm6337, 0, %v6423
        %v6426 = vcosq.f32.pop %v6424
        %v6427 = vsinq.f32.pop %v6424
        %vm6428 = vweird.f32 %v4276
        %v6429 = vadd.s32 %v6425, 3
        %v6430 = vand.u32 %v6429, 3
        %vm6431 = vcmp.lt.s32.totalorder %v6430, 2
        %vm6432 = vcmp.eq.s32.totalorder %v6430, 0
        %v6433 = vxor.u32 %v6427, 2147483648
        %v6434 = vsel %vm6432, %v6426, %v6433
        %vm6435 = vcmp.eq.s32.totalorder %v6430, 2
        %v6436 = vxor.u32 %v6426, 2147483648
        %v6437 = vsel %vm6435, %v6436, %v6427
        %v6438 = vsel %vm6431, %v6434, %v6437
        %v6439 = vsel %vm6428, nan, %v6438
        %v6440 = vand.u32 2147483647, %v4278
        %vm6441 = vcmp.le.f32.partialorder %v6440, 0.7853982
        %vm6442 = vcmp.lt.s32.totalorder %v4278, 0
        %v6443 = vand.u32 %v4278, 2139095040
        %v6444 = vshrl.u32 %v6443, 23
        %v6445 = vsub.s32 %v6444, 127
        %v6446 = vand.u32 2147483647, %v4278
        %v6447 = vand.u32 %v6446, 8388607
        %v6448 = vor.u32 %v6447, 8388608
        %v6449 = vsub.s32 0, %v6448
        %v6450 = vadd.s32 %v6445, 1
        %vm6451 = vcmp.gt.s32.totalorder %v6450, 0
        %v6452 = vsel %vm6451, %v6450, 0
        %v6453 = vshrl.u32 %v6452, 5
        %v6454 = vand.u32 %v6452, 31
        %v6455 = vsub.s32 32, %v6454
        %v6456 = vshrl.u32 683565275, %v6455
        %v6457 = vshll.u32 683565275, %v6454
        %v6458 = vshrl.u32 2475754826, %v6455
        %v6459 = vor.u32 %v6457, %v6458
        %v6460 = vshll.u32 2475754826, %v6454
        %v6461 = vshrl.u32 2131351028, %v6455
        %v6462 = vor.u32 %v6460, %v6461
        %v6463 = vshll.u32 2131351028, %v6454
        %v6464 = vshrl.u32 2102212464, %v6455
        %v6465 = vor.u32 %v6463, %v6464
        %v6466 = vshll.u32 2102212464, %v6454
        %v6467 = vshrl.u32 920167782, %v6455
        %v6468 = vor.u32 %v6466, %v6467
        %v6469 = vshll.u32 920167782, %v6454
        %v6470 = vshrl.u32 1326507024, %v6455
        %v6471 = vor.u32 %v6469, %v6470
        %vm6472 = vcmp.lt.s32.totalorder %v6453, 1
        %vm6473 = vcmp.lt.s32.totalorder %v6453, 2
        %vm6474 = vcmp.lt.s32.totalorder %v6453, 3
        %vm6475 = vcmp.lt.s32.totalorder %v6453, 4
        %v6476 = vsel %vm6472, %v6456, %v6459
        %v6477 = vsel %vm6475, %v6465, 2102212464
        %v6478 = vsel %vm6474, %v6462, %v6477
        %v6479 = vsel %vm6473, %v6476, %v6478
        %v6480 = vsel %vm6472, %v6459, %v6462
        %v6481 = vsel %vm6475, %v6468, 920167782
        %v6482 = vsel %vm6474, %v6465, %v6481
        %v6483 = vsel %vm6473, %v6480, %v6482
        %v6484 = vsel %vm6472, %v6462, %v6465
        %v6485 = vsel %vm6475, %v6471, 1326507024
        %v6486 = vsel %vm6474, %v6468, %v6485
        %v6487 = vsel %vm6473, %v6484, %v6486
        %v6488 = vshll.u32 %v6448, 8
        %v6489 = vmul.u32.u64.compose %v6488, %v6487
        %v6490 = vextract.low.u32 %v6489
        %v6491 = vextract.high.u32 %v6489
        %v6492 = vmul.u32.u64.compose %v6488, %v6483
        %v6493 = vextract.low.u32 %v6492
        %v6494 = vextract.high.u32 %v6492
        %v6495 = vmul.u32 %v6488, %v6479
        %v6496 = vadd.s32 %v6491, %v6493
        %vm6497 = vc.u32 %v6491, %v6493
        %v6498 = vadd.s32 %v6494, 1
        %v6499 = vsel %vm6497, %v6498, %v6494
        %v6500 = vadd.s32 %v6495, %v6499
        %v6501 = vadd.s32 %v6500, 536870912
        %v6502 = vshrl.u32 %v6501, 30
        %v6503 = vshll.u32 %v6502, 30
        %v6504 = vsub.s32 %v6500, %v6503
        %vm6505 = vcmp.lt.s32.totalorder %v6504, 0
        %v6506 = vsub.s32 0, %v6504
        %v6507 = vsel %vm6505, %v6506, %v6504
        %v6508 = vclz %v6507
        %v6509 = vsub.s32 %v6508, 2
        %vm6510 = vcmp.gt.s32.totalorder 0, %v6509
        %v6511 = vsel %vm6510, 0, %v6509
        %v6512 = vsub.s32 32, %v6511
        %v6513 = vshll.u32 %v6504, %v6511
        %v6514 = vshrl.u32 %v6496, %v6512
        %v6515 = vor.u32 %v6513, %v6514
        %v6516 = vsub.s32 4294967266, %v6511
        %v6517 = vadd.s32 %v6516, 127
        %v6518 = vshll.u32 %v6517, 23
        %v6519 = vor.u32 4788187, %v6518
        %v6520 = vand.u32 2147483647, %v6519
        %v6522 = vcvt.s32.f32 %v6515
        %v6523 = vmul.f32 %v6522, %v6520
        %v6524 = vxor.u32 %v6523, 2147483648
        %v6525 = vsel %vm6442, %v6524, %v6523
        %v6526 = vsub.s32 4, %v6502
        %v6527 = vsel %vm6442, %v6526, %v6502
        %v6528 = vsel %vm6441, %v4278, %v6525
        %v6529 = vsel %vm6441, 0, %v6527
        %v6530 = vcosq.f32.pop %v6528
        %v6531 = vsinq.f32.pop %v6528
        %vm6532 = vweird.f32 %v4278
        %v6533 = vadd.s32 %v6529, 3
        %v6534 = vand.u32 %v6533, 3
        %vm6535 = vcmp.lt.s32.totalorder %v6534, 2
        %vm6536 = vcmp.eq.s32.totalorder %v6534, 0
        %v6537 = vxor.u32 %v6531, 2147483648
        %v6538 = vsel %vm6536, %v6530, %v6537
        %vm6539 = vcmp.eq.s32.totalorder %v6534, 2
        %v6540 = vxor.u32 %v6530, 2147483648
        %v6541 = vsel %vm6539, %v6540, %v6531
        %v6542 = vsel %vm6535, %v6538, %v6541
        %v6543 = vsel %vm6532, nan, %v6542
        %v6544 = vand.u32 2147483647, %v4365
        %vm6545 = vcmp.le.f32.partialorder %v6544, 0.7853982
        %vm6546 = vcmp.lt.s32.totalorder %v4365, 0
        %v6547 = vand.u32 %v4365, 2139095040
        %v6548 = vshrl.u32 %v6547, 23
        %v6549 = vsub.s32 %v6548, 127
        %v6550 = vand.u32 2147483647, %v4365
        %v6551 = vand.u32 %v6550, 8388607
        %v6552 = vor.u32 %v6551, 8388608
        %v6553 = vsub.s32 0, %v6552
        %v6554 = vadd.s32 %v6549, 1
        %vm6555 = vcmp.gt.s32.totalorder %v6554, 0
        %v6556 = vsel %vm6555, %v6554, 0
        %v6557 = vshrl.u32 %v6556, 5
        %v6558 = vand.u32 %v6556, 31
        %v6559 = vsub.s32 32, %v6558
        %v6560 = vshrl.u32 683565275, %v6559
        %v6561 = vshll.u32 683565275, %v6558
        %v6562 = vshrl.u32 2475754826, %v6559
        %v6563 = vor.u32 %v6561, %v6562
        %v6564 = vshll.u32 2475754826, %v6558
        %v6565 = vshrl.u32 2131351028, %v6559
        %v6566 = vor.u32 %v6564, %v6565
        %v6567 = vshll.u32 2131351028, %v6558
        %v6568 = vshrl.u32 2102212464, %v6559
        %v6569 = vor.u32 %v6567, %v6568
        %v6570 = vshll.u32 2102212464, %v6558
        %v6571 = vshrl.u32 920167782, %v6559
        %v6572 = vor.u32 %v6570, %v6571
        %v6573 = vshll.u32 920167782, %v6558
        %v6574 = vshrl.u32 1326507024, %v6559
        %v6575 = vor.u32 %v6573, %v6574
        %vm6576 = vcmp.lt.s32.totalorder %v6557, 1
        %vm6577 = vcmp.lt.s32.totalorder %v6557, 2
        %vm6578 = vcmp.lt.s32.totalorder %v6557, 3
        %vm6579 = vcmp.lt.s32.totalorder %v6557, 4
        %v6580 = vsel %vm6576, %v6560, %v6563
        %v6581 = vsel %vm6579, %v6569, 2102212464
        %v6582 = vsel %vm6578, %v6566, %v6581
        %v6583 = vsel %vm6577, %v6580, %v6582
        %v6584 = vsel %vm6576, %v6563, %v6566
        %v6585 = vsel %vm6579, %v6572, 920167782
        %v6586 = vsel %vm6578, %v6569, %v6585
        %v6587 = vsel %vm6577, %v6584, %v6586
        %v6588 = vsel %vm6576, %v6566, %v6569
        %v6589 = vsel %vm6579, %v6575, 1326507024
        %v6590 = vsel %vm6578, %v6572, %v6589
        %v6591 = vsel %vm6577, %v6588, %v6590
        %v6592 = vshll.u32 %v6552, 8
        %v6593 = vmul.u32.u64.compose %v6592, %v6591
        %v6594 = vextract.low.u32 %v6593
        %v6595 = vextract.high.u32 %v6593
        %v6596 = vmul.u32.u64.compose %v6592, %v6587
        %v6597 = vextract.low.u32 %v6596
        %v6598 = vextract.high.u32 %v6596
        %v6599 = vmul.u32 %v6592, %v6583
        %v6600 = vadd.s32 %v6595, %v6597
        %vm6601 = vc.u32 %v6595, %v6597
        %v6602 = vadd.s32 %v6598, 1
        %v6603 = vsel %vm6601, %v6602, %v6598
        %v6604 = vadd.s32 %v6599, %v6603
        %v6605 = vadd.s32 %v6604, 536870912
        %v6606 = vshrl.u32 %v6605, 30
        %v6607 = vshll.u32 %v6606, 30
        %v6608 = vsub.s32 %v6604, %v6607
        %vm6609 = vcmp.lt.s32.totalorder %v6608, 0
        %v6610 = vsub.s32 0, %v6608
        %v6611 = vsel %vm6609, %v6610, %v6608
        %v6612 = vclz %v6611
        %v6613 = vsub.s32 %v6612, 2
        %vm6614 = vcmp.gt.s32.totalorder 0, %v6613
        %v6615 = vsel %vm6614, 0, %v6613
        %v6616 = vsub.s32 32, %v6615
        %v6617 = vshll.u32 %v6608, %v6615
        %v6618 = vshrl.u32 %v6600, %v6616
        %v6619 = vor.u32 %v6617, %v6618
        %v6620 = vsub.s32 4294967266, %v6615
        %v6621 = vadd.s32 %v6620, 127
        %v6622 = vshll.u32 %v6621, 23
        %v6623 = vor.u32 4788187, %v6622
        %v6624 = vand.u32 2147483647, %v6623
        %v6626 = vcvt.s32.f32 %v6619
        %v6627 = vmul.f32 %v6626, %v6624
        %v6628 = vxor.u32 %v6627, 2147483648
        %v6629 = vsel %vm6546, %v6628, %v6627
        %v6630 = vsub.s32 4, %v6606
        %v6631 = vsel %vm6546, %v6630, %v6606
        %v6632 = vsel %vm6545, %v4365, %v6629
        %v6633 = vsel %vm6545, 0, %v6631
        %v6634 = vcosq.f32.pop %v6632
        %v6635 = vsinq.f32.pop %v6632
        %vm6636 = vweird.f32 %v4365
        %v6637 = vadd.s32 %v6633, 3
        %v6638 = vand.u32 %v6637, 3
        %vm6639 = vcmp.lt.s32.totalorder %v6638, 2
        %vm6640 = vcmp.eq.s32.totalorder %v6638, 0
        %v6641 = vxor.u32 %v6635, 2147483648
        %v6642 = vsel %vm6640, %v6634, %v6641
        %vm6643 = vcmp.eq.s32.totalorder %v6638, 2
        %v6644 = vxor.u32 %v6634, 2147483648
        %v6645 = vsel %vm6643, %v6644, %v6635
        %v6646 = vsel %vm6639, %v6642, %v6645
        %v6647 = vsel %vm6636, nan, %v6646
        %v6648 = vand.u32 2147483647, %v4367
        %vm6649 = vcmp.le.f32.partialorder %v6648, 0.7853982
        %vm6650 = vcmp.lt.s32.totalorder %v4367, 0
        %v6651 = vand.u32 %v4367, 2139095040
        %v6652 = vshrl.u32 %v6651, 23
        %v6653 = vsub.s32 %v6652, 127
        %v6654 = vand.u32 2147483647, %v4367
        %v6655 = vand.u32 %v6654, 8388607
        %v6656 = vor.u32 %v6655, 8388608
        %v6657 = vsub.s32 0, %v6656
        %v6658 = vadd.s32 %v6653, 1
        %vm6659 = vcmp.gt.s32.totalorder %v6658, 0
        %v6660 = vsel %vm6659, %v6658, 0
        %v6661 = vshrl.u32 %v6660, 5
        %v6662 = vand.u32 %v6660, 31
        %v6663 = vsub.s32 32, %v6662
        %v6664 = vshrl.u32 683565275, %v6663
        %v6665 = vshll.u32 683565275, %v6662
        %v6666 = vshrl.u32 2475754826, %v6663
        %v6667 = vor.u32 %v6665, %v6666
        %v6668 = vshll.u32 2475754826, %v6662
        %v6669 = vshrl.u32 2131351028, %v6663
        %v6670 = vor.u32 %v6668, %v6669
        %v6671 = vshll.u32 2131351028, %v6662
        %v6672 = vshrl.u32 2102212464, %v6663
        %v6673 = vor.u32 %v6671, %v6672
        %v6674 = vshll.u32 2102212464, %v6662
        %v6675 = vshrl.u32 920167782, %v6663
        %v6676 = vor.u32 %v6674, %v6675
        %v6677 = vshll.u32 920167782, %v6662
        %v6678 = vshrl.u32 1326507024, %v6663
        %v6679 = vor.u32 %v6677, %v6678
        %vm6680 = vcmp.lt.s32.totalorder %v6661, 1
        %vm6681 = vcmp.lt.s32.totalorder %v6661, 2
        %vm6682 = vcmp.lt.s32.totalorder %v6661, 3
        %vm6683 = vcmp.lt.s32.totalorder %v6661, 4
        %v6684 = vsel %vm6680, %v6664, %v6667
        %v6685 = vsel %vm6683, %v6673, 2102212464
        %v6686 = vsel %vm6682, %v6670, %v6685
        %v6687 = vsel %vm6681, %v6684, %v6686
        %v6688 = vsel %vm6680, %v6667, %v6670
        %v6689 = vsel %vm6683, %v6676, 920167782
        %v6690 = vsel %vm6682, %v6673, %v6689
        %v6691 = vsel %vm6681, %v6688, %v6690
        %v6692 = vsel %vm6680, %v6670, %v6673
        %v6693 = vsel %vm6683, %v6679, 1326507024
        %v6694 = vsel %vm6682, %v6676, %v6693
        %v6695 = vsel %vm6681, %v6692, %v6694
        %v6696 = vshll.u32 %v6656, 8
        %v6697 = vmul.u32.u64.compose %v6696, %v6695
        %v6698 = vextract.low.u32 %v6697
        %v6699 = vextract.high.u32 %v6697
        %v6700 = vmul.u32.u64.compose %v6696, %v6691
        %v6701 = vextract.low.u32 %v6700
        %v6702 = vextract.high.u32 %v6700
        %v6703 = vmul.u32 %v6696, %v6687
        %v6704 = vadd.s32 %v6699, %v6701
        %vm6705 = vc.u32 %v6699, %v6701
        %v6706 = vadd.s32 %v6702, 1
        %v6707 = vsel %vm6705, %v6706, %v6702
        %v6708 = vadd.s32 %v6703, %v6707
        %v6709 = vadd.s32 %v6708, 536870912
        %v6710 = vshrl.u32 %v6709, 30
        %v6711 = vshll.u32 %v6710, 30
        %v6712 = vsub.s32 %v6708, %v6711
        %vm6713 = vcmp.lt.s32.totalorder %v6712, 0
        %v6714 = vsub.s32 0, %v6712
        %v6715 = vsel %vm6713, %v6714, %v6712
        %v6716 = vclz %v6715
        %v6717 = vsub.s32 %v6716, 2
        %vm6718 = vcmp.gt.s32.totalorder 0, %v6717
        %v6719 = vsel %vm6718, 0, %v6717
        %v6720 = vsub.s32 32, %v6719
        %v6721 = vshll.u32 %v6712, %v6719
        %v6722 = vshrl.u32 %v6704, %v6720
        %v6723 = vor.u32 %v6721, %v6722
        %v6724 = vsub.s32 4294967266, %v6719
        %v6725 = vadd.s32 %v6724, 127
        %v6726 = vshll.u32 %v6725, 23
        %v6727 = vor.u32 4788187, %v6726
        %v6728 = vand.u32 2147483647, %v6727
        %v6730 = vcvt.s32.f32 %v6723
        %v6731 = vmul.f32 %v6730, %v6728
        %v6732 = vxor.u32 %v6731, 2147483648
        %v6733 = vsel %vm6650, %v6732, %v6731
        %v6734 = vsub.s32 4, %v6710
        %v6735 = vsel %vm6650, %v6734, %v6710
        %v6736 = vsel %vm6649, %v4367, %v6733
        %v6737 = vsel %vm6649, 0, %v6735
        %v6738 = vcosq.f32.pop %v6736
        %v6739 = vsinq.f32.pop %v6736
        %vm6740 = vweird.f32 %v4367
        %v6741 = vadd.s32 %v6737, 3
        %v6742 = vand.u32 %v6741, 3
        %vm6743 = vcmp.lt.s32.totalorder %v6742, 2
        %vm6744 = vcmp.eq.s32.totalorder %v6742, 0
        %v6745 = vxor.u32 %v6739, 2147483648
        %v6746 = vsel %vm6744, %v6738, %v6745
        %vm6747 = vcmp.eq.s32.totalorder %v6742, 2
        %v6748 = vxor.u32 %v6738, 2147483648
        %v6749 = vsel %vm6747, %v6748, %v6739
        %v6750 = vsel %vm6743, %v6746, %v6749
        %v6751 = vsel %vm6740, nan, %v6750
        %v6752 = vand.u32 2147483647, %v4454
        %vm6753 = vcmp.le.f32.partialorder %v6752, 0.7853982
        %vm6754 = vcmp.lt.s32.totalorder %v4454, 0
        %v6755 = vand.u32 %v4454, 2139095040
        %v6756 = vshrl.u32 %v6755, 23
        %v6757 = vsub.s32 %v6756, 127
        %v6758 = vand.u32 2147483647, %v4454
        %v6759 = vand.u32 %v6758, 8388607
        %v6760 = vor.u32 %v6759, 8388608
        %v6761 = vsub.s32 0, %v6760
        %v6762 = vadd.s32 %v6757, 1
        %vm6763 = vcmp.gt.s32.totalorder %v6762, 0
        %v6764 = vsel %vm6763, %v6762, 0
        %v6765 = vshrl.u32 %v6764, 5
        %v6766 = vand.u32 %v6764, 31
        %v6767 = vsub.s32 32, %v6766
        %v6768 = vshrl.u32 683565275, %v6767
        %v6769 = vshll.u32 683565275, %v6766
        %v6770 = vshrl.u32 2475754826, %v6767
        %v6771 = vor.u32 %v6769, %v6770
        %v6772 = vshll.u32 2475754826, %v6766
        %v6773 = vshrl.u32 2131351028, %v6767
        %v6774 = vor.u32 %v6772, %v6773
        %v6775 = vshll.u32 2131351028, %v6766
        %v6776 = vshrl.u32 2102212464, %v6767
        %v6777 = vor.u32 %v6775, %v6776
        %v6778 = vshll.u32 2102212464, %v6766
        %v6779 = vshrl.u32 920167782, %v6767
        %v6780 = vor.u32 %v6778, %v6779
        %v6781 = vshll.u32 920167782, %v6766
        %v6782 = vshrl.u32 1326507024, %v6767
        %v6783 = vor.u32 %v6781, %v6782
        %vm6784 = vcmp.lt.s32.totalorder %v6765, 1
        %vm6785 = vcmp.lt.s32.totalorder %v6765, 2
        %vm6786 = vcmp.lt.s32.totalorder %v6765, 3
        %vm6787 = vcmp.lt.s32.totalorder %v6765, 4
        %v6788 = vsel %vm6784, %v6768, %v6771
        %v6789 = vsel %vm6787, %v6777, 2102212464
        %v6790 = vsel %vm6786, %v6774, %v6789
        %v6791 = vsel %vm6785, %v6788, %v6790
        %v6792 = vsel %vm6784, %v6771, %v6774
        %v6793 = vsel %vm6787, %v6780, 920167782
        %v6794 = vsel %vm6786, %v6777, %v6793
        %v6795 = vsel %vm6785, %v6792, %v6794
        %v6796 = vsel %vm6784, %v6774, %v6777
        %v6797 = vsel %vm6787, %v6783, 1326507024
        %v6798 = vsel %vm6786, %v6780, %v6797
        %v6799 = vsel %vm6785, %v6796, %v6798
        %v6800 = vshll.u32 %v6760, 8
        %v6801 = vmul.u32.u64.compose %v6800, %v6799
        %v6802 = vextract.low.u32 %v6801
        %v6803 = vextract.high.u32 %v6801
        %v6804 = vmul.u32.u64.compose %v6800, %v6795
        %v6805 = vextract.low.u32 %v6804
        %v6806 = vextract.high.u32 %v6804
        %v6807 = vmul.u32 %v6800, %v6791
        %v6808 = vadd.s32 %v6803, %v6805
        %vm6809 = vc.u32 %v6803, %v6805
        %v6810 = vadd.s32 %v6806, 1
        %v6811 = vsel %vm6809, %v6810, %v6806
        %v6812 = vadd.s32 %v6807, %v6811
        %v6813 = vadd.s32 %v6812, 536870912
        %v6814 = vshrl.u32 %v6813, 30
        %v6815 = vshll.u32 %v6814, 30
        %v6816 = vsub.s32 %v6812, %v6815
        %vm6817 = vcmp.lt.s32.totalorder %v6816, 0
        %v6818 = vsub.s32 0, %v6816
        %v6819 = vsel %vm6817, %v6818, %v6816
        %v6820 = vclz %v6819
        %v6821 = vsub.s32 %v6820, 2
        %vm6822 = vcmp.gt.s32.totalorder 0, %v6821
        %v6823 = vsel %vm6822, 0, %v6821
        %v6824 = vsub.s32 32, %v6823
        %v6825 = vshll.u32 %v6816, %v6823
        %v6826 = vshrl.u32 %v6808, %v6824
        %v6827 = vor.u32 %v6825, %v6826
        %v6828 = vsub.s32 4294967266, %v6823
        %v6829 = vadd.s32 %v6828, 127
        %v6830 = vshll.u32 %v6829, 23
        %v6831 = vor.u32 4788187, %v6830
        %v6832 = vand.u32 2147483647, %v6831
        %v6834 = vcvt.s32.f32 %v6827
        %v6835 = vmul.f32 %v6834, %v6832
        %v6836 = vxor.u32 %v6835, 2147483648
        %v6837 = vsel %vm6754, %v6836, %v6835
        %v6838 = vsub.s32 4, %v6814
        %v6839 = vsel %vm6754, %v6838, %v6814
        %v6840 = vsel %vm6753, %v4454, %v6837
        %v6841 = vsel %vm6753, 0, %v6839
        %v6842 = vcosq.f32.pop %v6840
        %v6843 = vsinq.f32.pop %v6840
        %vm6844 = vweird.f32 %v4454
        %v6845 = vadd.s32 %v6841, 3
        %v6846 = vand.u32 %v6845, 3
        %vm6847 = vcmp.lt.s32.totalorder %v6846, 2
        %vm6848 = vcmp.eq.s32.totalorder %v6846, 0
        %v6849 = vxor.u32 %v6843, 2147483648
        %v6850 = vsel %vm6848, %v6842, %v6849
        %vm6851 = vcmp.eq.s32.totalorder %v6846, 2
        %v6852 = vxor.u32 %v6842, 2147483648
        %v6853 = vsel %vm6851, %v6852, %v6843
        %v6854 = vsel %vm6847, %v6850, %v6853
        %v6855 = vsel %vm6844, nan, %v6854
        %v6856 = vand.u32 2147483647, %v4456
        %vm6857 = vcmp.le.f32.partialorder %v6856, 0.7853982
        %vm6858 = vcmp.lt.s32.totalorder %v4456, 0
        %v6859 = vand.u32 %v4456, 2139095040
        %v6860 = vshrl.u32 %v6859, 23
        %v6861 = vsub.s32 %v6860, 127
        %v6862 = vand.u32 2147483647, %v4456
        %v6863 = vand.u32 %v6862, 8388607
        %v6864 = vor.u32 %v6863, 8388608
        %v6865 = vsub.s32 0, %v6864
        %v6866 = vadd.s32 %v6861, 1
        %vm6867 = vcmp.gt.s32.totalorder %v6866, 0
        %v6868 = vsel %vm6867, %v6866, 0
        %v6869 = vshrl.u32 %v6868, 5
        %v6870 = vand.u32 %v6868, 31
        %v6871 = vsub.s32 32, %v6870
        %v6872 = vshrl.u32 683565275, %v6871
        %v6873 = vshll.u32 683565275, %v6870
        %v6874 = vshrl.u32 2475754826, %v6871
        %v6875 = vor.u32 %v6873, %v6874
        %v6876 = vshll.u32 2475754826, %v6870
        %v6877 = vshrl.u32 2131351028, %v6871
        %v6878 = vor.u32 %v6876, %v6877
        %v6879 = vshll.u32 2131351028, %v6870
        %v6880 = vshrl.u32 2102212464, %v6871
        %v6881 = vor.u32 %v6879, %v6880
        %v6882 = vshll.u32 2102212464, %v6870
        %v6883 = vshrl.u32 920167782, %v6871
        %v6884 = vor.u32 %v6882, %v6883
        %v6885 = vshll.u32 920167782, %v6870
        %v6886 = vshrl.u32 1326507024, %v6871
        %v6887 = vor.u32 %v6885, %v6886
        %vm6888 = vcmp.lt.s32.totalorder %v6869, 1
        %vm6889 = vcmp.lt.s32.totalorder %v6869, 2
        %vm6890 = vcmp.lt.s32.totalorder %v6869, 3
        %vm6891 = vcmp.lt.s32.totalorder %v6869, 4
        %v6892 = vsel %vm6888, %v6872, %v6875
        %v6893 = vsel %vm6891, %v6881, 2102212464
        %v6894 = vsel %vm6890, %v6878, %v6893
        %v6895 = vsel %vm6889, %v6892, %v6894
        %v6896 = vsel %vm6888, %v6875, %v6878
        %v6897 = vsel %vm6891, %v6884, 920167782
        %v6898 = vsel %vm6890, %v6881, %v6897
        %v6899 = vsel %vm6889, %v6896, %v6898
        %v6900 = vsel %vm6888, %v6878, %v6881
        %v6901 = vsel %vm6891, %v6887, 1326507024
        %v6902 = vsel %vm6890, %v6884, %v6901
        %v6903 = vsel %vm6889, %v6900, %v6902
        %v6904 = vshll.u32 %v6864, 8
        %v6905 = vmul.u32.u64.compose %v6904, %v6903
        %v6906 = vextract.low.u32 %v6905
        %v6907 = vextract.high.u32 %v6905
        %v6908 = vmul.u32.u64.compose %v6904, %v6899
        %v6909 = vextract.low.u32 %v6908
        %v6910 = vextract.high.u32 %v6908
        %v6911 = vmul.u32 %v6904, %v6895
        %v6912 = vadd.s32 %v6907, %v6909
        %vm6913 = vc.u32 %v6907, %v6909
        %v6914 = vadd.s32 %v6910, 1
        %v6915 = vsel %vm6913, %v6914, %v6910
        %v6916 = vadd.s32 %v6911, %v6915
        %v6917 = vadd.s32 %v6916, 536870912
        %v6918 = vshrl.u32 %v6917, 30
        %v6919 = vshll.u32 %v6918, 30
        %v6920 = vsub.s32 %v6916, %v6919
        %vm6921 = vcmp.lt.s32.totalorder %v6920, 0
        %v6922 = vsub.s32 0, %v6920
        %v6923 = vsel %vm6921, %v6922, %v6920
        %v6924 = vclz %v6923
        %v6925 = vsub.s32 %v6924, 2
        %vm6926 = vcmp.gt.s32.totalorder 0, %v6925
        %v6927 = vsel %vm6926, 0, %v6925
        %v6928 = vsub.s32 32, %v6927
        %v6929 = vshll.u32 %v6920, %v6927
        %v6930 = vshrl.u32 %v6912, %v6928
        %v6931 = vor.u32 %v6929, %v6930
        %v6932 = vsub.s32 4294967266, %v6927
        %v6933 = vadd.s32 %v6932, 127
        %v6934 = vshll.u32 %v6933, 23
        %v6935 = vor.u32 4788187, %v6934
        %v6936 = vand.u32 2147483647, %v6935
        %v6938 = vcvt.s32.f32 %v6931
        %v6939 = vmul.f32 %v6938, %v6936
        %v6940 = vxor.u32 %v6939, 2147483648
        %v6941 = vsel %vm6858, %v6940, %v6939
        %v6942 = vsub.s32 4, %v6918
        %v6943 = vsel %vm6858, %v6942, %v6918
        %v6944 = vsel %vm6857, %v4456, %v6941
        %v6945 = vsel %vm6857, 0, %v6943
        %v6946 = vcosq.f32.pop %v6944
        %v6947 = vsinq.f32.pop %v6944
        %vm6948 = vweird.f32 %v4456
        %v6949 = vadd.s32 %v6945, 3
        %v6950 = vand.u32 %v6949, 3
        %vm6951 = vcmp.lt.s32.totalorder %v6950, 2
        %vm6952 = vcmp.eq.s32.totalorder %v6950, 0
        %v6953 = vxor.u32 %v6947, 2147483648
        %v6954 = vsel %vm6952, %v6946, %v6953
        %vm6955 = vcmp.eq.s32.totalorder %v6950, 2
        %v6956 = vxor.u32 %v6946, 2147483648
        %v6957 = vsel %vm6955, %v6956, %v6947
        %v6958 = vsel %vm6951, %v6954, %v6957
        %v6959 = vsel %vm6948, nan, %v6958
        %v6960 = vand.u32 2147483647, %v4193
        %vm6961 = vcmp.le.f32.partialorder %v6960, 0.7853982
        %vm6962 = vcmp.lt.s32.totalorder %v4193, 0
        %v6963 = vand.u32 %v4193, 2139095040
        %v6964 = vshrl.u32 %v6963, 23
        %v6965 = vsub.s32 %v6964, 127
        %v6966 = vand.u32 2147483647, %v4193
        %v6967 = vand.u32 %v6966, 8388607
        %v6968 = vor.u32 %v6967, 8388608
        %v6969 = vsub.s32 0, %v6968
        %v6970 = vadd.s32 %v6965, 1
        %vm6971 = vcmp.gt.s32.totalorder %v6970, 0
        %v6972 = vsel %vm6971, %v6970, 0
        %v6973 = vshrl.u32 %v6972, 5
        %v6974 = vand.u32 %v6972, 31
        %v6975 = vsub.s32 32, %v6974
        %v6976 = vshrl.u32 683565275, %v6975
        %v6977 = vshll.u32 683565275, %v6974
        %v6978 = vshrl.u32 2475754826, %v6975
        %v6979 = vor.u32 %v6977, %v6978
        %v6980 = vshll.u32 2475754826, %v6974
        %v6981 = vshrl.u32 2131351028, %v6975
        %v6982 = vor.u32 %v6980, %v6981
        %v6983 = vshll.u32 2131351028, %v6974
        %v6984 = vshrl.u32 2102212464, %v6975
        %v6985 = vor.u32 %v6983, %v6984
        %v6986 = vshll.u32 2102212464, %v6974
        %v6987 = vshrl.u32 920167782, %v6975
        %v6988 = vor.u32 %v6986, %v6987
        %v6989 = vshll.u32 920167782, %v6974
        %v6990 = vshrl.u32 1326507024, %v6975
        %v6991 = vor.u32 %v6989, %v6990
        %vm6992 = vcmp.lt.s32.totalorder %v6973, 1
        %vm6993 = vcmp.lt.s32.totalorder %v6973, 2
        %vm6994 = vcmp.lt.s32.totalorder %v6973, 3
        %vm6995 = vcmp.lt.s32.totalorder %v6973, 4
        %v6996 = vsel %vm6992, %v6976, %v6979
        %v6997 = vsel %vm6995, %v6985, 2102212464
        %v6998 = vsel %vm6994, %v6982, %v6997
        %v6999 = vsel %vm6993, %v6996, %v6998
        %v7000 = vsel %vm6992, %v6979, %v6982
        %v7001 = vsel %vm6995, %v6988, 920167782
        %v7002 = vsel %vm6994, %v6985, %v7001
        %v7003 = vsel %vm6993, %v7000, %v7002
        %v7004 = vsel %vm6992, %v6982, %v6985
        %v7005 = vsel %vm6995, %v6991, 1326507024
        %v7006 = vsel %vm6994, %v6988, %v7005
        %v7007 = vsel %vm6993, %v7004, %v7006
        %v7008 = vshll.u32 %v6968, 8
        %v7009 = vmul.u32.u64.compose %v7008, %v7007
        %v7010 = vextract.low.u32 %v7009
        %v7011 = vextract.high.u32 %v7009
        %v7012 = vmul.u32.u64.compose %v7008, %v7003
        %v7013 = vextract.low.u32 %v7012
        %v7014 = vextract.high.u32 %v7012
        %v7015 = vmul.u32 %v7008, %v6999
        %v7016 = vadd.s32 %v7011, %v7013
        %vm7017 = vc.u32 %v7011, %v7013
        %v7018 = vadd.s32 %v7014, 1
        %v7019 = vsel %vm7017, %v7018, %v7014
        %v7020 = vadd.s32 %v7015, %v7019
        %v7021 = vadd.s32 %v7020, 536870912
        %v7022 = vshrl.u32 %v7021, 30
        %v7023 = vshll.u32 %v7022, 30
        %v7024 = vsub.s32 %v7020, %v7023
        %vm7025 = vcmp.lt.s32.totalorder %v7024, 0
        %v7026 = vsub.s32 0, %v7024
        %v7027 = vsel %vm7025, %v7026, %v7024
        %v7028 = vclz %v7027
        %v7029 = vsub.s32 %v7028, 2
        %vm7030 = vcmp.gt.s32.totalorder 0, %v7029
        %v7031 = vsel %vm7030, 0, %v7029
        %v7032 = vsub.s32 32, %v7031
        %v7033 = vshll.u32 %v7024, %v7031
        %v7034 = vshrl.u32 %v7016, %v7032
        %v7035 = vor.u32 %v7033, %v7034
        %v7036 = vsub.s32 4294967266, %v7031
        %v7037 = vadd.s32 %v7036, 127
        %v7038 = vshll.u32 %v7037, 23
        %v7039 = vor.u32 4788187, %v7038
        %v7040 = vand.u32 2147483647, %v7039
        %v7042 = vcvt.s32.f32 %v7035
        %v7043 = vmul.f32 %v7042, %v7040
        %v7044 = vxor.u32 %v7043, 2147483648
        %v7045 = vsel %vm6962, %v7044, %v7043
        %v7046 = vsub.s32 4, %v7022
        %v7047 = vsel %vm6962, %v7046, %v7022
        %v7048 = vsel %vm6961, %v4193, %v7045
        %v7049 = vsel %vm6961, 0, %v7047
        %v7050 = vcosq.f32.pop %v7048
        %v7051 = vsinq.f32.pop %v7048
        %vm7052 = vweird.f32 %v4193
        %v7053 = vadd.s32 %v7049, 3
        %v7054 = vand.u32 %v7053, 3
        %vm7055 = vcmp.lt.s32.totalorder %v7054, 2
        %vm7056 = vcmp.eq.s32.totalorder %v7054, 0
        %v7057 = vxor.u32 %v7051, 2147483648
        %v7058 = vsel %vm7056, %v7050, %v7057
        %vm7059 = vcmp.eq.s32.totalorder %v7054, 2
        %v7060 = vxor.u32 %v7050, 2147483648
        %v7061 = vsel %vm7059, %v7060, %v7051
        %v7062 = vsel %vm7055, %v7058, %v7061
        %v7063 = vsel %vm7052, nan, %v7062
        %v7064 = vand.u32 2147483647, %v4195
        %vm7065 = vcmp.le.f32.partialorder %v7064, 0.7853982
        %vm7066 = vcmp.lt.s32.totalorder %v4195, 0
        %v7067 = vand.u32 %v4195, 2139095040
        %v7068 = vshrl.u32 %v7067, 23
        %v7069 = vsub.s32 %v7068, 127
        %v7070 = vand.u32 2147483647, %v4195
        %v7071 = vand.u32 %v7070, 8388607
        %v7072 = vor.u32 %v7071, 8388608
        %v7073 = vsub.s32 0, %v7072
        %v7074 = vadd.s32 %v7069, 1
        %vm7075 = vcmp.gt.s32.totalorder %v7074, 0
        %v7076 = vsel %vm7075, %v7074, 0
        %v7077 = vshrl.u32 %v7076, 5
        %v7078 = vand.u32 %v7076, 31
        %v7079 = vsub.s32 32, %v7078
        %v7080 = vshrl.u32 683565275, %v7079
        %v7081 = vshll.u32 683565275, %v7078
        %v7082 = vshrl.u32 2475754826, %v7079
        %v7083 = vor.u32 %v7081, %v7082
        %v7084 = vshll.u32 2475754826, %v7078
        %v7085 = vshrl.u32 2131351028, %v7079
        %v7086 = vor.u32 %v7084, %v7085
        %v7087 = vshll.u32 2131351028, %v7078
        %v7088 = vshrl.u32 2102212464, %v7079
        %v7089 = vor.u32 %v7087, %v7088
        %v7090 = vshll.u32 2102212464, %v7078
        %v7091 = vshrl.u32 920167782, %v7079
        %v7092 = vor.u32 %v7090, %v7091
        %v7093 = vshll.u32 920167782, %v7078
        %v7094 = vshrl.u32 1326507024, %v7079
        %v7095 = vor.u32 %v7093, %v7094
        %vm7096 = vcmp.lt.s32.totalorder %v7077, 1
        %vm7097 = vcmp.lt.s32.totalorder %v7077, 2
        %vm7098 = vcmp.lt.s32.totalorder %v7077, 3
        %vm7099 = vcmp.lt.s32.totalorder %v7077, 4
        %v7100 = vsel %vm7096, %v7080, %v7083
        %v7101 = vsel %vm7099, %v7089, 2102212464
        %v7102 = vsel %vm7098, %v7086, %v7101
        %v7103 = vsel %vm7097, %v7100, %v7102
        %v7104 = vsel %vm7096, %v7083, %v7086
        %v7105 = vsel %vm7099, %v7092, 920167782
        %v7106 = vsel %vm7098, %v7089, %v7105
        %v7107 = vsel %vm7097, %v7104, %v7106
        %v7108 = vsel %vm7096, %v7086, %v7089
        %v7109 = vsel %vm7099, %v7095, 1326507024
        %v7110 = vsel %vm7098, %v7092, %v7109
        %v7111 = vsel %vm7097, %v7108, %v7110
        %v7112 = vshll.u32 %v7072, 8
        %v7113 = vmul.u32.u64.compose %v7112, %v7111
        %v7114 = vextract.low.u32 %v7113
        %v7115 = vextract.high.u32 %v7113
        %v7116 = vmul.u32.u64.compose %v7112, %v7107
        %v7117 = vextract.low.u32 %v7116
        %v7118 = vextract.high.u32 %v7116
        %v7119 = vmul.u32 %v7112, %v7103
        %v7120 = vadd.s32 %v7115, %v7117
        %vm7121 = vc.u32 %v7115, %v7117
        %v7122 = vadd.s32 %v7118, 1
        %v7123 = vsel %vm7121, %v7122, %v7118
        %v7124 = vadd.s32 %v7119, %v7123
        %v7125 = vadd.s32 %v7124, 536870912
        %v7126 = vshrl.u32 %v7125, 30
        %v7127 = vshll.u32 %v7126, 30
        %v7128 = vsub.s32 %v7124, %v7127
        %vm7129 = vcmp.lt.s32.totalorder %v7128, 0
        %v7130 = vsub.s32 0, %v7128
        %v7131 = vsel %vm7129, %v7130, %v7128
        %v7132 = vclz %v7131
        %v7133 = vsub.s32 %v7132, 2
        %vm7134 = vcmp.gt.s32.totalorder 0, %v7133
        %v7135 = vsel %vm7134, 0, %v7133
        %v7136 = vsub.s32 32, %v7135
        %v7137 = vshll.u32 %v7128, %v7135
        %v7138 = vshrl.u32 %v7120, %v7136
        %v7139 = vor.u32 %v7137, %v7138
        %v7140 = vsub.s32 4294967266, %v7135
        %v7141 = vadd.s32 %v7140, 127
        %v7142 = vshll.u32 %v7141, 23
        %v7143 = vor.u32 4788187, %v7142
        %v7144 = vand.u32 2147483647, %v7143
        %v7146 = vcvt.s32.f32 %v7139
        %v7147 = vmul.f32 %v7146, %v7144
        %v7148 = vxor.u32 %v7147, 2147483648
        %v7149 = vsel %vm7066, %v7148, %v7147
        %v7150 = vsub.s32 4, %v7126
        %v7151 = vsel %vm7066, %v7150, %v7126
        %v7152 = vsel %vm7065, %v4195, %v7149
        %v7153 = vsel %vm7065, 0, %v7151
        %v7154 = vcosq.f32.pop %v7152
        %v7155 = vsinq.f32.pop %v7152
        %vm7156 = vweird.f32 %v4195
        %v7157 = vadd.s32 %v7153, 3
        %v7158 = vand.u32 %v7157, 3
        %vm7159 = vcmp.lt.s32.totalorder %v7158, 2
        %vm7160 = vcmp.eq.s32.totalorder %v7158, 0
        %v7161 = vxor.u32 %v7155, 2147483648
        %v7162 = vsel %vm7160, %v7154, %v7161
        %vm7163 = vcmp.eq.s32.totalorder %v7158, 2
        %v7164 = vxor.u32 %v7154, 2147483648
        %v7165 = vsel %vm7163, %v7164, %v7155
        %v7166 = vsel %vm7159, %v7162, %v7165
        %v7167 = vsel %vm7156, nan, %v7166
        %v7168 = vand.u32 2147483647, %v4282
        %vm7169 = vcmp.le.f32.partialorder %v7168, 0.7853982
        %vm7170 = vcmp.lt.s32.totalorder %v4282, 0
        %v7171 = vand.u32 %v4282, 2139095040
        %v7172 = vshrl.u32 %v7171, 23
        %v7173 = vsub.s32 %v7172, 127
        %v7174 = vand.u32 2147483647, %v4282
        %v7175 = vand.u32 %v7174, 8388607
        %v7176 = vor.u32 %v7175, 8388608
        %v7177 = vsub.s32 0, %v7176
        %v7178 = vadd.s32 %v7173, 1
        %vm7179 = vcmp.gt.s32.totalorder %v7178, 0
        %v7180 = vsel %vm7179, %v7178, 0
        %v7181 = vshrl.u32 %v7180, 5
        %v7182 = vand.u32 %v7180, 31
        %v7183 = vsub.s32 32, %v7182
        %v7184 = vshrl.u32 683565275, %v7183
        %v7185 = vshll.u32 683565275, %v7182
        %v7186 = vshrl.u32 2475754826, %v7183
        %v7187 = vor.u32 %v7185, %v7186
        %v7188 = vshll.u32 2475754826, %v7182
        %v7189 = vshrl.u32 2131351028, %v7183
        %v7190 = vor.u32 %v7188, %v7189
        %v7191 = vshll.u32 2131351028, %v7182
        %v7192 = vshrl.u32 2102212464, %v7183
        %v7193 = vor.u32 %v7191, %v7192
        %v7194 = vshll.u32 2102212464, %v7182
        %v7195 = vshrl.u32 920167782, %v7183
        %v7196 = vor.u32 %v7194, %v7195
        %v7197 = vshll.u32 920167782, %v7182
        %v7198 = vshrl.u32 1326507024, %v7183
        %v7199 = vor.u32 %v7197, %v7198
        %vm7200 = vcmp.lt.s32.totalorder %v7181, 1
        %vm7201 = vcmp.lt.s32.totalorder %v7181, 2
        %vm7202 = vcmp.lt.s32.totalorder %v7181, 3
        %vm7203 = vcmp.lt.s32.totalorder %v7181, 4
        %v7204 = vsel %vm7200, %v7184, %v7187
        %v7205 = vsel %vm7203, %v7193, 2102212464
        %v7206 = vsel %vm7202, %v7190, %v7205
        %v7207 = vsel %vm7201, %v7204, %v7206
        %v7208 = vsel %vm7200, %v7187, %v7190
        %v7209 = vsel %vm7203, %v7196, 920167782
        %v7210 = vsel %vm7202, %v7193, %v7209
        %v7211 = vsel %vm7201, %v7208, %v7210
        %v7212 = vsel %vm7200, %v7190, %v7193
        %v7213 = vsel %vm7203, %v7199, 1326507024
        %v7214 = vsel %vm7202, %v7196, %v7213
        %v7215 = vsel %vm7201, %v7212, %v7214
        %v7216 = vshll.u32 %v7176, 8
        %v7217 = vmul.u32.u64.compose %v7216, %v7215
        %v7218 = vextract.low.u32 %v7217
        %v7219 = vextract.high.u32 %v7217
        %v7220 = vmul.u32.u64.compose %v7216, %v7211
        %v7221 = vextract.low.u32 %v7220
        %v7222 = vextract.high.u32 %v7220
        %v7223 = vmul.u32 %v7216, %v7207
        %v7224 = vadd.s32 %v7219, %v7221
        %vm7225 = vc.u32 %v7219, %v7221
        %v7226 = vadd.s32 %v7222, 1
        %v7227 = vsel %vm7225, %v7226, %v7222
        %v7228 = vadd.s32 %v7223, %v7227
        %v7229 = vadd.s32 %v7228, 536870912
        %v7230 = vshrl.u32 %v7229, 30
        %v7231 = vshll.u32 %v7230, 30
        %v7232 = vsub.s32 %v7228, %v7231
        %vm7233 = vcmp.lt.s32.totalorder %v7232, 0
        %v7234 = vsub.s32 0, %v7232
        %v7235 = vsel %vm7233, %v7234, %v7232
        %v7236 = vclz %v7235
        %v7237 = vsub.s32 %v7236, 2
        %vm7238 = vcmp.gt.s32.totalorder 0, %v7237
        %v7239 = vsel %vm7238, 0, %v7237
        %v7240 = vsub.s32 32, %v7239
        %v7241 = vshll.u32 %v7232, %v7239
        %v7242 = vshrl.u32 %v7224, %v7240
        %v7243 = vor.u32 %v7241, %v7242
        %v7244 = vsub.s32 4294967266, %v7239
        %v7245 = vadd.s32 %v7244, 127
        %v7246 = vshll.u32 %v7245, 23
        %v7247 = vor.u32 4788187, %v7246
        %v7248 = vand.u32 2147483647, %v7247
        %v7250 = vcvt.s32.f32 %v7243
        %v7251 = vmul.f32 %v7250, %v7248
        %v7252 = vxor.u32 %v7251, 2147483648
        %v7253 = vsel %vm7170, %v7252, %v7251
        %v7254 = vsub.s32 4, %v7230
        %v7255 = vsel %vm7170, %v7254, %v7230
        %v7256 = vsel %vm7169, %v4282, %v7253
        %v7257 = vsel %vm7169, 0, %v7255
        %v7258 = vcosq.f32.pop %v7256
        %v7259 = vsinq.f32.pop %v7256
        %vm7260 = vweird.f32 %v4282
        %v7261 = vadd.s32 %v7257, 3
        %v7262 = vand.u32 %v7261, 3
        %vm7263 = vcmp.lt.s32.totalorder %v7262, 2
        %vm7264 = vcmp.eq.s32.totalorder %v7262, 0
        %v7265 = vxor.u32 %v7259, 2147483648
        %v7266 = vsel %vm7264, %v7258, %v7265
        %vm7267 = vcmp.eq.s32.totalorder %v7262, 2
        %v7268 = vxor.u32 %v7258, 2147483648
        %v7269 = vsel %vm7267, %v7268, %v7259
        %v7270 = vsel %vm7263, %v7266, %v7269
        %v7271 = vsel %vm7260, nan, %v7270
        %v7272 = vand.u32 2147483647, %v4284
        %vm7273 = vcmp.le.f32.partialorder %v7272, 0.7853982
        %vm7274 = vcmp.lt.s32.totalorder %v4284, 0
        %v7275 = vand.u32 %v4284, 2139095040
        %v7276 = vshrl.u32 %v7275, 23
        %v7277 = vsub.s32 %v7276, 127
        %v7278 = vand.u32 2147483647, %v4284
        %v7279 = vand.u32 %v7278, 8388607
        %v7280 = vor.u32 %v7279, 8388608
        %v7281 = vsub.s32 0, %v7280
        %v7282 = vadd.s32 %v7277, 1
        %vm7283 = vcmp.gt.s32.totalorder %v7282, 0
        %v7284 = vsel %vm7283, %v7282, 0
        %v7285 = vshrl.u32 %v7284, 5
        %v7286 = vand.u32 %v7284, 31
        %v7287 = vsub.s32 32, %v7286
        %v7288 = vshrl.u32 683565275, %v7287
        %v7289 = vshll.u32 683565275, %v7286
        %v7290 = vshrl.u32 2475754826, %v7287
        %v7291 = vor.u32 %v7289, %v7290
        %v7292 = vshll.u32 2475754826, %v7286
        %v7293 = vshrl.u32 2131351028, %v7287
        %v7294 = vor.u32 %v7292, %v7293
        %v7295 = vshll.u32 2131351028, %v7286
        %v7296 = vshrl.u32 2102212464, %v7287
        %v7297 = vor.u32 %v7295, %v7296
        %v7298 = vshll.u32 2102212464, %v7286
        %v7299 = vshrl.u32 920167782, %v7287
        %v7300 = vor.u32 %v7298, %v7299
        %v7301 = vshll.u32 920167782, %v7286
        %v7302 = vshrl.u32 1326507024, %v7287
        %v7303 = vor.u32 %v7301, %v7302
        %vm7304 = vcmp.lt.s32.totalorder %v7285, 1
        %vm7305 = vcmp.lt.s32.totalorder %v7285, 2
        %vm7306 = vcmp.lt.s32.totalorder %v7285, 3
        %vm7307 = vcmp.lt.s32.totalorder %v7285, 4
        %v7308 = vsel %vm7304, %v7288, %v7291
        %v7309 = vsel %vm7307, %v7297, 2102212464
        %v7310 = vsel %vm7306, %v7294, %v7309
        %v7311 = vsel %vm7305, %v7308, %v7310
        %v7312 = vsel %vm7304, %v7291, %v7294
        %v7313 = vsel %vm7307, %v7300, 920167782
        %v7314 = vsel %vm7306, %v7297, %v7313
        %v7315 = vsel %vm7305, %v7312, %v7314
        %v7316 = vsel %vm7304, %v7294, %v7297
        %v7317 = vsel %vm7307, %v7303, 1326507024
        %v7318 = vsel %vm7306, %v7300, %v7317
        %v7319 = vsel %vm7305, %v7316, %v7318
        %v7320 = vshll.u32 %v7280, 8
        %v7321 = vmul.u32.u64.compose %v7320, %v7319
        %v7322 = vextract.low.u32 %v7321
        %v7323 = vextract.high.u32 %v7321
        %v7324 = vmul.u32.u64.compose %v7320, %v7315
        %v7325 = vextract.low.u32 %v7324
        %v7326 = vextract.high.u32 %v7324
        %v7327 = vmul.u32 %v7320, %v7311
        %v7328 = vadd.s32 %v7323, %v7325
        %vm7329 = vc.u32 %v7323, %v7325
        %v7330 = vadd.s32 %v7326, 1
        %v7331 = vsel %vm7329, %v7330, %v7326
        %v7332 = vadd.s32 %v7327, %v7331
        %v7333 = vadd.s32 %v7332, 536870912
        %v7334 = vshrl.u32 %v7333, 30
        %v7335 = vshll.u32 %v7334, 30
        %v7336 = vsub.s32 %v7332, %v7335
        %vm7337 = vcmp.lt.s32.totalorder %v7336, 0
        %v7338 = vsub.s32 0, %v7336
        %v7339 = vsel %vm7337, %v7338, %v7336
        %v7340 = vclz %v7339
        %v7341 = vsub.s32 %v7340, 2
        %vm7342 = vcmp.gt.s32.totalorder 0, %v7341
        %v7343 = vsel %vm7342, 0, %v7341
        %v7344 = vsub.s32 32, %v7343
        %v7345 = vshll.u32 %v7336, %v7343
        %v7346 = vshrl.u32 %v7328, %v7344
        %v7347 = vor.u32 %v7345, %v7346
        %v7348 = vsub.s32 4294967266, %v7343
        %v7349 = vadd.s32 %v7348, 127
        %v7350 = vshll.u32 %v7349, 23
        %v7351 = vor.u32 4788187, %v7350
        %v7352 = vand.u32 2147483647, %v7351
        %v7354 = vcvt.s32.f32 %v7347
        %v7355 = vmul.f32 %v7354, %v7352
        %v7356 = vxor.u32 %v7355, 2147483648
        %v7357 = vsel %vm7274, %v7356, %v7355
        %v7358 = vsub.s32 4, %v7334
        %v7359 = vsel %vm7274, %v7358, %v7334
        %v7360 = vsel %vm7273, %v4284, %v7357
        %v7361 = vsel %vm7273, 0, %v7359
        %v7362 = vcosq.f32.pop %v7360
        %v7363 = vsinq.f32.pop %v7360
        %vm7364 = vweird.f32 %v4284
        %v7365 = vadd.s32 %v7361, 3
        %v7366 = vand.u32 %v7365, 3
        %vm7367 = vcmp.lt.s32.totalorder %v7366, 2
        %vm7368 = vcmp.eq.s32.totalorder %v7366, 0
        %v7369 = vxor.u32 %v7363, 2147483648
        %v7370 = vsel %vm7368, %v7362, %v7369
        %vm7371 = vcmp.eq.s32.totalorder %v7366, 2
        %v7372 = vxor.u32 %v7362, 2147483648
        %v7373 = vsel %vm7371, %v7372, %v7363
        %v7374 = vsel %vm7367, %v7370, %v7373
        %v7375 = vsel %vm7364, nan, %v7374
        %v7376 = vand.u32 2147483647, %v4371
        %vm7377 = vcmp.le.f32.partialorder %v7376, 0.7853982
        %vm7378 = vcmp.lt.s32.totalorder %v4371, 0
        %v7379 = vand.u32 %v4371, 2139095040
        %v7380 = vshrl.u32 %v7379, 23
        %v7381 = vsub.s32 %v7380, 127
        %v7382 = vand.u32 2147483647, %v4371
        %v7383 = vand.u32 %v7382, 8388607
        %v7384 = vor.u32 %v7383, 8388608
        %v7385 = vsub.s32 0, %v7384
        %v7386 = vadd.s32 %v7381, 1
        %vm7387 = vcmp.gt.s32.totalorder %v7386, 0
        %v7388 = vsel %vm7387, %v7386, 0
        %v7389 = vshrl.u32 %v7388, 5
        %v7390 = vand.u32 %v7388, 31
        %v7391 = vsub.s32 32, %v7390
        %v7392 = vshrl.u32 683565275, %v7391
        %v7393 = vshll.u32 683565275, %v7390
        %v7394 = vshrl.u32 2475754826, %v7391
        %v7395 = vor.u32 %v7393, %v7394
        %v7396 = vshll.u32 2475754826, %v7390
        %v7397 = vshrl.u32 2131351028, %v7391
        %v7398 = vor.u32 %v7396, %v7397
        %v7399 = vshll.u32 2131351028, %v7390
        %v7400 = vshrl.u32 2102212464, %v7391
        %v7401 = vor.u32 %v7399, %v7400
        %v7402 = vshll.u32 2102212464, %v7390
        %v7403 = vshrl.u32 920167782, %v7391
        %v7404 = vor.u32 %v7402, %v7403
        %v7405 = vshll.u32 920167782, %v7390
        %v7406 = vshrl.u32 1326507024, %v7391
        %v7407 = vor.u32 %v7405, %v7406
        %vm7408 = vcmp.lt.s32.totalorder %v7389, 1
        %vm7409 = vcmp.lt.s32.totalorder %v7389, 2
        %vm7410 = vcmp.lt.s32.totalorder %v7389, 3
        %vm7411 = vcmp.lt.s32.totalorder %v7389, 4
        %v7412 = vsel %vm7408, %v7392, %v7395
        %v7413 = vsel %vm7411, %v7401, 2102212464
        %v7414 = vsel %vm7410, %v7398, %v7413
        %v7415 = vsel %vm7409, %v7412, %v7414
        %v7416 = vsel %vm7408, %v7395, %v7398
        %v7417 = vsel %vm7411, %v7404, 920167782
        %v7418 = vsel %vm7410, %v7401, %v7417
        %v7419 = vsel %vm7409, %v7416, %v7418
        %v7420 = vsel %vm7408, %v7398, %v7401
        %v7421 = vsel %vm7411, %v7407, 1326507024
        %v7422 = vsel %vm7410, %v7404, %v7421
        %v7423 = vsel %vm7409, %v7420, %v7422
        %v7424 = vshll.u32 %v7384, 8
        %v7425 = vmul.u32.u64.compose %v7424, %v7423
        %v7426 = vextract.low.u32 %v7425
        %v7427 = vextract.high.u32 %v7425
        %v7428 = vmul.u32.u64.compose %v7424, %v7419
        %v7429 = vextract.low.u32 %v7428
        %v7430 = vextract.high.u32 %v7428
        %v7431 = vmul.u32 %v7424, %v7415
        %v7432 = vadd.s32 %v7427, %v7429
        %vm7433 = vc.u32 %v7427, %v7429
        %v7434 = vadd.s32 %v7430, 1
        %v7435 = vsel %vm7433, %v7434, %v7430
        %v7436 = vadd.s32 %v7431, %v7435
        %v7437 = vadd.s32 %v7436, 536870912
        %v7438 = vshrl.u32 %v7437, 30
        %v7439 = vshll.u32 %v7438, 30
        %v7440 = vsub.s32 %v7436, %v7439
        %vm7441 = vcmp.lt.s32.totalorder %v7440, 0
        %v7442 = vsub.s32 0, %v7440
        %v7443 = vsel %vm7441, %v7442, %v7440
        %v7444 = vclz %v7443
        %v7445 = vsub.s32 %v7444, 2
        %vm7446 = vcmp.gt.s32.totalorder 0, %v7445
        %v7447 = vsel %vm7446, 0, %v7445
        %v7448 = vsub.s32 32, %v7447
        %v7449 = vshll.u32 %v7440, %v7447
        %v7450 = vshrl.u32 %v7432, %v7448
        %v7451 = vor.u32 %v7449, %v7450
        %v7452 = vsub.s32 4294967266, %v7447
        %v7453 = vadd.s32 %v7452, 127
        %v7454 = vshll.u32 %v7453, 23
        %v7455 = vor.u32 4788187, %v7454
        %v7456 = vand.u32 2147483647, %v7455
        %v7458 = vcvt.s32.f32 %v7451
        %v7459 = vmul.f32 %v7458, %v7456
        %v7460 = vxor.u32 %v7459, 2147483648
        %v7461 = vsel %vm7378, %v7460, %v7459
        %v7462 = vsub.s32 4, %v7438
        %v7463 = vsel %vm7378, %v7462, %v7438
        %v7464 = vsel %vm7377, %v4371, %v7461
        %v7465 = vsel %vm7377, 0, %v7463
        %v7466 = vcosq.f32.pop %v7464
        %v7467 = vsinq.f32.pop %v7464
        %vm7468 = vweird.f32 %v4371
        %v7469 = vadd.s32 %v7465, 3
        %v7470 = vand.u32 %v7469, 3
        %vm7471 = vcmp.lt.s32.totalorder %v7470, 2
        %vm7472 = vcmp.eq.s32.totalorder %v7470, 0
        %v7473 = vxor.u32 %v7467, 2147483648
        %v7474 = vsel %vm7472, %v7466, %v7473
        %vm7475 = vcmp.eq.s32.totalorder %v7470, 2
        %v7476 = vxor.u32 %v7466, 2147483648
        %v7477 = vsel %vm7475, %v7476, %v7467
        %v7478 = vsel %vm7471, %v7474, %v7477
        %v7479 = vsel %vm7468, nan, %v7478
        %v7480 = vand.u32 2147483647, %v4373
        %vm7481 = vcmp.le.f32.partialorder %v7480, 0.7853982
        %vm7482 = vcmp.lt.s32.totalorder %v4373, 0
        %v7483 = vand.u32 %v4373, 2139095040
        %v7484 = vshrl.u32 %v7483, 23
        %v7485 = vsub.s32 %v7484, 127
        %v7486 = vand.u32 2147483647, %v4373
        %v7487 = vand.u32 %v7486, 8388607
        %v7488 = vor.u32 %v7487, 8388608
        %v7489 = vsub.s32 0, %v7488
        %v7490 = vadd.s32 %v7485, 1
        %vm7491 = vcmp.gt.s32.totalorder %v7490, 0
        %v7492 = vsel %vm7491, %v7490, 0
        %v7493 = vshrl.u32 %v7492, 5
        %v7494 = vand.u32 %v7492, 31
        %v7495 = vsub.s32 32, %v7494
        %v7496 = vshrl.u32 683565275, %v7495
        %v7497 = vshll.u32 683565275, %v7494
        %v7498 = vshrl.u32 2475754826, %v7495
        %v7499 = vor.u32 %v7497, %v7498
        %v7500 = vshll.u32 2475754826, %v7494
        %v7501 = vshrl.u32 2131351028, %v7495
        %v7502 = vor.u32 %v7500, %v7501
        %v7503 = vshll.u32 2131351028, %v7494
        %v7504 = vshrl.u32 2102212464, %v7495
        %v7505 = vor.u32 %v7503, %v7504
        %v7506 = vshll.u32 2102212464, %v7494
        %v7507 = vshrl.u32 920167782, %v7495
        %v7508 = vor.u32 %v7506, %v7507
        %v7509 = vshll.u32 920167782, %v7494
        %v7510 = vshrl.u32 1326507024, %v7495
        %v7511 = vor.u32 %v7509, %v7510
        %vm7512 = vcmp.lt.s32.totalorder %v7493, 1
        %vm7513 = vcmp.lt.s32.totalorder %v7493, 2
        %vm7514 = vcmp.lt.s32.totalorder %v7493, 3
        %vm7515 = vcmp.lt.s32.totalorder %v7493, 4
        %v7516 = vsel %vm7512, %v7496, %v7499
        %v7517 = vsel %vm7515, %v7505, 2102212464
        %v7518 = vsel %vm7514, %v7502, %v7517
        %v7519 = vsel %vm7513, %v7516, %v7518
        %v7520 = vsel %vm7512, %v7499, %v7502
        %v7521 = vsel %vm7515, %v7508, 920167782
        %v7522 = vsel %vm7514, %v7505, %v7521
        %v7523 = vsel %vm7513, %v7520, %v7522
        %v7524 = vsel %vm7512, %v7502, %v7505
        %v7525 = vsel %vm7515, %v7511, 1326507024
        %v7526 = vsel %vm7514, %v7508, %v7525
        %v7527 = vsel %vm7513, %v7524, %v7526
        %v7528 = vshll.u32 %v7488, 8
        %v7529 = vmul.u32.u64.compose %v7528, %v7527
        %v7530 = vextract.low.u32 %v7529
        %v7531 = vextract.high.u32 %v7529
        %v7532 = vmul.u32.u64.compose %v7528, %v7523
        %v7533 = vextract.low.u32 %v7532
        %v7534 = vextract.high.u32 %v7532
        %v7535 = vmul.u32 %v7528, %v7519
        %v7536 = vadd.s32 %v7531, %v7533
        %vm7537 = vc.u32 %v7531, %v7533
        %v7538 = vadd.s32 %v7534, 1
        %v7539 = vsel %vm7537, %v7538, %v7534
        %v7540 = vadd.s32 %v7535, %v7539
        %v7541 = vadd.s32 %v7540, 536870912
        %v7542 = vshrl.u32 %v7541, 30
        %v7543 = vshll.u32 %v7542, 30
        %v7544 = vsub.s32 %v7540, %v7543
        %vm7545 = vcmp.lt.s32.totalorder %v7544, 0
        %v7546 = vsub.s32 0, %v7544
        %v7547 = vsel %vm7545, %v7546, %v7544
        %v7548 = vclz %v7547
        %v7549 = vsub.s32 %v7548, 2
        %vm7550 = vcmp.gt.s32.totalorder 0, %v7549
        %v7551 = vsel %vm7550, 0, %v7549
        %v7552 = vsub.s32 32, %v7551
        %v7553 = vshll.u32 %v7544, %v7551
        %v7554 = vshrl.u32 %v7536, %v7552
        %v7555 = vor.u32 %v7553, %v7554
        %v7556 = vsub.s32 4294967266, %v7551
        %v7557 = vadd.s32 %v7556, 127
        %v7558 = vshll.u32 %v7557, 23
        %v7559 = vor.u32 4788187, %v7558
        %v7560 = vand.u32 2147483647, %v7559
        %v7562 = vcvt.s32.f32 %v7555
        %v7563 = vmul.f32 %v7562, %v7560
        %v7564 = vxor.u32 %v7563, 2147483648
        %v7565 = vsel %vm7482, %v7564, %v7563
        %v7566 = vsub.s32 4, %v7542
        %v7567 = vsel %vm7482, %v7566, %v7542
        %v7568 = vsel %vm7481, %v4373, %v7565
        %v7569 = vsel %vm7481, 0, %v7567
        %v7570 = vcosq.f32.pop %v7568
        %v7571 = vsinq.f32.pop %v7568
        %vm7572 = vweird.f32 %v4373
        %v7573 = vadd.s32 %v7569, 3
        %v7574 = vand.u32 %v7573, 3
        %vm7575 = vcmp.lt.s32.totalorder %v7574, 2
        %vm7576 = vcmp.eq.s32.totalorder %v7574, 0
        %v7577 = vxor.u32 %v7571, 2147483648
        %v7578 = vsel %vm7576, %v7570, %v7577
        %vm7579 = vcmp.eq.s32.totalorder %v7574, 2
        %v7580 = vxor.u32 %v7570, 2147483648
        %v7581 = vsel %vm7579, %v7580, %v7571
        %v7582 = vsel %vm7575, %v7578, %v7581
        %v7583 = vsel %vm7572, nan, %v7582
        %v7584 = vand.u32 2147483647, %v4460
        %vm7585 = vcmp.le.f32.partialorder %v7584, 0.7853982
        %vm7586 = vcmp.lt.s32.totalorder %v4460, 0
        %v7587 = vand.u32 %v4460, 2139095040
        %v7588 = vshrl.u32 %v7587, 23
        %v7589 = vsub.s32 %v7588, 127
        %v7590 = vand.u32 2147483647, %v4460
        %v7591 = vand.u32 %v7590, 8388607
        %v7592 = vor.u32 %v7591, 8388608
        %v7593 = vsub.s32 0, %v7592
        %v7594 = vadd.s32 %v7589, 1
        %vm7595 = vcmp.gt.s32.totalorder %v7594, 0
        %v7596 = vsel %vm7595, %v7594, 0
        %v7597 = vshrl.u32 %v7596, 5
        %v7598 = vand.u32 %v7596, 31
        %v7599 = vsub.s32 32, %v7598
        %v7600 = vshrl.u32 683565275, %v7599
        %v7601 = vshll.u32 683565275, %v7598
        %v7602 = vshrl.u32 2475754826, %v7599
        %v7603 = vor.u32 %v7601, %v7602
        %v7604 = vshll.u32 2475754826, %v7598
        %v7605 = vshrl.u32 2131351028, %v7599
        %v7606 = vor.u32 %v7604, %v7605
        %v7607 = vshll.u32 2131351028, %v7598
        %v7608 = vshrl.u32 2102212464, %v7599
        %v7609 = vor.u32 %v7607, %v7608
        %v7610 = vshll.u32 2102212464, %v7598
        %v7611 = vshrl.u32 920167782, %v7599
        %v7612 = vor.u32 %v7610, %v7611
        %v7613 = vshll.u32 920167782, %v7598
        %v7614 = vshrl.u32 1326507024, %v7599
        %v7615 = vor.u32 %v7613, %v7614
        %vm7616 = vcmp.lt.s32.totalorder %v7597, 1
        %vm7617 = vcmp.lt.s32.totalorder %v7597, 2
        %vm7618 = vcmp.lt.s32.totalorder %v7597, 3
        %vm7619 = vcmp.lt.s32.totalorder %v7597, 4
        %v7620 = vsel %vm7616, %v7600, %v7603
        %v7621 = vsel %vm7619, %v7609, 2102212464
        %v7622 = vsel %vm7618, %v7606, %v7621
        %v7623 = vsel %vm7617, %v7620, %v7622
        %v7624 = vsel %vm7616, %v7603, %v7606
        %v7625 = vsel %vm7619, %v7612, 920167782
        %v7626 = vsel %vm7618, %v7609, %v7625
        %v7627 = vsel %vm7617, %v7624, %v7626
        %v7628 = vsel %vm7616, %v7606, %v7609
        %v7629 = vsel %vm7619, %v7615, 1326507024
        %v7630 = vsel %vm7618, %v7612, %v7629
        %v7631 = vsel %vm7617, %v7628, %v7630
        %v7632 = vshll.u32 %v7592, 8
        %v7633 = vmul.u32.u64.compose %v7632, %v7631
        %v7634 = vextract.low.u32 %v7633
        %v7635 = vextract.high.u32 %v7633
        %v7636 = vmul.u32.u64.compose %v7632, %v7627
        %v7637 = vextract.low.u32 %v7636
        %v7638 = vextract.high.u32 %v7636
        %v7639 = vmul.u32 %v7632, %v7623
        %v7640 = vadd.s32 %v7635, %v7637
        %vm7641 = vc.u32 %v7635, %v7637
        %v7642 = vadd.s32 %v7638, 1
        %v7643 = vsel %vm7641, %v7642, %v7638
        %v7644 = vadd.s32 %v7639, %v7643
        %v7645 = vadd.s32 %v7644, 536870912
        %v7646 = vshrl.u32 %v7645, 30
        %v7647 = vshll.u32 %v7646, 30
        %v7648 = vsub.s32 %v7644, %v7647
        %vm7649 = vcmp.lt.s32.totalorder %v7648, 0
        %v7650 = vsub.s32 0, %v7648
        %v7651 = vsel %vm7649, %v7650, %v7648
        %v7652 = vclz %v7651
        %v7653 = vsub.s32 %v7652, 2
        %vm7654 = vcmp.gt.s32.totalorder 0, %v7653
        %v7655 = vsel %vm7654, 0, %v7653
        %v7656 = vsub.s32 32, %v7655
        %v7657 = vshll.u32 %v7648, %v7655
        %v7658 = vshrl.u32 %v7640, %v7656
        %v7659 = vor.u32 %v7657, %v7658
        %v7660 = vsub.s32 4294967266, %v7655
        %v7661 = vadd.s32 %v7660, 127
        %v7662 = vshll.u32 %v7661, 23
        %v7663 = vor.u32 4788187, %v7662
        %v7664 = vand.u32 2147483647, %v7663
        %v7666 = vcvt.s32.f32 %v7659
        %v7667 = vmul.f32 %v7666, %v7664
        %v7668 = vxor.u32 %v7667, 2147483648
        %v7669 = vsel %vm7586, %v7668, %v7667
        %v7670 = vsub.s32 4, %v7646
        %v7671 = vsel %vm7586, %v7670, %v7646
        %v7672 = vsel %vm7585, %v4460, %v7669
        %v7673 = vsel %vm7585, 0, %v7671
        %v7674 = vcosq.f32.pop %v7672
        %v7675 = vsinq.f32.pop %v7672
        %vm7676 = vweird.f32 %v4460
        %v7677 = vadd.s32 %v7673, 3
        %v7678 = vand.u32 %v7677, 3
        %vm7679 = vcmp.lt.s32.totalorder %v7678, 2
        %vm7680 = vcmp.eq.s32.totalorder %v7678, 0
        %v7681 = vxor.u32 %v7675, 2147483648
        %v7682 = vsel %vm7680, %v7674, %v7681
        %vm7683 = vcmp.eq.s32.totalorder %v7678, 2
        %v7684 = vxor.u32 %v7674, 2147483648
        %v7685 = vsel %vm7683, %v7684, %v7675
        %v7686 = vsel %vm7679, %v7682, %v7685
        %v7687 = vsel %vm7676, nan, %v7686
        %v7688 = vand.u32 2147483647, %v4462
        %vm7689 = vcmp.le.f32.partialorder %v7688, 0.7853982
        %vm7690 = vcmp.lt.s32.totalorder %v4462, 0
        %v7691 = vand.u32 %v4462, 2139095040
        %v7692 = vshrl.u32 %v7691, 23
        %v7693 = vsub.s32 %v7692, 127
        %v7694 = vand.u32 2147483647, %v4462
        %v7695 = vand.u32 %v7694, 8388607
        %v7696 = vor.u32 %v7695, 8388608
        %v7697 = vsub.s32 0, %v7696
        %v7698 = vadd.s32 %v7693, 1
        %vm7699 = vcmp.gt.s32.totalorder %v7698, 0
        %v7700 = vsel %vm7699, %v7698, 0
        %v7701 = vshrl.u32 %v7700, 5
        %v7702 = vand.u32 %v7700, 31
        %v7703 = vsub.s32 32, %v7702
        %v7704 = vshrl.u32 683565275, %v7703
        %v7705 = vshll.u32 683565275, %v7702
        %v7706 = vshrl.u32 2475754826, %v7703
        %v7707 = vor.u32 %v7705, %v7706
        %v7708 = vshll.u32 2475754826, %v7702
        %v7709 = vshrl.u32 2131351028, %v7703
        %v7710 = vor.u32 %v7708, %v7709
        %v7711 = vshll.u32 2131351028, %v7702
        %v7712 = vshrl.u32 2102212464, %v7703
        %v7713 = vor.u32 %v7711, %v7712
        %v7714 = vshll.u32 2102212464, %v7702
        %v7715 = vshrl.u32 920167782, %v7703
        %v7716 = vor.u32 %v7714, %v7715
        %v7717 = vshll.u32 920167782, %v7702
        %v7718 = vshrl.u32 1326507024, %v7703
        %v7719 = vor.u32 %v7717, %v7718
        %vm7720 = vcmp.lt.s32.totalorder %v7701, 1
        %vm7721 = vcmp.lt.s32.totalorder %v7701, 2
        %vm7722 = vcmp.lt.s32.totalorder %v7701, 3
        %vm7723 = vcmp.lt.s32.totalorder %v7701, 4
        %v7724 = vsel %vm7720, %v7704, %v7707
        %v7725 = vsel %vm7723, %v7713, 2102212464
        %v7726 = vsel %vm7722, %v7710, %v7725
        %v7727 = vsel %vm7721, %v7724, %v7726
        %v7728 = vsel %vm7720, %v7707, %v7710
        %v7729 = vsel %vm7723, %v7716, 920167782
        %v7730 = vsel %vm7722, %v7713, %v7729
        %v7731 = vsel %vm7721, %v7728, %v7730
        %v7732 = vsel %vm7720, %v7710, %v7713
        %v7733 = vsel %vm7723, %v7719, 1326507024
        %v7734 = vsel %vm7722, %v7716, %v7733
        %v7735 = vsel %vm7721, %v7732, %v7734
        %v7736 = vshll.u32 %v7696, 8
        %v7737 = vmul.u32.u64.compose %v7736, %v7735
        %v7738 = vextract.low.u32 %v7737
        %v7739 = vextract.high.u32 %v7737
        %v7740 = vmul.u32.u64.compose %v7736, %v7731
        %v7741 = vextract.low.u32 %v7740
        %v7742 = vextract.high.u32 %v7740
        %v7743 = vmul.u32 %v7736, %v7727
        %v7744 = vadd.s32 %v7739, %v7741
        %vm7745 = vc.u32 %v7739, %v7741
        %v7746 = vadd.s32 %v7742, 1
        %v7747 = vsel %vm7745, %v7746, %v7742
        %v7748 = vadd.s32 %v7743, %v7747
        %v7749 = vadd.s32 %v7748, 536870912
        %v7750 = vshrl.u32 %v7749, 30
        %v7751 = vshll.u32 %v7750, 30
        %v7752 = vsub.s32 %v7748, %v7751
        %vm7753 = vcmp.lt.s32.totalorder %v7752, 0
        %v7754 = vsub.s32 0, %v7752
        %v7755 = vsel %vm7753, %v7754, %v7752
        %v7756 = vclz %v7755
        %v7757 = vsub.s32 %v7756, 2
        %vm7758 = vcmp.gt.s32.totalorder 0, %v7757
        %v7759 = vsel %vm7758, 0, %v7757
        %v7760 = vsub.s32 32, %v7759
        %v7761 = vshll.u32 %v7752, %v7759
        %v7762 = vshrl.u32 %v7744, %v7760
        %v7763 = vor.u32 %v7761, %v7762
        %v7764 = vsub.s32 4294967266, %v7759
        %v7765 = vadd.s32 %v7764, 127
        %v7766 = vshll.u32 %v7765, 23
        %v7767 = vor.u32 4788187, %v7766
        %v7768 = vand.u32 2147483647, %v7767
        %v7770 = vcvt.s32.f32 %v7763
        %v7771 = vmul.f32 %v7770, %v7768
        %v7772 = vxor.u32 %v7771, 2147483648
        %v7773 = vsel %vm7690, %v7772, %v7771
        %v7774 = vsub.s32 4, %v7750
        %v7775 = vsel %vm7690, %v7774, %v7750
        %v7776 = vsel %vm7689, %v4462, %v7773
        %v7777 = vsel %vm7689, 0, %v7775
        %v7778 = vcosq.f32.pop %v7776
        %v7779 = vsinq.f32.pop %v7776
        %vm7780 = vweird.f32 %v4462
        %v7781 = vadd.s32 %v7777, 3
        %v7782 = vand.u32 %v7781, 3
        %vm7783 = vcmp.lt.s32.totalorder %v7782, 2
        %vm7784 = vcmp.eq.s32.totalorder %v7782, 0
        %v7785 = vxor.u32 %v7779, 2147483648
        %v7786 = vsel %vm7784, %v7778, %v7785
        %vm7787 = vcmp.eq.s32.totalorder %v7782, 2
        %v7788 = vxor.u32 %v7778, 2147483648
        %v7789 = vsel %vm7787, %v7788, %v7779
        %v7790 = vsel %vm7783, %v7786, %v7789
        %v7791 = vsel %vm7780, nan, %v7790
        %v7792 = vld [vmem:[%s5] sm:$0x7]
        %v7794 = vsel %vm4095, %v7792, 0
        %7796 = vmatprep.subr.mxu0 %v4671
        %7797 = vmatpush1.msra.mxu0 %v4567
        %7798 = vmatprep.subr.mxu0 %v5503
        %7799 = vmatpush1.msra.mxu0 %v5399
        %7800 = vmatprep.subr.mxu0 %v6335
        %7801 = vmatpush1.msra.mxu0 %v6231
        %7802 = vmatprep.subr.mxu0 %v7167
        %7803 = vmatpush1.msra.mxu0 %v7063
        %7804 = vmatprep.subr.mxu0 0.0
        %7805 = vmatpush1.msra.mxu0 0.0
        %7806 = vmatprep.subr.mxu0 0.0
        %7807 = vmatpush1.msra.mxu0 0.0
        %7808 = vmatprep.subr.mxu0 0.0
        %7809 = vmatpush1.msra.mxu0 0.0
        %7810 = vmatprep.subr.mxu0 0.0
        %7811 = vmatpush1.msra.mxu0 0.0
        %7812 = vmatprep.subr.mxu0 0.0
        %7813 = vmatpush1.msra.mxu0 0.0
        %7814 = vmatprep.subr.mxu0 0.0
        %7815 = vmatpush1.msra.mxu0 0.0
        %7816 = vmatprep.subr.mxu0 0.0
        %7817 = vmatpush1.msra.mxu0 0.0
        %7818 = vmatprep.subr.mxu0 0.0
        %7819 = vmatpush1.msra.mxu0 0.0
        %7820 = vmatprep.subr.mxu0 0.0
        %7821 = vmatpush1.msra.mxu0 0.0
        %7822 = vmatprep.subr.mxu0 0.0
        %7823 = vmatpush1.msra.mxu0 0.0
        %7824 = vmatprep.subr.mxu0 0.0
        %7825 = vmatpush1.msra.mxu0 0.0
        %7826 = vmatprep.subr.mxu0 0.0
        %7827 = vmatpush1.msra.mxu0 0.0
        %7828 = vmatprep.subr.mxu0 0.0
        %7829 = vmatpush1.msra.mxu0 0.0
        %7830 = vmatprep.subr.mxu0 0.0
        %7831 = vmatpush1.msra.mxu0 0.0
        %7832 = vmatprep.subr.mxu0 0.0
        %7833 = vmatpush1.msra.mxu0 0.0
        %7834 = vmatprep.subr.mxu0 0.0
        %7835 = vmatpush1.msra.mxu0 0.0
        %7836 = vmatprep.subr.mxu0 0.0
        %7837 = vmatpush1.msra.mxu0 0.0
        %7838 = vmatprep.subr.mxu0 0.0
        %7839 = vmatpush1.msra.mxu0 0.0
        %7840 = vmatprep.subr.mxu0 0.0
        %7841 = vmatpush1.msra.mxu0 0.0
        %7842 = vmatprep.subr.mxu0 0.0
        %7843 = vmatpush1.msra.mxu0 0.0
        %7844 = vmatprep.subr.mxu0 0.0
        %7845 = vmatpush1.msra.mxu0 0.0
        %7846 = vmatprep.subr.mxu0 0.0
        %7847 = vmatpush1.msra.mxu0 0.0
        %7848 = vmatprep.subr.mxu0 0.0
        %7849 = vmatpush1.msra.mxu0 0.0
        %7850 = vmatprep.subr.mxu0 0.0
        %7851 = vmatpush1.msra.mxu0 0.0
        %7852 = vmatprep.subr.mxu0 0.0
        %7853 = vmatpush1.msra.mxu0 0.0
        %7854 = vmatprep.subr.mxu0 0.0
        %7855 = vmatpush1.msra.mxu0 0.0
        %7856 = vmatprep.subr.mxu0 0.0
        %7857 = vmatpush1.msra.mxu0 0.0
        %7858 = vmatprep.subr.mxu0 0.0
        %7859 = vmatpush1.msra.mxu0 0.0
        %7860 = vmatprep.mubr.f32.mxu0 0.0
        %7861 = vmatmul.mubr.f32.gmra.mrb[0].mxu0 %v7794
        %v7862 = vpop.f32.mrb[0].mxu0
        %v7863 = vadd.f32 0.0, %v7862
        %v7864 = vpop.f32.mrb[0].mxu0
        %v7865 = vadd.f32 0.0, %v7864
        %7866 = vdwg.mxu0
        %7867 = vmatprep.subr.mxu0 %v4879
        %7868 = vmatpush1.msra.mxu0 %v4775
        %7869 = vmatprep.subr.mxu0 %v5711
        %7870 = vmatpush1.msra.mxu0 %v5607
        %7871 = vmatprep.subr.mxu0 %v6543
        %7872 = vmatpush1.msra.mxu0 %v6439
        %7873 = vmatprep.subr.mxu0 %v7375
        %7874 = vmatpush1.msra.mxu0 %v7271
        %7875 = vmatprep.subr.mxu0 0.0
        %7876 = vmatpush1.msra.mxu0 0.0
        %7877 = vmatprep.subr.mxu0 0.0
        %7878 = vmatpush1.msra.mxu0 0.0
        %7879 = vmatprep.subr.mxu0 0.0
        %7880 = vmatpush1.msra.mxu0 0.0
        %7881 = vmatprep.subr.mxu0 0.0
        %7882 = vmatpush1.msra.mxu0 0.0
        %7883 = vmatprep.subr.mxu0 0.0
        %7884 = vmatpush1.msra.mxu0 0.0
        %7885 = vmatprep.subr.mxu0 0.0
        %7886 = vmatpush1.msra.mxu0 0.0
        %7887 = vmatprep.subr.mxu0 0.0
        %7888 = vmatpush1.msra.mxu0 0.0
        %7889 = vmatprep.subr.mxu0 0.0
        %7890 = vmatpush1.msra.mxu0 0.0
        %7891 = vmatprep.subr.mxu0 0.0
        %7892 = vmatpush1.msra.mxu0 0.0
        %7893 = vmatprep.subr.mxu0 0.0
        %7894 = vmatpush1.msra.mxu0 0.0
        %7895 = vmatprep.subr.mxu0 0.0
        %7896 = vmatpush1.msra.mxu0 0.0
        %7897 = vmatprep.subr.mxu0 0.0
        %7898 = vmatpush1.msra.mxu0 0.0
        %7899 = vmatprep.subr.mxu0 0.0
        %7900 = vmatpush1.msra.mxu0 0.0
        %7901 = vmatprep.subr.mxu0 0.0
        %7902 = vmatpush1.msra.mxu0 0.0
        %7903 = vmatprep.subr.mxu0 0.0
        %7904 = vmatpush1.msra.mxu0 0.0
        %7905 = vmatprep.subr.mxu0 0.0
        %7906 = vmatpush1.msra.mxu0 0.0
        %7907 = vmatprep.subr.mxu0 0.0
        %7908 = vmatpush1.msra.mxu0 0.0
        %7909 = vmatprep.subr.mxu0 0.0
        %7910 = vmatpush1.msra.mxu0 0.0
        %7911 = vmatprep.subr.mxu0 0.0
        %7912 = vmatpush1.msra.mxu0 0.0
        %7913 = vmatprep.subr.mxu0 0.0
        %7914 = vmatpush1.msra.mxu0 0.0
        %7915 = vmatprep.subr.mxu0 0.0
        %7916 = vmatpush1.msra.mxu0 0.0
        %7917 = vmatprep.subr.mxu0 0.0
        %7918 = vmatpush1.msra.mxu0 0.0
        %7919 = vmatprep.subr.mxu0 0.0
        %7920 = vmatpush1.msra.mxu0 0.0
        %7921 = vmatprep.subr.mxu0 0.0
        %7922 = vmatpush1.msra.mxu0 0.0
        %7923 = vmatprep.subr.mxu0 0.0
        %7924 = vmatpush1.msra.mxu0 0.0
        %7925 = vmatprep.subr.mxu0 0.0
        %7926 = vmatpush1.msra.mxu0 0.0
        %7927 = vmatprep.subr.mxu0 0.0
        %7928 = vmatpush1.msra.mxu0 0.0
        %7929 = vmatprep.subr.mxu0 0.0
        %7930 = vmatpush1.msra.mxu0 0.0
        %7931 = vmatprep.mubr.f32.mxu0 0.0
        %7932 = vmatmul.mubr.f32.gmra.mrb[0].mxu0 %v7794
        %v7933 = vpop.f32.mrb[0].mxu0
        %v7934 = vadd.f32 0.0, %v7933
        %v7935 = vpop.f32.mrb[0].mxu0
        %v7936 = vadd.f32 0.0, %v7935
        %7937 = vdwg.mxu0
        %7938 = vmatprep.subr.mxu0 %v5087
        %7939 = vmatpush1.msra.mxu0 %v4983
        %7940 = vmatprep.subr.mxu0 %v5919
        %7941 = vmatpush1.msra.mxu0 %v5815
        %7942 = vmatprep.subr.mxu0 %v6751
        %7943 = vmatpush1.msra.mxu0 %v6647
        %7944 = vmatprep.subr.mxu0 %v7583
        %7945 = vmatpush1.msra.mxu0 %v7479
        %7946 = vmatprep.subr.mxu0 0.0
        %7947 = vmatpush1.msra.mxu0 0.0
        %7948 = vmatprep.subr.mxu0 0.0
        %7949 = vmatpush1.msra.mxu0 0.0
        %7950 = vmatprep.subr.mxu0 0.0
        %7951 = vmatpush1.msra.mxu0 0.0
        %7952 = vmatprep.subr.mxu0 0.0
        %7953 = vmatpush1.msra.mxu0 0.0
        %7954 = vmatprep.subr.mxu0 0.0
        %7955 = vmatpush1.msra.mxu0 0.0
        %7956 = vmatprep.subr.mxu0 0.0
        %7957 = vmatpush1.msra.mxu0 0.0
        %7958 = vmatprep.subr.mxu0 0.0
        %7959 = vmatpush1.msra.mxu0 0.0
        %7960 = vmatprep.subr.mxu0 0.0
        %7961 = vmatpush1.msra.mxu0 0.0
        %7962 = vmatprep.subr.mxu0 0.0
        %7963 = vmatpush1.msra.mxu0 0.0
        %7964 = vmatprep.subr.mxu0 0.0
        %7965 = vmatpush1.msra.mxu0 0.0
        %7966 = vmatprep.subr.mxu0 0.0
        %7967 = vmatpush1.msra.mxu0 0.0
        %7968 = vmatprep.subr.mxu0 0.0
        %7969 = vmatpush1.msra.mxu0 0.0
        %7970 = vmatprep.subr.mxu0 0.0
        %7971 = vmatpush1.msra.mxu0 0.0
        %7972 = vmatprep.subr.mxu0 0.0
        %7973 = vmatpush1.msra.mxu0 0.0
        %7974 = vmatprep.subr.mxu0 0.0
        %7975 = vmatpush1.msra.mxu0 0.0
        %7976 = vmatprep.subr.mxu0 0.0
        %7977 = vmatpush1.msra.mxu0 0.0
        %7978 = vmatprep.subr.mxu0 0.0
        %7979 = vmatpush1.msra.mxu0 0.0
        %7980 = vmatprep.subr.mxu0 0.0
        %7981 = vmatpush1.msra.mxu0 0.0
        %7982 = vmatprep.subr.mxu0 0.0
        %7983 = vmatpush1.msra.mxu0 0.0
        %7984 = vmatprep.subr.mxu0 0.0
        %7985 = vmatpush1.msra.mxu0 0.0
        %7986 = vmatprep.subr.mxu0 0.0
        %7987 = vmatpush1.msra.mxu0 0.0
        %7988 = vmatprep.subr.mxu0 0.0
        %7989 = vmatpush1.msra.mxu0 0.0
        %7990 = vmatprep.subr.mxu0 0.0
        %7991 = vmatpush1.msra.mxu0 0.0
        %7992 = vmatprep.subr.mxu0 0.0
        %7993 = vmatpush1.msra.mxu0 0.0
        %7994 = vmatprep.subr.mxu0 0.0
        %7995 = vmatpush1.msra.mxu0 0.0
        %7996 = vmatprep.subr.mxu0 0.0
        %7997 = vmatpush1.msra.mxu0 0.0
        %7998 = vmatprep.subr.mxu0 0.0
        %7999 = vmatpush1.msra.mxu0 0.0
        %8000 = vmatprep.subr.mxu0 0.0
        %8001 = vmatpush1.msra.mxu0 0.0
        %8002 = vmatprep.mubr.f32.mxu0 0.0
        %8003 = vmatmul.mubr.f32.gmra.mrb[0].mxu0 %v7794
        %v8004 = vpop.f32.mrb[0].mxu0
        %v8005 = vadd.f32 0.0, %v8004
        %v8006 = vpop.f32.mrb[0].mxu0
        %v8007 = vadd.f32 0.0, %v8006
        %8008 = vdwg.mxu0
        %8009 = vmatprep.subr.mxu0 %v5295
        %8010 = vmatpush1.msra.mxu0 %v5191
        %8011 = vmatprep.subr.mxu0 %v6127
        %8012 = vmatpush1.msra.mxu0 %v6023
        %8013 = vmatprep.subr.mxu0 %v6959
        %8014 = vmatpush1.msra.mxu0 %v6855
        %8015 = vmatprep.subr.mxu0 %v7791
        %8016 = vmatpush1.msra.mxu0 %v7687
        %8017 = vmatprep.subr.mxu0 0.0
        %8018 = vmatpush1.msra.mxu0 0.0
        %8019 = vmatprep.subr.mxu0 0.0
        %8020 = vmatpush1.msra.mxu0 0.0
        %8021 = vmatprep.subr.mxu0 0.0
        %8022 = vmatpush1.msra.mxu0 0.0
        %8023 = vmatprep.subr.mxu0 0.0
        %8024 = vmatpush1.msra.mxu0 0.0
        %8025 = vmatprep.subr.mxu0 0.0
        %8026 = vmatpush1.msra.mxu0 0.0
        %8027 = vmatprep.subr.mxu0 0.0
        %8028 = vmatpush1.msra.mxu0 0.0
        %8029 = vmatprep.subr.mxu0 0.0
        %8030 = vmatpush1.msra.mxu0 0.0
        %8031 = vmatprep.subr.mxu0 0.0
        %8032 = vmatpush1.msra.mxu0 0.0
        %8033 = vmatprep.subr.mxu0 0.0
        %8034 = vmatpush1.msra.mxu0 0.0
        %8035 = vmatprep.subr.mxu0 0.0
        %8036 = vmatpush1.msra.mxu0 0.0
        %8037 = vmatprep.subr.mxu0 0.0
        %8038 = vmatpush1.msra.mxu0 0.0
        %8039 = vmatprep.subr.mxu0 0.0
        %8040 = vmatpush1.msra.mxu0 0.0
        %8041 = vmatprep.subr.mxu0 0.0
        %8042 = vmatpush1.msra.mxu0 0.0
        %8043 = vmatprep.subr.mxu0 0.0
        %8044 = vmatpush1.msra.mxu0 0.0
        %8045 = vmatprep.subr.mxu0 0.0
        %8046 = vmatpush1.msra.mxu0 0.0
        %8047 = vmatprep.subr.mxu0 0.0
        %8048 = vmatpush1.msra.mxu0 0.0
        %8049 = vmatprep.subr.mxu0 0.0
        %8050 = vmatpush1.msra.mxu0 0.0
        %8051 = vmatprep.subr.mxu0 0.0
        %8052 = vmatpush1.msra.mxu0 0.0
        %8053 = vmatprep.subr.mxu0 0.0
        %8054 = vmatpush1.msra.mxu0 0.0
        %8055 = vmatprep.subr.mxu0 0.0
        %8056 = vmatpush1.msra.mxu0 0.0
        %8057 = vmatprep.subr.mxu0 0.0
        %8058 = vmatpush1.msra.mxu0 0.0
        %8059 = vmatprep.subr.mxu0 0.0
        %8060 = vmatpush1.msra.mxu0 0.0
        %8061 = vmatprep.subr.mxu0 0.0
        %8062 = vmatpush1.msra.mxu0 0.0
        %8063 = vmatprep.subr.mxu0 0.0
        %8064 = vmatpush1.msra.mxu0 0.0
        %8065 = vmatprep.subr.mxu0 0.0
        %8066 = vmatpush1.msra.mxu0 0.0
        %8067 = vmatprep.subr.mxu0 0.0
        %8068 = vmatpush1.msra.mxu0 0.0
        %8069 = vmatprep.subr.mxu0 0.0
        %8070 = vmatpush1.msra.mxu0 0.0
        %8071 = vmatprep.subr.mxu0 0.0
        %8072 = vmatpush1.msra.mxu0 0.0
        %8073 = vmatprep.mubr.f32.mxu0 0.0
        %8074 = vmatmul.mubr.f32.gmra.mrb[0].mxu0 %v7794
        %v8075 = vpop.f32.mrb[0].mxu0
        %v8076 = vadd.f32 0.0, %v8075
        %v8077 = vpop.f32.mrb[0].mxu0
        %v8078 = vadd.f32 0.0, %v8077
        %8079 = vdwg.mxu0
        %v8088 = vcombine.low %v7863, %v7865
        %v8089 = vcombine.low %v7934, %v7936
        %v8090 = vcombine.low %v8005, %v8007
        %v8091 = vcombine.low %v8076, %v8078
        %8096 = vst [vmem:[%s305] sm:$0x77] %v8088
        %8097 = vst [vmem:[%s305 + $0x8] sm:$0x77] %v8089
        %8098 = vst [vmem:[%s305 + $0x10] sm:$0x77] %v8090
        %8099 = vst [vmem:[%s305 + $0x18] sm:$0x77] %v8091
        %v8100 = vtanh.pop %v7863
        %v8101 = vtanh.pop %v7865
        %v8102 = vtanh.pop %v7934
        %v8103 = vtanh.pop %v7936
        %v8104 = vtanh.pop %v8005
        %v8105 = vtanh.pop %v8007
        %v8106 = vtanh.pop %v8076
        %v8107 = vtanh.pop %v8078
        %v8116 = vcombine.low %v8100, %v8101
        %v8117 = vcombine.low %v8102, %v8103
        %v8118 = vcombine.low %v8104, %v8105
        %v8119 = vcombine.low %v8106, %v8107
        %8124 = vst [vmem:[%s298] sm:$0x77] %v8116
        %8125 = vst [vmem:[%s298 + $0x8] sm:$0x77] %v8117
        %8126 = vst [vmem:[%s298 + $0x10] sm:$0x77] %v8118
        %8127 = vst [vmem:[%s298 + $0x18] sm:$0x77] %v8119
        %s8128 = sand.u32 %s167, 1
        %s8129 = scalar_lea.sflag [#allocation4], %s8128
        %s8130 = sand.u32 %s167, 1
        %s8131 = smul.addr %s8130, 32
        %s8132 = scalar_lea.vmem [#allocation5], %s8131
        %s8133 = sand.u32 %s193, 1
        %s8134 = scalar_lea.sflag [#allocation7], %s8133
        %s8135 = sand.u32 %s193, 1
        %s8136 = smul.addr %s8135, 32
        %s8137 = scalar_lea.vmem [#allocation6], %s8136
        // Predicated region
        $region49: #{tpu_custom_call.1} parent=43 // pred_check
          %p8138 = pneg %p177
        $region50: #{tpu_custom_call.1} parent=43 // pred_check_branch
          %8140 = sbr.rel (%p8138) target = $region52
        $region51: #{tpu_custom_call.1} parent=43 // pred_region
          %s8141 = smul.u32 8, %s28
          %s8143 = ssub.s32 512, 512
          %8144 = vsyncadd %s8129, %s8143
          %s8145 = smul.addr %s8141, 64
          %s8146 = scalar_lea.hbm %s6, %s8145
          %s8148 = sshll.u32 %s8132, 4
          %s8149 = int_to_ptr.vmem [resolvable:$true] %s8148
          %8151 = dma.vmem_to_hbm [thread:$0]  %s8149, 512, %s8146, %s8129
        $region52: #{tpu_custom_call.1} parent=43 // pred_fallthru
          _
        // Predicated region
        $region53: #{tpu_custom_call.1} parent=43 // pred_check
          %p8152 = pneg %p203
        $region54: #{tpu_custom_call.1} parent=43 // pred_check_branch
          %8154 = sbr.rel (%p8152) target = $region56
        $region55: #{tpu_custom_call.1} parent=43 // pred_region
          %s8155 = smul.u32 8, %s28
          %s8157 = ssub.s32 512, 512
          %8158 = vsyncadd %s8134, %s8157
          %s8159 = smul.addr %s8155, 64
          %s8160 = scalar_lea.hbm %s7, %s8159
          %s8162 = sshll.u32 %s8137, 4
          %s8163 = int_to_ptr.vmem [resolvable:$true] %s8162
          %8165 = dma.vmem_to_hbm [thread:$0]  %s8163, 512, %s8160, %s8134
        $region56: #{tpu_custom_call.1} parent=43 // pred_fallthru
          _
      $region44: #{tpu_custom_call.1} parent=5 // pred_fallthru
        _
      %p8166 = scmp.le.s32.totalorder 2, %s23
      // Predicated region
      $region57: #{tpu_custom_call.1} parent=5 // pred_check
        %p8167 = pneg %p8166
      $region58: #{tpu_custom_call.1} parent=5 // pred_check_branch
        %8169 = sbr.rel (%p8167) target = $region60
      $region59: #{tpu_custom_call.1} parent=5 // pred_region
        %s8170 = ssub.s32 %s23, 2
        // Predicated region
        $region61: #{tpu_custom_call.1} parent=59 // pred_check
          %p8171 = pneg %p183
        $region62: #{tpu_custom_call.1} parent=59 // pred_check_branch
          %8173 = sbr.rel (%p8171) target = $region64
        $region63: #{tpu_custom_call.1} parent=59 // pred_region
          %s8174 = sand.u32 %s168, 1
          %s8175 = scalar_lea.sflag [#allocation4], %s8174
          %s8176 = sand.u32 %s168, 1
          %s8177 = smul.addr %s8176, 32
          %s8178 = scalar_lea.vmem [#allocation5], %s8177
          %8179 = dma.done %s8175, 512
        $region64: #{tpu_custom_call.1} parent=59 // pred_fallthru
          _
        // Predicated region
        $region65: #{tpu_custom_call.1} parent=59 // pred_check
          %p8180 = pneg %p209
        $region66: #{tpu_custom_call.1} parent=59 // pred_check_branch
          %8182 = sbr.rel (%p8180) target = $region68
        $region67: #{tpu_custom_call.1} parent=59 // pred_region
          %s8183 = sand.u32 %s194, 1
          %s8184 = scalar_lea.sflag [#allocation7], %s8183
          %s8185 = sand.u32 %s194, 1
          %s8186 = smul.addr %s8185, 32
          %s8187 = scalar_lea.vmem [#allocation6], %s8186
          %8188 = dma.done %s8184, 512
        $region68: #{tpu_custom_call.1} parent=59 // pred_fallthru
          _
      $region60: #{tpu_custom_call.1} parent=5 // pred_fallthru
        _
    $region6: #{tpu_custom_call.1} parent=1 // loop_footer
      %s27 = sadd.s32 1, %s23
    $region7: #{tpu_custom_call.1} parent=1 // loop_footer_branch
      %22 = sbr.rel target = $region3
    $region8: #{tpu_custom_call.1} parent=1 // loop_exit
      _
    %8189 = vsyncpa [#allocation3], 1
    %s8190 = scalar_lea.sflag [#allocation3], 1
    %8191 = vsyncpa %s8190, 1
    %8192 = vsyncpa [#allocation4], 1
    %s8193 = scalar_lea.sflag [#allocation4], 1
    %8194 = vsyncpa %s8193, 1
    %8195 = vsyncpa [#allocation7], 1
    %s8196 = scalar_lea.sflag [#allocation7], 1
    %8197 = vsyncpa %s8196, 1

</llo_original>
